<compile_context>
chip_gen: v6e
topology: v6e:2x2x1
jax: 0.10.0
libtpu: 0.0.40
codegen_flags: <defaults>
</compile_context>

<pallas_src>
import math
from functools import partial

import jax
import jax.numpy as jnp
from jax.experimental import pallas as pl
from jax.experimental.pallas import tpu as pltpu

NEG_BIG = -1e18          # python float, NOT a jnp array (avoids captured-constant error)
LN_EPS = 1e-6


def _round_up(x, m):
    return (x + m - 1) // m * m


def _layernorm(x, w, b, eps=LN_EPS):
    mu = jnp.mean(x, axis=-1, keepdims=True)
    xc = x - mu
    var = jnp.mean(xc * xc, axis=-1, keepdims=True)
    return xc * jax.lax.rsqrt(var + eps) * w + b


# --------------------------------------------------------------------------- #
# Fused kernel: one encoder layer per (b, l) grid step; pooling tail at l=L-1.
# Activation slab (G*T, D) carried across the layer axis in VMEM scratch.
# --------------------------------------------------------------------------- #
def _fused_encoder_kernel(H, dh, x_ref, prow_ref, pcol_ref, *refs):
    (ln_a_w, ln_a_b, wqkv, bqkv, wo, bo,
     ln_f_w, ln_f_b, w1, b1, w2, b2) = refs[:12]
    (ln1_w, ln1_b, pk_w, pk_b, pv_w, pv_b, ln2_w_t, ln2_b_t,
     head_expand, head_pool, ff_ln_w, ff_ln_b,
     ff_w1, ff_b1, ff_w2, ff_b2) = refs[12:28]
    feat_ref, blk_ref, x_sc = refs[28], refs[29], refs[30]

    G, T, D = x_ref.shape
    GT = G * T
    f32 = jnp.float32
    bf16 = jnp.bfloat16
    l = pl.program_id(1)

    key_pad = prow_ref[...] > 0.5            # (G, 1, T)  True == padded key

    # ---- initialize the carried residual stream on the first layer step ----
    @pl.when(l == 0)
    def _():
        x_sc[...] = x_ref[...].reshape(GT, D)

    x = x_sc[...]                             # (GT, D) f32 residual stream

    # ---- one pre-LN transformer encoder layer (weights for layer `l`) ------
    xn = _layernorm(x, ln_a_w[0], ln_a_b[0])
    # fused QKV projection: one N=3D MXU matmul, bf16 operands, f32 accumulate
    qkv = jnp.dot(xn.astype(bf16), wqkv[0], preferred_element_type=f32) + bqkv[0]
    q3 = qkv[:, :D].reshape(G, T, D).astype(bf16)        # 1/sqrt(dh) folded on host
    k3 = qkv[:, D:2 * D].reshape(G, T, D).astype(bf16)
    v3 = qkv[:, 2 * D:].reshape(G, T, D).astype(bf16)

    ctx_heads = []
    for h in range(H):                        # static loop over heads
        sl = slice(h * dh, (h + 1) * dh)
        s = jax.lax.dot_general(q3[:, :, sl], k3[:, :, sl],
                                (((2,), (2,)), ((0,), (0,))),
                                preferred_element_type=f32)        # (G,T,T) f32
        s = jnp.where(key_pad, NEG_BIG, s)
        m = jnp.max(s, axis=-1, keepdims=True)
        e = jnp.exp(s - m)
        p = e * pl.reciprocal(jnp.sum(e, axis=-1, keepdims=True), approx=True)
        ctx_heads.append(
            jax.lax.dot_general(p.astype(bf16), v3[:, :, sl],
                                (((2,), (1,)), ((0,), (0,))),
                                preferred_element_type=f32))       # (G,T,dh)
    # single K=D output projection (no per-head small-K matmuls)
    ctx = jnp.concatenate(ctx_heads, axis=-1).reshape(GT, D)
    attn = jnp.dot(ctx.astype(bf16), wo[0], preferred_element_type=f32)
    x = attn + bo[0] + x                      # dropout == identity

    xn2 = _layernorm(x, ln_f_w[0], ln_f_b[0])
    hid = jnp.maximum(
        jnp.dot(xn2.astype(bf16), w1[0], preferred_element_type=f32) + b1[0], 0.0)
    x = jnp.dot(hid.astype(bf16), w2[0], preferred_element_type=f32) + b2[0] + x

    x_sc[...] = x                             # carry to next layer step

    # ---- tail: layer_norm1 + MultiHeadedPooling + layer_norm2 + FFN --------
    @pl.when(l == pl.num_programs(1) - 1)
    def _():
        tok_pad = pcol_ref[...]               # (G, T, 1)  1.0 == padded token

        wvn = _layernorm(x, ln1_w[...], ln1_b[...])                          # (GT, D)
        wvn_b = wvn.astype(bf16)
        scores = jnp.dot(wvn_b, pk_w[...], preferred_element_type=f32) + pk_b[...]
        vals = jnp.dot(wvn_b, pv_w[...], preferred_element_type=f32) + pv_b[...]

        s3 = jnp.where(tok_pad > 0.5, NEG_BIG, scores.reshape(G, T, H))
        m = jnp.max(s3, axis=1, keepdims=True)
        e = jnp.exp(s3 - m)
        a = e * pl.reciprocal(jnp.sum(e, axis=1, keepdims=True), approx=True)  # (G,T,H)

        # expand per-head weights onto the (rows, D) lane layout and pool (f32)
        a_exp = jnp.dot(a.reshape(GT, H), head_expand[...],
                        preferred_element_type=f32)                          # (GT, D)
        ctx_p = jnp.sum((a_exp * vals).reshape(G, T, D), axis=1)             # (G, D)

        # per-head layer_norm2 over dh-wide lane segments (constant pooling matmul)
        seg_mean = jnp.dot(ctx_p, head_pool[...], preferred_element_type=f32)
        cc = ctx_p - seg_mean
        seg_var = jnp.dot(cc * cc, head_pool[...], preferred_element_type=f32)
        blk = cc * jax.lax.rsqrt(seg_var + LN_EPS) * ln2_w_t[...] + ln2_b_t[...]
        blk_ref[...] = blk.astype(blk_ref.dtype)

        inp = (wvn.reshape(G, T, D) + blk.reshape(G, 1, D)).reshape(GT, D)
        xn_t = _layernorm(inp, ff_ln_w[...], ff_ln_b[...])
        hid_t = jnp.maximum(
            jnp.dot(xn_t.astype(bf16), ff_w1[...], preferred_element_type=f32)
            + ff_b1[...], 0.0)
        out = jnp.dot(hid_t.astype(bf16), ff_w2[...],
                      preferred_element_type=f32) + ff_b2[...] + inp
        out = out.reshape(G, T, D) * (1.0 - tok_pad)        # src_features * mask_hier
        feat_ref[...] = out.astype(feat_ref.dtype)


# --------------------------------------------------------------------------- #
# pallas_call wrapper
# --------------------------------------------------------------------------- #
def _layer_spec(a):
    """Streamed per-layer weight: block (1, ...) indexed by the layer grid axis."""
    nrest = a.ndim - 1
    return pl.BlockSpec((1,) + a.shape[1:], lambda b, l, _n=nrest: (l,) + (0,) * _n)


def _invariant_spec(a):
    """Grid-invariant (tail) weight: full block, same index for all grid steps."""
    n = a.ndim
    return pl.BlockSpec(a.shape, lambda b, l, _n=n: (0,) * _n)


def _default_vmem_limit():
    # Per-generation sizing: ~3/4 of physical VMEM, capped well under v7x's 64 MiB.
    try:
        info = pltpu.get_tpu_info()
        cap = getattr(info, "vmem_capacity_bytes", None)
        if cap:
            return min(int(cap) * 3 // 4, 112 * 1024 * 1024)
    except Exception:
        pass
    return 48 * 1024 * 1024


def fused_encoder_pallas(word_vec, pad_row, pad_col, layer_w, tail_w, *, L, H, dh, G):
    Bp, T, D = word_vec.shape
    weights = list(layer_w) + list(tail_w)

    in_specs = ([pl.BlockSpec((G, T, D), lambda b, l: (b, 0, 0)),
                 pl.BlockSpec((G, 1, T), lambda b, l: (b, 0, 0)),
                 pl.BlockSpec((G, T, 1), lambda b, l: (b, 0, 0))]
                + [_layer_spec(w) for w in layer_w]
                + [_invariant_spec(w) for w in tail_w])
    out_shape = (jax.ShapeDtypeStruct((Bp, T, D), jnp.float32),
                 jax.ShapeDtypeStruct((Bp, D), jnp.float32))
    out_specs = (pl.BlockSpec((G, T, D), lambda b, l: (b, 0, 0)),
                 pl.BlockSpec((G, D), lambda b, l: (b, 0)))
    return pl.pallas_call(
        partial(_fused_encoder_kernel, H, dh),
        out_shape=out_shape,
        grid=(Bp // G, L),                          # layer (carry) axis innermost
        in_specs=in_specs,
        out_specs=out_specs,
        scratch_shapes=[pltpu.VMEM((G * T, D), jnp.float32)],   # carried residual slab
        compiler_params=pltpu.CompilerParams(
            dimension_semantics=("parallel", "arbitrary"),
            vmem_limit_bytes=_default_vmem_limit()),
    )(word_vec, pad_row, pad_col, *weights)


# --------------------------------------------------------------------------- #
# Full forward pass (embedding/pos-enc glue in plain JAX + one fused kernel)
# --------------------------------------------------------------------------- #
def new_transformer_encoder_forward(src, params, *, d_model, heads, padding_idx,
                                    block_rows=32):
    B, NB, NT = src.shape
    dh = d_model // heads
    half = d_model // 2
    Bp = B * NB
    L = len(params["layers"])
    scale = 1.0 / math.sqrt(dh)
    bf16 = jnp.bfloat16

    # glue: embedding gather + hierarchical sinusoidal positional encoding
    emb = params["emb_table"][src]                              # (B, NB, NT, D)
    pe = params["pe"]
    combined = jnp.concatenate(
        [jnp.broadcast_to(pe[:NT][None, None, :, :], (B, NB, NT, half)),
         jnp.broadcast_to(pe[:NB][None, :, None, :], (B, NB, NT, half))], axis=-1)
    emb = emb * math.sqrt(d_model) + combined                   # pos_emb.dropout == identity
    word_vec = emb.reshape(Bp, NT, d_model).astype(jnp.float32)

    pad2d = (src == padding_idx).reshape(Bp, NT).astype(jnp.float32)    # 1.0 == pad

    # pad the batch-row dimension up to a multiple of the per-step block G.
    # (At real sizes pick G so G*NT is a multiple of 128 (v5e) / 256 (v6e/v7x)
    #  and Bp//G >= 2 and even for balanced megacore sharding.)
    G = max(8, min(block_rows, _round_up(Bp, 8)))
    Bp_pad = _round_up(Bp, G)
    if Bp_pad != Bp:
        word_vec = jnp.pad(word_vec, ((0, Bp_pad - Bp), (0, 0), (0, 0)))
        pad_full = jnp.pad(pad2d, ((0, Bp_pad - Bp), (0, 0)), constant_values=1.0)
    else:
        pad_full = pad2d
    pad_row = pad_full[:, None, :]          # (Bp_pad, 1, NT)  key-mask layout
    pad_col = pad_full[:, :, None]          # (Bp_pad, NT, 1)  token-mask layout

    # ---- stack per-layer weights to (L, ...); MXU operands pre-cast to bf16 ----
    def stack(key):
        return jnp.stack([lp[key] for lp in params["layers"]])

    wqkv = jnp.concatenate([stack("wq") * scale, stack("wk"), stack("wv")],
                           axis=-1).astype(bf16)                 # (L, D, 3D)
    bqkv = jnp.concatenate([stack("bq") * scale, stack("bk"), stack("bv")],
                           axis=-1)                              # (L, 1, 3D) f32
    layer_w = [stack("ln_a_w"), stack("ln_a_b"),
               wqkv, bqkv,
               stack("wo").astype(bf16), stack("bo"),
               stack("ln_f_w"), stack("ln_f_b"),
               stack("w1").astype(bf16), stack("b1"),
               stack("w2").astype(bf16), stack("b2")]

    tp = params["tail"]
    eye_h = jnp.eye(heads, dtype=jnp.float32)
    head_expand = jnp.kron(eye_h, jnp.ones((1, dh), jnp.float32))            # (H, D)
    head_pool = jnp.kron(eye_h, jnp.full((dh, dh), 1.0 / dh, jnp.float32))   # (D, D)
    tail_w = [tp["ln1_w"], tp["ln1_b"],
              tp["pk_w"].astype(bf16), tp["pk_b"],
              tp["pv_w"].astype(bf16), tp["pv_b"],
              jnp.tile(tp["ln2_w"], (1, heads)), jnp.tile(tp["ln2_b"], (1, heads)),
              head_expand, head_pool,
              tp["ff_ln_w"], tp["ff_ln_b"],
              tp["ff_w1"].astype(bf16), tp["ff_b1"],
              tp["ff_w2"].astype(bf16), tp["ff_b2"]]

    feats, blk = fused_encoder_pallas(word_vec, pad_row, pad_col, layer_w, tail_w,
                                      L=L, H=heads, dh=dh, G=G)

    block_vec = blk[:Bp].reshape(B, NB, d_model)
    src_features = feats[:Bp].reshape(B, NB, NT, d_model)
    mask_hier = (1.0 - pad2d)[:, :, None]
    return block_vec, src_features, mask_hier


# --------------------------------------------------------------------------- #
# Pure-JAX f32 reference (for correctness check of the kernel)
# --------------------------------------------------------------------------- #
def _ref_forward(src, params, *, d_model, heads, padding_idx):
    B, NB, NT = src.shape
    dh = d_model // heads
    half = d_model // 2
    emb = params["emb_table"][src]
    pe = params["pe"]
    combined = jnp.concatenate(
        [jnp.broadcast_to(pe[:NT][None, None], (B, NB, NT, half)),
         jnp.broadcast_to(pe[:NB][None, :, None], (B, NB, NT, half))], -1)
    x = (emb * math.sqrt(d_model) + combined).reshape(B * NB, NT, d_model)
    pad = (src == padding_idx).reshape(B * NB, NT)
    Bp = x.shape[0]
    for lp in params["layers"]:
        xn = _layernorm(x, lp["ln_a_w"], lp["ln_a_b"])
        q = xn @ lp["wq"] + lp["bq"]
        k = xn @ lp["wk"] + lp["bk"]
        v = xn @ lp["wv"] + lp["bv"]
        split = lambda t: t.reshape(Bp, NT, heads, dh).transpose(0, 2, 1, 3)
        qh, kh, vh = split(q) / math.sqrt(dh), split(k), split(v)
        s = jnp.einsum("bhqd,bhkd->bhqk", qh, kh)
        s = jnp.where(pad[:, None, None, :], -1e18, s)
        a = jax.nn.softmax(s, -1)
        ctx = jnp.einsum("bhqk,bhkd->bhqd", a, vh).transpose(0, 2, 1, 3).reshape(Bp, NT, d_model)
        x = ctx @ lp["wo"] + lp["bo"] + x
        xn2 = _layernorm(x, lp["ln_f_w"], lp["ln_f_b"])
        x = jax.nn.relu(xn2 @ lp["w1"] + lp["b1"]) @ lp["w2"] + lp["b2"] + x
    tp = params["tail"]
    wvn = _layernorm(x, tp["ln1_w"], tp["ln1_b"])
    scores = wvn @ tp["pk_w"] + tp["pk_b"]
    vals = (wvn @ tp["pv_w"] + tp["pv_b"]).reshape(Bp, NT, heads, dh)
    scores = jnp.where(pad[:, :, None], -1e18, scores)
    a = jax.nn.softmax(scores, axis=1)
    ctx = jnp.einsum("bth,bthd->bhd", a, vals)
    ctx = _layernorm(ctx, tp["ln2_w"], tp["ln2_b"])
    block_vec = ctx.reshape(Bp, 1, d_model)
    inp = wvn + block_vec
    xn = _layernorm(inp, tp["ff_ln_w"], tp["ff_ln_b"])
    feats = jax.nn.relu(xn @ tp["ff_w1"] + tp["ff_b1"]) @ tp["ff_w2"] + tp["ff_b2"] + inp
    mask_hier = (~pad).astype(jnp.float32)[:, :, None]
    feats = feats * mask_hier
    return (block_vec.reshape(B, NB, d_model),
            feats.reshape(B, NB, NT, d_model),
            mask_hier)


# --------------------------------------------------------------------------- #
# Deterministic parameter init (linear weights pre-transposed to (in, out))
# --------------------------------------------------------------------------- #
def init_params(key, *, vocab, d_model, heads, d_ff, num_layers, padding_idx, max_len=512):
    dh = d_model // heads
    half = d_model // 2
    keys = iter(jax.random.split(key, 256))

    def w(shape, scale=0.05):
        return (scale * jax.random.normal(next(keys), shape)).astype(jnp.float32)

    ones = lambda shape: jnp.ones(shape, jnp.float32)
    zeros = lambda shape: jnp.zeros(shape, jnp.float32)

    emb_table = w((vocab, d_model), 0.1).at[padding_idx].set(0.0)

    position = jnp.arange(max_len, dtype=jnp.float32)[:, None]
    div_term = jnp.exp(jnp.arange(0, half, 2, dtype=jnp.float32) * -(math.log(10000.0) / half))
    pe = jnp.zeros((max_len, half), jnp.float32)
    pe = pe.at[:, 0::2].set(jnp.sin(position * div_term))
    pe = pe.at[:, 1::2].set(jnp.cos(position * div_term))

    layers = []
    for _ in range(num_layers):
        layers.append(dict(
            ln_a_w=ones((1, d_model)), ln_a_b=zeros((1, d_model)),
            wq=w((d_model, d_model)), bq=w((1, d_model), 0.02),
            wk=w((d_model, d_model)), bk=w((1, d_model), 0.02),
            wv=w((d_model, d_model)), bv=w((1, d_model), 0.02),
            wo=w((d_model, d_model)), bo=w((1, d_model), 0.02),
            ln_f_w=ones((1, d_model)), ln_f_b=zeros((1, d_model)),
            w1=w((d_model, d_ff)), b1=w((1, d_ff), 0.02),
            w2=w((d_ff, d_model)), b2=w((1, d_model), 0.02),
        ))

    tail = dict(
        ln1_w=ones((1, d_model)), ln1_b=zeros((1, d_model)),
        pk_w=w((d_model, heads)), pk_b=w((1, heads), 0.02),
        pv_w=w((d_model, d_model)), pv_b=w((1, d_model), 0.02),
        ln2_w=ones((1, dh)), ln2_b=zeros((1, dh)),
        ff_ln_w=ones((1, d_model)), ff_ln_b=zeros((1, d_model)),
        ff_w1=w((d_model, d_ff)), ff_b1=w((1, d_ff), 0.02),
        ff_w2=w((d_ff, d_model)), ff_b2=w((1, d_model), 0.02),
    )
    return dict(emb_table=emb_table, pe=pe, layers=layers, tail=tail)


if __name__ == "__main__":
    B, NB, NT = 2, 3, 8
    D, H, DFF, L = 32, 4, 64, 2
    VOCAB, PAD_IDX = 50, 0

    root = jax.random.PRNGKey(0)
    k_src, k_par = jax.random.split(root)

    src = jax.random.randint(k_src, (B, NB, NT), 1, VOCAB, dtype=jnp.int32)
    src = src.at[0, 1, 5:].set(PAD_IDX)   # partially padded block
    src = src.at[1, 0, 7:].set(PAD_IDX)   # one padded token
    src = src.at[1, 2, :].set(PAD_IDX)    # fully padded block

    params = init_params(k_par, vocab=VOCAB, d_model=D, heads=H, d_ff=DFF,
                         num_layers=L, padding_idx=PAD_IDX)

    fwd = jax.jit(partial(new_transformer_encoder_forward,
                          d_model=D, heads=H, padding_idx=PAD_IDX))
    block_vec, src_features, mask_hier = fwd(src, params)
    jax.block_until_ready((block_vec, src_features, mask_hier))

    assert block_vec.shape == (B, NB, D)
    assert src_features.shape == (B, NB, NT, D)
    assert mask_hier.shape == (B * NB, NT, 1)

    # bf16 MXU operands + approx reciprocal => slightly looser tolerance than pure f32
    rb, rf, rm = _ref_forward(src, params, d_model=D, heads=H, padding_idx=PAD_IDX)
    assert jnp.allclose(block_vec, rb, rtol=3e-2, atol=3e-2), "block_vec mismatch"
    assert jnp.allclose(src_features, rf, rtol=3e-2, atol=3e-2), "src_features mismatch"
    assert jnp.allclose(mask_hier, rm), "mask_hier mismatch"

    print("KERNEL_OK")
</pallas_src>

<mosaic_0001>
module attributes {stable_mosaic.version = 11 : i64} {
  func.func @_fused_encoder_kernel(%arg0: i32, %arg1: i32, %arg2: memref<8x8x32xf32, #tpu.memory_space<vmem>>, %arg3: memref<8x1x8xf32, #tpu.memory_space<vmem>>, %arg4: memref<8x8x1xf32, #tpu.memory_space<vmem>>, %arg5: memref<1x1x32xf32, #tpu.memory_space<vmem>>, %arg6: memref<1x1x32xf32, #tpu.memory_space<vmem>>, %arg7: memref<1x32x96xbf16, #tpu.memory_space<vmem>>, %arg8: memref<1x1x96xf32, #tpu.memory_space<vmem>>, %arg9: memref<1x32x32xbf16, #tpu.memory_space<vmem>>, %arg10: memref<1x1x32xf32, #tpu.memory_space<vmem>>, %arg11: memref<1x1x32xf32, #tpu.memory_space<vmem>>, %arg12: memref<1x1x32xf32, #tpu.memory_space<vmem>>, %arg13: memref<1x32x64xbf16, #tpu.memory_space<vmem>>, %arg14: memref<1x1x64xf32, #tpu.memory_space<vmem>>, %arg15: memref<1x64x32xbf16, #tpu.memory_space<vmem>>, %arg16: memref<1x1x32xf32, #tpu.memory_space<vmem>>, %arg17: memref<1x32xf32, #tpu.memory_space<vmem>>, %arg18: memref<1x32xf32, #tpu.memory_space<vmem>>, %arg19: memref<32x4xbf16, #tpu.memory_space<vmem>>, %arg20: memref<1x4xf32, #tpu.memory_space<vmem>>, %arg21: memref<32x32xbf16, #tpu.memory_space<vmem>>, %arg22: memref<1x32xf32, #tpu.memory_space<vmem>>, %arg23: memref<1x32xf32, #tpu.memory_space<vmem>>, %arg24: memref<1x32xf32, #tpu.memory_space<vmem>>, %arg25: memref<4x32xf32, #tpu.memory_space<vmem>>, %arg26: memref<32x32xf32, #tpu.memory_space<vmem>>, %arg27: memref<1x32xf32, #tpu.memory_space<vmem>>, %arg28: memref<1x32xf32, #tpu.memory_space<vmem>>, %arg29: memref<32x64xbf16, #tpu.memory_space<vmem>>, %arg30: memref<1x64xf32, #tpu.memory_space<vmem>>, %arg31: memref<64x32xbf16, #tpu.memory_space<vmem>>, %arg32: memref<1x32xf32, #tpu.memory_space<vmem>>, %arg33: memref<8x8x32xf32, #tpu.memory_space<vmem>>, %arg34: memref<8x32xf32, #tpu.memory_space<vmem>>, %arg35: memref<64x32xf32, #tpu.memory_space<vmem>>) attributes {dimension_semantics = [#tpu.dimension_semantics<parallel>, #tpu.dimension_semantics<arbitrary>], iteration_bounds = array<i64: 1, 2>, scalar_prefetch = 0 : i64, scratch_operands = 1 : i64, tpu.core_type = #tpu.core_type<tc>, window_params = [{transform_indices = @transform_0, window_bounds = array<i64: 8, 8, 32>}, {transform_indices = @transform_1, window_bounds = array<i64: 8, 1, 8>}, {transform_indices = @transform_2, window_bounds = array<i64: 8, 8, 1>}, {transform_indices = @transform_3, window_bounds = array<i64: 1, 1, 32>}, {transform_indices = @transform_4, window_bounds = array<i64: 1, 1, 32>}, {transform_indices = @transform_5, window_bounds = array<i64: 1, 32, 96>}, {transform_indices = @transform_6, window_bounds = array<i64: 1, 1, 96>}, {transform_indices = @transform_7, window_bounds = array<i64: 1, 32, 32>}, {transform_indices = @transform_8, window_bounds = array<i64: 1, 1, 32>}, {transform_indices = @transform_9, window_bounds = array<i64: 1, 1, 32>}, {transform_indices = @transform_10, window_bounds = array<i64: 1, 1, 32>}, {transform_indices = @transform_11, window_bounds = array<i64: 1, 32, 64>}, {transform_indices = @transform_12, window_bounds = array<i64: 1, 1, 64>}, {transform_indices = @transform_13, window_bounds = array<i64: 1, 64, 32>}, {transform_indices = @transform_14, window_bounds = array<i64: 1, 1, 32>}, {pipeline_mode = #tpu.pipeline_mode<synchronous>, transform_indices = @transform_15, window_bounds = array<i64: 1, 32>}, {pipeline_mode = #tpu.pipeline_mode<synchronous>, transform_indices = @transform_16, window_bounds = array<i64: 1, 32>}, {pipeline_mode = #tpu.pipeline_mode<synchronous>, transform_indices = @transform_17, window_bounds = array<i64: 32, 4>}, {pipeline_mode = #tpu.pipeline_mode<synchronous>, transform_indices = @transform_18, window_bounds = array<i64: 1, 4>}, {pipeline_mode = #tpu.pipeline_mode<synchronous>, transform_indices = @transform_19, window_bounds = array<i64: 32, 32>}, {pipeline_mode = #tpu.pipeline_mode<synchronous>, transform_indices = @transform_20, window_bounds = array<i64: 1, 32>}, {pipeline_mode = #tpu.pipeline_mode<synchronous>, transform_indices = @transform_21, window_bounds = array<i64: 1, 32>}, {pipeline_mode = #tpu.pipeline_mode<synchronous>, transform_indices = @transform_22, window_bounds = array<i64: 1, 32>}, {pipeline_mode = #tpu.pipeline_mode<synchronous>, transform_indices = @transform_23, window_bounds = array<i64: 4, 32>}, {pipeline_mode = #tpu.pipeline_mode<synchronous>, transform_indices = @transform_24, window_bounds = array<i64: 32, 32>}, {pipeline_mode = #tpu.pipeline_mode<synchronous>, transform_indices = @transform_25, window_bounds = array<i64: 1, 32>}, {pipeline_mode = #tpu.pipeline_mode<synchronous>, transform_indices = @transform_26, window_bounds = array<i64: 1, 32>}, {pipeline_mode = #tpu.pipeline_mode<synchronous>, transform_indices = @transform_27, window_bounds = array<i64: 32, 64>}, {pipeline_mode = #tpu.pipeline_mode<synchronous>, transform_indices = @transform_28, window_bounds = array<i64: 1, 64>}, {pipeline_mode = #tpu.pipeline_mode<synchronous>, transform_indices = @transform_29, window_bounds = array<i64: 64, 32>}, {pipeline_mode = #tpu.pipeline_mode<synchronous>, transform_indices = @transform_30, window_bounds = array<i64: 1, 32>}, {transform_indices = @transform_31, window_bounds = array<i64: 8, 8, 32>}, {transform_indices = @transform_32, window_bounds = array<i64: 8, 32>}]} {
    %c0 = arith.constant 0 : index
    %c0_0 = arith.constant 0 : index
    %c0_1 = arith.constant 0 : index
    %0 = vector.load %arg3[%c0, %c0_0, %c0_1] : memref<8x1x8xf32, #tpu.memory_space<vmem>>, vector<8x1x8xf32>
    %cst = arith.constant 5.000000e-01 : f32
    %1 = vector.broadcast %cst : f32 to vector<8x1x8xf32>
    %2 = arith.cmpf ogt, %0, %1 : vector<8x1x8xf32>
    %c0_i32 = arith.constant 0 : i32
    %3 = arith.cmpi eq, %arg1, %c0_i32 : i32
    %4 = arith.extui %3 : i1 to i32
    %c0_i32_2 = arith.constant 0 : i32
    %5 = arith.cmpi ne, %4, %c0_i32_2 : i32
    scf.if %5 {
      %c0_79 = arith.constant 0 : index
      %c0_80 = arith.constant 0 : index
      %c0_81 = arith.constant 0 : index
      %186 = vector.load %arg2[%c0_79, %c0_80, %c0_81] : memref<8x8x32xf32, #tpu.memory_space<vmem>>, vector<8x8x32xf32>
      %187 = vector.shape_cast %186 : vector<8x8x32xf32> to vector<64x32xf32>
      %c0_82 = arith.constant 0 : index
      %c0_83 = arith.constant 0 : index
      %188 = vector.load %arg35[%c0_82, %c0_83] : memref<64x32xf32, #tpu.memory_space<vmem>>, vector<64x32xf32>
      tpu.vector_store %arg35[%c0_82, %c0_83], %187 {strides = array<i32>} : memref<64x32xf32, #tpu.memory_space<vmem>>, vector<64x32xf32>,
    } else {
    }
    %c0_3 = arith.constant 0 : index
    %c0_4 = arith.constant 0 : index
    %6 = vector.load %arg35[%c0_3, %c0_4] : memref<64x32xf32, #tpu.memory_space<vmem>>, vector<64x32xf32>
    %c0_5 = arith.constant 0 : index
    %c0_6 = arith.constant 0 : index
    %c0_7 = arith.constant 0 : index
    %7 = vector.load %arg5[%c0_5, %c0_6, %c0_7] : memref<1x1x32xf32, #tpu.memory_space<vmem>>, vector<1x1x32xf32>
    %8 = vector.shape_cast %7 : vector<1x1x32xf32> to vector<1x32xf32>
    %c0_8 = arith.constant 0 : index
    %c0_9 = arith.constant 0 : index
    %c0_10 = arith.constant 0 : index
    %9 = vector.load %arg6[%c0_8, %c0_9, %c0_10] : memref<1x1x32xf32, #tpu.memory_space<vmem>>, vector<1x1x32xf32>
    %10 = vector.shape_cast %9 : vector<1x1x32xf32> to vector<1x32xf32>
    %cst_11 = arith.constant dense<0.000000e+00> : vector<64xf32>
    %11 = vector.multi_reduction <add>, %6, %cst_11 [1] : vector<64x32xf32> to vector<64xf32>
    %12 = vector.shape_cast %11 : vector<64xf32> to vector<64x1xf32>
    %cst_12 = arith.constant 3.200000e+01 : f32
    %13 = vector.broadcast %cst_12 : f32 to vector<64x1xf32>
    %14 = arith.divf %12, %13 : vector<64x1xf32>
    %15 = vector.broadcast %14 : vector<64x1xf32> to vector<64x32xf32>
    %16 = arith.subf %6, %15 : vector<64x32xf32>
    %17 = arith.mulf %16, %16 : vector<64x32xf32>
    %cst_13 = arith.constant dense<0.000000e+00> : vector<64xf32>
    %18 = vector.multi_reduction <add>, %17, %cst_13 [1] : vector<64x32xf32> to vector<64xf32>
    %19 = vector.shape_cast %18 : vector<64xf32> to vector<64x1xf32>
    %cst_14 = arith.constant 3.200000e+01 : f32
    %20 = vector.broadcast %cst_14 : f32 to vector<64x1xf32>
    %21 = arith.divf %19, %20 : vector<64x1xf32>
    %cst_15 = arith.constant 9.99999997E-7 : f32
    %22 = vector.broadcast %cst_15 : f32 to vector<64x1xf32>
    %23 = arith.addf %21, %22 : vector<64x1xf32>
    %24 = math.rsqrt %23 : vector<64x1xf32>
    %25 = vector.broadcast %24 : vector<64x1xf32> to vector<64x32xf32>
    %26 = arith.mulf %16, %25 : vector<64x32xf32>
    %27 = vector.broadcast %8 : vector<1x32xf32> to vector<64x32xf32>
    %28 = arith.mulf %26, %27 : vector<64x32xf32>
    %29 = vector.broadcast %10 : vector<1x32xf32> to vector<64x32xf32>
    %30 = arith.addf %28, %29 : vector<64x32xf32>
    %31 = arith.truncf %30 : vector<64x32xf32> to vector<64x32xbf16>
    %c0_16 = arith.constant 0 : index
    %c0_17 = arith.constant 0 : index
    %c0_18 = arith.constant 0 : index
    %32 = vector.load %arg7[%c0_16, %c0_17, %c0_18] : memref<1x32x96xbf16, #tpu.memory_space<vmem>>, vector<1x32x96xbf16>
    %33 = vector.shape_cast %32 : vector<1x32x96xbf16> to vector<32x96xbf16>
    %cst_19 = arith.constant dense<0.000000e+00> : vector<64x96xf32>
    %34 = tpu.matmul %31, %33, %cst_19 {dimension_numbers = #tpu.dot_dimension_numbers<[1], [0], [0], [1], [0, 0, 1, 1], [], []>} : vector<64x32xbf16>, vector<32x96xbf16>, vector<64x96xf32> -> vector<64x96xf32>
    %c0_20 = arith.constant 0 : index
    %c0_21 = arith.constant 0 : index
    %c0_22 = arith.constant 0 : index
    %35 = vector.load %arg8[%c0_20, %c0_21, %c0_22] : memref<1x1x96xf32, #tpu.memory_space<vmem>>, vector<1x1x96xf32>
    %36 = vector.shape_cast %35 : vector<1x1x96xf32> to vector<1x96xf32>
    %37 = vector.broadcast %36 : vector<1x96xf32> to vector<64x96xf32>
    %38 = arith.addf %34, %37 : vector<64x96xf32>
    %39 = vector.extract_strided_slice %38 {offsets = [0, 0], sizes = [64, 32], strides = [1, 1]} : vector<64x96xf32> to vector<64x32xf32>
    %40 = vector.shape_cast %39 : vector<64x32xf32> to vector<8x8x32xf32>
    %41 = arith.truncf %40 : vector<8x8x32xf32> to vector<8x8x32xbf16>
    %42 = vector.extract_strided_slice %38 {offsets = [0, 32], sizes = [64, 32], strides = [1, 1]} : vector<64x96xf32> to vector<64x32xf32>
    %43 = vector.shape_cast %42 : vector<64x32xf32> to vector<8x8x32xf32>
    %44 = arith.truncf %43 : vector<8x8x32xf32> to vector<8x8x32xbf16>
    %45 = vector.extract_strided_slice %38 {offsets = [0, 64], sizes = [64, 32], strides = [1, 1]} : vector<64x96xf32> to vector<64x32xf32>
    %46 = vector.shape_cast %45 : vector<64x32xf32> to vector<8x8x32xf32>
    %47 = arith.truncf %46 : vector<8x8x32xf32> to vector<8x8x32xbf16>
    %48 = vector.extract_strided_slice %41 {offsets = [0, 0, 0], sizes = [8, 8, 8], strides = [1, 1, 1]} : vector<8x8x32xbf16> to vector<8x8x8xbf16>
    %49 = vector.extract_strided_slice %44 {offsets = [0, 0, 0], sizes = [8, 8, 8], strides = [1, 1, 1]} : vector<8x8x32xbf16> to vector<8x8x8xbf16>
    %cst_23 = arith.constant dense<0.000000e+00> : vector<8x8x8xf32>
    %50 = tpu.matmul %48, %49, %cst_23 {dimension_numbers = #tpu.dot_dimension_numbers<[2], [2], [1], [1], [0, 0, 0, 1, 1, 1], [0], [0]>} : vector<8x8x8xbf16>, vector<8x8x8xbf16>, vector<8x8x8xf32> -> vector<8x8x8xf32>
    %cst_24 = arith.constant -9.99999984E+17 : f32
    %51 = vector.shape_cast %2 : vector<8x1x8xi1> to vector<8x1x8xi1>
    %52 = vector.broadcast %51 : vector<8x1x8xi1> to vector<8x8x8xi1>
    %53 = vector.broadcast %cst_24 : f32 to vector<8x8x8xf32>
    %54 = arith.select %52, %53, %50 : vector<8x8x8xi1>, vector<8x8x8xf32>
    %cst_25 = arith.constant dense<0xFF800000> : vector<8x8xf32>
    %55 = vector.multi_reduction <maximumf>, %54, %cst_25 [2] : vector<8x8x8xf32> to vector<8x8xf32>
    %56 = vector.shape_cast %55 : vector<8x8xf32> to vector<8x8x1xf32>
    %57 = vector.broadcast %56 : vector<8x8x1xf32> to vector<8x8x8xf32>
    %58 = arith.subf %54, %57 : vector<8x8x8xf32>
    %59 = math.exp %58 : vector<8x8x8xf32>
    %cst_26 = arith.constant dense<0.000000e+00> : vector<8x8xf32>
    %60 = vector.multi_reduction <add>, %59, %cst_26 [2] : vector<8x8x8xf32> to vector<8x8xf32>
    %61 = vector.shape_cast %60 : vector<8x8xf32> to vector<8x8x1xf32>
    %62 = tpu.reciprocal %61 {approx = true} : vector<8x8x1xf32> -> vector<8x8x1xf32>
    %63 = vector.broadcast %62 : vector<8x8x1xf32> to vector<8x8x8xf32>
    %64 = arith.mulf %59, %63 : vector<8x8x8xf32>
    %65 = arith.truncf %64 : vector<8x8x8xf32> to vector<8x8x8xbf16>
    %66 = vector.extract_strided_slice %47 {offsets = [0, 0, 0], sizes = [8, 8, 8], strides = [1, 1, 1]} : vector<8x8x32xbf16> to vector<8x8x8xbf16>
    %cst_27 = arith.constant dense<0.000000e+00> : vector<8x8x8xf32>
    %67 = tpu.matmul %65, %66, %cst_27 {dimension_numbers = #tpu.dot_dimension_numbers<[2], [1], [1], [2], [0, 0, 0, 1, 1, 2], [0], [0]>} : vector<8x8x8xbf16>, vector<8x8x8xbf16>, vector<8x8x8xf32> -> vector<8x8x8xf32>
    %68 = vector.extract_strided_slice %41 {offsets = [0, 0, 8], sizes = [8, 8, 8], strides = [1, 1, 1]} : vector<8x8x32xbf16> to vector<8x8x8xbf16>
    %69 = vector.extract_strided_slice %44 {offsets = [0, 0, 8], sizes = [8, 8, 8], strides = [1, 1, 1]} : vector<8x8x32xbf16> to vector<8x8x8xbf16>
    %cst_28 = arith.constant dense<0.000000e+00> : vector<8x8x8xf32>
    %70 = tpu.matmul %68, %69, %cst_28 {dimension_numbers = #tpu.dot_dimension_numbers<[2], [2], [1], [1], [0, 0, 0, 1, 1, 1], [0], [0]>} : vector<8x8x8xbf16>, vector<8x8x8xbf16>, vector<8x8x8xf32> -> vector<8x8x8xf32>
    %cst_29 = arith.constant -9.99999984E+17 : f32
    %71 = vector.shape_cast %2 : vector<8x1x8xi1> to vector<8x1x8xi1>
    %72 = vector.broadcast %71 : vector<8x1x8xi1> to vector<8x8x8xi1>
    %73 = vector.broadcast %cst_29 : f32 to vector<8x8x8xf32>
    %74 = arith.select %72, %73, %70 : vector<8x8x8xi1>, vector<8x8x8xf32>
    %cst_30 = arith.constant dense<0xFF800000> : vector<8x8xf32>
    %75 = vector.multi_reduction <maximumf>, %74, %cst_30 [2] : vector<8x8x8xf32> to vector<8x8xf32>
    %76 = vector.shape_cast %75 : vector<8x8xf32> to vector<8x8x1xf32>
    %77 = vector.broadcast %76 : vector<8x8x1xf32> to vector<8x8x8xf32>
    %78 = arith.subf %74, %77 : vector<8x8x8xf32>
    %79 = math.exp %78 : vector<8x8x8xf32>
    %cst_31 = arith.constant dense<0.000000e+00> : vector<8x8xf32>
    %80 = vector.multi_reduction <add>, %79, %cst_31 [2] : vector<8x8x8xf32> to vector<8x8xf32>
    %81 = vector.shape_cast %80 : vector<8x8xf32> to vector<8x8x1xf32>
    %82 = tpu.reciprocal %81 {approx = true} : vector<8x8x1xf32> -> vector<8x8x1xf32>
    %83 = vector.broadcast %82 : vector<8x8x1xf32> to vector<8x8x8xf32>
    %84 = arith.mulf %79, %83 : vector<8x8x8xf32>
    %85 = arith.truncf %84 : vector<8x8x8xf32> to vector<8x8x8xbf16>
    %86 = vector.extract_strided_slice %47 {offsets = [0, 0, 8], sizes = [8, 8, 8], strides = [1, 1, 1]} : vector<8x8x32xbf16> to vector<8x8x8xbf16>
    %cst_32 = arith.constant dense<0.000000e+00> : vector<8x8x8xf32>
    %87 = tpu.matmul %85, %86, %cst_32 {dimension_numbers = #tpu.dot_dimension_numbers<[2], [1], [1], [2], [0, 0, 0, 1, 1, 2], [0], [0]>} : vector<8x8x8xbf16>, vector<8x8x8xbf16>, vector<8x8x8xf32> -> vector<8x8x8xf32>
    %88 = vector.extract_strided_slice %41 {offsets = [0, 0, 16], sizes = [8, 8, 8], strides = [1, 1, 1]} : vector<8x8x32xbf16> to vector<8x8x8xbf16>
    %89 = vector.extract_strided_slice %44 {offsets = [0, 0, 16], sizes = [8, 8, 8], strides = [1, 1, 1]} : vector<8x8x32xbf16> to vector<8x8x8xbf16>
    %cst_33 = arith.constant dense<0.000000e+00> : vector<8x8x8xf32>
    %90 = tpu.matmul %88, %89, %cst_33 {dimension_numbers = #tpu.dot_dimension_numbers<[2], [2], [1], [1], [0, 0, 0, 1, 1, 1], [0], [0]>} : vector<8x8x8xbf16>, vector<8x8x8xbf16>, vector<8x8x8xf32> -> vector<8x8x8xf32>
    %cst_34 = arith.constant -9.99999984E+17 : f32
    %91 = vector.shape_cast %2 : vector<8x1x8xi1> to vector<8x1x8xi1>
    %92 = vector.broadcast %91 : vector<8x1x8xi1> to vector<8x8x8xi1>
    %93 = vector.broadcast %cst_34 : f32 to vector<8x8x8xf32>
    %94 = arith.select %92, %93, %90 : vector<8x8x8xi1>, vector<8x8x8xf32>
    %cst_35 = arith.constant dense<0xFF800000> : vector<8x8xf32>
    %95 = vector.multi_reduction <maximumf>, %94, %cst_35 [2] : vector<8x8x8xf32> to vector<8x8xf32>
    %96 = vector.shape_cast %95 : vector<8x8xf32> to vector<8x8x1xf32>
    %97 = vector.broadcast %96 : vector<8x8x1xf32> to vector<8x8x8xf32>
    %98 = arith.subf %94, %97 : vector<8x8x8xf32>
    %99 = math.exp %98 : vector<8x8x8xf32>
    %cst_36 = arith.constant dense<0.000000e+00> : vector<8x8xf32>
    %100 = vector.multi_reduction <add>, %99, %cst_36 [2] : vector<8x8x8xf32> to vector<8x8xf32>
    %101 = vector.shape_cast %100 : vector<8x8xf32> to vector<8x8x1xf32>
    %102 = tpu.reciprocal %101 {approx = true} : vector<8x8x1xf32> -> vector<8x8x1xf32>
    %103 = vector.broadcast %102 : vector<8x8x1xf32> to vector<8x8x8xf32>
    %104 = arith.mulf %99, %103 : vector<8x8x8xf32>
    %105 = arith.truncf %104 : vector<8x8x8xf32> to vector<8x8x8xbf16>
    %106 = vector.extract_strided_slice %47 {offsets = [0, 0, 16], sizes = [8, 8, 8], strides = [1, 1, 1]} : vector<8x8x32xbf16> to vector<8x8x8xbf16>
    %cst_37 = arith.constant dense<0.000000e+00> : vector<8x8x8xf32>
    %107 = tpu.matmul %105, %106, %cst_37 {dimension_numbers = #tpu.dot_dimension_numbers<[2], [1], [1], [2], [0, 0, 0, 1, 1, 2], [0], [0]>} : vector<8x8x8xbf16>, vector<8x8x8xbf16>, vector<8x8x8xf32> -> vector<8x8x8xf32>
    %108 = vector.extract_strided_slice %41 {offsets = [0, 0, 24], sizes = [8, 8, 8], strides = [1, 1, 1]} : vector<8x8x32xbf16> to vector<8x8x8xbf16>
    %109 = vector.extract_strided_slice %44 {offsets = [0, 0, 24], sizes = [8, 8, 8], strides = [1, 1, 1]} : vector<8x8x32xbf16> to vector<8x8x8xbf16>
    %cst_38 = arith.constant dense<0.000000e+00> : vector<8x8x8xf32>
    %110 = tpu.matmul %108, %109, %cst_38 {dimension_numbers = #tpu.dot_dimension_numbers<[2], [2], [1], [1], [0, 0, 0, 1, 1, 1], [0], [0]>} : vector<8x8x8xbf16>, vector<8x8x8xbf16>, vector<8x8x8xf32> -> vector<8x8x8xf32>
    %cst_39 = arith.constant -9.99999984E+17 : f32
    %111 = vector.shape_cast %2 : vector<8x1x8xi1> to vector<8x1x8xi1>
    %112 = vector.broadcast %111 : vector<8x1x8xi1> to vector<8x8x8xi1>
    %113 = vector.broadcast %cst_39 : f32 to vector<8x8x8xf32>
    %114 = arith.select %112, %113, %110 : vector<8x8x8xi1>, vector<8x8x8xf32>
    %cst_40 = arith.constant dense<0xFF800000> : vector<8x8xf32>
    %115 = vector.multi_reduction <maximumf>, %114, %cst_40 [2] : vector<8x8x8xf32> to vector<8x8xf32>
    %116 = vector.shape_cast %115 : vector<8x8xf32> to vector<8x8x1xf32>
    %117 = vector.broadcast %116 : vector<8x8x1xf32> to vector<8x8x8xf32>
    %118 = arith.subf %114, %117 : vector<8x8x8xf32>
    %119 = math.exp %118 : vector<8x8x8xf32>
    %cst_41 = arith.constant dense<0.000000e+00> : vector<8x8xf32>
    %120 = vector.multi_reduction <add>, %119, %cst_41 [2] : vector<8x8x8xf32> to vector<8x8xf32>
    %121 = vector.shape_cast %120 : vector<8x8xf32> to vector<8x8x1xf32>
    %122 = tpu.reciprocal %121 {approx = true} : vector<8x8x1xf32> -> vector<8x8x1xf32>
    %123 = vector.broadcast %122 : vector<8x8x1xf32> to vector<8x8x8xf32>
    %124 = arith.mulf %119, %123 : vector<8x8x8xf32>
    %125 = arith.truncf %124 : vector<8x8x8xf32> to vector<8x8x8xbf16>
    %126 = vector.extract_strided_slice %47 {offsets = [0, 0, 24], sizes = [8, 8, 8], strides = [1, 1, 1]} : vector<8x8x32xbf16> to vector<8x8x8xbf16>
    %cst_42 = arith.constant dense<0.000000e+00> : vector<8x8x8xf32>
    %127 = tpu.matmul %125, %126, %cst_42 {dimension_numbers = #tpu.dot_dimension_numbers<[2], [1], [1], [2], [0, 0, 0, 1, 1, 2], [0], [0]>} : vector<8x8x8xbf16>, vector<8x8x8xbf16>, vector<8x8x8xf32> -> vector<8x8x8xf32>
    %128 = tpu.concatenate %67, %87, %107, %127 in 2 : vector<8x8x8xf32>, vector<8x8x8xf32>, vector<8x8x8xf32>, vector<8x8x8xf32> -> vector<8x8x32xf32>
    %129 = vector.shape_cast %128 : vector<8x8x32xf32> to vector<64x32xf32>
    %130 = arith.truncf %129 : vector<64x32xf32> to vector<64x32xbf16>
    %c0_43 = arith.constant 0 : index
    %c0_44 = arith.constant 0 : index
    %c0_45 = arith.constant 0 : index
    %131 = vector.load %arg9[%c0_43, %c0_44, %c0_45] : memref<1x32x32xbf16, #tpu.memory_space<vmem>>, vector<1x32x32xbf16>
    %132 = vector.shape_cast %131 : vector<1x32x32xbf16> to vector<32x32xbf16>
    %cst_46 = arith.constant dense<0.000000e+00> : vector<64x32xf32>
    %133 = tpu.matmul %130, %132, %cst_46 {dimension_numbers = #tpu.dot_dimension_numbers<[1], [0], [0], [1], [0, 0, 1, 1], [], []>} : vector<64x32xbf16>, vector<32x32xbf16>, vector<64x32xf32> -> vector<64x32xf32>
    %c0_47 = arith.constant 0 : index
    %c0_48 = arith.constant 0 : index
    %c0_49 = arith.constant 0 : index
    %134 = vector.load %arg10[%c0_47, %c0_48, %c0_49] : memref<1x1x32xf32, #tpu.memory_space<vmem>>, vector<1x1x32xf32>
    %135 = vector.shape_cast %134 : vector<1x1x32xf32> to vector<1x32xf32>
    %136 = vector.broadcast %135 : vector<1x32xf32> to vector<64x32xf32>
    %137 = arith.addf %133, %136 : vector<64x32xf32>
    %138 = arith.addf %137, %6 : vector<64x32xf32>
    %c0_50 = arith.constant 0 : index
    %c0_51 = arith.constant 0 : index
    %c0_52 = arith.constant 0 : index
    %139 = vector.load %arg11[%c0_50, %c0_51, %c0_52] : memref<1x1x32xf32, #tpu.memory_space<vmem>>, vector<1x1x32xf32>
    %140 = vector.shape_cast %139 : vector<1x1x32xf32> to vector<1x32xf32>
    %c0_53 = arith.constant 0 : index
    %c0_54 = arith.constant 0 : index
    %c0_55 = arith.constant 0 : index
    %141 = vector.load %arg12[%c0_53, %c0_54, %c0_55] : memref<1x1x32xf32, #tpu.memory_space<vmem>>, vector<1x1x32xf32>
    %142 = vector.shape_cast %141 : vector<1x1x32xf32> to vector<1x32xf32>
    %cst_56 = arith.constant dense<0.000000e+00> : vector<64xf32>
    %143 = vector.multi_reduction <add>, %138, %cst_56 [1] : vector<64x32xf32> to vector<64xf32>
    %144 = vector.shape_cast %143 : vector<64xf32> to vector<64x1xf32>
    %cst_57 = arith.constant 3.200000e+01 : f32
    %145 = vector.broadcast %cst_57 : f32 to vector<64x1xf32>
    %146 = arith.divf %144, %145 : vector<64x1xf32>
    %147 = vector.broadcast %146 : vector<64x1xf32> to vector<64x32xf32>
    %148 = arith.subf %138, %147 : vector<64x32xf32>
    %149 = arith.mulf %148, %148 : vector<64x32xf32>
    %cst_58 = arith.constant dense<0.000000e+00> : vector<64xf32>
    %150 = vector.multi_reduction <add>, %149, %cst_58 [1] : vector<64x32xf32> to vector<64xf32>
    %151 = vector.shape_cast %150 : vector<64xf32> to vector<64x1xf32>
    %cst_59 = arith.constant 3.200000e+01 : f32
    %152 = vector.broadcast %cst_59 : f32 to vector<64x1xf32>
    %153 = arith.divf %151, %152 : vector<64x1xf32>
    %cst_60 = arith.constant 9.99999997E-7 : f32
    %154 = vector.broadcast %cst_60 : f32 to vector<64x1xf32>
    %155 = arith.addf %153, %154 : vector<64x1xf32>
    %156 = math.rsqrt %155 : vector<64x1xf32>
    %157 = vector.broadcast %156 : vector<64x1xf32> to vector<64x32xf32>
    %158 = arith.mulf %148, %157 : vector<64x32xf32>
    %159 = vector.broadcast %140 : vector<1x32xf32> to vector<64x32xf32>
    %160 = arith.mulf %158, %159 : vector<64x32xf32>
    %161 = vector.broadcast %142 : vector<1x32xf32> to vector<64x32xf32>
    %162 = arith.addf %160, %161 : vector<64x32xf32>
    %163 = arith.truncf %162 : vector<64x32xf32> to vector<64x32xbf16>
    %c0_61 = arith.constant 0 : index
    %c0_62 = arith.constant 0 : index
    %c0_63 = arith.constant 0 : index
    %164 = vector.load %arg13[%c0_61, %c0_62, %c0_63] : memref<1x32x64xbf16, #tpu.memory_space<vmem>>, vector<1x32x64xbf16>
    %165 = vector.shape_cast %164 : vector<1x32x64xbf16> to vector<32x64xbf16>
    %cst_64 = arith.constant dense<0.000000e+00> : vector<64x64xf32>
    %166 = tpu.matmul %163, %165, %cst_64 {dimension_numbers = #tpu.dot_dimension_numbers<[1], [0], [0], [1], [0, 0, 1, 1], [], []>} : vector<64x32xbf16>, vector<32x64xbf16>, vector<64x64xf32> -> vector<64x64xf32>
    %c0_65 = arith.constant 0 : index
    %c0_66 = arith.constant 0 : index
    %c0_67 = arith.constant 0 : index
    %167 = vector.load %arg14[%c0_65, %c0_66, %c0_67] : memref<1x1x64xf32, #tpu.memory_space<vmem>>, vector<1x1x64xf32>
    %168 = vector.shape_cast %167 : vector<1x1x64xf32> to vector<1x64xf32>
    %169 = vector.broadcast %168 : vector<1x64xf32> to vector<64x64xf32>
    %170 = arith.addf %166, %169 : vector<64x64xf32>
    %cst_68 = arith.constant 0.000000e+00 : f32
    %171 = vector.broadcast %cst_68 : f32 to vector<64x64xf32>
    %172 = arith.maximumf %170, %171 : vector<64x64xf32>
    %173 = arith.truncf %172 : vector<64x64xf32> to vector<64x64xbf16>
    %c0_69 = arith.constant 0 : index
    %c0_70 = arith.constant 0 : index
    %c0_71 = arith.constant 0 : index
    %174 = vector.load %arg15[%c0_69, %c0_70, %c0_71] : memref<1x64x32xbf16, #tpu.memory_space<vmem>>, vector<1x64x32xbf16>
    %175 = vector.shape_cast %174 : vector<1x64x32xbf16> to vector<64x32xbf16>
    %cst_72 = arith.constant dense<0.000000e+00> : vector<64x32xf32>
    %176 = tpu.matmul %173, %175, %cst_72 {dimension_numbers = #tpu.dot_dimension_numbers<[1], [0], [0], [1], [0, 0, 1, 1], [], []>} : vector<64x64xbf16>, vector<64x32xbf16>, vector<64x32xf32> -> vector<64x32xf32>
    %c0_73 = arith.constant 0 : index
    %c0_74 = arith.constant 0 : index
    %c0_75 = arith.constant 0 : index
    %177 = vector.load %arg16[%c0_73, %c0_74, %c0_75] : memref<1x1x32xf32, #tpu.memory_space<vmem>>, vector<1x1x32xf32>
    %178 = vector.shape_cast %177 : vector<1x1x32xf32> to vector<1x32xf32>
    %179 = vector.broadcast %178 : vector<1x32xf32> to vector<64x32xf32>
    %180 = arith.addf %176, %179 : vector<64x32xf32>
    %181 = arith.addf %180, %138 : vector<64x32xf32>
    %c0_76 = arith.constant 0 : index
    %c0_77 = arith.constant 0 : index
    %182 = vector.load %arg35[%c0_76, %c0_77] : memref<64x32xf32, #tpu.memory_space<vmem>>, vector<64x32xf32>
    tpu.vector_store %arg35[%c0_76, %c0_77], %181 {strides = array<i32>} : memref<64x32xf32, #tpu.memory_space<vmem>>, vector<64x32xf32>,
    %c1_i32 = arith.constant 1 : i32
    %183 = arith.cmpi eq, %arg1, %c1_i32 : i32
    %184 = arith.extui %183 : i1 to i32
    %c0_i32_78 = arith.constant 0 : i32
    %185 = arith.cmpi ne, %184, %c0_i32_78 : i32
    scf.if %185 {
      %c0_79 = arith.constant 0 : index
      %c0_80 = arith.constant 0 : index
      %c0_81 = arith.constant 0 : index
      %186 = vector.load %arg4[%c0_79, %c0_80, %c0_81] : memref<8x8x1xf32, #tpu.memory_space<vmem>>, vector<8x8x1xf32>
      %c0_82 = arith.constant 0 : index
      %c0_83 = arith.constant 0 : index
      %187 = vector.load %arg17[%c0_82, %c0_83] : memref<1x32xf32, #tpu.memory_space<vmem>>, vector<1x32xf32>
      %c0_84 = arith.constant 0 : index
      %c0_85 = arith.constant 0 : index
      %188 = vector.load %arg18[%c0_84, %c0_85] : memref<1x32xf32, #tpu.memory_space<vmem>>, vector<1x32xf32>
      %cst_86 = arith.constant dense<0.000000e+00> : vector<64xf32>
      %189 = vector.multi_reduction <add>, %181, %cst_86 [1] : vector<64x32xf32> to vector<64xf32>
      %190 = vector.shape_cast %189 : vector<64xf32> to vector<64x1xf32>
      %cst_87 = arith.constant 3.200000e+01 : f32
      %191 = vector.broadcast %cst_87 : f32 to vector<64x1xf32>
      %192 = arith.divf %190, %191 : vector<64x1xf32>
      %193 = vector.broadcast %192 : vector<64x1xf32> to vector<64x32xf32>
      %194 = arith.subf %181, %193 : vector<64x32xf32>
      %195 = arith.mulf %194, %194 : vector<64x32xf32>
      %cst_88 = arith.constant dense<0.000000e+00> : vector<64xf32>
      %196 = vector.multi_reduction <add>, %195, %cst_88 [1] : vector<64x32xf32> to vector<64xf32>
      %197 = vector.shape_cast %196 : vector<64xf32> to vector<64x1xf32>
      %cst_89 = arith.constant 3.200000e+01 : f32
      %198 = vector.broadcast %cst_89 : f32 to vector<64x1xf32>
      %199 = arith.divf %197, %198 : vector<64x1xf32>
      %cst_90 = arith.constant 9.99999997E-7 : f32
      %200 = vector.broadcast %cst_90 : f32 to vector<64x1xf32>
      %201 = arith.addf %199, %200 : vector<64x1xf32>
      %202 = math.rsqrt %201 : vector<64x1xf32>
      %203 = vector.broadcast %202 : vector<64x1xf32> to vector<64x32xf32>
      %204 = arith.mulf %194, %203 : vector<64x32xf32>
      %205 = vector.broadcast %187 : vector<1x32xf32> to vector<64x32xf32>
      %206 = arith.mulf %204, %205 : vector<64x32xf32>
      %207 = vector.broadcast %188 : vector<1x32xf32> to vector<64x32xf32>
      %208 = arith.addf %206, %207 : vector<64x32xf32>
      %209 = arith.truncf %208 : vector<64x32xf32> to vector<64x32xbf16>
      %c0_91 = arith.constant 0 : index
      %c0_92 = arith.constant 0 : index
      %210 = vector.load %arg19[%c0_91, %c0_92] : memref<32x4xbf16, #tpu.memory_space<vmem>>, vector<32x4xbf16>
      %cst_93 = arith.constant dense<0.000000e+00> : vector<64x4xf32>
      %211 = tpu.matmul %209, %210, %cst_93 {dimension_numbers = #tpu.dot_dimension_numbers<[1], [0], [0], [1], [0, 0, 1, 1], [], []>} : vector<64x32xbf16>, vector<32x4xbf16>, vector<64x4xf32> -> vector<64x4xf32>
      %c0_94 = arith.constant 0 : index
      %c0_95 = arith.constant 0 : index
      %212 = vector.load %arg20[%c0_94, %c0_95] : memref<1x4xf32, #tpu.memory_space<vmem>>, vector<1x4xf32>
      %213 = vector.broadcast %212 : vector<1x4xf32> to vector<64x4xf32>
      %214 = arith.addf %211, %213 : vector<64x4xf32>
      %c0_96 = arith.constant 0 : index
      %c0_97 = arith.constant 0 : index
      %215 = vector.load %arg21[%c0_96, %c0_97] : memref<32x32xbf16, #tpu.memory_space<vmem>>, vector<32x32xbf16>
      %cst_98 = arith.constant dense<0.000000e+00> : vector<64x32xf32>
      %216 = tpu.matmul %209, %215, %cst_98 {dimension_numbers = #tpu.dot_dimension_numbers<[1], [0], [0], [1], [0, 0, 1, 1], [], []>} : vector<64x32xbf16>, vector<32x32xbf16>, vector<64x32xf32> -> vector<64x32xf32>
      %c0_99 = arith.constant 0 : index
      %c0_100 = arith.constant 0 : index
      %217 = vector.load %arg22[%c0_99, %c0_100] : memref<1x32xf32, #tpu.memory_space<vmem>>, vector<1x32xf32>
      %218 = vector.broadcast %217 : vector<1x32xf32> to vector<64x32xf32>
      %219 = arith.addf %216, %218 : vector<64x32xf32>
      %cst_101 = arith.constant 5.000000e-01 : f32
      %220 = vector.broadcast %cst_101 : f32 to vector<8x8x1xf32>
      %221 = arith.cmpf ogt, %186, %220 : vector<8x8x1xf32>
      %222 = vector.shape_cast %214 : vector<64x4xf32> to vector<8x8x4xf32>
      %cst_102 = arith.constant -9.99999984E+17 : f32
      %223 = vector.shape_cast %221 : vector<8x8x1xi1> to vector<8x8x1xi1>
      %224 = vector.broadcast %223 : vector<8x8x1xi1> to vector<8x8x4xi1>
      %225 = vector.broadcast %cst_102 : f32 to vector<8x8x4xf32>
      %226 = arith.select %224, %225, %222 : vector<8x8x4xi1>, vector<8x8x4xf32>
      %cst_103 = arith.constant dense<0xFF800000> : vector<8x4xf32>
      %227 = vector.multi_reduction <maximumf>, %226, %cst_103 [1] : vector<8x8x4xf32> to vector<8x4xf32>
      %228 = vector.shape_cast %227 : vector<8x4xf32> to vector<8x1x4xf32>
      %229 = vector.broadcast %228 : vector<8x1x4xf32> to vector<8x8x4xf32>
      %230 = arith.subf %226, %229 : vector<8x8x4xf32>
      %231 = math.exp %230 : vector<8x8x4xf32>
      %cst_104 = arith.constant dense<0.000000e+00> : vector<8x4xf32>
      %232 = vector.multi_reduction <add>, %231, %cst_104 [1] : vector<8x8x4xf32> to vector<8x4xf32>
      %233 = vector.shape_cast %232 : vector<8x4xf32> to vector<8x1x4xf32>
      %234 = tpu.reciprocal %233 {approx = true} : vector<8x1x4xf32> -> vector<8x1x4xf32>
      %235 = vector.broadcast %234 : vector<8x1x4xf32> to vector<8x8x4xf32>
      %236 = arith.mulf %231, %235 : vector<8x8x4xf32>
      %237 = vector.shape_cast %236 : vector<8x8x4xf32> to vector<64x4xf32>
      %c0_105 = arith.constant 0 : index
      %c0_106 = arith.constant 0 : index
      %238 = vector.load %arg25[%c0_105, %c0_106] : memref<4x32xf32, #tpu.memory_space<vmem>>, vector<4x32xf32>
      %cst_107 = arith.constant dense<0.000000e+00> : vector<64x32xf32>
      %239 = tpu.matmul %237, %238, %cst_107 {dimension_numbers = #tpu.dot_dimension_numbers<[1], [0], [0], [1], [0, 0, 1, 1], [], []>} : vector<64x4xf32>, vector<4x32xf32>, vector<64x32xf32> -> vector<64x32xf32>
      %240 = arith.mulf %239, %219 : vector<64x32xf32>
      %241 = vector.shape_cast %240 : vector<64x32xf32> to vector<8x8x32xf32>
      %cst_108 = arith.constant dense<0.000000e+00> : vector<8x32xf32>
      %242 = vector.multi_reduction <add>, %241, %cst_108 [1] : vector<8x8x32xf32> to vector<8x32xf32>
      %c0_109 = arith.constant 0 : index
      %c0_110 = arith.constant 0 : index
      %243 = vector.load %arg26[%c0_109, %c0_110] : memref<32x32xf32, #tpu.memory_space<vmem>>, vector<32x32xf32>
      %cst_111 = arith.constant dense<0.000000e+00> : vector<8x32xf32>
      %244 = tpu.matmul %242, %243, %cst_111 {dimension_numbers = #tpu.dot_dimension_numbers<[1], [0], [0], [1], [0, 0, 1, 1], [], []>} : vector<8x32xf32>, vector<32x32xf32>, vector<8x32xf32> -> vector<8x32xf32>
      %245 = arith.subf %242, %244 : vector<8x32xf32>
      %246 = arith.mulf %245, %245 : vector<8x32xf32>
      %c0_112 = arith.constant 0 : index
      %c0_113 = arith.constant 0 : index
      %247 = vector.load %arg26[%c0_112, %c0_113] : memref<32x32xf32, #tpu.memory_space<vmem>>, vector<32x32xf32>
      %cst_114 = arith.constant dense<0.000000e+00> : vector<8x32xf32>
      %248 = tpu.matmul %246, %247, %cst_114 {dimension_numbers = #tpu.dot_dimension_numbers<[1], [0], [0], [1], [0, 0, 1, 1], [], []>} : vector<8x32xf32>, vector<32x32xf32>, vector<8x32xf32> -> vector<8x32xf32>
      %cst_115 = arith.constant 9.99999997E-7 : f32
      %249 = vector.broadcast %cst_115 : f32 to vector<8x32xf32>
      %250 = arith.addf %248, %249 : vector<8x32xf32>
      %251 = math.rsqrt %250 : vector<8x32xf32>
      %252 = arith.mulf %245, %251 : vector<8x32xf32>
      %c0_116 = arith.constant 0 : index
      %c0_117 = arith.constant 0 : index
      %253 = vector.load %arg23[%c0_116, %c0_117] : memref<1x32xf32, #tpu.memory_space<vmem>>, vector<1x32xf32>
      %254 = vector.broadcast %253 : vector<1x32xf32> to vector<8x32xf32>
      %255 = arith.mulf %252, %254 : vector<8x32xf32>
      %c0_118 = arith.constant 0 : index
      %c0_119 = arith.constant 0 : index
      %256 = vector.load %arg24[%c0_118, %c0_119] : memref<1x32xf32, #tpu.memory_space<vmem>>, vector<1x32xf32>
      %257 = vector.broadcast %256 : vector<1x32xf32> to vector<8x32xf32>
      %258 = arith.addf %255, %257 : vector<8x32xf32>
      %c0_120 = arith.constant 0 : index
      %c0_121 = arith.constant 0 : index
      %259 = vector.load %arg34[%c0_120, %c0_121] : memref<8x32xf32, #tpu.memory_space<vmem>>, vector<8x32xf32>
      tpu.vector_store %arg34[%c0_120, %c0_121], %258 {strides = array<i32>} : memref<8x32xf32, #tpu.memory_space<vmem>>, vector<8x32xf32>,
      %260 = vector.shape_cast %208 : vector<64x32xf32> to vector<8x8x32xf32>
      %261 = vector.shape_cast %258 : vector<8x32xf32> to vector<8x1x32xf32>
      %262 = vector.broadcast %261 : vector<8x1x32xf32> to vector<8x8x32xf32>
      %263 = arith.addf %260, %262 : vector<8x8x32xf32>
      %264 = vector.shape_cast %263 : vector<8x8x32xf32> to vector<64x32xf32>
      %c0_122 = arith.constant 0 : index
      %c0_123 = arith.constant 0 : index
      %265 = vector.load %arg27[%c0_122, %c0_123] : memref<1x32xf32, #tpu.memory_space<vmem>>, vector<1x32xf32>
      %c0_124 = arith.constant 0 : index
      %c0_125 = arith.constant 0 : index
      %266 = vector.load %arg28[%c0_124, %c0_125] : memref<1x32xf32, #tpu.memory_space<vmem>>, vector<1x32xf32>
      %cst_126 = arith.constant dense<0.000000e+00> : vector<64xf32>
      %267 = vector.multi_reduction <add>, %264, %cst_126 [1] : vector<64x32xf32> to vector<64xf32>
      %268 = vector.shape_cast %267 : vector<64xf32> to vector<64x1xf32>
      %cst_127 = arith.constant 3.200000e+01 : f32
      %269 = vector.broadcast %cst_127 : f32 to vector<64x1xf32>
      %270 = arith.divf %268, %269 : vector<64x1xf32>
      %271 = vector.broadcast %270 : vector<64x1xf32> to vector<64x32xf32>
      %272 = arith.subf %264, %271 : vector<64x32xf32>
      %273 = arith.mulf %272, %272 : vector<64x32xf32>
      %cst_128 = arith.constant dense<0.000000e+00> : vector<64xf32>
      %274 = vector.multi_reduction <add>, %273, %cst_128 [1] : vector<64x32xf32> to vector<64xf32>
      %275 = vector.shape_cast %274 : vector<64xf32> to vector<64x1xf32>
      %cst_129 = arith.constant 3.200000e+01 : f32
      %276 = vector.broadcast %cst_129 : f32 to vector<64x1xf32>
      %277 = arith.divf %275, %276 : vector<64x1xf32>
      %cst_130 = arith.constant 9.99999997E-7 : f32
      %278 = vector.broadcast %cst_130 : f32 to vector<64x1xf32>
      %279 = arith.addf %277, %278 : vector<64x1xf32>
      %280 = math.rsqrt %279 : vector<64x1xf32>
      %281 = vector.broadcast %280 : vector<64x1xf32> to vector<64x32xf32>
      %282 = arith.mulf %272, %281 : vector<64x32xf32>
      %283 = vector.broadcast %265 : vector<1x32xf32> to vector<64x32xf32>
      %284 = arith.mulf %282, %283 : vector<64x32xf32>
      %285 = vector.broadcast %266 : vector<1x32xf32> to vector<64x32xf32>
      %286 = arith.addf %284, %285 : vector<64x32xf32>
      %287 = arith.truncf %286 : vector<64x32xf32> to vector<64x32xbf16>
      %c0_131 = arith.constant 0 : index
      %c0_132 = arith.constant 0 : index
      %288 = vector.load %arg29[%c0_131, %c0_132] : memref<32x64xbf16, #tpu.memory_space<vmem>>, vector<32x64xbf16>
      %cst_133 = arith.constant dense<0.000000e+00> : vector<64x64xf32>
      %289 = tpu.matmul %287, %288, %cst_133 {dimension_numbers = #tpu.dot_dimension_numbers<[1], [0], [0], [1], [0, 0, 1, 1], [], []>} : vector<64x32xbf16>, vector<32x64xbf16>, vector<64x64xf32> -> vector<64x64xf32>
      %c0_134 = arith.constant 0 : index
      %c0_135 = arith.constant 0 : index
      %290 = vector.load %arg30[%c0_134, %c0_135] : memref<1x64xf32, #tpu.memory_space<vmem>>, vector<1x64xf32>
      %291 = vector.broadcast %290 : vector<1x64xf32> to vector<64x64xf32>
      %292 = arith.addf %289, %291 : vector<64x64xf32>
      %cst_136 = arith.constant 0.000000e+00 : f32
      %293 = vector.broadcast %cst_136 : f32 to vector<64x64xf32>
      %294 = arith.maximumf %292, %293 : vector<64x64xf32>
      %295 = arith.truncf %294 : vector<64x64xf32> to vector<64x64xbf16>
      %c0_137 = arith.constant 0 : index
      %c0_138 = arith.constant 0 : index
      %296 = vector.load %arg31[%c0_137, %c0_138] : memref<64x32xbf16, #tpu.memory_space<vmem>>, vector<64x32xbf16>
      %cst_139 = arith.constant dense<0.000000e+00> : vector<64x32xf32>
      %297 = tpu.matmul %295, %296, %cst_139 {dimension_numbers = #tpu.dot_dimension_numbers<[1], [0], [0], [1], [0, 0, 1, 1], [], []>} : vector<64x64xbf16>, vector<64x32xbf16>, vector<64x32xf32> -> vector<64x32xf32>
      %c0_140 = arith.constant 0 : index
      %c0_141 = arith.constant 0 : index
      %298 = vector.load %arg32[%c0_140, %c0_141] : memref<1x32xf32, #tpu.memory_space<vmem>>, vector<1x32xf32>
      %299 = vector.broadcast %298 : vector<1x32xf32> to vector<64x32xf32>
      %300 = arith.addf %297, %299 : vector<64x32xf32>
      %301 = arith.addf %300, %264 : vector<64x32xf32>
      %302 = vector.shape_cast %301 : vector<64x32xf32> to vector<8x8x32xf32>
      %cst_142 = arith.constant 1.000000e+00 : f32
      %303 = vector.broadcast %cst_142 : f32 to vector<8x8x1xf32>
      %304 = arith.subf %303, %186 : vector<8x8x1xf32>
      %305 = vector.broadcast %304 : vector<8x8x1xf32> to vector<8x8x32xf32>
      %306 = arith.mulf %302, %305 : vector<8x8x32xf32>
      %c0_143 = arith.constant 0 : index
      %c0_144 = arith.constant 0 : index
      %c0_145 = arith.constant 0 : index
      %307 = vector.load %arg33[%c0_143, %c0_144, %c0_145] : memref<8x8x32xf32, #tpu.memory_space<vmem>>, vector<8x8x32xf32>
      tpu.vector_store %arg33[%c0_143, %c0_144, %c0_145], %306 {strides = array<i32>} : memref<8x8x32xf32, #tpu.memory_space<vmem>>, vector<8x8x32xf32>,
    } else {
    }
    return
  }
  func.func @transform_0(%arg0: i32, %arg1: i32) -> (i32, i32, i32) {
    %c0_i32 = arith.constant 0 : i32
    %c0_i32_0 = arith.constant 0 : i32
    %c0_i32_1 = arith.constant 0 : i32
    return %arg0, %c0_i32, %c0_i32_0 : i32, i32, i32
  }
  func.func @transform_1(%arg0: i32, %arg1: i32) -> (i32, i32, i32) {
    %c0_i32 = arith.constant 0 : i32
    %c0_i32_0 = arith.constant 0 : i32
    %c0_i32_1 = arith.constant 0 : i32
    return %arg0, %c0_i32, %c0_i32_0 : i32, i32, i32
  }
  func.func @transform_2(%arg0: i32, %arg1: i32) -> (i32, i32, i32) {
    %c0_i32 = arith.constant 0 : i32
    %c0_i32_0 = arith.constant 0 : i32
    %c0_i32_1 = arith.constant 0 : i32
    return %arg0, %c0_i32, %c0_i32_0 : i32, i32, i32
  }
  func.func @transform_3(%arg0: i32, %arg1: i32) -> (i32, i32, i32) {
    %c0_i32 = arith.constant 0 : i32
    %c0_i32_0 = arith.constant 0 : i32
    %c0_i32_1 = arith.constant 0 : i32
    return %arg1, %c0_i32, %c0_i32_0 : i32, i32, i32
  }
  func.func @transform_4(%arg0: i32, %arg1: i32) -> (i32, i32, i32) {
    %c0_i32 = arith.constant 0 : i32
    %c0_i32_0 = arith.constant 0 : i32
    %c0_i32_1 = arith.constant 0 : i32
    return %arg1, %c0_i32, %c0_i32_0 : i32, i32, i32
  }
  func.func @transform_5(%arg0: i32, %arg1: i32) -> (i32, i32, i32) {
    %c0_i32 = arith.constant 0 : i32
    %c0_i32_0 = arith.constant 0 : i32
    %c0_i32_1 = arith.constant 0 : i32
    return %arg1, %c0_i32, %c0_i32_0 : i32, i32, i32
  }
  func.func @transform_6(%arg0: i32, %arg1: i32) -> (i32, i32, i32) {
    %c0_i32 = arith.constant 0 : i32
    %c0_i32_0 = arith.constant 0 : i32
    %c0_i32_1 = arith.constant 0 : i32
    return %arg1, %c0_i32, %c0_i32_0 : i32, i32, i32
  }
  func.func @transform_7(%arg0: i32, %arg1: i32) -> (i32, i32, i32) {
    %c0_i32 = arith.constant 0 : i32
    %c0_i32_0 = arith.constant 0 : i32
    %c0_i32_1 = arith.constant 0 : i32
    return %arg1, %c0_i32, %c0_i32_0 : i32, i32, i32
  }
  func.func @transform_8(%arg0: i32, %arg1: i32) -> (i32, i32, i32) {
    %c0_i32 = arith.constant 0 : i32
    %c0_i32_0 = arith.constant 0 : i32
    %c0_i32_1 = arith.constant 0 : i32
    return %arg1, %c0_i32, %c0_i32_0 : i32, i32, i32
  }
  func.func @transform_9(%arg0: i32, %arg1: i32) -> (i32, i32, i32) {
    %c0_i32 = arith.constant 0 : i32
    %c0_i32_0 = arith.constant 0 : i32
    %c0_i32_1 = arith.constant 0 : i32
    return %arg1, %c0_i32, %c0_i32_0 : i32, i32, i32
  }
  func.func @transform_10(%arg0: i32, %arg1: i32) -> (i32, i32, i32) {
    %c0_i32 = arith.constant 0 : i32
    %c0_i32_0 = arith.constant 0 : i32
    %c0_i32_1 = arith.constant 0 : i32
    return %arg1, %c0_i32, %c0_i32_0 : i32, i32, i32
  }
  func.func @transform_11(%arg0: i32, %arg1: i32) -> (i32, i32, i32) {
    %c0_i32 = arith.constant 0 : i32
    %c0_i32_0 = arith.constant 0 : i32
    %c0_i32_1 = arith.constant 0 : i32
    return %arg1, %c0_i32, %c0_i32_0 : i32, i32, i32
  }
  func.func @transform_12(%arg0: i32, %arg1: i32) -> (i32, i32, i32) {
    %c0_i32 = arith.constant 0 : i32
    %c0_i32_0 = arith.constant 0 : i32
    %c0_i32_1 = arith.constant 0 : i32
    return %arg1, %c0_i32, %c0_i32_0 : i32, i32, i32
  }
  func.func @transform_13(%arg0: i32, %arg1: i32) -> (i32, i32, i32) {
    %c0_i32 = arith.constant 0 : i32
    %c0_i32_0 = arith.constant 0 : i32
    %c0_i32_1 = arith.constant 0 : i32
    return %arg1, %c0_i32, %c0_i32_0 : i32, i32, i32
  }
  func.func @transform_14(%arg0: i32, %arg1: i32) -> (i32, i32, i32) {
    %c0_i32 = arith.constant 0 : i32
    %c0_i32_0 = arith.constant 0 : i32
    %c0_i32_1 = arith.constant 0 : i32
    return %arg1, %c0_i32, %c0_i32_0 : i32, i32, i32
  }
  func.func @transform_15(%arg0: i32, %arg1: i32) -> (i32, i32) {
    %c0_i32 = arith.constant 0 : i32
    %c0_i32_0 = arith.constant 0 : i32
    %c0_i32_1 = arith.constant 0 : i32
    return %c0_i32, %c0_i32_0 : i32, i32
  }
  func.func @transform_16(%arg0: i32, %arg1: i32) -> (i32, i32) {
    %c0_i32 = arith.constant 0 : i32
    %c0_i32_0 = arith.constant 0 : i32
    %c0_i32_1 = arith.constant 0 : i32
    return %c0_i32, %c0_i32_0 : i32, i32
  }
  func.func @transform_17(%arg0: i32, %arg1: i32) -> (i32, i32) {
    %c0_i32 = arith.constant 0 : i32
    %c0_i32_0 = arith.constant 0 : i32
    %c0_i32_1 = arith.constant 0 : i32
    return %c0_i32, %c0_i32_0 : i32, i32
  }
  func.func @transform_18(%arg0: i32, %arg1: i32) -> (i32, i32) {
    %c0_i32 = arith.constant 0 : i32
    %c0_i32_0 = arith.constant 0 : i32
    %c0_i32_1 = arith.constant 0 : i32
    return %c0_i32, %c0_i32_0 : i32, i32
  }
  func.func @transform_19(%arg0: i32, %arg1: i32) -> (i32, i32) {
    %c0_i32 = arith.constant 0 : i32
    %c0_i32_0 = arith.constant 0 : i32
    %c0_i32_1 = arith.constant 0 : i32
    return %c0_i32, %c0_i32_0 : i32, i32
  }
  func.func @transform_20(%arg0: i32, %arg1: i32) -> (i32, i32) {
    %c0_i32 = arith.constant 0 : i32
    %c0_i32_0 = arith.constant 0 : i32
    %c0_i32_1 = arith.constant 0 : i32
    return %c0_i32, %c0_i32_0 : i32, i32
  }
  func.func @transform_21(%arg0: i32, %arg1: i32) -> (i32, i32) {
    %c0_i32 = arith.constant 0 : i32
    %c0_i32_0 = arith.constant 0 : i32
    %c0_i32_1 = arith.constant 0 : i32
    return %c0_i32, %c0_i32_0 : i32, i32
  }
  func.func @transform_22(%arg0: i32, %arg1: i32) -> (i32, i32) {
    %c0_i32 = arith.constant 0 : i32
    %c0_i32_0 = arith.constant 0 : i32
    %c0_i32_1 = arith.constant 0 : i32
    return %c0_i32, %c0_i32_0 : i32, i32
  }
  func.func @transform_23(%arg0: i32, %arg1: i32) -> (i32, i32) {
    %c0_i32 = arith.constant 0 : i32
    %c0_i32_0 = arith.constant 0 : i32
    %c0_i32_1 = arith.constant 0 : i32
    return %c0_i32, %c0_i32_0 : i32, i32
  }
  func.func @transform_24(%arg0: i32, %arg1: i32) -> (i32, i32) {
    %c0_i32 = arith.constant 0 : i32
    %c0_i32_0 = arith.constant 0 : i32
    %c0_i32_1 = arith.constant 0 : i32
    return %c0_i32, %c0_i32_0 : i32, i32
  }
  func.func @transform_25(%arg0: i32, %arg1: i32) -> (i32, i32) {
    %c0_i32 = arith.constant 0 : i32
    %c0_i32_0 = arith.constant 0 : i32
    %c0_i32_1 = arith.constant 0 : i32
    return %c0_i32, %c0_i32_0 : i32, i32
  }
  func.func @transform_26(%arg0: i32, %arg1: i32) -> (i32, i32) {
    %c0_i32 = arith.constant 0 : i32
    %c0_i32_0 = arith.constant 0 : i32
    %c0_i32_1 = arith.constant 0 : i32
    return %c0_i32, %c0_i32_0 : i32, i32
  }
  func.func @transform_27(%arg0: i32, %arg1: i32) -> (i32, i32) {
    %c0_i32 = arith.constant 0 : i32
    %c0_i32_0 = arith.constant 0 : i32
    %c0_i32_1 = arith.constant 0 : i32
    return %c0_i32, %c0_i32_0 : i32, i32
  }
  func.func @transform_28(%arg0: i32, %arg1: i32) -> (i32, i32) {
    %c0_i32 = arith.constant 0 : i32
    %c0_i32_0 = arith.constant 0 : i32
    %c0_i32_1 = arith.constant 0 : i32
    return %c0_i32, %c0_i32_0 : i32, i32
  }
  func.func @transform_29(%arg0: i32, %arg1: i32) -> (i32, i32) {
    %c0_i32 = arith.constant 0 : i32
    %c0_i32_0 = arith.constant 0 : i32
    %c0_i32_1 = arith.constant 0 : i32
    return %c0_i32, %c0_i32_0 : i32, i32
  }
  func.func @transform_30(%arg0: i32, %arg1: i32) -> (i32, i32) {
    %c0_i32 = arith.constant 0 : i32
    %c0_i32_0 = arith.constant 0 : i32
    %c0_i32_1 = arith.constant 0 : i32
    return %c0_i32, %c0_i32_0 : i32, i32
  }
  func.func @transform_31(%arg0: i32, %arg1: i32) -> (i32, i32, i32) {
    %c0_i32 = arith.constant 0 : i32
    %c0_i32_0 = arith.constant 0 : i32
    %c0_i32_1 = arith.constant 0 : i32
    return %arg0, %c0_i32, %c0_i32_0 : i32, i32, i32
  }
  func.func @transform_32(%arg0: i32, %arg1: i32) -> (i32, i32) {
    %c0_i32 = arith.constant 0 : i32
    %c0_i32_0 = arith.constant 0 : i32
    return %arg0, %c0_i32 : i32, i32
  }
}

</mosaic_0001>

<llo_original>
// kernel: new_transformer_encoder_forward.1
$region0: #{new_transformer_encoder_forward.1}
  #allocation0 [shape = 'u32[]', space=smem, size = 0x4, offset = 0x4, fixed_abs, tag = 'smem constant byte address 0x4 - core index']
  #allocation1 [shape = 'u32[144,128]{1,0:T(1,128)}', space=vmem, size = 0x12000, scoped, tag = 'internal scratch']
  #allocation2 [shape = 'f32[64,32]{1,0:T(8,128)}', space=vmem, size = 0x8000, scoped, tag = 'scratch operand']
  %s0 = inlined_call_operand.smem [shape: u32[33], index: -1, kind: input, shape index: {}]
  %s1 = sld [smem:[%s0]]
  %s2 = scalar_lea.smem %s0, 1
  %s3 = sld [smem:[%s2]]
  %s4 = scalar_lea.smem %s0, 2
  %s5 = sld [smem:[%s4]]
  %s6 = scalar_lea.smem %s0, 3
  %s7 = sld [smem:[%s6]]
  %s8 = scalar_lea.smem %s0, 4
  %s9 = sld [smem:[%s8]]
  %s10 = scalar_lea.smem %s0, 5
  %s11 = sld [smem:[%s10]]
  %s12 = scalar_lea.smem %s0, 6
  %s13 = sld [smem:[%s12]]
  %s14 = scalar_lea.smem %s0, 7
  %s15 = sld [smem:[%s14]]
  %s16 = scalar_lea.smem %s0, 8
  %s17 = sld [smem:[%s16]]
  %s18 = scalar_lea.smem %s0, 9
  %s19 = sld [smem:[%s18]]
  %s20 = scalar_lea.smem %s0, 10
  %s21 = sld [smem:[%s20]]
  %s22 = scalar_lea.smem %s0, 11
  %s23 = sld [smem:[%s22]]
  %s24 = scalar_lea.smem %s0, 12
  %s25 = sld [smem:[%s24]]
  %s26 = scalar_lea.smem %s0, 13
  %s27 = sld [smem:[%s26]]
  %s28 = scalar_lea.smem %s0, 14
  %s29 = sld [smem:[%s28]]
  %s30 = scalar_lea.smem %s0, 15
  %s31 = sld [smem:[%s30]]
  %s32 = scalar_lea.smem %s0, 16
  %s33 = sld [smem:[%s32]]
  %s34 = scalar_lea.smem %s0, 17
  %s35 = sld [smem:[%s34]]
  %s36 = scalar_lea.smem %s0, 18
  %s37 = sld [smem:[%s36]]
  %s38 = scalar_lea.smem %s0, 19
  %s39 = sld [smem:[%s38]]
  %s40 = scalar_lea.smem %s0, 20
  %s41 = sld [smem:[%s40]]
  %s42 = scalar_lea.smem %s0, 21
  %s43 = sld [smem:[%s42]]
  %s44 = scalar_lea.smem %s0, 22
  %s45 = sld [smem:[%s44]]
  %s46 = scalar_lea.smem %s0, 23
  %s47 = sld [smem:[%s46]]
  %s48 = scalar_lea.smem %s0, 24
  %s49 = sld [smem:[%s48]]
  %s50 = scalar_lea.smem %s0, 25
  %s51 = sld [smem:[%s50]]
  %s52 = scalar_lea.smem %s0, 26
  %s53 = sld [smem:[%s52]]
  %s54 = scalar_lea.smem %s0, 27
  %s55 = sld [smem:[%s54]]
  %s56 = scalar_lea.smem %s0, 28
  %s57 = sld [smem:[%s56]]
  %s58 = scalar_lea.smem %s0, 29
  %s59 = sld [smem:[%s58]]
  %s60 = scalar_lea.smem %s0, 30
  %s61 = sld [smem:[%s60]]
  %s62 = scalar_lea.smem %s0, 31
  %s63 = sld [smem:[%s62]]
  %s64 = scalar_lea.smem %s0, 32
  %s65 = sld [smem:[%s64]]
  %66 = xla_tuple %s63, %s65
  %s67 = sld [smem:[#allocation0]]
  $region173: #{new_transformer_encoder_forward.1} parent=0
    _
  %s69 = ssub.s32 1, %s67
  %s70 = scalar_select 0, %s69, %s67
  loop: start=0, step=1, limit=4
  $region2: #{new_transformer_encoder_forward.1} parent=0 // loop_pre_header
    _
  $region3: #{new_transformer_encoder_forward.1} parent=0 // loop_header
    %s72 = sphi 0, %s76
    %p73 = scmp.ge.s32.totalorder %s72, 4
    %s79 = sphi 0, %s91
    %s80 = sphi 0, %s87
    %s81 = sphi 0, %s79
    %s82 = sphi 0, %s80
    %s83 = sphi 0, %s81
    %s84 = sphi 0, %s82
    %s94 = sphi 0, %s96
    %s97 = sphi 0, %s94
    %s98 = sphi 0, %s97
    %s114 = sphi 0, %s98
    %s120 = sphi 0, %s122
    %s123 = sphi 0, %s120
    %s124 = sphi 0, %s123
    %s140 = sphi 0, %s124
    %s146 = sphi 0, %s148
    %s149 = sphi 0, %s146
    %s150 = sphi 0, %s149
    %s166 = sphi 0, %s150
    %s172 = sphi 0, %s174
    %s175 = sphi 0, %s172
    %s176 = sphi 0, %s175
    %s192 = sphi 0, %s176
    %s198 = sphi 0, %s200
    %s201 = sphi 0, %s198
    %s202 = sphi 0, %s201
    %s218 = sphi 0, %s202
    %s224 = sphi 0, %s226
    %s227 = sphi 0, %s224
    %s228 = sphi 0, %s227
    %s244 = sphi 0, %s228
    %s250 = sphi 0, %s252
    %s253 = sphi 0, %s250
    %s254 = sphi 0, %s253
    %s270 = sphi 0, %s254
    %s276 = sphi 0, %s278
    %s279 = sphi 0, %s276
    %s280 = sphi 0, %s279
    %s296 = sphi 0, %s280
    %s302 = sphi 0, %s304
    %s305 = sphi 0, %s302
    %s306 = sphi 0, %s305
    %s322 = sphi 0, %s306
    %s328 = sphi 0, %s330
    %s331 = sphi 0, %s328
    %s332 = sphi 0, %s331
    %s348 = sphi 0, %s332
    %s354 = sphi 0, %s356
    %s357 = sphi 0, %s354
    %s358 = sphi 0, %s357
    %s374 = sphi 0, %s358
    %s380 = sphi 0, %s382
    %s383 = sphi 0, %s380
    %s384 = sphi 0, %s383
    %s400 = sphi 0, %s384
    %s406 = sphi 0, %s408
    %s409 = sphi 0, %s406
    %s410 = sphi 0, %s409
    %s426 = sphi 0, %s410
    %s432 = sphi 0, %s434
    %s435 = sphi 0, %s432
    %s436 = sphi 0, %s435
    %s452 = sphi 0, %s436
    %s458 = sphi 0, %s460
    %s461 = sphi 0, %s458
    %s462 = sphi 0, %s461
    %s478 = sphi 0, %s462
    %s482 = sphi 0, %s482
    %s484 = sphi 0, %s482
    %s485 = sphi 0, %s484
    %s499 = sphi 0, %s485
    %s503 = sphi 0, %s503
    %s505 = sphi 0, %s503
    %s506 = sphi 0, %s505
    %s520 = sphi 0, %s506
    %s524 = sphi 0, %s524
    %s526 = sphi 0, %s524
    %s527 = sphi 0, %s526
    %s541 = sphi 0, %s527
    %s545 = sphi 0, %s545
    %s547 = sphi 0, %s545
    %s548 = sphi 0, %s547
    %s562 = sphi 0, %s548
    %s566 = sphi 0, %s566
    %s568 = sphi 0, %s566
    %s569 = sphi 0, %s568
    %s583 = sphi 0, %s569
    %s587 = sphi 0, %s587
    %s589 = sphi 0, %s587
    %s590 = sphi 0, %s589
    %s604 = sphi 0, %s590
    %s608 = sphi 0, %s608
    %s610 = sphi 0, %s608
    %s611 = sphi 0, %s610
    %s625 = sphi 0, %s611
    %s629 = sphi 0, %s629
    %s631 = sphi 0, %s629
    %s632 = sphi 0, %s631
    %s646 = sphi 0, %s632
    %s650 = sphi 0, %s650
    %s652 = sphi 0, %s650
    %s653 = sphi 0, %s652
    %s667 = sphi 0, %s653
    %s671 = sphi 0, %s671
    %s673 = sphi 0, %s671
    %s674 = sphi 0, %s673
    %s688 = sphi 0, %s674
    %s692 = sphi 0, %s692
    %s694 = sphi 0, %s692
    %s695 = sphi 0, %s694
    %s709 = sphi 0, %s695
    %s713 = sphi 0, %s713
    %s715 = sphi 0, %s713
    %s716 = sphi 0, %s715
    %s730 = sphi 0, %s716
    %s734 = sphi 0, %s734
    %s736 = sphi 0, %s734
    %s737 = sphi 0, %s736
    %s751 = sphi 0, %s737
    %s755 = sphi 0, %s755
    %s757 = sphi 0, %s755
    %s758 = sphi 0, %s757
    %s772 = sphi 0, %s758
    %s776 = sphi 0, %s776
    %s778 = sphi 0, %s776
    %s779 = sphi 0, %s778
    %s793 = sphi 0, %s779
    %s797 = sphi 0, %s797
    %s799 = sphi 0, %s797
    %s800 = sphi 0, %s799
    %s814 = sphi 0, %s800
    %s820 = sphi 0, %s822
    %s823 = sphi 0, %s820
    %s824 = sphi 0, %s823
    %s840 = sphi 0, %s824
    %s846 = sphi 0, %s848
    %s849 = sphi 0, %s846
    %s850 = sphi 0, %s849
    %s866 = sphi 0, %s850
  $region4: #{new_transformer_encoder_forward.1} parent=0 // loop_header_branch
    %75 = sbr.rel (%p73) target = $region8
  $region5: #{new_transformer_encoder_forward.1} parent=0 // loop_body
    %s77 = ssub.s32 %s72, 1
    %s78 = ssub.s32 %s72, 2
    %s85 = sadd.s32 1, %s80
    %p86 = scmp.ge.s32.totalorder %s85, 2
    %s87 = scalar_select %p86, 0, %s85
    %s88 = sadd.s32 1, %s79
    %s89 = scalar_select %p86, %s88, %s79
    %p90 = scmp.ge.s32.totalorder %s89, 1
    %s91 = scalar_select %p90, 0, %s89
    %s92 = ssub.s32 %s79, %s91
    %p93 = scmp.eq.s32.totalorder %s92, 0
    %s95 = sadd.s32 %s94, 1
    %s96 = scalar_select %p93, %s94, %s95
    %p99 = pneg %p93
    %p100 = scmp.eq.s32.totalorder %s72, 1
    %p101 = por %p99, %p100
    %p102 = scmp.ne.s32.totalorder %s94, %s97
    %p103 = scmp.eq.s32.totalorder %s72, 0
    %p104 = por %p102, %p103
    %p105 = scmp.ne.s32.totalorder %s94, %s97
    %p106 = scmp.eq.s32.totalorder %s77, 1
    %p107 = por %p105, %p106
    %p108 = scmp.ne.s32.totalorder %s97, %s98
    %p109 = scmp.eq.s32.totalorder %s77, 0
    %p110 = por %p108, %p109
    %p111 = scmp.ne.s32.totalorder %s97, %s98
    %p112 = scmp.eq.s32.totalorder %s78, 1
    %p113 = por %p111, %p112
    %p115 = scmp.ne.s32.totalorder %s98, %s114
    %p116 = scmp.eq.s32.totalorder %s78, 0
    %p117 = por %p115, %p116
    %s118 = ssub.s32 %s79, %s91
    %p119 = scmp.eq.s32.totalorder %s118, 0
    %s121 = sadd.s32 %s120, 1
    %s122 = scalar_select %p119, %s120, %s121
    %p125 = pneg %p119
    %p126 = scmp.eq.s32.totalorder %s72, 1
    %p127 = por %p125, %p126
    %p128 = scmp.ne.s32.totalorder %s120, %s123
    %p129 = scmp.eq.s32.totalorder %s72, 0
    %p130 = por %p128, %p129
    %p131 = scmp.ne.s32.totalorder %s120, %s123
    %p132 = scmp.eq.s32.totalorder %s77, 1
    %p133 = por %p131, %p132
    %p134 = scmp.ne.s32.totalorder %s123, %s124
    %p135 = scmp.eq.s32.totalorder %s77, 0
    %p136 = por %p134, %p135
    %p137 = scmp.ne.s32.totalorder %s123, %s124
    %p138 = scmp.eq.s32.totalorder %s78, 1
    %p139 = por %p137, %p138
    %p141 = scmp.ne.s32.totalorder %s124, %s140
    %p142 = scmp.eq.s32.totalorder %s78, 0
    %p143 = por %p141, %p142
    %s144 = ssub.s32 %s79, %s91
    %p145 = scmp.eq.s32.totalorder %s144, 0
    %s147 = sadd.s32 %s146, 1
    %s148 = scalar_select %p145, %s146, %s147
    %p151 = pneg %p145
    %p152 = scmp.eq.s32.totalorder %s72, 1
    %p153 = por %p151, %p152
    %p154 = scmp.ne.s32.totalorder %s146, %s149
    %p155 = scmp.eq.s32.totalorder %s72, 0
    %p156 = por %p154, %p155
    %p157 = scmp.ne.s32.totalorder %s146, %s149
    %p158 = scmp.eq.s32.totalorder %s77, 1
    %p159 = por %p157, %p158
    %p160 = scmp.ne.s32.totalorder %s149, %s150
    %p161 = scmp.eq.s32.totalorder %s77, 0
    %p162 = por %p160, %p161
    %p163 = scmp.ne.s32.totalorder %s149, %s150
    %p164 = scmp.eq.s32.totalorder %s78, 1
    %p165 = por %p163, %p164
    %p167 = scmp.ne.s32.totalorder %s150, %s166
    %p168 = scmp.eq.s32.totalorder %s78, 0
    %p169 = por %p167, %p168
    %s170 = ssub.s32 %s80, %s87
    %p171 = scmp.eq.s32.totalorder %s170, 0
    %s173 = sadd.s32 %s172, 1
    %s174 = scalar_select %p171, %s172, %s173
    %p177 = pneg %p171
    %p178 = scmp.eq.s32.totalorder %s72, 1
    %p179 = por %p177, %p178
    %p180 = scmp.ne.s32.totalorder %s172, %s175
    %p181 = scmp.eq.s32.totalorder %s72, 0
    %p182 = por %p180, %p181
    %p183 = scmp.ne.s32.totalorder %s172, %s175
    %p184 = scmp.eq.s32.totalorder %s77, 1
    %p185 = por %p183, %p184
    %p186 = scmp.ne.s32.totalorder %s175, %s176
    %p187 = scmp.eq.s32.totalorder %s77, 0
    %p188 = por %p186, %p187
    %p189 = scmp.ne.s32.totalorder %s175, %s176
    %p190 = scmp.eq.s32.totalorder %s78, 1
    %p191 = por %p189, %p190
    %p193 = scmp.ne.s32.totalorder %s176, %s192
    %p194 = scmp.eq.s32.totalorder %s78, 0
    %p195 = por %p193, %p194
    %s196 = ssub.s32 %s80, %s87
    %p197 = scmp.eq.s32.totalorder %s196, 0
    %s199 = sadd.s32 %s198, 1
    %s200 = scalar_select %p197, %s198, %s199
    %p203 = pneg %p197
    %p204 = scmp.eq.s32.totalorder %s72, 1
    %p205 = por %p203, %p204
    %p206 = scmp.ne.s32.totalorder %s198, %s201
    %p207 = scmp.eq.s32.totalorder %s72, 0
    %p208 = por %p206, %p207
    %p209 = scmp.ne.s32.totalorder %s198, %s201
    %p210 = scmp.eq.s32.totalorder %s77, 1
    %p211 = por %p209, %p210
    %p212 = scmp.ne.s32.totalorder %s201, %s202
    %p213 = scmp.eq.s32.totalorder %s77, 0
    %p214 = por %p212, %p213
    %p215 = scmp.ne.s32.totalorder %s201, %s202
    %p216 = scmp.eq.s32.totalorder %s78, 1
    %p217 = por %p215, %p216
    %p219 = scmp.ne.s32.totalorder %s202, %s218
    %p220 = scmp.eq.s32.totalorder %s78, 0
    %p221 = por %p219, %p220
    %s222 = ssub.s32 %s80, %s87
    %p223 = scmp.eq.s32.totalorder %s222, 0
    %s225 = sadd.s32 %s224, 1
    %s226 = scalar_select %p223, %s224, %s225
    %p229 = pneg %p223
    %p230 = scmp.eq.s32.totalorder %s72, 1
    %p231 = por %p229, %p230
    %p232 = scmp.ne.s32.totalorder %s224, %s227
    %p233 = scmp.eq.s32.totalorder %s72, 0
    %p234 = por %p232, %p233
    %p235 = scmp.ne.s32.totalorder %s224, %s227
    %p236 = scmp.eq.s32.totalorder %s77, 1
    %p237 = por %p235, %p236
    %p238 = scmp.ne.s32.totalorder %s227, %s228
    %p239 = scmp.eq.s32.totalorder %s77, 0
    %p240 = por %p238, %p239
    %p241 = scmp.ne.s32.totalorder %s227, %s228
    %p242 = scmp.eq.s32.totalorder %s78, 1
    %p243 = por %p241, %p242
    %p245 = scmp.ne.s32.totalorder %s228, %s244
    %p246 = scmp.eq.s32.totalorder %s78, 0
    %p247 = por %p245, %p246
    %s248 = ssub.s32 %s80, %s87
    %p249 = scmp.eq.s32.totalorder %s248, 0
    %s251 = sadd.s32 %s250, 1
    %s252 = scalar_select %p249, %s250, %s251
    %p255 = pneg %p249
    %p256 = scmp.eq.s32.totalorder %s72, 1
    %p257 = por %p255, %p256
    %p258 = scmp.ne.s32.totalorder %s250, %s253
    %p259 = scmp.eq.s32.totalorder %s72, 0
    %p260 = por %p258, %p259
    %p261 = scmp.ne.s32.totalorder %s250, %s253
    %p262 = scmp.eq.s32.totalorder %s77, 1
    %p263 = por %p261, %p262
    %p264 = scmp.ne.s32.totalorder %s253, %s254
    %p265 = scmp.eq.s32.totalorder %s77, 0
    %p266 = por %p264, %p265
    %p267 = scmp.ne.s32.totalorder %s253, %s254
    %p268 = scmp.eq.s32.totalorder %s78, 1
    %p269 = por %p267, %p268
    %p271 = scmp.ne.s32.totalorder %s254, %s270
    %p272 = scmp.eq.s32.totalorder %s78, 0
    %p273 = por %p271, %p272
    %s274 = ssub.s32 %s80, %s87
    %p275 = scmp.eq.s32.totalorder %s274, 0
    %s277 = sadd.s32 %s276, 1
    %s278 = scalar_select %p275, %s276, %s277
    %p281 = pneg %p275
    %p282 = scmp.eq.s32.totalorder %s72, 1
    %p283 = por %p281, %p282
    %p284 = scmp.ne.s32.totalorder %s276, %s279
    %p285 = scmp.eq.s32.totalorder %s72, 0
    %p286 = por %p284, %p285
    %p287 = scmp.ne.s32.totalorder %s276, %s279
    %p288 = scmp.eq.s32.totalorder %s77, 1
    %p289 = por %p287, %p288
    %p290 = scmp.ne.s32.totalorder %s279, %s280
    %p291 = scmp.eq.s32.totalorder %s77, 0
    %p292 = por %p290, %p291
    %p293 = scmp.ne.s32.totalorder %s279, %s280
    %p294 = scmp.eq.s32.totalorder %s78, 1
    %p295 = por %p293, %p294
    %p297 = scmp.ne.s32.totalorder %s280, %s296
    %p298 = scmp.eq.s32.totalorder %s78, 0
    %p299 = por %p297, %p298
    %s300 = ssub.s32 %s80, %s87
    %p301 = scmp.eq.s32.totalorder %s300, 0
    %s303 = sadd.s32 %s302, 1
    %s304 = scalar_select %p301, %s302, %s303
    %p307 = pneg %p301
    %p308 = scmp.eq.s32.totalorder %s72, 1
    %p309 = por %p307, %p308
    %p310 = scmp.ne.s32.totalorder %s302, %s305
    %p311 = scmp.eq.s32.totalorder %s72, 0
    %p312 = por %p310, %p311
    %p313 = scmp.ne.s32.totalorder %s302, %s305
    %p314 = scmp.eq.s32.totalorder %s77, 1
    %p315 = por %p313, %p314
    %p316 = scmp.ne.s32.totalorder %s305, %s306
    %p317 = scmp.eq.s32.totalorder %s77, 0
    %p318 = por %p316, %p317
    %p319 = scmp.ne.s32.totalorder %s305, %s306
    %p320 = scmp.eq.s32.totalorder %s78, 1
    %p321 = por %p319, %p320
    %p323 = scmp.ne.s32.totalorder %s306, %s322
    %p324 = scmp.eq.s32.totalorder %s78, 0
    %p325 = por %p323, %p324
    %s326 = ssub.s32 %s80, %s87
    %p327 = scmp.eq.s32.totalorder %s326, 0
    %s329 = sadd.s32 %s328, 1
    %s330 = scalar_select %p327, %s328, %s329
    %p333 = pneg %p327
    %p334 = scmp.eq.s32.totalorder %s72, 1
    %p335 = por %p333, %p334
    %p336 = scmp.ne.s32.totalorder %s328, %s331
    %p337 = scmp.eq.s32.totalorder %s72, 0
    %p338 = por %p336, %p337
    %p339 = scmp.ne.s32.totalorder %s328, %s331
    %p340 = scmp.eq.s32.totalorder %s77, 1
    %p341 = por %p339, %p340
    %p342 = scmp.ne.s32.totalorder %s331, %s332
    %p343 = scmp.eq.s32.totalorder %s77, 0
    %p344 = por %p342, %p343
    %p345 = scmp.ne.s32.totalorder %s331, %s332
    %p346 = scmp.eq.s32.totalorder %s78, 1
    %p347 = por %p345, %p346
    %p349 = scmp.ne.s32.totalorder %s332, %s348
    %p350 = scmp.eq.s32.totalorder %s78, 0
    %p351 = por %p349, %p350
    %s352 = ssub.s32 %s80, %s87
    %p353 = scmp.eq.s32.totalorder %s352, 0
    %s355 = sadd.s32 %s354, 1
    %s356 = scalar_select %p353, %s354, %s355
    %p359 = pneg %p353
    %p360 = scmp.eq.s32.totalorder %s72, 1
    %p361 = por %p359, %p360
    %p362 = scmp.ne.s32.totalorder %s354, %s357
    %p363 = scmp.eq.s32.totalorder %s72, 0
    %p364 = por %p362, %p363
    %p365 = scmp.ne.s32.totalorder %s354, %s357
    %p366 = scmp.eq.s32.totalorder %s77, 1
    %p367 = por %p365, %p366
    %p368 = scmp.ne.s32.totalorder %s357, %s358
    %p369 = scmp.eq.s32.totalorder %s77, 0
    %p370 = por %p368, %p369
    %p371 = scmp.ne.s32.totalorder %s357, %s358
    %p372 = scmp.eq.s32.totalorder %s78, 1
    %p373 = por %p371, %p372
    %p375 = scmp.ne.s32.totalorder %s358, %s374
    %p376 = scmp.eq.s32.totalorder %s78, 0
    %p377 = por %p375, %p376
    %s378 = ssub.s32 %s80, %s87
    %p379 = scmp.eq.s32.totalorder %s378, 0
    %s381 = sadd.s32 %s380, 1
    %s382 = scalar_select %p379, %s380, %s381
    %p385 = pneg %p379
    %p386 = scmp.eq.s32.totalorder %s72, 1
    %p387 = por %p385, %p386
    %p388 = scmp.ne.s32.totalorder %s380, %s383
    %p389 = scmp.eq.s32.totalorder %s72, 0
    %p390 = por %p388, %p389
    %p391 = scmp.ne.s32.totalorder %s380, %s383
    %p392 = scmp.eq.s32.totalorder %s77, 1
    %p393 = por %p391, %p392
    %p394 = scmp.ne.s32.totalorder %s383, %s384
    %p395 = scmp.eq.s32.totalorder %s77, 0
    %p396 = por %p394, %p395
    %p397 = scmp.ne.s32.totalorder %s383, %s384
    %p398 = scmp.eq.s32.totalorder %s78, 1
    %p399 = por %p397, %p398
    %p401 = scmp.ne.s32.totalorder %s384, %s400
    %p402 = scmp.eq.s32.totalorder %s78, 0
    %p403 = por %p401, %p402
    %s404 = ssub.s32 %s80, %s87
    %p405 = scmp.eq.s32.totalorder %s404, 0
    %s407 = sadd.s32 %s406, 1
    %s408 = scalar_select %p405, %s406, %s407
    %p411 = pneg %p405
    %p412 = scmp.eq.s32.totalorder %s72, 1
    %p413 = por %p411, %p412
    %p414 = scmp.ne.s32.totalorder %s406, %s409
    %p415 = scmp.eq.s32.totalorder %s72, 0
    %p416 = por %p414, %p415
    %p417 = scmp.ne.s32.totalorder %s406, %s409
    %p418 = scmp.eq.s32.totalorder %s77, 1
    %p419 = por %p417, %p418
    %p420 = scmp.ne.s32.totalorder %s409, %s410
    %p421 = scmp.eq.s32.totalorder %s77, 0
    %p422 = por %p420, %p421
    %p423 = scmp.ne.s32.totalorder %s409, %s410
    %p424 = scmp.eq.s32.totalorder %s78, 1
    %p425 = por %p423, %p424
    %p427 = scmp.ne.s32.totalorder %s410, %s426
    %p428 = scmp.eq.s32.totalorder %s78, 0
    %p429 = por %p427, %p428
    %s430 = ssub.s32 %s80, %s87
    %p431 = scmp.eq.s32.totalorder %s430, 0
    %s433 = sadd.s32 %s432, 1
    %s434 = scalar_select %p431, %s432, %s433
    %p437 = pneg %p431
    %p438 = scmp.eq.s32.totalorder %s72, 1
    %p439 = por %p437, %p438
    %p440 = scmp.ne.s32.totalorder %s432, %s435
    %p441 = scmp.eq.s32.totalorder %s72, 0
    %p442 = por %p440, %p441
    %p443 = scmp.ne.s32.totalorder %s432, %s435
    %p444 = scmp.eq.s32.totalorder %s77, 1
    %p445 = por %p443, %p444
    %p446 = scmp.ne.s32.totalorder %s435, %s436
    %p447 = scmp.eq.s32.totalorder %s77, 0
    %p448 = por %p446, %p447
    %p449 = scmp.ne.s32.totalorder %s435, %s436
    %p450 = scmp.eq.s32.totalorder %s78, 1
    %p451 = por %p449, %p450
    %p453 = scmp.ne.s32.totalorder %s436, %s452
    %p454 = scmp.eq.s32.totalorder %s78, 0
    %p455 = por %p453, %p454
    %s456 = ssub.s32 %s80, %s87
    %p457 = scmp.eq.s32.totalorder %s456, 0
    %s459 = sadd.s32 %s458, 1
    %s460 = scalar_select %p457, %s458, %s459
    %p463 = pneg %p457
    %p464 = scmp.eq.s32.totalorder %s72, 1
    %p465 = por %p463, %p464
    %p466 = scmp.ne.s32.totalorder %s458, %s461
    %p467 = scmp.eq.s32.totalorder %s72, 0
    %p468 = por %p466, %p467
    %p469 = scmp.ne.s32.totalorder %s458, %s461
    %p470 = scmp.eq.s32.totalorder %s77, 1
    %p471 = por %p469, %p470
    %p472 = scmp.ne.s32.totalorder %s461, %s462
    %p473 = scmp.eq.s32.totalorder %s77, 0
    %p474 = por %p472, %p473
    %p475 = scmp.ne.s32.totalorder %s461, %s462
    %p476 = scmp.eq.s32.totalorder %s78, 1
    %p477 = por %p475, %p476
    %p479 = scmp.ne.s32.totalorder %s462, %s478
    %p480 = scmp.eq.s32.totalorder %s78, 0
    %p481 = por %p479, %p480
    %s483 = sadd.s32 %s482, 1
    %p486 = scmp.eq.s32.totalorder %s72, 1
    %p487 = scmp.ne.s32.totalorder %s482, %s484
    %p488 = scmp.eq.s32.totalorder %s72, 0
    %p489 = por %p487, %p488
    %p490 = scmp.ne.s32.totalorder %s482, %s484
    %p491 = scmp.eq.s32.totalorder %s77, 1
    %p492 = por %p490, %p491
    %p493 = scmp.ne.s32.totalorder %s484, %s485
    %p494 = scmp.eq.s32.totalorder %s77, 0
    %p495 = por %p493, %p494
    %p496 = scmp.ne.s32.totalorder %s484, %s485
    %p497 = scmp.eq.s32.totalorder %s78, 1
    %p498 = por %p496, %p497
    %p500 = scmp.ne.s32.totalorder %s485, %s499
    %p501 = scmp.eq.s32.totalorder %s78, 0
    %p502 = por %p500, %p501
    %s504 = sadd.s32 %s503, 1
    %p507 = scmp.eq.s32.totalorder %s72, 1
    %p508 = scmp.ne.s32.totalorder %s503, %s505
    %p509 = scmp.eq.s32.totalorder %s72, 0
    %p510 = por %p508, %p509
    %p511 = scmp.ne.s32.totalorder %s503, %s505
    %p512 = scmp.eq.s32.totalorder %s77, 1
    %p513 = por %p511, %p512
    %p514 = scmp.ne.s32.totalorder %s505, %s506
    %p515 = scmp.eq.s32.totalorder %s77, 0
    %p516 = por %p514, %p515
    %p517 = scmp.ne.s32.totalorder %s505, %s506
    %p518 = scmp.eq.s32.totalorder %s78, 1
    %p519 = por %p517, %p518
    %p521 = scmp.ne.s32.totalorder %s506, %s520
    %p522 = scmp.eq.s32.totalorder %s78, 0
    %p523 = por %p521, %p522
    %s525 = sadd.s32 %s524, 1
    %p528 = scmp.eq.s32.totalorder %s72, 1
    %p529 = scmp.ne.s32.totalorder %s524, %s526
    %p530 = scmp.eq.s32.totalorder %s72, 0
    %p531 = por %p529, %p530
    %p532 = scmp.ne.s32.totalorder %s524, %s526
    %p533 = scmp.eq.s32.totalorder %s77, 1
    %p534 = por %p532, %p533
    %p535 = scmp.ne.s32.totalorder %s526, %s527
    %p536 = scmp.eq.s32.totalorder %s77, 0
    %p537 = por %p535, %p536
    %p538 = scmp.ne.s32.totalorder %s526, %s527
    %p539 = scmp.eq.s32.totalorder %s78, 1
    %p540 = por %p538, %p539
    %p542 = scmp.ne.s32.totalorder %s527, %s541
    %p543 = scmp.eq.s32.totalorder %s78, 0
    %p544 = por %p542, %p543
    %s546 = sadd.s32 %s545, 1
    %p549 = scmp.eq.s32.totalorder %s72, 1
    %p550 = scmp.ne.s32.totalorder %s545, %s547
    %p551 = scmp.eq.s32.totalorder %s72, 0
    %p552 = por %p550, %p551
    %p553 = scmp.ne.s32.totalorder %s545, %s547
    %p554 = scmp.eq.s32.totalorder %s77, 1
    %p555 = por %p553, %p554
    %p556 = scmp.ne.s32.totalorder %s547, %s548
    %p557 = scmp.eq.s32.totalorder %s77, 0
    %p558 = por %p556, %p557
    %p559 = scmp.ne.s32.totalorder %s547, %s548
    %p560 = scmp.eq.s32.totalorder %s78, 1
    %p561 = por %p559, %p560
    %p563 = scmp.ne.s32.totalorder %s548, %s562
    %p564 = scmp.eq.s32.totalorder %s78, 0
    %p565 = por %p563, %p564
    %s567 = sadd.s32 %s566, 1
    %p570 = scmp.eq.s32.totalorder %s72, 1
    %p571 = scmp.ne.s32.totalorder %s566, %s568
    %p572 = scmp.eq.s32.totalorder %s72, 0
    %p573 = por %p571, %p572
    %p574 = scmp.ne.s32.totalorder %s566, %s568
    %p575 = scmp.eq.s32.totalorder %s77, 1
    %p576 = por %p574, %p575
    %p577 = scmp.ne.s32.totalorder %s568, %s569
    %p578 = scmp.eq.s32.totalorder %s77, 0
    %p579 = por %p577, %p578
    %p580 = scmp.ne.s32.totalorder %s568, %s569
    %p581 = scmp.eq.s32.totalorder %s78, 1
    %p582 = por %p580, %p581
    %p584 = scmp.ne.s32.totalorder %s569, %s583
    %p585 = scmp.eq.s32.totalorder %s78, 0
    %p586 = por %p584, %p585
    %s588 = sadd.s32 %s587, 1
    %p591 = scmp.eq.s32.totalorder %s72, 1
    %p592 = scmp.ne.s32.totalorder %s587, %s589
    %p593 = scmp.eq.s32.totalorder %s72, 0
    %p594 = por %p592, %p593
    %p595 = scmp.ne.s32.totalorder %s587, %s589
    %p596 = scmp.eq.s32.totalorder %s77, 1
    %p597 = por %p595, %p596
    %p598 = scmp.ne.s32.totalorder %s589, %s590
    %p599 = scmp.eq.s32.totalorder %s77, 0
    %p600 = por %p598, %p599
    %p601 = scmp.ne.s32.totalorder %s589, %s590
    %p602 = scmp.eq.s32.totalorder %s78, 1
    %p603 = por %p601, %p602
    %p605 = scmp.ne.s32.totalorder %s590, %s604
    %p606 = scmp.eq.s32.totalorder %s78, 0
    %p607 = por %p605, %p606
    %s609 = sadd.s32 %s608, 1
    %p612 = scmp.eq.s32.totalorder %s72, 1
    %p613 = scmp.ne.s32.totalorder %s608, %s610
    %p614 = scmp.eq.s32.totalorder %s72, 0
    %p615 = por %p613, %p614
    %p616 = scmp.ne.s32.totalorder %s608, %s610
    %p617 = scmp.eq.s32.totalorder %s77, 1
    %p618 = por %p616, %p617
    %p619 = scmp.ne.s32.totalorder %s610, %s611
    %p620 = scmp.eq.s32.totalorder %s77, 0
    %p621 = por %p619, %p620
    %p622 = scmp.ne.s32.totalorder %s610, %s611
    %p623 = scmp.eq.s32.totalorder %s78, 1
    %p624 = por %p622, %p623
    %p626 = scmp.ne.s32.totalorder %s611, %s625
    %p627 = scmp.eq.s32.totalorder %s78, 0
    %p628 = por %p626, %p627
    %s630 = sadd.s32 %s629, 1
    %p633 = scmp.eq.s32.totalorder %s72, 1
    %p634 = scmp.ne.s32.totalorder %s629, %s631
    %p635 = scmp.eq.s32.totalorder %s72, 0
    %p636 = por %p634, %p635
    %p637 = scmp.ne.s32.totalorder %s629, %s631
    %p638 = scmp.eq.s32.totalorder %s77, 1
    %p639 = por %p637, %p638
    %p640 = scmp.ne.s32.totalorder %s631, %s632
    %p641 = scmp.eq.s32.totalorder %s77, 0
    %p642 = por %p640, %p641
    %p643 = scmp.ne.s32.totalorder %s631, %s632
    %p644 = scmp.eq.s32.totalorder %s78, 1
    %p645 = por %p643, %p644
    %p647 = scmp.ne.s32.totalorder %s632, %s646
    %p648 = scmp.eq.s32.totalorder %s78, 0
    %p649 = por %p647, %p648
    %s651 = sadd.s32 %s650, 1
    %p654 = scmp.eq.s32.totalorder %s72, 1
    %p655 = scmp.ne.s32.totalorder %s650, %s652
    %p656 = scmp.eq.s32.totalorder %s72, 0
    %p657 = por %p655, %p656
    %p658 = scmp.ne.s32.totalorder %s650, %s652
    %p659 = scmp.eq.s32.totalorder %s77, 1
    %p660 = por %p658, %p659
    %p661 = scmp.ne.s32.totalorder %s652, %s653
    %p662 = scmp.eq.s32.totalorder %s77, 0
    %p663 = por %p661, %p662
    %p664 = scmp.ne.s32.totalorder %s652, %s653
    %p665 = scmp.eq.s32.totalorder %s78, 1
    %p666 = por %p664, %p665
    %p668 = scmp.ne.s32.totalorder %s653, %s667
    %p669 = scmp.eq.s32.totalorder %s78, 0
    %p670 = por %p668, %p669
    %s672 = sadd.s32 %s671, 1
    %p675 = scmp.eq.s32.totalorder %s72, 1
    %p676 = scmp.ne.s32.totalorder %s671, %s673
    %p677 = scmp.eq.s32.totalorder %s72, 0
    %p678 = por %p676, %p677
    %p679 = scmp.ne.s32.totalorder %s671, %s673
    %p680 = scmp.eq.s32.totalorder %s77, 1
    %p681 = por %p679, %p680
    %p682 = scmp.ne.s32.totalorder %s673, %s674
    %p683 = scmp.eq.s32.totalorder %s77, 0
    %p684 = por %p682, %p683
    %p685 = scmp.ne.s32.totalorder %s673, %s674
    %p686 = scmp.eq.s32.totalorder %s78, 1
    %p687 = por %p685, %p686
    %p689 = scmp.ne.s32.totalorder %s674, %s688
    %p690 = scmp.eq.s32.totalorder %s78, 0
    %p691 = por %p689, %p690
    %s693 = sadd.s32 %s692, 1
    %p696 = scmp.eq.s32.totalorder %s72, 1
    %p697 = scmp.ne.s32.totalorder %s692, %s694
    %p698 = scmp.eq.s32.totalorder %s72, 0
    %p699 = por %p697, %p698
    %p700 = scmp.ne.s32.totalorder %s692, %s694
    %p701 = scmp.eq.s32.totalorder %s77, 1
    %p702 = por %p700, %p701
    %p703 = scmp.ne.s32.totalorder %s694, %s695
    %p704 = scmp.eq.s32.totalorder %s77, 0
    %p705 = por %p703, %p704
    %p706 = scmp.ne.s32.totalorder %s694, %s695
    %p707 = scmp.eq.s32.totalorder %s78, 1
    %p708 = por %p706, %p707
    %p710 = scmp.ne.s32.totalorder %s695, %s709
    %p711 = scmp.eq.s32.totalorder %s78, 0
    %p712 = por %p710, %p711
    %s714 = sadd.s32 %s713, 1
    %p717 = scmp.eq.s32.totalorder %s72, 1
    %p718 = scmp.ne.s32.totalorder %s713, %s715
    %p719 = scmp.eq.s32.totalorder %s72, 0
    %p720 = por %p718, %p719
    %p721 = scmp.ne.s32.totalorder %s713, %s715
    %p722 = scmp.eq.s32.totalorder %s77, 1
    %p723 = por %p721, %p722
    %p724 = scmp.ne.s32.totalorder %s715, %s716
    %p725 = scmp.eq.s32.totalorder %s77, 0
    %p726 = por %p724, %p725
    %p727 = scmp.ne.s32.totalorder %s715, %s716
    %p728 = scmp.eq.s32.totalorder %s78, 1
    %p729 = por %p727, %p728
    %p731 = scmp.ne.s32.totalorder %s716, %s730
    %p732 = scmp.eq.s32.totalorder %s78, 0
    %p733 = por %p731, %p732
    %s735 = sadd.s32 %s734, 1
    %p738 = scmp.eq.s32.totalorder %s72, 1
    %p739 = scmp.ne.s32.totalorder %s734, %s736
    %p740 = scmp.eq.s32.totalorder %s72, 0
    %p741 = por %p739, %p740
    %p742 = scmp.ne.s32.totalorder %s734, %s736
    %p743 = scmp.eq.s32.totalorder %s77, 1
    %p744 = por %p742, %p743
    %p745 = scmp.ne.s32.totalorder %s736, %s737
    %p746 = scmp.eq.s32.totalorder %s77, 0
    %p747 = por %p745, %p746
    %p748 = scmp.ne.s32.totalorder %s736, %s737
    %p749 = scmp.eq.s32.totalorder %s78, 1
    %p750 = por %p748, %p749
    %p752 = scmp.ne.s32.totalorder %s737, %s751
    %p753 = scmp.eq.s32.totalorder %s78, 0
    %p754 = por %p752, %p753
    %s756 = sadd.s32 %s755, 1
    %p759 = scmp.eq.s32.totalorder %s72, 1
    %p760 = scmp.ne.s32.totalorder %s755, %s757
    %p761 = scmp.eq.s32.totalorder %s72, 0
    %p762 = por %p760, %p761
    %p763 = scmp.ne.s32.totalorder %s755, %s757
    %p764 = scmp.eq.s32.totalorder %s77, 1
    %p765 = por %p763, %p764
    %p766 = scmp.ne.s32.totalorder %s757, %s758
    %p767 = scmp.eq.s32.totalorder %s77, 0
    %p768 = por %p766, %p767
    %p769 = scmp.ne.s32.totalorder %s757, %s758
    %p770 = scmp.eq.s32.totalorder %s78, 1
    %p771 = por %p769, %p770
    %p773 = scmp.ne.s32.totalorder %s758, %s772
    %p774 = scmp.eq.s32.totalorder %s78, 0
    %p775 = por %p773, %p774
    %s777 = sadd.s32 %s776, 1
    %p780 = scmp.eq.s32.totalorder %s72, 1
    %p781 = scmp.ne.s32.totalorder %s776, %s778
    %p782 = scmp.eq.s32.totalorder %s72, 0
    %p783 = por %p781, %p782
    %p784 = scmp.ne.s32.totalorder %s776, %s778
    %p785 = scmp.eq.s32.totalorder %s77, 1
    %p786 = por %p784, %p785
    %p787 = scmp.ne.s32.totalorder %s778, %s779
    %p788 = scmp.eq.s32.totalorder %s77, 0
    %p789 = por %p787, %p788
    %p790 = scmp.ne.s32.totalorder %s778, %s779
    %p791 = scmp.eq.s32.totalorder %s78, 1
    %p792 = por %p790, %p791
    %p794 = scmp.ne.s32.totalorder %s779, %s793
    %p795 = scmp.eq.s32.totalorder %s78, 0
    %p796 = por %p794, %p795
    %s798 = sadd.s32 %s797, 1
    %p801 = scmp.eq.s32.totalorder %s72, 1
    %p802 = scmp.ne.s32.totalorder %s797, %s799
    %p803 = scmp.eq.s32.totalorder %s72, 0
    %p804 = por %p802, %p803
    %p805 = scmp.ne.s32.totalorder %s797, %s799
    %p806 = scmp.eq.s32.totalorder %s77, 1
    %p807 = por %p805, %p806
    %p808 = scmp.ne.s32.totalorder %s799, %s800
    %p809 = scmp.eq.s32.totalorder %s77, 0
    %p810 = por %p808, %p809
    %p811 = scmp.ne.s32.totalorder %s799, %s800
    %p812 = scmp.eq.s32.totalorder %s78, 1
    %p813 = por %p811, %p812
    %p815 = scmp.ne.s32.totalorder %s800, %s814
    %p816 = scmp.eq.s32.totalorder %s78, 0
    %p817 = por %p815, %p816
    %s818 = ssub.s32 %s79, %s91
    %p819 = scmp.eq.s32.totalorder %s818, 0
    %s821 = sadd.s32 %s820, 1
    %s822 = scalar_select %p819, %s820, %s821
    %p825 = pneg %p819
    %p826 = scmp.eq.s32.totalorder %s72, 1
    %p827 = por %p825, %p826
    %p828 = scmp.ne.s32.totalorder %s820, %s823
    %p829 = scmp.eq.s32.totalorder %s72, 0
    %p830 = por %p828, %p829
    %p831 = scmp.ne.s32.totalorder %s820, %s823
    %p832 = scmp.eq.s32.totalorder %s77, 1
    %p833 = por %p831, %p832
    %p834 = scmp.ne.s32.totalorder %s823, %s824
    %p835 = scmp.eq.s32.totalorder %s77, 0
    %p836 = por %p834, %p835
    %p837 = scmp.ne.s32.totalorder %s823, %s824
    %p838 = scmp.eq.s32.totalorder %s78, 1
    %p839 = por %p837, %p838
    %p841 = scmp.ne.s32.totalorder %s824, %s840
    %p842 = scmp.eq.s32.totalorder %s78, 0
    %p843 = por %p841, %p842
    %s844 = ssub.s32 %s79, %s91
    %p845 = scmp.eq.s32.totalorder %s844, 0
    %s847 = sadd.s32 %s846, 1
    %s848 = scalar_select %p845, %s846, %s847
    %p851 = pneg %p845
    %p852 = scmp.eq.s32.totalorder %s72, 1
    %p853 = por %p851, %p852
    %p854 = scmp.ne.s32.totalorder %s846, %s849
    %p855 = scmp.eq.s32.totalorder %s72, 0
    %p856 = por %p854, %p855
    %p857 = scmp.ne.s32.totalorder %s846, %s849
    %p858 = scmp.eq.s32.totalorder %s77, 1
    %p859 = por %p857, %p858
    %p860 = scmp.ne.s32.totalorder %s849, %s850
    %p861 = scmp.eq.s32.totalorder %s77, 0
    %p862 = por %p860, %p861
    %p863 = scmp.ne.s32.totalorder %s849, %s850
    %p864 = scmp.eq.s32.totalorder %s78, 1
    %p865 = por %p863, %p864
    %p867 = scmp.ne.s32.totalorder %s850, %s866
    %p868 = scmp.eq.s32.totalorder %s78, 0
    %p869 = por %p867, %p868
    %p870 = scmp.le.s32.totalorder 1, %s72
    %p871 = scmp.lt.s32.totalorder %s72, 3
    %p872 = pnand %p870, %p871
    %p873 = pneg %p872
    // Predicated region
    $region9: #{new_transformer_encoder_forward.1} parent=5 // pred_check
      _
    $region10: #{new_transformer_encoder_forward.1} parent=5 // pred_check_branch
      %875 = sbr.rel (%p872) target = $region12
    $region11: #{new_transformer_encoder_forward.1} parent=5 // pred_region
      %s876 = ssub.s32 %s72, 1
      // Predicated region
      $region13: #{new_transformer_encoder_forward.1} parent=11 // pred_check
        %p877 = pneg %p110
      $region14: #{new_transformer_encoder_forward.1} parent=11 // pred_check_branch
        %879 = sbr.rel (%p877) target = $region16
      $region15: #{new_transformer_encoder_forward.1} parent=11 // pred_region
        %s880 = smul.u32 8, %s81
        %p881 = scmp.lt.s32.totalorder %s880, 7
        %s882 = scalar_select %p881, %s880, 7
        %s883 = smul.addr %s882, 8
        %s884 = scalar_lea.vmem %s1, %s883
        %s885 = smul.u32 8, %s81
      $region16: #{new_transformer_encoder_forward.1} parent=11 // pred_fallthru
        _
      // Predicated region
      $region17: #{new_transformer_encoder_forward.1} parent=11 // pred_check
        %p886 = pneg %p136
      $region18: #{new_transformer_encoder_forward.1} parent=11 // pred_check_branch
        %888 = sbr.rel (%p886) target = $region20
      $region19: #{new_transformer_encoder_forward.1} parent=11 // pred_region
        %s889 = smul.u32 8, %s81
        %p890 = scmp.lt.s32.totalorder %s889, 7
        %s891 = scalar_select %p890, %s889, 7
        %s892 = scalar_lea.vmem %s3, %s891
        %s893 = smul.u32 8, %s81
      $region20: #{new_transformer_encoder_forward.1} parent=11 // pred_fallthru
        _
      // Predicated region
      $region21: #{new_transformer_encoder_forward.1} parent=11 // pred_check
        %p894 = pneg %p162
      $region22: #{new_transformer_encoder_forward.1} parent=11 // pred_check_branch
        %896 = sbr.rel (%p894) target = $region24
      $region23: #{new_transformer_encoder_forward.1} parent=11 // pred_region
        %s897 = smul.u32 8, %s81
        %p898 = scmp.lt.s32.totalorder %s897, 7
        %s899 = scalar_select %p898, %s897, 7
        %s900 = smul.addr %s899, 8
        %s901 = scalar_lea.vmem %s5, %s900
        %s902 = smul.u32 8, %s81
      $region24: #{new_transformer_encoder_forward.1} parent=11 // pred_fallthru
        _
      // Predicated region
      $region25: #{new_transformer_encoder_forward.1} parent=11 // pred_check
        %p903 = pneg %p495
      $region26: #{new_transformer_encoder_forward.1} parent=11 // pred_check_branch
        %905 = sbr.rel (%p903) target = $region28
      $region27: #{new_transformer_encoder_forward.1} parent=11 // pred_region
        _
      $region28: #{new_transformer_encoder_forward.1} parent=11 // pred_fallthru
        _
      // Predicated region
      $region29: #{new_transformer_encoder_forward.1} parent=11 // pred_check
        %p906 = pneg %p516
      $region30: #{new_transformer_encoder_forward.1} parent=11 // pred_check_branch
        %908 = sbr.rel (%p906) target = $region32
      $region31: #{new_transformer_encoder_forward.1} parent=11 // pred_region
        _
      $region32: #{new_transformer_encoder_forward.1} parent=11 // pred_fallthru
        _
      // Predicated region
      $region33: #{new_transformer_encoder_forward.1} parent=11 // pred_check
        %p909 = pneg %p537
      $region34: #{new_transformer_encoder_forward.1} parent=11 // pred_check_branch
        %911 = sbr.rel (%p909) target = $region36
      $region35: #{new_transformer_encoder_forward.1} parent=11 // pred_region
        _
      $region36: #{new_transformer_encoder_forward.1} parent=11 // pred_fallthru
        _
      // Predicated region
      $region37: #{new_transformer_encoder_forward.1} parent=11 // pred_check
        %p912 = pneg %p558
      $region38: #{new_transformer_encoder_forward.1} parent=11 // pred_check_branch
        %914 = sbr.rel (%p912) target = $region40
      $region39: #{new_transformer_encoder_forward.1} parent=11 // pred_region
        _
      $region40: #{new_transformer_encoder_forward.1} parent=11 // pred_fallthru
        _
      // Predicated region
      $region41: #{new_transformer_encoder_forward.1} parent=11 // pred_check
        %p915 = pneg %p579
      $region42: #{new_transformer_encoder_forward.1} parent=11 // pred_check_branch
        %917 = sbr.rel (%p915) target = $region44
      $region43: #{new_transformer_encoder_forward.1} parent=11 // pred_region
        _
      $region44: #{new_transformer_encoder_forward.1} parent=11 // pred_fallthru
        _
      // Predicated region
      $region45: #{new_transformer_encoder_forward.1} parent=11 // pred_check
        %p918 = pneg %p600
      $region46: #{new_transformer_encoder_forward.1} parent=11 // pred_check_branch
        %920 = sbr.rel (%p918) target = $region48
      $region47: #{new_transformer_encoder_forward.1} parent=11 // pred_region
        _
      $region48: #{new_transformer_encoder_forward.1} parent=11 // pred_fallthru
        _
      // Predicated region
      $region49: #{new_transformer_encoder_forward.1} parent=11 // pred_check
        %p921 = pneg %p621
      $region50: #{new_transformer_encoder_forward.1} parent=11 // pred_check_branch
        %923 = sbr.rel (%p921) target = $region52
      $region51: #{new_transformer_encoder_forward.1} parent=11 // pred_region
        _
      $region52: #{new_transformer_encoder_forward.1} parent=11 // pred_fallthru
        _
      // Predicated region
      $region53: #{new_transformer_encoder_forward.1} parent=11 // pred_check
        %p924 = pneg %p642
      $region54: #{new_transformer_encoder_forward.1} parent=11 // pred_check_branch
        %926 = sbr.rel (%p924) target = $region56
      $region55: #{new_transformer_encoder_forward.1} parent=11 // pred_region
        _
      $region56: #{new_transformer_encoder_forward.1} parent=11 // pred_fallthru
        _
      // Predicated region
      $region57: #{new_transformer_encoder_forward.1} parent=11 // pred_check
        %p927 = pneg %p663
      $region58: #{new_transformer_encoder_forward.1} parent=11 // pred_check_branch
        %929 = sbr.rel (%p927) target = $region60
      $region59: #{new_transformer_encoder_forward.1} parent=11 // pred_region
        _
      $region60: #{new_transformer_encoder_forward.1} parent=11 // pred_fallthru
        _
      // Predicated region
      $region61: #{new_transformer_encoder_forward.1} parent=11 // pred_check
        %p930 = pneg %p684
      $region62: #{new_transformer_encoder_forward.1} parent=11 // pred_check_branch
        %932 = sbr.rel (%p930) target = $region64
      $region63: #{new_transformer_encoder_forward.1} parent=11 // pred_region
        _
      $region64: #{new_transformer_encoder_forward.1} parent=11 // pred_fallthru
        _
      // Predicated region
      $region65: #{new_transformer_encoder_forward.1} parent=11 // pred_check
        %p933 = pneg %p705
      $region66: #{new_transformer_encoder_forward.1} parent=11 // pred_check_branch
        %935 = sbr.rel (%p933) target = $region68
      $region67: #{new_transformer_encoder_forward.1} parent=11 // pred_region
        _
      $region68: #{new_transformer_encoder_forward.1} parent=11 // pred_fallthru
        _
      // Predicated region
      $region69: #{new_transformer_encoder_forward.1} parent=11 // pred_check
        %p936 = pneg %p726
      $region70: #{new_transformer_encoder_forward.1} parent=11 // pred_check_branch
        %938 = sbr.rel (%p936) target = $region72
      $region71: #{new_transformer_encoder_forward.1} parent=11 // pred_region
        _
      $region72: #{new_transformer_encoder_forward.1} parent=11 // pred_fallthru
        _
      // Predicated region
      $region73: #{new_transformer_encoder_forward.1} parent=11 // pred_check
        %p939 = pneg %p747
      $region74: #{new_transformer_encoder_forward.1} parent=11 // pred_check_branch
        %941 = sbr.rel (%p939) target = $region76
      $region75: #{new_transformer_encoder_forward.1} parent=11 // pred_region
        _
      $region76: #{new_transformer_encoder_forward.1} parent=11 // pred_fallthru
        _
      // Predicated region
      $region77: #{new_transformer_encoder_forward.1} parent=11 // pred_check
        %p942 = pneg %p768
      $region78: #{new_transformer_encoder_forward.1} parent=11 // pred_check_branch
        %944 = sbr.rel (%p942) target = $region80
      $region79: #{new_transformer_encoder_forward.1} parent=11 // pred_region
        _
      $region80: #{new_transformer_encoder_forward.1} parent=11 // pred_fallthru
        _
      // Predicated region
      $region81: #{new_transformer_encoder_forward.1} parent=11 // pred_check
        %p945 = pneg %p789
      $region82: #{new_transformer_encoder_forward.1} parent=11 // pred_check_branch
        %947 = sbr.rel (%p945) target = $region84
      $region83: #{new_transformer_encoder_forward.1} parent=11 // pred_region
        _
      $region84: #{new_transformer_encoder_forward.1} parent=11 // pred_fallthru
        _
      // Predicated region
      $region85: #{new_transformer_encoder_forward.1} parent=11 // pred_check
        %p948 = pneg %p810
      $region86: #{new_transformer_encoder_forward.1} parent=11 // pred_check_branch
        %950 = sbr.rel (%p948) target = $region88
      $region87: #{new_transformer_encoder_forward.1} parent=11 // pred_region
        _
      $region88: #{new_transformer_encoder_forward.1} parent=11 // pred_fallthru
        _
    $region12: #{new_transformer_encoder_forward.1} parent=5 // pred_fallthru
      _
    %p951 = scmp.lt.s32.totalorder %s72, 2
    // Predicated region
    $region89: #{new_transformer_encoder_forward.1} parent=5 // pred_check
      %p952 = pneg %p951
    $region90: #{new_transformer_encoder_forward.1} parent=5 // pred_check_branch
      %954 = sbr.rel (%p952) target = $region92
    $region91: #{new_transformer_encoder_forward.1} parent=5 // pred_region
      // Predicated region
      $region93: #{new_transformer_encoder_forward.1} parent=91 // pred_check
        %p955 = pneg %p182
      $region94: #{new_transformer_encoder_forward.1} parent=91 // pred_check_branch
        %957 = sbr.rel (%p955) target = $region96
      $region95: #{new_transformer_encoder_forward.1} parent=91 // pred_region
        %p958 = scmp.lt.s32.totalorder %s80, 1
        %s959 = scalar_select %p958, %s80, 1
        %s960 = scalar_lea.vmem %s7, %s959
      $region96: #{new_transformer_encoder_forward.1} parent=91 // pred_fallthru
        _
      // Predicated region
      $region97: #{new_transformer_encoder_forward.1} parent=91 // pred_check
        %p961 = pneg %p208
      $region98: #{new_transformer_encoder_forward.1} parent=91 // pred_check_branch
        %963 = sbr.rel (%p961) target = $region100
      $region99: #{new_transformer_encoder_forward.1} parent=91 // pred_region
        %p964 = scmp.lt.s32.totalorder %s80, 1
        %s965 = scalar_select %p964, %s80, 1
        %s966 = scalar_lea.vmem %s9, %s965
      $region100: #{new_transformer_encoder_forward.1} parent=91 // pred_fallthru
        _
      // Predicated region
      $region101: #{new_transformer_encoder_forward.1} parent=91 // pred_check
        %p967 = pneg %p234
      $region102: #{new_transformer_encoder_forward.1} parent=91 // pred_check_branch
        %969 = sbr.rel (%p967) target = $region104
      $region103: #{new_transformer_encoder_forward.1} parent=91 // pred_region
        %p970 = scmp.lt.s32.totalorder %s80, 1
        %s971 = scalar_select %p970, %s80, 1
        %s972 = smul.addr %s971, 4
        %s973 = smul.addr %s972, 4
        %s974 = scalar_lea.vmem %s11, %s973
      $region104: #{new_transformer_encoder_forward.1} parent=91 // pred_fallthru
        _
      // Predicated region
      $region105: #{new_transformer_encoder_forward.1} parent=91 // pred_check
        %p975 = pneg %p260
      $region106: #{new_transformer_encoder_forward.1} parent=91 // pred_check_branch
        %977 = sbr.rel (%p975) target = $region108
      $region107: #{new_transformer_encoder_forward.1} parent=91 // pred_region
        %p978 = scmp.lt.s32.totalorder %s80, 1
        %s979 = scalar_select %p978, %s80, 1
        %s980 = scalar_lea.vmem %s13, %s979
      $region108: #{new_transformer_encoder_forward.1} parent=91 // pred_fallthru
        _
      // Predicated region
      $region109: #{new_transformer_encoder_forward.1} parent=91 // pred_check
        %p981 = pneg %p286
      $region110: #{new_transformer_encoder_forward.1} parent=91 // pred_check_branch
        %983 = sbr.rel (%p981) target = $region112
      $region111: #{new_transformer_encoder_forward.1} parent=91 // pred_region
        %p984 = scmp.lt.s32.totalorder %s80, 1
        %s985 = scalar_select %p984, %s80, 1
        %s986 = smul.addr %s985, 4
        %s987 = smul.addr %s986, 4
        %s988 = scalar_lea.vmem %s15, %s987
      $region112: #{new_transformer_encoder_forward.1} parent=91 // pred_fallthru
        _
      // Predicated region
      $region113: #{new_transformer_encoder_forward.1} parent=91 // pred_check
        %p989 = pneg %p312
      $region114: #{new_transformer_encoder_forward.1} parent=91 // pred_check_branch
        %991 = sbr.rel (%p989) target = $region116
      $region115: #{new_transformer_encoder_forward.1} parent=91 // pred_region
        %p992 = scmp.lt.s32.totalorder %s80, 1
        %s993 = scalar_select %p992, %s80, 1
        %s994 = scalar_lea.vmem %s17, %s993
      $region116: #{new_transformer_encoder_forward.1} parent=91 // pred_fallthru
        _
      // Predicated region
      $region117: #{new_transformer_encoder_forward.1} parent=91 // pred_check
        %p995 = pneg %p338
      $region118: #{new_transformer_encoder_forward.1} parent=91 // pred_check_branch
        %997 = sbr.rel (%p995) target = $region120
      $region119: #{new_transformer_encoder_forward.1} parent=91 // pred_region
        %p998 = scmp.lt.s32.totalorder %s80, 1
        %s999 = scalar_select %p998, %s80, 1
        %s1000 = scalar_lea.vmem %s19, %s999
      $region120: #{new_transformer_encoder_forward.1} parent=91 // pred_fallthru
        _
      // Predicated region
      $region121: #{new_transformer_encoder_forward.1} parent=91 // pred_check
        %p1001 = pneg %p364
      $region122: #{new_transformer_encoder_forward.1} parent=91 // pred_check_branch
        %1003 = sbr.rel (%p1001) target = $region124
      $region123: #{new_transformer_encoder_forward.1} parent=91 // pred_region
        %p1004 = scmp.lt.s32.totalorder %s80, 1
        %s1005 = scalar_select %p1004, %s80, 1
        %s1006 = scalar_lea.vmem %s21, %s1005
      $region124: #{new_transformer_encoder_forward.1} parent=91 // pred_fallthru
        _
      // Predicated region
      $region125: #{new_transformer_encoder_forward.1} parent=91 // pred_check
        %p1007 = pneg %p390
      $region126: #{new_transformer_encoder_forward.1} parent=91 // pred_check_branch
        %1009 = sbr.rel (%p1007) target = $region128
      $region127: #{new_transformer_encoder_forward.1} parent=91 // pred_region
        %p1010 = scmp.lt.s32.totalorder %s80, 1
        %s1011 = scalar_select %p1010, %s80, 1
        %s1012 = smul.addr %s1011, 4
        %s1013 = smul.addr %s1012, 4
        %s1014 = scalar_lea.vmem %s23, %s1013
      $region128: #{new_transformer_encoder_forward.1} parent=91 // pred_fallthru
        _
      // Predicated region
      $region129: #{new_transformer_encoder_forward.1} parent=91 // pred_check
        %p1015 = pneg %p416
      $region130: #{new_transformer_encoder_forward.1} parent=91 // pred_check_branch
        %1017 = sbr.rel (%p1015) target = $region132
      $region131: #{new_transformer_encoder_forward.1} parent=91 // pred_region
        %p1018 = scmp.lt.s32.totalorder %s80, 1
        %s1019 = scalar_select %p1018, %s80, 1
        %s1020 = scalar_lea.vmem %s25, %s1019
      $region132: #{new_transformer_encoder_forward.1} parent=91 // pred_fallthru
        _
      // Predicated region
      $region133: #{new_transformer_encoder_forward.1} parent=91 // pred_check
        %p1021 = pneg %p442
      $region134: #{new_transformer_encoder_forward.1} parent=91 // pred_check_branch
        %1023 = sbr.rel (%p1021) target = $region136
      $region135: #{new_transformer_encoder_forward.1} parent=91 // pred_region
        %p1024 = scmp.lt.s32.totalorder %s80, 1
        %s1025 = scalar_select %p1024, %s80, 1
        %s1026 = smul.addr %s1025, 8
        %s1027 = smul.addr %s1026, 4
        %s1028 = scalar_lea.vmem %s27, %s1027
      $region136: #{new_transformer_encoder_forward.1} parent=91 // pred_fallthru
        _
      // Predicated region
      $region137: #{new_transformer_encoder_forward.1} parent=91 // pred_check
        %p1029 = pneg %p468
      $region138: #{new_transformer_encoder_forward.1} parent=91 // pred_check_branch
        %1031 = sbr.rel (%p1029) target = $region140
      $region139: #{new_transformer_encoder_forward.1} parent=91 // pred_region
        %p1032 = scmp.lt.s32.totalorder %s80, 1
        %s1033 = scalar_select %p1032, %s80, 1
        %s1034 = scalar_lea.vmem %s29, %s1033
      $region140: #{new_transformer_encoder_forward.1} parent=91 // pred_fallthru
        _
    $region92: #{new_transformer_encoder_forward.1} parent=5 // pred_fallthru
      _
    %p1035 = scmp.le.s32.totalorder 1, %s72
    %p1036 = scmp.lt.s32.totalorder %s72, 3
    %p1037 = pnand %p1035, %p1036
    %p1038 = pneg %p1037
    // Predicated region
    $region141: #{new_transformer_encoder_forward.1} parent=5 // pred_check
      _
    $region142: #{new_transformer_encoder_forward.1} parent=5 // pred_check_branch
      %1040 = sbr.rel (%p1037) target = $region144
    $region143: #{new_transformer_encoder_forward.1} parent=5 // pred_region
      %s1041 = ssub.s32 %s72, 1
      %s1042 = smul.u32 8, %s81
      %p1043 = scmp.lt.s32.totalorder %s1042, 7
      %s1044 = scalar_select %p1043, %s1042, 7
      %s1045 = smul.addr %s1044, 8
      %s1046 = scalar_lea.vmem %s1, %s1045
      %p1047 = pneg %p110
      %p1048 = pneg %p107
      %s1049 = smul.u32 8, %s81
      %p1050 = scmp.lt.s32.totalorder %s1049, 7
      %s1051 = scalar_select %p1050, %s1049, 7
      %s1052 = scalar_lea.vmem %s3, %s1051
      %p1053 = pneg %p136
      %p1054 = pneg %p133
      %s1055 = smul.u32 8, %s81
      %p1056 = scmp.lt.s32.totalorder %s1055, 7
      %s1057 = scalar_select %p1056, %s1055, 7
      %s1058 = smul.addr %s1057, 8
      %s1059 = scalar_lea.vmem %s5, %s1058
      %p1060 = pneg %p162
      %p1061 = pneg %p159
      %p1062 = scmp.lt.s32.totalorder %s82, 1
      %s1063 = scalar_select %p1062, %s82, 1
      %s1064 = scalar_lea.vmem %s7, %s1063
      %p1065 = pneg %p188
      %p1066 = pneg %p185
      %p1067 = scmp.lt.s32.totalorder %s82, 1
      %s1068 = scalar_select %p1067, %s82, 1
      %s1069 = scalar_lea.vmem %s9, %s1068
      %p1070 = pneg %p214
      %p1071 = pneg %p211
      %p1072 = scmp.lt.s32.totalorder %s82, 1
      %s1073 = scalar_select %p1072, %s82, 1
      %s1074 = smul.addr %s1073, 4
      %s1075 = smul.addr %s1074, 4
      %s1076 = scalar_lea.vmem %s11, %s1075
      %p1077 = pneg %p240
      %p1078 = pneg %p237
      %p1079 = scmp.lt.s32.totalorder %s82, 1
      %s1080 = scalar_select %p1079, %s82, 1
      %s1081 = scalar_lea.vmem %s13, %s1080
      %p1082 = pneg %p266
      %p1083 = pneg %p263
      %p1084 = scmp.lt.s32.totalorder %s82, 1
      %s1085 = scalar_select %p1084, %s82, 1
      %s1086 = smul.addr %s1085, 4
      %s1087 = smul.addr %s1086, 4
      %s1088 = scalar_lea.vmem %s15, %s1087
      %p1089 = pneg %p292
      %p1090 = pneg %p289
      %p1091 = scmp.lt.s32.totalorder %s82, 1
      %s1092 = scalar_select %p1091, %s82, 1
      %s1093 = scalar_lea.vmem %s17, %s1092
      %p1094 = pneg %p318
      %p1095 = pneg %p315
      %p1096 = scmp.lt.s32.totalorder %s82, 1
      %s1097 = scalar_select %p1096, %s82, 1
      %s1098 = scalar_lea.vmem %s19, %s1097
      %p1099 = pneg %p344
      %p1100 = pneg %p341
      %p1101 = scmp.lt.s32.totalorder %s82, 1
      %s1102 = scalar_select %p1101, %s82, 1
      %s1103 = scalar_lea.vmem %s21, %s1102
      %p1104 = pneg %p370
      %p1105 = pneg %p367
      %p1106 = scmp.lt.s32.totalorder %s82, 1
      %s1107 = scalar_select %p1106, %s82, 1
      %s1108 = smul.addr %s1107, 4
      %s1109 = smul.addr %s1108, 4
      %s1110 = scalar_lea.vmem %s23, %s1109
      %p1111 = pneg %p396
      %p1112 = pneg %p393
      %p1113 = scmp.lt.s32.totalorder %s82, 1
      %s1114 = scalar_select %p1113, %s82, 1
      %s1115 = scalar_lea.vmem %s25, %s1114
      %p1116 = pneg %p422
      %p1117 = pneg %p419
      %p1118 = scmp.lt.s32.totalorder %s82, 1
      %s1119 = scalar_select %p1118, %s82, 1
      %s1120 = smul.addr %s1119, 8
      %s1121 = smul.addr %s1120, 4
      %s1122 = scalar_lea.vmem %s27, %s1121
      %p1123 = pneg %p448
      %p1124 = pneg %p445
      %p1125 = scmp.lt.s32.totalorder %s82, 1
      %s1126 = scalar_select %p1125, %s82, 1
      %s1127 = scalar_lea.vmem %s29, %s1126
      %p1128 = pneg %p474
      %p1129 = pneg %p471
      %p1130 = pneg %p495
      %p1131 = pneg %p492
      %p1132 = pneg %p516
      %p1133 = pneg %p513
      %p1134 = pneg %p537
      %p1135 = pneg %p534
      %p1136 = pneg %p558
      %p1137 = pneg %p555
      %p1138 = pneg %p579
      %p1139 = pneg %p576
      %p1140 = pneg %p600
      %p1141 = pneg %p597
      %p1142 = pneg %p621
      %p1143 = pneg %p618
      %p1144 = pneg %p642
      %p1145 = pneg %p639
      %p1146 = pneg %p663
      %p1147 = pneg %p660
      %p1148 = pneg %p684
      %p1149 = pneg %p681
      %p1150 = pneg %p705
      %p1151 = pneg %p702
      %p1152 = pneg %p726
      %p1153 = pneg %p723
      %p1154 = pneg %p747
      %p1155 = pneg %p744
      %p1156 = pneg %p768
      %p1157 = pneg %p765
      %p1158 = pneg %p789
      %p1159 = pneg %p786
      %p1160 = pneg %p810
      %p1161 = pneg %p807
      %p1162 = pneg %p836
      %p1163 = pneg %p833
      %s1164 = smul.u32 8, %s81
      %p1165 = scmp.lt.s32.totalorder %s1164, 7
      %s1166 = scalar_select %p1165, %s1164, 7
      %s1167 = smul.addr %s1166, 8
      %s1168 = scalar_lea.vmem %s63, %s1167
      %p1169 = pneg %p862
      %p1170 = pneg %p859
      %p1171 = scmp.lt.s32.totalorder %s81, 0
      %s1172 = scalar_select %p1171, %s81, 0
      %s1173 = smul.addr %s1172, 8
      %s1174 = scalar_lea.vmem %s65, %s1173
      %s1175 = smul.u32 8, %s81
      %p1176 = scmp.lt.s32.totalorder %s1175, 7
      %s1177 = scalar_select %p1176, %s1175, 7
      %s1178 = smul.addr %s1177, 8
      %s1179 = scalar_lea.vmem %s1, %s1178
      %s1180 = smul.u32 8, %s81
      %s1181 = smul.u32 8, %s81
      %p1182 = scmp.lt.s32.totalorder %s1181, 7
      %s1183 = scalar_select %p1182, %s1181, 7
      %s1184 = scalar_lea.vmem %s3, %s1183
      %s1185 = smul.u32 8, %s81
      %s1186 = smul.u32 8, %s81
      %p1187 = scmp.lt.s32.totalorder %s1186, 7
      %s1188 = scalar_select %p1187, %s1186, 7
      %s1189 = smul.addr %s1188, 8
      %s1190 = scalar_lea.vmem %s5, %s1189
      %s1191 = smul.u32 8, %s81
      %p1192 = scmp.lt.s32.totalorder %s82, 1
      %s1193 = scalar_select %p1192, %s82, 1
      %s1194 = scalar_lea.vmem %s7, %s1193
      %p1195 = scmp.lt.s32.totalorder %s82, 1
      %s1196 = scalar_select %p1195, %s82, 1
      %s1197 = scalar_lea.vmem %s9, %s1196
      %p1198 = scmp.lt.s32.totalorder %s82, 1
      %s1199 = scalar_select %p1198, %s82, 1
      %s1200 = smul.addr %s1199, 4
      %s1201 = smul.addr %s1200, 4
      %s1202 = scalar_lea.vmem %s11, %s1201
      %p1203 = scmp.lt.s32.totalorder %s82, 1
      %s1204 = scalar_select %p1203, %s82, 1
      %s1205 = scalar_lea.vmem %s13, %s1204
      %p1206 = scmp.lt.s32.totalorder %s82, 1
      %s1207 = scalar_select %p1206, %s82, 1
      %s1208 = smul.addr %s1207, 4
      %s1209 = smul.addr %s1208, 4
      %s1210 = scalar_lea.vmem %s15, %s1209
      %p1211 = scmp.lt.s32.totalorder %s82, 1
      %s1212 = scalar_select %p1211, %s82, 1
      %s1213 = scalar_lea.vmem %s17, %s1212
      %p1214 = scmp.lt.s32.totalorder %s82, 1
      %s1215 = scalar_select %p1214, %s82, 1
      %s1216 = scalar_lea.vmem %s19, %s1215
      %p1217 = scmp.lt.s32.totalorder %s82, 1
      %s1218 = scalar_select %p1217, %s82, 1
      %s1219 = scalar_lea.vmem %s21, %s1218
      %p1220 = scmp.lt.s32.totalorder %s82, 1
      %s1221 = scalar_select %p1220, %s82, 1
      %s1222 = smul.addr %s1221, 4
      %s1223 = smul.addr %s1222, 4
      %s1224 = scalar_lea.vmem %s23, %s1223
      %p1225 = scmp.lt.s32.totalorder %s82, 1
      %s1226 = scalar_select %p1225, %s82, 1
      %s1227 = scalar_lea.vmem %s25, %s1226
      %p1228 = scmp.lt.s32.totalorder %s82, 1
      %s1229 = scalar_select %p1228, %s82, 1
      %s1230 = smul.addr %s1229, 8
      %s1231 = smul.addr %s1230, 4
      %s1232 = scalar_lea.vmem %s27, %s1231
      %p1233 = scmp.lt.s32.totalorder %s82, 1
      %s1234 = scalar_select %p1233, %s82, 1
      %s1235 = scalar_lea.vmem %s29, %s1234
      %s1236 = smul.u32 8, %s81
      %p1237 = scmp.lt.s32.totalorder %s1236, 7
      %s1238 = scalar_select %p1237, %s1236, 7
      %s1239 = smul.addr %s1238, 8
      %s1240 = scalar_lea.vmem %s63, %s1239
      %s1241 = smul.u32 8, %s81
      %p1242 = scmp.lt.s32.totalorder %s81, 0
      %s1243 = scalar_select %p1242, %s81, 0
      %s1244 = smul.addr %s1243, 8
      %s1245 = scalar_lea.vmem %s65, %s1244
      %v1247 = vld [vmem:[%s1184] sm:$0x1]
      %v1248 = vld [vmem:[%s1184 + $0x1] sm:$0x1]
      %v1249 = vld [vmem:[%s1184 + $0x2] sm:$0x1]
      %v1250 = vld [vmem:[%s1184 + $0x3] sm:$0x1]
      %v1251 = vld [vmem:[%s1184 + $0x4] sm:$0x1]
      %v1252 = vld [vmem:[%s1184 + $0x5] sm:$0x1]
      %v1253 = vld [vmem:[%s1184 + $0x6] sm:$0x1]
      %v1254 = vld [vmem:[%s1184 + $0x7] sm:$0x1]
      %vm1255 = vcmp.gt.f32.partialorder %v1247, 0.5
      %vm1256 = vcmp.gt.f32.partialorder %v1248, 0.5
      %vm1257 = vcmp.gt.f32.partialorder %v1249, 0.5
      %vm1258 = vcmp.gt.f32.partialorder %v1250, 0.5
      %vm1259 = vcmp.gt.f32.partialorder %v1251, 0.5
      %vm1260 = vcmp.gt.f32.partialorder %v1252, 0.5
      %vm1261 = vcmp.gt.f32.partialorder %v1253, 0.5
      %vm1262 = vcmp.gt.f32.partialorder %v1254, 0.5
      %p1263 = scmp.eq.s32.totalorder %s82, 0
      // Predicated region
      $region145: #{new_transformer_encoder_forward.1} parent=143 // pred_check
        %p1264 = pneg %p1263
      $region146: #{new_transformer_encoder_forward.1} parent=143 // pred_check_branch
        %1266 = sbr.rel (%p1264) target = $region148
      $region147: #{new_transformer_encoder_forward.1} parent=143 // pred_region
        %v1267 = vld [vmem:[%s1179] sm:$0xff]
        %v1268 = vld [vmem:[%s1179 + $0x8] sm:$0xff]
        %v1269 = vld [vmem:[%s1179 + $0x10] sm:$0xff]
        %v1270 = vld [vmem:[%s1179 + $0x18] sm:$0xff]
        %v1271 = vld [vmem:[%s1179 + $0x20] sm:$0xff]
        %v1272 = vld [vmem:[%s1179 + $0x28] sm:$0xff]
        %v1273 = vld [vmem:[%s1179 + $0x30] sm:$0xff]
        %v1274 = vld [vmem:[%s1179 + $0x38] sm:$0xff]
        %vm1275 = vcmask 261120
        %1276 = vst.msk [vmem:[#allocation2] sm:$0xff] %vm1275, %v1267
        %1277 = vst.msk [vmem:[#allocation2 + $0x8] sm:$0xff] %vm1275, %v1268
        %1278 = vst.msk [vmem:[#allocation2 + $0x10] sm:$0xff] %vm1275, %v1269
        %1279 = vst.msk [vmem:[#allocation2 + $0x18] sm:$0xff] %vm1275, %v1270
        %1280 = vst.msk [vmem:[#allocation2 + $0x20] sm:$0xff] %vm1275, %v1271
        %1281 = vst.msk [vmem:[#allocation2 + $0x28] sm:$0xff] %vm1275, %v1272
        %1282 = vst.msk [vmem:[#allocation2 + $0x30] sm:$0xff] %vm1275, %v1273
        %1283 = vst.msk [vmem:[#allocation2 + $0x38] sm:$0xff] %vm1275, %v1274
      $region148: #{new_transformer_encoder_forward.1} parent=143 // pred_fallthru
        _
      %v1284 = vld [vmem:[#allocation2] sm:$0xff]
      %v1285 = vld [vmem:[#allocation2 + $0x8] sm:$0xff]
      %v1286 = vld [vmem:[#allocation2 + $0x10] sm:$0xff]
      %v1287 = vld [vmem:[#allocation2 + $0x18] sm:$0xff]
      %v1288 = vld [vmem:[#allocation2 + $0x20] sm:$0xff]
      %v1289 = vld [vmem:[#allocation2 + $0x28] sm:$0xff]
      %v1290 = vld [vmem:[#allocation2 + $0x30] sm:$0xff]
      %v1291 = vld [vmem:[#allocation2 + $0x38] sm:$0xff]
      %v1292 = vld [vmem:[%s1194] sm:$0x1]
      %v1293 = vld [vmem:[%s1197] sm:$0x1]
      %vm1294 = vcmask 261120
      %v1295 = vsel %vm1294, %v1284, 0.0
      %1296 = vadd.xlane.f32.xlu0 %v1295
      %v1297 = vpop.xlane.xlu0 %1296
      %v1298 = vsel %vm1294, %v1285, 0.0
      %1299 = vadd.xlane.f32.xlu0 %v1298
      %v1300 = vpop.xlane.xlu0 %1299
      %v1301 = vsel %vm1294, %v1286, 0.0
      %1302 = vadd.xlane.f32.xlu0 %v1301
      %v1303 = vpop.xlane.xlu0 %1302
      %v1304 = vsel %vm1294, %v1287, 0.0
      %1305 = vadd.xlane.f32.xlu0 %v1304
      %v1306 = vpop.xlane.xlu0 %1305
      %v1307 = vsel %vm1294, %v1288, 0.0
      %1308 = vadd.xlane.f32.xlu0 %v1307
      %v1309 = vpop.xlane.xlu0 %1308
      %v1310 = vsel %vm1294, %v1289, 0.0
      %1311 = vadd.xlane.f32.xlu0 %v1310
      %v1312 = vpop.xlane.xlu0 %1311
      %v1313 = vsel %vm1294, %v1290, 0.0
      %1314 = vadd.xlane.f32.xlu0 %v1313
      %v1315 = vpop.xlane.xlu0 %1314
      %v1316 = vsel %vm1294, %v1291, 0.0
      %1317 = vadd.xlane.f32.xlu0 %v1316
      %v1318 = vpop.xlane.xlu0 %1317
      %v1319 = vrcp.pop 32.0
      %v1320 = vmul.f32 %v1297, %v1319
      %v1321 = vmul.f32 %v1300, %v1319
      %v1322 = vmul.f32 %v1303, %v1319
      %v1323 = vmul.f32 %v1306, %v1319
      %v1324 = vmul.f32 %v1309, %v1319
      %v1325 = vmul.f32 %v1312, %v1319
      %v1326 = vmul.f32 %v1315, %v1319
      %v1327 = vmul.f32 %v1318, %v1319
      %v1328 = vsub.f32 %v1284, %v1320
      %v1329 = vsub.f32 %v1285, %v1321
      %v1330 = vsub.f32 %v1286, %v1322
      %v1331 = vsub.f32 %v1287, %v1323
      %v1332 = vsub.f32 %v1288, %v1324
      %v1333 = vsub.f32 %v1289, %v1325
      %v1334 = vsub.f32 %v1290, %v1326
      %v1335 = vsub.f32 %v1291, %v1327
      %v1336 = vmul.f32 %v1328, %v1328
      %v1337 = vmul.f32 %v1329, %v1329
      %v1338 = vmul.f32 %v1330, %v1330
      %v1339 = vmul.f32 %v1331, %v1331
      %v1340 = vmul.f32 %v1332, %v1332
      %v1341 = vmul.f32 %v1333, %v1333
      %v1342 = vmul.f32 %v1334, %v1334
      %v1343 = vmul.f32 %v1335, %v1335
      %v1344 = vsel %vm1294, %v1336, 0.0
      %1345 = vadd.xlane.f32.xlu0 %v1344
      %v1346 = vpop.xlane.xlu0 %1345
      %v1347 = vsel %vm1294, %v1337, 0.0
      %1348 = vadd.xlane.f32.xlu0 %v1347
      %v1349 = vpop.xlane.xlu0 %1348
      %v1350 = vsel %vm1294, %v1338, 0.0
      %1351 = vadd.xlane.f32.xlu0 %v1350
      %v1352 = vpop.xlane.xlu0 %1351
      %v1353 = vsel %vm1294, %v1339, 0.0
      %1354 = vadd.xlane.f32.xlu0 %v1353
      %v1355 = vpop.xlane.xlu0 %1354
      %v1356 = vsel %vm1294, %v1340, 0.0
      %1357 = vadd.xlane.f32.xlu0 %v1356
      %v1358 = vpop.xlane.xlu0 %1357
      %v1359 = vsel %vm1294, %v1341, 0.0
      %1360 = vadd.xlane.f32.xlu0 %v1359
      %v1361 = vpop.xlane.xlu0 %1360
      %v1362 = vsel %vm1294, %v1342, 0.0
      %1363 = vadd.xlane.f32.xlu0 %v1362
      %v1364 = vpop.xlane.xlu0 %1363
      %v1365 = vsel %vm1294, %v1343, 0.0
      %1366 = vadd.xlane.f32.xlu0 %v1365
      %v1367 = vpop.xlane.xlu0 %1366
      %v1368 = vmul.f32 %v1346, %v1319
      %v1369 = vmul.f32 %v1349, %v1319
      %v1370 = vmul.f32 %v1352, %v1319
      %v1371 = vmul.f32 %v1355, %v1319
      %v1372 = vmul.f32 %v1358, %v1319
      %v1373 = vmul.f32 %v1361, %v1319
      %v1374 = vmul.f32 %v1364, %v1319
      %v1375 = vmul.f32 %v1367, %v1319
      %v1376 = vadd.f32 %v1368, 1e-06
      %v1377 = vadd.f32 %v1369, 1e-06
      %v1378 = vadd.f32 %v1370, 1e-06
      %v1379 = vadd.f32 %v1371, 1e-06
      %v1380 = vadd.f32 %v1372, 1e-06
      %v1381 = vadd.f32 %v1373, 1e-06
      %v1382 = vadd.f32 %v1374, 1e-06
      %v1383 = vadd.f32 %v1375, 1e-06
      %v1384 = vrsqrt.pop %v1376
      %v1385 = vrsqrt.pop %v1377
      %v1386 = vrsqrt.pop %v1378
      %v1387 = vrsqrt.pop %v1379
      %v1388 = vrsqrt.pop %v1380
      %v1389 = vrsqrt.pop %v1381
      %v1390 = vrsqrt.pop %v1382
      %v1391 = vrsqrt.pop %v1383
      %v1392 = vmul.f32 %v1328, %v1384
      %v1393 = vmul.f32 %v1329, %v1385
      %v1394 = vmul.f32 %v1330, %v1386
      %v1395 = vmul.f32 %v1331, %v1387
      %v1396 = vmul.f32 %v1332, %v1388
      %v1397 = vmul.f32 %v1333, %v1389
      %v1398 = vmul.f32 %v1334, %v1390
      %v1399 = vmul.f32 %v1335, %v1391
      %v1401 = vlaneseq
      %v1402 = vshrl.u32 %v1401, 7
      %v1403 = vsub.s32 0, %v1402
      %v1404 = vrot.slane %v1292, %v1403
      %v1406 = vmul.f32 %v1392, %v1404
      %v1407 = vmul.f32 %v1393, %v1404
      %v1408 = vmul.f32 %v1394, %v1404
      %v1409 = vmul.f32 %v1395, %v1404
      %v1410 = vmul.f32 %v1396, %v1404
      %v1411 = vmul.f32 %v1397, %v1404
      %v1412 = vmul.f32 %v1398, %v1404
      %v1413 = vmul.f32 %v1399, %v1404
      %v1415 = vlaneseq
      %v1416 = vshrl.u32 %v1415, 7
      %v1417 = vsub.s32 0, %v1416
      %v1418 = vrot.slane %v1293, %v1417
      %v1420 = vadd.f32 %v1406, %v1418
      %v1421 = vadd.f32 %v1407, %v1418
      %v1422 = vadd.f32 %v1408, %v1418
      %v1423 = vadd.f32 %v1409, %v1418
      %v1424 = vadd.f32 %v1410, %v1418
      %v1425 = vadd.f32 %v1411, %v1418
      %v1426 = vadd.f32 %v1412, %v1418
      %v1427 = vadd.f32 %v1413, %v1418
      %v1428 = vpack.c.bf16 %v1421, %v1420
      %v1429 = vpack.c.bf16 %v1423, %v1422
      %v1430 = vpack.c.bf16 %v1425, %v1424
      %v1431 = vpack.c.bf16 %v1427, %v1426
      %v1432 = vld [vmem:[%s1202] sm:$0xf]
      %v1433 = vld [vmem:[%s1202 + $0x4] sm:$0xf]
      %v1434 = vld [vmem:[%s1202 + $0x8] sm:$0xf]
      %v1435 = vld [vmem:[%s1202 + $0xc] sm:$0xf]
      %v1436 = vld [vmem:[%s1205] sm:$0x1]
      %v1438 = vlaneseq
      %v1439 = vshrl.u32 %v1438, 7
      %v1440 = vsub.s32 0, %v1439
      %v1441 = vrot.slane %v1436, %v1440
      %v1447 = vunpack.c.l.b16 %v1432
      %v1448 = vunpack.c.l.b16 %v1433
      %v1449 = vunpack.c.l.b16 %v1434
      %v1450 = vunpack.c.l.b16 %v1435
      %v1451 = vpack.c.b16 %v1448, %v1447
      %v1452 = vpack.c.b16 %v1450, %v1449
      %v1456 = vsel %vm1294, %v1428, 0
      %v1459 = vsel %vm1294, %v1429, 0
      %v1462 = vsel %vm1294, %v1430, 0
      %v1465 = vsel %vm1294, %v1431, 0
      %1467 = vmatprep.subr.bf16.mxu0 0
      %1468 = vmatpush1.bf16.msra.mxu0 0
      %1469 = vmatprep.subr.bf16.mxu0 0
      %1470 = vmatpush1.bf16.msra.mxu0 0
      %1471 = vmatprep.subr.bf16.mxu0 0
      %1472 = vmatpush1.bf16.msra.mxu0 0
      %1473 = vmatprep.subr.bf16.mxu0 0
      %1474 = vmatpush1.bf16.msra.mxu0 0
      %1475 = vmatprep.subr.bf16.mxu0 0
      %1476 = vmatpush1.bf16.msra.mxu0 0
      %1477 = vmatprep.subr.bf16.mxu0 0
      %1478 = vmatpush1.bf16.msra.mxu0 0
      %1479 = vmatprep.subr.bf16.mxu0 0
      %1480 = vmatpush1.bf16.msra.mxu0 %v1452
      %1481 = vmatprep.subr.bf16.mxu0 0
      %1482 = vmatpush1.bf16.msra.mxu0 %v1451
      %1483 = vmatprep.subr.bf16.mxu0 0
      %1484 = vmatpush2.bf16.msra.mxu0 0
      %1485 = vmatprep.subr.bf16.mxu0 0
      %1486 = vmatpush2.bf16.msra.mxu0 0
      %1487 = vmatprep.subr.bf16.mxu0 0
      %1488 = vmatpush2.bf16.msra.mxu0 0
      %1489 = vmatprep.subr.bf16.mxu0 0
      %1490 = vmatpush2.bf16.msra.mxu0 0
      %1491 = vmatprep.subr.bf16.mxu0 0
      %1492 = vmatpush2.bf16.msra.mxu0 0
      %1493 = vmatprep.subr.bf16.mxu0 0
      %1494 = vmatpush2.bf16.msra.mxu0 0
      %1495 = vmatprep.subr.bf16.mxu0 0
      %1496 = vmatpush2.bf16.msra.mxu0 0
      %1497 = vmatprep.subr.bf16.mxu0 0
      %1498 = vmatpush2.bf16.msra.mxu0 0
      %1499 = vmatprep.mubr.bf16.mxu0 0
      %1500 = vmatmul.mubr.bf16.gmra.mxu0 %v1456
      %v1501 = vpop.f32.mrf.mxu0
      %v1502 = vadd.f32 %v1441, %v1501
      %v1503 = vpop.f32.mrf.mxu0
      %v1504 = vpop.f32.mrf.mxu0
      %v1505 = vadd.f32 %v1441, %v1504
      %v1506 = vpop.f32.mrf.mxu0
      %1507 = vmatprep.mubr.bf16.mxu0 0
      %1508 = vmatmul.mubr.bf16.gmra.mxu0 %v1459
      %v1509 = vpop.f32.mrf.mxu0
      %v1510 = vadd.f32 %v1441, %v1509
      %v1511 = vpop.f32.mrf.mxu0
      %v1512 = vpop.f32.mrf.mxu0
      %v1513 = vadd.f32 %v1441, %v1512
      %v1514 = vpop.f32.mrf.mxu0
      %1515 = vmatprep.mubr.bf16.mxu0 0
      %1516 = vmatmul.mubr.bf16.gmra.mxu0 %v1462
      %v1517 = vpop.f32.mrf.mxu0
      %v1518 = vadd.f32 %v1441, %v1517
      %v1519 = vpop.f32.mrf.mxu0
      %v1520 = vpop.f32.mrf.mxu0
      %v1521 = vadd.f32 %v1441, %v1520
      %v1522 = vpop.f32.mrf.mxu0
      %1523 = vmatprep.mubr.bf16.mxu0 0
      %1524 = vmatmul.mubr.bf16.gmra.mxu0 %v1465
      %v1525 = vpop.f32.mrf.mxu0
      %v1526 = vadd.f32 %v1441, %v1525
      %v1527 = vpop.f32.mrf.mxu0
      %v1528 = vpop.f32.mrf.mxu0
      %v1529 = vadd.f32 %v1441, %v1528
      %v1530 = vpop.f32.mrf.mxu0
      %1531 = vdwg.mxu0
      %v1532 = vpack.c.bf16 %v1502, %v1502
      %v1533 = vpack.c.bf16 %v1505, %v1505
      %v1534 = vpack.c.bf16 %v1510, %v1510
      %v1535 = vpack.c.bf16 %v1513, %v1513
      %v1536 = vpack.c.bf16 %v1518, %v1518
      %v1537 = vpack.c.bf16 %v1521, %v1521
      %v1538 = vpack.c.bf16 %v1526, %v1526
      %v1539 = vpack.c.bf16 %v1529, %v1529
      %1541 = vrot.lane.b32.xlu0 %v1532, 96
      %v1542 = vpop.permute.xlu0 %1541
      %vm1543 = vcmask 64512
      %v1545 = vsel %vm1543, %v1532, 0
      %v1548 = vsel %vm1543, %v1542, 0
      %1550 = vmatprep.subr.bf16.mxu0 0
      %1551 = vmatpush1.bf16.xpose.msra.mxu0 0
      %1552 = vmatprep.subr.bf16.mxu0 0
      %1553 = vmatpush1.bf16.xpose.msra.mxu0 0
      %1554 = vmatprep.subr.bf16.mxu0 0
      %1555 = vmatpush1.bf16.xpose.msra.mxu0 0
      %1556 = vmatprep.subr.bf16.mxu0 0
      %1557 = vmatpush1.bf16.xpose.msra.mxu0 0
      %1558 = vmatprep.subr.bf16.mxu0 0
      %1559 = vmatpush1.bf16.xpose.msra.mxu0 0
      %1560 = vmatprep.subr.bf16.mxu0 0
      %1561 = vmatpush1.bf16.xpose.msra.mxu0 0
      %1562 = vmatprep.subr.bf16.mxu0 0
      %1563 = vmatpush1.bf16.xpose.msra.mxu0 0
      %1564 = vmatprep.subr.bf16.mxu0 0
      %1565 = vmatpush1.bf16.xpose.msra.mxu0 %v1548
      %1566 = vmatprep.subr.bf16.mxu0 0
      %1567 = vmatpush2.bf16.xpose.msra.mxu0 0
      %1568 = vmatprep.subr.bf16.mxu0 0
      %1569 = vmatpush2.bf16.xpose.msra.mxu0 0
      %1570 = vmatprep.subr.bf16.mxu0 0
      %1571 = vmatpush2.bf16.xpose.msra.mxu0 0
      %1572 = vmatprep.subr.bf16.mxu0 0
      %1573 = vmatpush2.bf16.xpose.msra.mxu0 0
      %1574 = vmatprep.subr.bf16.mxu0 0
      %1575 = vmatpush2.bf16.xpose.msra.mxu0 0
      %1576 = vmatprep.subr.bf16.mxu0 0
      %1577 = vmatpush2.bf16.xpose.msra.mxu0 0
      %1578 = vmatprep.subr.bf16.mxu0 0
      %1579 = vmatpush2.bf16.xpose.msra.mxu0 0
      %1580 = vmatprep.subr.bf16.mxu0 0
      %1581 = vmatpush2.bf16.xpose.msra.mxu0 0
      %1582 = vmatprep.mubr.bf16.mxu0 0
      %1583 = vmatmul.mubr.bf16.gmra.mxu0 %v1545
      %v1584 = vpop.f32.mrf.mxu0
      %v1585 = vadd.f32 0.0, %v1584
      %v1586 = vpop.f32.mrf.mxu0
      %v1587 = vpop.f32.mrf.mxu0
      %v1588 = vpop.f32.mrf.mxu0
      %1589 = vdwg.mxu0
      %1591 = vrot.lane.b32.xlu0 %v1533, 96
      %v1592 = vpop.permute.xlu0 %1591
      %v1594 = vsel %vm1543, %v1533, 0
      %v1597 = vsel %vm1543, %v1592, 0
      %1599 = vmatprep.subr.bf16.mxu0 0
      %1600 = vmatpush1.bf16.xpose.msra.mxu0 0
      %1601 = vmatprep.subr.bf16.mxu0 0
      %1602 = vmatpush1.bf16.xpose.msra.mxu0 0
      %1603 = vmatprep.subr.bf16.mxu0 0
      %1604 = vmatpush1.bf16.xpose.msra.mxu0 0
      %1605 = vmatprep.subr.bf16.mxu0 0
      %1606 = vmatpush1.bf16.xpose.msra.mxu0 0
      %1607 = vmatprep.subr.bf16.mxu0 0
      %1608 = vmatpush1.bf16.xpose.msra.mxu0 0
      %1609 = vmatprep.subr.bf16.mxu0 0
      %1610 = vmatpush1.bf16.xpose.msra.mxu0 0
      %1611 = vmatprep.subr.bf16.mxu0 0
      %1612 = vmatpush1.bf16.xpose.msra.mxu0 0
      %1613 = vmatprep.subr.bf16.mxu0 0
      %1614 = vmatpush1.bf16.xpose.msra.mxu0 %v1597
      %1615 = vmatprep.subr.bf16.mxu0 0
      %1616 = vmatpush2.bf16.xpose.msra.mxu0 0
      %1617 = vmatprep.subr.bf16.mxu0 0
      %1618 = vmatpush2.bf16.xpose.msra.mxu0 0
      %1619 = vmatprep.subr.bf16.mxu0 0
      %1620 = vmatpush2.bf16.xpose.msra.mxu0 0
      %1621 = vmatprep.subr.bf16.mxu0 0
      %1622 = vmatpush2.bf16.xpose.msra.mxu0 0
      %1623 = vmatprep.subr.bf16.mxu0 0
      %1624 = vmatpush2.bf16.xpose.msra.mxu0 0
      %1625 = vmatprep.subr.bf16.mxu0 0
      %1626 = vmatpush2.bf16.xpose.msra.mxu0 0
      %1627 = vmatprep.subr.bf16.mxu0 0
      %1628 = vmatpush2.bf16.xpose.msra.mxu0 0
      %1629 = vmatprep.subr.bf16.mxu0 0
      %1630 = vmatpush2.bf16.xpose.msra.mxu0 0
      %1631 = vmatprep.mubr.bf16.mxu0 0
      %1632 = vmatmul.mubr.bf16.gmra.mxu0 %v1594
      %v1633 = vpop.f32.mrf.mxu0
      %v1634 = vadd.f32 0.0, %v1633
      %v1635 = vpop.f32.mrf.mxu0
      %v1636 = vpop.f32.mrf.mxu0
      %v1637 = vpop.f32.mrf.mxu0
      %1638 = vdwg.mxu0
      %1640 = vrot.lane.b32.xlu0 %v1534, 96
      %v1641 = vpop.permute.xlu0 %1640
      %v1643 = vsel %vm1543, %v1534, 0
      %v1646 = vsel %vm1543, %v1641, 0
      %1648 = vmatprep.subr.bf16.mxu0 0
      %1649 = vmatpush1.bf16.xpose.msra.mxu0 0
      %1650 = vmatprep.subr.bf16.mxu0 0
      %1651 = vmatpush1.bf16.xpose.msra.mxu0 0
      %1652 = vmatprep.subr.bf16.mxu0 0
      %1653 = vmatpush1.bf16.xpose.msra.mxu0 0
      %1654 = vmatprep.subr.bf16.mxu0 0
      %1655 = vmatpush1.bf16.xpose.msra.mxu0 0
      %1656 = vmatprep.subr.bf16.mxu0 0
      %1657 = vmatpush1.bf16.xpose.msra.mxu0 0
      %1658 = vmatprep.subr.bf16.mxu0 0
      %1659 = vmatpush1.bf16.xpose.msra.mxu0 0
      %1660 = vmatprep.subr.bf16.mxu0 0
      %1661 = vmatpush1.bf16.xpose.msra.mxu0 0
      %1662 = vmatprep.subr.bf16.mxu0 0
      %1663 = vmatpush1.bf16.xpose.msra.mxu0 %v1646
      %1664 = vmatprep.subr.bf16.mxu0 0
      %1665 = vmatpush2.bf16.xpose.msra.mxu0 0
      %1666 = vmatprep.subr.bf16.mxu0 0
      %1667 = vmatpush2.bf16.xpose.msra.mxu0 0
      %1668 = vmatprep.subr.bf16.mxu0 0
      %1669 = vmatpush2.bf16.xpose.msra.mxu0 0
      %1670 = vmatprep.subr.bf16.mxu0 0
      %1671 = vmatpush2.bf16.xpose.msra.mxu0 0
      %1672 = vmatprep.subr.bf16.mxu0 0
      %1673 = vmatpush2.bf16.xpose.msra.mxu0 0
      %1674 = vmatprep.subr.bf16.mxu0 0
      %1675 = vmatpush2.bf16.xpose.msra.mxu0 0
      %1676 = vmatprep.subr.bf16.mxu0 0
      %1677 = vmatpush2.bf16.xpose.msra.mxu0 0
      %1678 = vmatprep.subr.bf16.mxu0 0
      %1679 = vmatpush2.bf16.xpose.msra.mxu0 0
      %1680 = vmatprep.mubr.bf16.mxu0 0
      %1681 = vmatmul.mubr.bf16.gmra.mxu0 %v1643
      %v1682 = vpop.f32.mrf.mxu0
      %v1683 = vadd.f32 0.0, %v1682
      %v1684 = vpop.f32.mrf.mxu0
      %v1685 = vpop.f32.mrf.mxu0
      %v1686 = vpop.f32.mrf.mxu0
      %1687 = vdwg.mxu0
      %1689 = vrot.lane.b32.xlu0 %v1535, 96
      %v1690 = vpop.permute.xlu0 %1689
      %v1692 = vsel %vm1543, %v1535, 0
      %v1695 = vsel %vm1543, %v1690, 0
      %1697 = vmatprep.subr.bf16.mxu0 0
      %1698 = vmatpush1.bf16.xpose.msra.mxu0 0
      %1699 = vmatprep.subr.bf16.mxu0 0
      %1700 = vmatpush1.bf16.xpose.msra.mxu0 0
      %1701 = vmatprep.subr.bf16.mxu0 0
      %1702 = vmatpush1.bf16.xpose.msra.mxu0 0
      %1703 = vmatprep.subr.bf16.mxu0 0
      %1704 = vmatpush1.bf16.xpose.msra.mxu0 0
      %1705 = vmatprep.subr.bf16.mxu0 0
      %1706 = vmatpush1.bf16.xpose.msra.mxu0 0
      %1707 = vmatprep.subr.bf16.mxu0 0
      %1708 = vmatpush1.bf16.xpose.msra.mxu0 0
      %1709 = vmatprep.subr.bf16.mxu0 0
      %1710 = vmatpush1.bf16.xpose.msra.mxu0 0
      %1711 = vmatprep.subr.bf16.mxu0 0
      %1712 = vmatpush1.bf16.xpose.msra.mxu0 %v1695
      %1713 = vmatprep.subr.bf16.mxu0 0
      %1714 = vmatpush2.bf16.xpose.msra.mxu0 0
      %1715 = vmatprep.subr.bf16.mxu0 0
      %1716 = vmatpush2.bf16.xpose.msra.mxu0 0
      %1717 = vmatprep.subr.bf16.mxu0 0
      %1718 = vmatpush2.bf16.xpose.msra.mxu0 0
      %1719 = vmatprep.subr.bf16.mxu0 0
      %1720 = vmatpush2.bf16.xpose.msra.mxu0 0
      %1721 = vmatprep.subr.bf16.mxu0 0
      %1722 = vmatpush2.bf16.xpose.msra.mxu0 0
      %1723 = vmatprep.subr.bf16.mxu0 0
      %1724 = vmatpush2.bf16.xpose.msra.mxu0 0
      %1725 = vmatprep.subr.bf16.mxu0 0
      %1726 = vmatpush2.bf16.xpose.msra.mxu0 0
      %1727 = vmatprep.subr.bf16.mxu0 0
      %1728 = vmatpush2.bf16.xpose.msra.mxu0 0
      %1729 = vmatprep.mubr.bf16.mxu0 0
      %1730 = vmatmul.mubr.bf16.gmra.mxu0 %v1692
      %v1731 = vpop.f32.mrf.mxu0
      %v1732 = vadd.f32 0.0, %v1731
      %v1733 = vpop.f32.mrf.mxu0
      %v1734 = vpop.f32.mrf.mxu0
      %v1735 = vpop.f32.mrf.mxu0
      %1736 = vdwg.mxu0
      %1738 = vrot.lane.b32.xlu0 %v1536, 96
      %v1739 = vpop.permute.xlu0 %1738
      %v1741 = vsel %vm1543, %v1536, 0
      %v1744 = vsel %vm1543, %v1739, 0
      %1746 = vmatprep.subr.bf16.mxu0 0
      %1747 = vmatpush1.bf16.xpose.msra.mxu0 0
      %1748 = vmatprep.subr.bf16.mxu0 0
      %1749 = vmatpush1.bf16.xpose.msra.mxu0 0
      %1750 = vmatprep.subr.bf16.mxu0 0
      %1751 = vmatpush1.bf16.xpose.msra.mxu0 0
      %1752 = vmatprep.subr.bf16.mxu0 0
      %1753 = vmatpush1.bf16.xpose.msra.mxu0 0
      %1754 = vmatprep.subr.bf16.mxu0 0
      %1755 = vmatpush1.bf16.xpose.msra.mxu0 0
      %1756 = vmatprep.subr.bf16.mxu0 0
      %1757 = vmatpush1.bf16.xpose.msra.mxu0 0
      %1758 = vmatprep.subr.bf16.mxu0 0
      %1759 = vmatpush1.bf16.xpose.msra.mxu0 0
      %1760 = vmatprep.subr.bf16.mxu0 0
      %1761 = vmatpush1.bf16.xpose.msra.mxu0 %v1744
      %1762 = vmatprep.subr.bf16.mxu0 0
      %1763 = vmatpush2.bf16.xpose.msra.mxu0 0
      %1764 = vmatprep.subr.bf16.mxu0 0
      %1765 = vmatpush2.bf16.xpose.msra.mxu0 0
      %1766 = vmatprep.subr.bf16.mxu0 0
      %1767 = vmatpush2.bf16.xpose.msra.mxu0 0
      %1768 = vmatprep.subr.bf16.mxu0 0
      %1769 = vmatpush2.bf16.xpose.msra.mxu0 0
      %1770 = vmatprep.subr.bf16.mxu0 0
      %1771 = vmatpush2.bf16.xpose.msra.mxu0 0
      %1772 = vmatprep.subr.bf16.mxu0 0
      %1773 = vmatpush2.bf16.xpose.msra.mxu0 0
      %1774 = vmatprep.subr.bf16.mxu0 0
      %1775 = vmatpush2.bf16.xpose.msra.mxu0 0
      %1776 = vmatprep.subr.bf16.mxu0 0
      %1777 = vmatpush2.bf16.xpose.msra.mxu0 0
      %1778 = vmatprep.mubr.bf16.mxu0 0
      %1779 = vmatmul.mubr.bf16.gmra.mxu0 %v1741
      %v1780 = vpop.f32.mrf.mxu0
      %v1781 = vadd.f32 0.0, %v1780
      %v1782 = vpop.f32.mrf.mxu0
      %v1783 = vpop.f32.mrf.mxu0
      %v1784 = vpop.f32.mrf.mxu0
      %1785 = vdwg.mxu0
      %1787 = vrot.lane.b32.xlu0 %v1537, 96
      %v1788 = vpop.permute.xlu0 %1787
      %v1790 = vsel %vm1543, %v1537, 0
      %v1793 = vsel %vm1543, %v1788, 0
      %1795 = vmatprep.subr.bf16.mxu0 0
      %1796 = vmatpush1.bf16.xpose.msra.mxu0 0
      %1797 = vmatprep.subr.bf16.mxu0 0
      %1798 = vmatpush1.bf16.xpose.msra.mxu0 0
      %1799 = vmatprep.subr.bf16.mxu0 0
      %1800 = vmatpush1.bf16.xpose.msra.mxu0 0
      %1801 = vmatprep.subr.bf16.mxu0 0
      %1802 = vmatpush1.bf16.xpose.msra.mxu0 0
      %1803 = vmatprep.subr.bf16.mxu0 0
      %1804 = vmatpush1.bf16.xpose.msra.mxu0 0
      %1805 = vmatprep.subr.bf16.mxu0 0
      %1806 = vmatpush1.bf16.xpose.msra.mxu0 0
      %1807 = vmatprep.subr.bf16.mxu0 0
      %1808 = vmatpush1.bf16.xpose.msra.mxu0 0
      %1809 = vmatprep.subr.bf16.mxu0 0
      %1810 = vmatpush1.bf16.xpose.msra.mxu0 %v1793
      %1811 = vmatprep.subr.bf16.mxu0 0
      %1812 = vmatpush2.bf16.xpose.msra.mxu0 0
      %1813 = vmatprep.subr.bf16.mxu0 0
      %1814 = vmatpush2.bf16.xpose.msra.mxu0 0
      %1815 = vmatprep.subr.bf16.mxu0 0
      %1816 = vmatpush2.bf16.xpose.msra.mxu0 0
      %1817 = vmatprep.subr.bf16.mxu0 0
      %1818 = vmatpush2.bf16.xpose.msra.mxu0 0
      %1819 = vmatprep.subr.bf16.mxu0 0
      %1820 = vmatpush2.bf16.xpose.msra.mxu0 0
      %1821 = vmatprep.subr.bf16.mxu0 0
      %1822 = vmatpush2.bf16.xpose.msra.mxu0 0
      %1823 = vmatprep.subr.bf16.mxu0 0
      %1824 = vmatpush2.bf16.xpose.msra.mxu0 0
      %1825 = vmatprep.subr.bf16.mxu0 0
      %1826 = vmatpush2.bf16.xpose.msra.mxu0 0
      %1827 = vmatprep.mubr.bf16.mxu0 0
      %1828 = vmatmul.mubr.bf16.gmra.mxu0 %v1790
      %v1829 = vpop.f32.mrf.mxu0
      %v1830 = vadd.f32 0.0, %v1829
      %v1831 = vpop.f32.mrf.mxu0
      %v1832 = vpop.f32.mrf.mxu0
      %v1833 = vpop.f32.mrf.mxu0
      %1834 = vdwg.mxu0
      %1836 = vrot.lane.b32.xlu0 %v1538, 96
      %v1837 = vpop.permute.xlu0 %1836
      %v1839 = vsel %vm1543, %v1538, 0
      %v1842 = vsel %vm1543, %v1837, 0
      %1844 = vmatprep.subr.bf16.mxu0 0
      %1845 = vmatpush1.bf16.xpose.msra.mxu0 0
      %1846 = vmatprep.subr.bf16.mxu0 0
      %1847 = vmatpush1.bf16.xpose.msra.mxu0 0
      %1848 = vmatprep.subr.bf16.mxu0 0
      %1849 = vmatpush1.bf16.xpose.msra.mxu0 0
      %1850 = vmatprep.subr.bf16.mxu0 0
      %1851 = vmatpush1.bf16.xpose.msra.mxu0 0
      %1852 = vmatprep.subr.bf16.mxu0 0
      %1853 = vmatpush1.bf16.xpose.msra.mxu0 0
      %1854 = vmatprep.subr.bf16.mxu0 0
      %1855 = vmatpush1.bf16.xpose.msra.mxu0 0
      %1856 = vmatprep.subr.bf16.mxu0 0
      %1857 = vmatpush1.bf16.xpose.msra.mxu0 0
      %1858 = vmatprep.subr.bf16.mxu0 0
      %1859 = vmatpush1.bf16.xpose.msra.mxu0 %v1842
      %1860 = vmatprep.subr.bf16.mxu0 0
      %1861 = vmatpush2.bf16.xpose.msra.mxu0 0
      %1862 = vmatprep.subr.bf16.mxu0 0
      %1863 = vmatpush2.bf16.xpose.msra.mxu0 0
      %1864 = vmatprep.subr.bf16.mxu0 0
      %1865 = vmatpush2.bf16.xpose.msra.mxu0 0
      %1866 = vmatprep.subr.bf16.mxu0 0
      %1867 = vmatpush2.bf16.xpose.msra.mxu0 0
      %1868 = vmatprep.subr.bf16.mxu0 0
      %1869 = vmatpush2.bf16.xpose.msra.mxu0 0
      %1870 = vmatprep.subr.bf16.mxu0 0
      %1871 = vmatpush2.bf16.xpose.msra.mxu0 0
      %1872 = vmatprep.subr.bf16.mxu0 0
      %1873 = vmatpush2.bf16.xpose.msra.mxu0 0
      %1874 = vmatprep.subr.bf16.mxu0 0
      %1875 = vmatpush2.bf16.xpose.msra.mxu0 0
      %1876 = vmatprep.mubr.bf16.mxu0 0
      %1877 = vmatmul.mubr.bf16.gmra.mxu0 %v1839
      %v1878 = vpop.f32.mrf.mxu0
      %v1879 = vadd.f32 0.0, %v1878
      %v1880 = vpop.f32.mrf.mxu0
      %v1881 = vpop.f32.mrf.mxu0
      %v1882 = vpop.f32.mrf.mxu0
      %1883 = vdwg.mxu0
      %1885 = vrot.lane.b32.xlu0 %v1539, 96
      %v1886 = vpop.permute.xlu0 %1885
      %v1888 = vsel %vm1543, %v1539, 0
      %v1891 = vsel %vm1543, %v1886, 0
      %1893 = vmatprep.subr.bf16.mxu0 0
      %1894 = vmatpush1.bf16.xpose.msra.mxu0 0
      %1895 = vmatprep.subr.bf16.mxu0 0
      %1896 = vmatpush1.bf16.xpose.msra.mxu0 0
      %1897 = vmatprep.subr.bf16.mxu0 0
      %1898 = vmatpush1.bf16.xpose.msra.mxu0 0
      %1899 = vmatprep.subr.bf16.mxu0 0
      %1900 = vmatpush1.bf16.xpose.msra.mxu0 0
      %1901 = vmatprep.subr.bf16.mxu0 0
      %1902 = vmatpush1.bf16.xpose.msra.mxu0 0
      %1903 = vmatprep.subr.bf16.mxu0 0
      %1904 = vmatpush1.bf16.xpose.msra.mxu0 0
      %1905 = vmatprep.subr.bf16.mxu0 0
      %1906 = vmatpush1.bf16.xpose.msra.mxu0 0
      %1907 = vmatprep.subr.bf16.mxu0 0
      %1908 = vmatpush1.bf16.xpose.msra.mxu0 %v1891
      %1909 = vmatprep.subr.bf16.mxu0 0
      %1910 = vmatpush2.bf16.xpose.msra.mxu0 0
      %1911 = vmatprep.subr.bf16.mxu0 0
      %1912 = vmatpush2.bf16.xpose.msra.mxu0 0
      %1913 = vmatprep.subr.bf16.mxu0 0
      %1914 = vmatpush2.bf16.xpose.msra.mxu0 0
      %1915 = vmatprep.subr.bf16.mxu0 0
      %1916 = vmatpush2.bf16.xpose.msra.mxu0 0
      %1917 = vmatprep.subr.bf16.mxu0 0
      %1918 = vmatpush2.bf16.xpose.msra.mxu0 0
      %1919 = vmatprep.subr.bf16.mxu0 0
      %1920 = vmatpush2.bf16.xpose.msra.mxu0 0
      %1921 = vmatprep.subr.bf16.mxu0 0
      %1922 = vmatpush2.bf16.xpose.msra.mxu0 0
      %1923 = vmatprep.subr.bf16.mxu0 0
      %1924 = vmatpush2.bf16.xpose.msra.mxu0 0
      %1925 = vmatprep.mubr.bf16.mxu0 0
      %1926 = vmatmul.mubr.bf16.gmra.mxu0 %v1888
      %v1927 = vpop.f32.mrf.mxu0
      %v1928 = vadd.f32 0.0, %v1927
      %v1929 = vpop.f32.mrf.mxu0
      %v1930 = vpop.f32.mrf.mxu0
      %v1931 = vpop.f32.mrf.mxu0
      %1932 = vdwg.mxu0
      %v1933 = vsel %vm1255, 1, 0
      %v1934 = vsel %vm1256, 1, 0
      %v1935 = vsel %vm1257, 1, 0
      %v1936 = vsel %vm1258, 1, 0
      %v1937 = vsel %vm1259, 1, 0
      %v1938 = vsel %vm1260, 1, 0
      %v1939 = vsel %vm1261, 1, 0
      %v1940 = vsel %vm1262, 1, 0
      %v1941 = vlaneseq
      %v1942 = vshrl.u32 %v1941, 7
      %v1943 = vsub.s32 0, %v1942
      %v1944 = vrot.slane %v1933, %v1943
      %v1945 = vlaneseq
      %v1946 = vshrl.u32 %v1945, 7
      %v1947 = vsub.s32 0, %v1946
      %v1948 = vrot.slane %v1934, %v1947
      %v1949 = vlaneseq
      %v1950 = vshrl.u32 %v1949, 7
      %v1951 = vsub.s32 0, %v1950
      %v1952 = vrot.slane %v1935, %v1951
      %v1953 = vlaneseq
      %v1954 = vshrl.u32 %v1953, 7
      %v1955 = vsub.s32 0, %v1954
      %v1956 = vrot.slane %v1936, %v1955
      %v1957 = vlaneseq
      %v1958 = vshrl.u32 %v1957, 7
      %v1959 = vsub.s32 0, %v1958
      %v1960 = vrot.slane %v1937, %v1959
      %v1961 = vlaneseq
      %v1962 = vshrl.u32 %v1961, 7
      %v1963 = vsub.s32 0, %v1962
      %v1964 = vrot.slane %v1938, %v1963
      %v1965 = vlaneseq
      %v1966 = vshrl.u32 %v1965, 7
      %v1967 = vsub.s32 0, %v1966
      %v1968 = vrot.slane %v1939, %v1967
      %v1969 = vlaneseq
      %v1970 = vshrl.u32 %v1969, 7
      %v1971 = vsub.s32 0, %v1970
      %v1972 = vrot.slane %v1940, %v1971
      %vm1973 = vcmp.eq.s32.totalorder %v1944, 1
      %vm1974 = vcmp.eq.s32.totalorder %v1948, 1
      %vm1975 = vcmp.eq.s32.totalorder %v1952, 1
      %vm1976 = vcmp.eq.s32.totalorder %v1956, 1
      %vm1977 = vcmp.eq.s32.totalorder %v1960, 1
      %vm1978 = vcmp.eq.s32.totalorder %v1964, 1
      %vm1979 = vcmp.eq.s32.totalorder %v1968, 1
      %vm1980 = vcmp.eq.s32.totalorder %v1972, 1
      %v1981 = vsel %vm1973, -1e+18, %v1585
      %v1982 = vsel %vm1974, -1e+18, %v1634
      %v1983 = vsel %vm1975, -1e+18, %v1683
      %v1984 = vsel %vm1976, -1e+18, %v1732
      %v1985 = vsel %vm1977, -1e+18, %v1781
      %v1986 = vsel %vm1978, -1e+18, %v1830
      %v1987 = vsel %vm1979, -1e+18, %v1879
      %v1988 = vsel %vm1980, -1e+18, %v1928
      %v1989 = vsel %vm1543, %v1981, -inf
      %1990 = vmax.xlane.f32.xlu0 %v1989
      %v1991 = vpop.xlane.xlu0 %1990
      %v1992 = vsel %vm1543, %v1982, -inf
      %1993 = vmax.xlane.f32.xlu0 %v1992
      %v1994 = vpop.xlane.xlu0 %1993
      %v1995 = vsel %vm1543, %v1983, -inf
      %1996 = vmax.xlane.f32.xlu0 %v1995
      %v1997 = vpop.xlane.xlu0 %1996
      %v1998 = vsel %vm1543, %v1984, -inf
      %1999 = vmax.xlane.f32.xlu0 %v1998
      %v2000 = vpop.xlane.xlu0 %1999
      %v2001 = vsel %vm1543, %v1985, -inf
      %2002 = vmax.xlane.f32.xlu0 %v2001
      %v2003 = vpop.xlane.xlu0 %2002
      %v2004 = vsel %vm1543, %v1986, -inf
      %2005 = vmax.xlane.f32.xlu0 %v2004
      %v2006 = vpop.xlane.xlu0 %2005
      %v2007 = vsel %vm1543, %v1987, -inf
      %2008 = vmax.xlane.f32.xlu0 %v2007
      %v2009 = vpop.xlane.xlu0 %2008
      %v2010 = vsel %vm1543, %v1988, -inf
      %2011 = vmax.xlane.f32.xlu0 %v2010
      %v2012 = vpop.xlane.xlu0 %2011
      %v2013 = vsub.f32 %v1981, %v1991
      %v2014 = vsub.f32 %v1982, %v1994
      %v2015 = vsub.f32 %v1983, %v1997
      %v2016 = vsub.f32 %v1984, %v2000
      %v2017 = vsub.f32 %v1985, %v2003
      %v2018 = vsub.f32 %v1986, %v2006
      %v2019 = vsub.f32 %v1987, %v2009
      %v2020 = vsub.f32 %v1988, %v2012
      %v2021 = vmul.f32 %v2013, 1.442695
      %v2022 = vpow.pop %v2021
      %v2023 = vmul.f32 %v2014, 1.442695
      %v2024 = vpow.pop %v2023
      %v2025 = vmul.f32 %v2015, 1.442695
      %v2026 = vpow.pop %v2025
      %v2027 = vmul.f32 %v2016, 1.442695
      %v2028 = vpow.pop %v2027
      %v2029 = vmul.f32 %v2017, 1.442695
      %v2030 = vpow.pop %v2029
      %v2031 = vmul.f32 %v2018, 1.442695
      %v2032 = vpow.pop %v2031
      %v2033 = vmul.f32 %v2019, 1.442695
      %v2034 = vpow.pop %v2033
      %v2035 = vmul.f32 %v2020, 1.442695
      %v2036 = vpow.pop %v2035
      %v2037 = vsel %vm1543, %v2022, 0.0
      %2038 = vadd.xlane.f32.xlu0 %v2037
      %v2039 = vpop.xlane.xlu0 %2038
      %v2040 = vsel %vm1543, %v2024, 0.0
      %2041 = vadd.xlane.f32.xlu0 %v2040
      %v2042 = vpop.xlane.xlu0 %2041
      %v2043 = vsel %vm1543, %v2026, 0.0
      %2044 = vadd.xlane.f32.xlu0 %v2043
      %v2045 = vpop.xlane.xlu0 %2044
      %v2046 = vsel %vm1543, %v2028, 0.0
      %2047 = vadd.xlane.f32.xlu0 %v2046
      %v2048 = vpop.xlane.xlu0 %2047
      %v2049 = vsel %vm1543, %v2030, 0.0
      %2050 = vadd.xlane.f32.xlu0 %v2049
      %v2051 = vpop.xlane.xlu0 %2050
      %v2052 = vsel %vm1543, %v2032, 0.0
      %2053 = vadd.xlane.f32.xlu0 %v2052
      %v2054 = vpop.xlane.xlu0 %2053
      %v2055 = vsel %vm1543, %v2034, 0.0
      %2056 = vadd.xlane.f32.xlu0 %v2055
      %v2057 = vpop.xlane.xlu0 %2056
      %v2058 = vsel %vm1543, %v2036, 0.0
      %2059 = vadd.xlane.f32.xlu0 %v2058
      %v2060 = vpop.xlane.xlu0 %2059
      %v2061 = vrcp.pop %v2039
      %v2062 = vrcp.pop %v2042
      %v2063 = vrcp.pop %v2045
      %v2064 = vrcp.pop %v2048
      %v2065 = vrcp.pop %v2051
      %v2066 = vrcp.pop %v2054
      %v2067 = vrcp.pop %v2057
      %v2068 = vrcp.pop %v2060
      %v2069 = vmul.f32 %v2022, %v2061
      %v2070 = vmul.f32 %v2024, %v2062
      %v2071 = vmul.f32 %v2026, %v2063
      %v2072 = vmul.f32 %v2028, %v2064
      %v2073 = vmul.f32 %v2030, %v2065
      %v2074 = vmul.f32 %v2032, %v2066
      %v2075 = vmul.f32 %v2034, %v2067
      %v2076 = vmul.f32 %v2036, %v2068
      %v2077 = vpack.c.bf16 %v2069, %v2069
      %v2078 = vpack.c.bf16 %v2070, %v2070
      %v2079 = vpack.c.bf16 %v2071, %v2071
      %v2080 = vpack.c.bf16 %v2072, %v2072
      %v2081 = vpack.c.bf16 %v2073, %v2073
      %v2082 = vpack.c.bf16 %v2074, %v2074
      %v2083 = vpack.c.bf16 %v2075, %v2075
      %v2084 = vpack.c.bf16 %v2076, %v2076
      %2085 = vrot.lane.b32.xlu0 %v1532, 64
      %v2086 = vpop.permute.xlu0 %2085
      %v2088 = vsel %vm1543, %v2077, 0
      %vm2090 = vcmask 1043456
      %v2092 = vsel %vm2090, %v2086, 0
      %2094 = vmatprep.subr.bf16.mxu0 0
      %2095 = vmatpush1.bf16.msra.mxu0 0
      %2096 = vmatprep.subr.bf16.mxu0 0
      %2097 = vmatpush1.bf16.msra.mxu0 0
      %2098 = vmatprep.subr.bf16.mxu0 0
      %2099 = vmatpush1.bf16.msra.mxu0 0
      %2100 = vmatprep.subr.bf16.mxu0 0
      %2101 = vmatpush1.bf16.msra.mxu0 0
      %2102 = vmatprep.subr.bf16.mxu0 0
      %2103 = vmatpush1.bf16.msra.mxu0 0
      %2104 = vmatprep.subr.bf16.mxu0 0
      %2105 = vmatpush1.bf16.msra.mxu0 0
      %2106 = vmatprep.subr.bf16.mxu0 0
      %2107 = vmatpush1.bf16.msra.mxu0 0
      %2108 = vmatprep.subr.bf16.mxu0 0
      %2109 = vmatpush1.bf16.msra.mxu0 %v2092
      %2110 = vmatprep.subr.bf16.mxu0 0
      %2111 = vmatpush2.bf16.msra.mxu0 0
      %2112 = vmatprep.subr.bf16.mxu0 0
      %2113 = vmatpush2.bf16.msra.mxu0 0
      %2114 = vmatprep.subr.bf16.mxu0 0
      %2115 = vmatpush2.bf16.msra.mxu0 0
      %2116 = vmatprep.subr.bf16.mxu0 0
      %2117 = vmatpush2.bf16.msra.mxu0 0
      %2118 = vmatprep.subr.bf16.mxu0 0
      %2119 = vmatpush2.bf16.msra.mxu0 0
      %2120 = vmatprep.subr.bf16.mxu0 0
      %2121 = vmatpush2.bf16.msra.mxu0 0
      %2122 = vmatprep.subr.bf16.mxu0 0
      %2123 = vmatpush2.bf16.msra.mxu0 0
      %2124 = vmatprep.subr.bf16.mxu0 0
      %2125 = vmatpush2.bf16.msra.mxu0 0
      %2126 = vmatprep.mubr.bf16.mxu0 0
      %2127 = vmatmul.mubr.bf16.gmra.mxu0 %v2088
      %v2128 = vpop.f32.mrf.mxu0
      %v2129 = vadd.f32 0.0, %v2128
      %v2130 = vpop.f32.mrf.mxu0
      %v2131 = vpop.f32.mrf.mxu0
      %v2132 = vpop.f32.mrf.mxu0
      %2133 = vdwg.mxu0
      %2134 = vrot.lane.b32.xlu0 %v1533, 64
      %v2135 = vpop.permute.xlu0 %2134
      %v2137 = vsel %vm1543, %v2078, 0
      %v2140 = vsel %vm2090, %v2135, 0
      %2142 = vmatprep.subr.bf16.mxu0 0
      %2143 = vmatpush1.bf16.msra.mxu0 0
      %2144 = vmatprep.subr.bf16.mxu0 0
      %2145 = vmatpush1.bf16.msra.mxu0 0
      %2146 = vmatprep.subr.bf16.mxu0 0
      %2147 = vmatpush1.bf16.msra.mxu0 0
      %2148 = vmatprep.subr.bf16.mxu0 0
      %2149 = vmatpush1.bf16.msra.mxu0 0
      %2150 = vmatprep.subr.bf16.mxu0 0
      %2151 = vmatpush1.bf16.msra.mxu0 0
      %2152 = vmatprep.subr.bf16.mxu0 0
      %2153 = vmatpush1.bf16.msra.mxu0 0
      %2154 = vmatprep.subr.bf16.mxu0 0
      %2155 = vmatpush1.bf16.msra.mxu0 0
      %2156 = vmatprep.subr.bf16.mxu0 0
      %2157 = vmatpush1.bf16.msra.mxu0 %v2140
      %2158 = vmatprep.subr.bf16.mxu0 0
      %2159 = vmatpush2.bf16.msra.mxu0 0
      %2160 = vmatprep.subr.bf16.mxu0 0
      %2161 = vmatpush2.bf16.msra.mxu0 0
      %2162 = vmatprep.subr.bf16.mxu0 0
      %2163 = vmatpush2.bf16.msra.mxu0 0
      %2164 = vmatprep.subr.bf16.mxu0 0
      %2165 = vmatpush2.bf16.msra.mxu0 0
      %2166 = vmatprep.subr.bf16.mxu0 0
      %2167 = vmatpush2.bf16.msra.mxu0 0
      %2168 = vmatprep.subr.bf16.mxu0 0
      %2169 = vmatpush2.bf16.msra.mxu0 0
      %2170 = vmatprep.subr.bf16.mxu0 0
      %2171 = vmatpush2.bf16.msra.mxu0 0
      %2172 = vmatprep.subr.bf16.mxu0 0
      %2173 = vmatpush2.bf16.msra.mxu0 0
      %2174 = vmatprep.mubr.bf16.mxu0 0
      %2175 = vmatmul.mubr.bf16.gmra.mxu0 %v2137
      %v2176 = vpop.f32.mrf.mxu0
      %v2177 = vadd.f32 0.0, %v2176
      %v2178 = vpop.f32.mrf.mxu0
      %v2179 = vpop.f32.mrf.mxu0
      %v2180 = vpop.f32.mrf.mxu0
      %2181 = vdwg.mxu0
      %2182 = vrot.lane.b32.xlu0 %v1534, 64
      %v2183 = vpop.permute.xlu0 %2182
      %v2185 = vsel %vm1543, %v2079, 0
      %v2188 = vsel %vm2090, %v2183, 0
      %2190 = vmatprep.subr.bf16.mxu0 0
      %2191 = vmatpush1.bf16.msra.mxu0 0
      %2192 = vmatprep.subr.bf16.mxu0 0
      %2193 = vmatpush1.bf16.msra.mxu0 0
      %2194 = vmatprep.subr.bf16.mxu0 0
      %2195 = vmatpush1.bf16.msra.mxu0 0
      %2196 = vmatprep.subr.bf16.mxu0 0
      %2197 = vmatpush1.bf16.msra.mxu0 0
      %2198 = vmatprep.subr.bf16.mxu0 0
      %2199 = vmatpush1.bf16.msra.mxu0 0
      %2200 = vmatprep.subr.bf16.mxu0 0
      %2201 = vmatpush1.bf16.msra.mxu0 0
      %2202 = vmatprep.subr.bf16.mxu0 0
      %2203 = vmatpush1.bf16.msra.mxu0 0
      %2204 = vmatprep.subr.bf16.mxu0 0
      %2205 = vmatpush1.bf16.msra.mxu0 %v2188
      %2206 = vmatprep.subr.bf16.mxu0 0
      %2207 = vmatpush2.bf16.msra.mxu0 0
      %2208 = vmatprep.subr.bf16.mxu0 0
      %2209 = vmatpush2.bf16.msra.mxu0 0
      %2210 = vmatprep.subr.bf16.mxu0 0
      %2211 = vmatpush2.bf16.msra.mxu0 0
      %2212 = vmatprep.subr.bf16.mxu0 0
      %2213 = vmatpush2.bf16.msra.mxu0 0
      %2214 = vmatprep.subr.bf16.mxu0 0
      %2215 = vmatpush2.bf16.msra.mxu0 0
      %2216 = vmatprep.subr.bf16.mxu0 0
      %2217 = vmatpush2.bf16.msra.mxu0 0
      %2218 = vmatprep.subr.bf16.mxu0 0
      %2219 = vmatpush2.bf16.msra.mxu0 0
      %2220 = vmatprep.subr.bf16.mxu0 0
      %2221 = vmatpush2.bf16.msra.mxu0 0
      %2222 = vmatprep.mubr.bf16.mxu0 0
      %2223 = vmatmul.mubr.bf16.gmra.mxu0 %v2185
      %v2224 = vpop.f32.mrf.mxu0
      %v2225 = vadd.f32 0.0, %v2224
      %v2226 = vpop.f32.mrf.mxu0
      %v2227 = vpop.f32.mrf.mxu0
      %v2228 = vpop.f32.mrf.mxu0
      %2229 = vdwg.mxu0
      %2230 = vrot.lane.b32.xlu0 %v1535, 64
      %v2231 = vpop.permute.xlu0 %2230
      %v2233 = vsel %vm1543, %v2080, 0
      %v2236 = vsel %vm2090, %v2231, 0
      %2238 = vmatprep.subr.bf16.mxu0 0
      %2239 = vmatpush1.bf16.msra.mxu0 0
      %2240 = vmatprep.subr.bf16.mxu0 0
      %2241 = vmatpush1.bf16.msra.mxu0 0
      %2242 = vmatprep.subr.bf16.mxu0 0
      %2243 = vmatpush1.bf16.msra.mxu0 0
      %2244 = vmatprep.subr.bf16.mxu0 0
      %2245 = vmatpush1.bf16.msra.mxu0 0
      %2246 = vmatprep.subr.bf16.mxu0 0
      %2247 = vmatpush1.bf16.msra.mxu0 0
      %2248 = vmatprep.subr.bf16.mxu0 0
      %2249 = vmatpush1.bf16.msra.mxu0 0
      %2250 = vmatprep.subr.bf16.mxu0 0
      %2251 = vmatpush1.bf16.msra.mxu0 0
      %2252 = vmatprep.subr.bf16.mxu0 0
      %2253 = vmatpush1.bf16.msra.mxu0 %v2236
      %2254 = vmatprep.subr.bf16.mxu0 0
      %2255 = vmatpush2.bf16.msra.mxu0 0
      %2256 = vmatprep.subr.bf16.mxu0 0
      %2257 = vmatpush2.bf16.msra.mxu0 0
      %2258 = vmatprep.subr.bf16.mxu0 0
      %2259 = vmatpush2.bf16.msra.mxu0 0
      %2260 = vmatprep.subr.bf16.mxu0 0
      %2261 = vmatpush2.bf16.msra.mxu0 0
      %2262 = vmatprep.subr.bf16.mxu0 0
      %2263 = vmatpush2.bf16.msra.mxu0 0
      %2264 = vmatprep.subr.bf16.mxu0 0
      %2265 = vmatpush2.bf16.msra.mxu0 0
      %2266 = vmatprep.subr.bf16.mxu0 0
      %2267 = vmatpush2.bf16.msra.mxu0 0
      %2268 = vmatprep.subr.bf16.mxu0 0
      %2269 = vmatpush2.bf16.msra.mxu0 0
      %2270 = vmatprep.mubr.bf16.mxu0 0
      %2271 = vmatmul.mubr.bf16.gmra.mxu0 %v2233
      %v2272 = vpop.f32.mrf.mxu0
      %v2273 = vadd.f32 0.0, %v2272
      %v2274 = vpop.f32.mrf.mxu0
      %v2275 = vpop.f32.mrf.mxu0
      %v2276 = vpop.f32.mrf.mxu0
      %2277 = vdwg.mxu0
      %2278 = vrot.lane.b32.xlu0 %v1536, 64
      %v2279 = vpop.permute.xlu0 %2278
      %v2281 = vsel %vm1543, %v2081, 0
      %v2284 = vsel %vm2090, %v2279, 0
      %2286 = vmatprep.subr.bf16.mxu0 0
      %2287 = vmatpush1.bf16.msra.mxu0 0
      %2288 = vmatprep.subr.bf16.mxu0 0
      %2289 = vmatpush1.bf16.msra.mxu0 0
      %2290 = vmatprep.subr.bf16.mxu0 0
      %2291 = vmatpush1.bf16.msra.mxu0 0
      %2292 = vmatprep.subr.bf16.mxu0 0
      %2293 = vmatpush1.bf16.msra.mxu0 0
      %2294 = vmatprep.subr.bf16.mxu0 0
      %2295 = vmatpush1.bf16.msra.mxu0 0
      %2296 = vmatprep.subr.bf16.mxu0 0
      %2297 = vmatpush1.bf16.msra.mxu0 0
      %2298 = vmatprep.subr.bf16.mxu0 0
      %2299 = vmatpush1.bf16.msra.mxu0 0
      %2300 = vmatprep.subr.bf16.mxu0 0
      %2301 = vmatpush1.bf16.msra.mxu0 %v2284
      %2302 = vmatprep.subr.bf16.mxu0 0
      %2303 = vmatpush2.bf16.msra.mxu0 0
      %2304 = vmatprep.subr.bf16.mxu0 0
      %2305 = vmatpush2.bf16.msra.mxu0 0
      %2306 = vmatprep.subr.bf16.mxu0 0
      %2307 = vmatpush2.bf16.msra.mxu0 0
      %2308 = vmatprep.subr.bf16.mxu0 0
      %2309 = vmatpush2.bf16.msra.mxu0 0
      %2310 = vmatprep.subr.bf16.mxu0 0
      %2311 = vmatpush2.bf16.msra.mxu0 0
      %2312 = vmatprep.subr.bf16.mxu0 0
      %2313 = vmatpush2.bf16.msra.mxu0 0
      %2314 = vmatprep.subr.bf16.mxu0 0
      %2315 = vmatpush2.bf16.msra.mxu0 0
      %2316 = vmatprep.subr.bf16.mxu0 0
      %2317 = vmatpush2.bf16.msra.mxu0 0
      %2318 = vmatprep.mubr.bf16.mxu0 0
      %2319 = vmatmul.mubr.bf16.gmra.mxu0 %v2281
      %v2320 = vpop.f32.mrf.mxu0
      %v2321 = vadd.f32 0.0, %v2320
      %v2322 = vpop.f32.mrf.mxu0
      %v2323 = vpop.f32.mrf.mxu0
      %v2324 = vpop.f32.mrf.mxu0
      %2325 = vdwg.mxu0
      %2326 = vrot.lane.b32.xlu0 %v1537, 64
      %v2327 = vpop.permute.xlu0 %2326
      %v2329 = vsel %vm1543, %v2082, 0
      %v2332 = vsel %vm2090, %v2327, 0
      %2334 = vmatprep.subr.bf16.mxu0 0
      %2335 = vmatpush1.bf16.msra.mxu0 0
      %2336 = vmatprep.subr.bf16.mxu0 0
      %2337 = vmatpush1.bf16.msra.mxu0 0
      %2338 = vmatprep.subr.bf16.mxu0 0
      %2339 = vmatpush1.bf16.msra.mxu0 0
      %2340 = vmatprep.subr.bf16.mxu0 0
      %2341 = vmatpush1.bf16.msra.mxu0 0
      %2342 = vmatprep.subr.bf16.mxu0 0
      %2343 = vmatpush1.bf16.msra.mxu0 0
      %2344 = vmatprep.subr.bf16.mxu0 0
      %2345 = vmatpush1.bf16.msra.mxu0 0
      %2346 = vmatprep.subr.bf16.mxu0 0
      %2347 = vmatpush1.bf16.msra.mxu0 0
      %2348 = vmatprep.subr.bf16.mxu0 0
      %2349 = vmatpush1.bf16.msra.mxu0 %v2332
      %2350 = vmatprep.subr.bf16.mxu0 0
      %2351 = vmatpush2.bf16.msra.mxu0 0
      %2352 = vmatprep.subr.bf16.mxu0 0
      %2353 = vmatpush2.bf16.msra.mxu0 0
      %2354 = vmatprep.subr.bf16.mxu0 0
      %2355 = vmatpush2.bf16.msra.mxu0 0
      %2356 = vmatprep.subr.bf16.mxu0 0
      %2357 = vmatpush2.bf16.msra.mxu0 0
      %2358 = vmatprep.subr.bf16.mxu0 0
      %2359 = vmatpush2.bf16.msra.mxu0 0
      %2360 = vmatprep.subr.bf16.mxu0 0
      %2361 = vmatpush2.bf16.msra.mxu0 0
      %2362 = vmatprep.subr.bf16.mxu0 0
      %2363 = vmatpush2.bf16.msra.mxu0 0
      %2364 = vmatprep.subr.bf16.mxu0 0
      %2365 = vmatpush2.bf16.msra.mxu0 0
      %2366 = vmatprep.mubr.bf16.mxu0 0
      %2367 = vmatmul.mubr.bf16.gmra.mxu0 %v2329
      %v2368 = vpop.f32.mrf.mxu0
      %v2369 = vadd.f32 0.0, %v2368
      %v2370 = vpop.f32.mrf.mxu0
      %v2371 = vpop.f32.mrf.mxu0
      %v2372 = vpop.f32.mrf.mxu0
      %2373 = vdwg.mxu0
      %2374 = vrot.lane.b32.xlu0 %v1538, 64
      %v2375 = vpop.permute.xlu0 %2374
      %v2377 = vsel %vm1543, %v2083, 0
      %v2380 = vsel %vm2090, %v2375, 0
      %2382 = vmatprep.subr.bf16.mxu0 0
      %2383 = vmatpush1.bf16.msra.mxu0 0
      %2384 = vmatprep.subr.bf16.mxu0 0
      %2385 = vmatpush1.bf16.msra.mxu0 0
      %2386 = vmatprep.subr.bf16.mxu0 0
      %2387 = vmatpush1.bf16.msra.mxu0 0
      %2388 = vmatprep.subr.bf16.mxu0 0
      %2389 = vmatpush1.bf16.msra.mxu0 0
      %2390 = vmatprep.subr.bf16.mxu0 0
      %2391 = vmatpush1.bf16.msra.mxu0 0
      %2392 = vmatprep.subr.bf16.mxu0 0
      %2393 = vmatpush1.bf16.msra.mxu0 0
      %2394 = vmatprep.subr.bf16.mxu0 0
      %2395 = vmatpush1.bf16.msra.mxu0 0
      %2396 = vmatprep.subr.bf16.mxu0 0
      %2397 = vmatpush1.bf16.msra.mxu0 %v2380
      %2398 = vmatprep.subr.bf16.mxu0 0
      %2399 = vmatpush2.bf16.msra.mxu0 0
      %2400 = vmatprep.subr.bf16.mxu0 0
      %2401 = vmatpush2.bf16.msra.mxu0 0
      %2402 = vmatprep.subr.bf16.mxu0 0
      %2403 = vmatpush2.bf16.msra.mxu0 0
      %2404 = vmatprep.subr.bf16.mxu0 0
      %2405 = vmatpush2.bf16.msra.mxu0 0
      %2406 = vmatprep.subr.bf16.mxu0 0
      %2407 = vmatpush2.bf16.msra.mxu0 0
      %2408 = vmatprep.subr.bf16.mxu0 0
      %2409 = vmatpush2.bf16.msra.mxu0 0
      %2410 = vmatprep.subr.bf16.mxu0 0
      %2411 = vmatpush2.bf16.msra.mxu0 0
      %2412 = vmatprep.subr.bf16.mxu0 0
      %2413 = vmatpush2.bf16.msra.mxu0 0
      %2414 = vmatprep.mubr.bf16.mxu0 0
      %2415 = vmatmul.mubr.bf16.gmra.mxu0 %v2377
      %v2416 = vpop.f32.mrf.mxu0
      %v2417 = vadd.f32 0.0, %v2416
      %v2418 = vpop.f32.mrf.mxu0
      %v2419 = vpop.f32.mrf.mxu0
      %v2420 = vpop.f32.mrf.mxu0
      %2421 = vdwg.mxu0
      %2422 = vrot.lane.b32.xlu0 %v1539, 64
      %v2423 = vpop.permute.xlu0 %2422
      %v2425 = vsel %vm1543, %v2084, 0
      %v2428 = vsel %vm2090, %v2423, 0
      %2430 = vmatprep.subr.bf16.mxu0 0
      %2431 = vmatpush1.bf16.msra.mxu0 0
      %2432 = vmatprep.subr.bf16.mxu0 0
      %2433 = vmatpush1.bf16.msra.mxu0 0
      %2434 = vmatprep.subr.bf16.mxu0 0
      %2435 = vmatpush1.bf16.msra.mxu0 0
      %2436 = vmatprep.subr.bf16.mxu0 0
      %2437 = vmatpush1.bf16.msra.mxu0 0
      %2438 = vmatprep.subr.bf16.mxu0 0
      %2439 = vmatpush1.bf16.msra.mxu0 0
      %2440 = vmatprep.subr.bf16.mxu0 0
      %2441 = vmatpush1.bf16.msra.mxu0 0
      %2442 = vmatprep.subr.bf16.mxu0 0
      %2443 = vmatpush1.bf16.msra.mxu0 0
      %2444 = vmatprep.subr.bf16.mxu0 0
      %2445 = vmatpush1.bf16.msra.mxu0 %v2428
      %2446 = vmatprep.subr.bf16.mxu0 0
      %2447 = vmatpush2.bf16.msra.mxu0 0
      %2448 = vmatprep.subr.bf16.mxu0 0
      %2449 = vmatpush2.bf16.msra.mxu0 0
      %2450 = vmatprep.subr.bf16.mxu0 0
      %2451 = vmatpush2.bf16.msra.mxu0 0
      %2452 = vmatprep.subr.bf16.mxu0 0
      %2453 = vmatpush2.bf16.msra.mxu0 0
      %2454 = vmatprep.subr.bf16.mxu0 0
      %2455 = vmatpush2.bf16.msra.mxu0 0
      %2456 = vmatprep.subr.bf16.mxu0 0
      %2457 = vmatpush2.bf16.msra.mxu0 0
      %2458 = vmatprep.subr.bf16.mxu0 0
      %2459 = vmatpush2.bf16.msra.mxu0 0
      %2460 = vmatprep.subr.bf16.mxu0 0
      %2461 = vmatpush2.bf16.msra.mxu0 0
      %2462 = vmatprep.mubr.bf16.mxu0 0
      %2463 = vmatmul.mubr.bf16.gmra.mxu0 %v2425
      %v2464 = vpop.f32.mrf.mxu0
      %v2465 = vadd.f32 0.0, %v2464
      %v2466 = vpop.f32.mrf.mxu0
      %v2467 = vpop.f32.mrf.mxu0
      %v2468 = vpop.f32.mrf.mxu0
      %2469 = vdwg.mxu0
      %2470 = vrot.lane.b32.xlu0 %v1532, 120
      %v2471 = vpop.permute.xlu0 %2470
      %2472 = vrot.lane.b32.xlu0 %v1532, 88
      %v2473 = vpop.permute.xlu0 %2472
      %v2475 = vsel %vm1543, %v2471, 0
      %v2478 = vsel %vm1543, %v2473, 0
      %2480 = vmatprep.subr.bf16.mxu0 0
      %2481 = vmatpush1.bf16.xpose.msra.mxu0 0
      %2482 = vmatprep.subr.bf16.mxu0 0
      %2483 = vmatpush1.bf16.xpose.msra.mxu0 0
      %2484 = vmatprep.subr.bf16.mxu0 0
      %2485 = vmatpush1.bf16.xpose.msra.mxu0 0
      %2486 = vmatprep.subr.bf16.mxu0 0
      %2487 = vmatpush1.bf16.xpose.msra.mxu0 0
      %2488 = vmatprep.subr.bf16.mxu0 0
      %2489 = vmatpush1.bf16.xpose.msra.mxu0 0
      %2490 = vmatprep.subr.bf16.mxu0 0
      %2491 = vmatpush1.bf16.xpose.msra.mxu0 0
      %2492 = vmatprep.subr.bf16.mxu0 0
      %2493 = vmatpush1.bf16.xpose.msra.mxu0 0
      %2494 = vmatprep.subr.bf16.mxu0 0
      %2495 = vmatpush1.bf16.xpose.msra.mxu0 %v2478
      %2496 = vmatprep.subr.bf16.mxu0 0
      %2497 = vmatpush2.bf16.xpose.msra.mxu0 0
      %2498 = vmatprep.subr.bf16.mxu0 0
      %2499 = vmatpush2.bf16.xpose.msra.mxu0 0
      %2500 = vmatprep.subr.bf16.mxu0 0
      %2501 = vmatpush2.bf16.xpose.msra.mxu0 0
      %2502 = vmatprep.subr.bf16.mxu0 0
      %2503 = vmatpush2.bf16.xpose.msra.mxu0 0
      %2504 = vmatprep.subr.bf16.mxu0 0
      %2505 = vmatpush2.bf16.xpose.msra.mxu0 0
      %2506 = vmatprep.subr.bf16.mxu0 0
      %2507 = vmatpush2.bf16.xpose.msra.mxu0 0
      %2508 = vmatprep.subr.bf16.mxu0 0
      %2509 = vmatpush2.bf16.xpose.msra.mxu0 0
      %2510 = vmatprep.subr.bf16.mxu0 0
      %2511 = vmatpush2.bf16.xpose.msra.mxu0 0
      %2512 = vmatprep.mubr.bf16.mxu0 0
      %2513 = vmatmul.mubr.bf16.gmra.mxu0 %v2475
      %v2514 = vpop.f32.mrf.mxu0
      %v2515 = vadd.f32 0.0, %v2514
      %v2516 = vpop.f32.mrf.mxu0
      %v2517 = vpop.f32.mrf.mxu0
      %v2518 = vpop.f32.mrf.mxu0
      %2519 = vdwg.mxu0
      %2520 = vrot.lane.b32.xlu0 %v1533, 120
      %v2521 = vpop.permute.xlu0 %2520
      %2522 = vrot.lane.b32.xlu0 %v1533, 88
      %v2523 = vpop.permute.xlu0 %2522
      %v2525 = vsel %vm1543, %v2521, 0
      %v2528 = vsel %vm1543, %v2523, 0
      %2530 = vmatprep.subr.bf16.mxu0 0
      %2531 = vmatpush1.bf16.xpose.msra.mxu0 0
      %2532 = vmatprep.subr.bf16.mxu0 0
      %2533 = vmatpush1.bf16.xpose.msra.mxu0 0
      %2534 = vmatprep.subr.bf16.mxu0 0
      %2535 = vmatpush1.bf16.xpose.msra.mxu0 0
      %2536 = vmatprep.subr.bf16.mxu0 0
      %2537 = vmatpush1.bf16.xpose.msra.mxu0 0
      %2538 = vmatprep.subr.bf16.mxu0 0
      %2539 = vmatpush1.bf16.xpose.msra.mxu0 0
      %2540 = vmatprep.subr.bf16.mxu0 0
      %2541 = vmatpush1.bf16.xpose.msra.mxu0 0
      %2542 = vmatprep.subr.bf16.mxu0 0
      %2543 = vmatpush1.bf16.xpose.msra.mxu0 0
      %2544 = vmatprep.subr.bf16.mxu0 0
      %2545 = vmatpush1.bf16.xpose.msra.mxu0 %v2528
      %2546 = vmatprep.subr.bf16.mxu0 0
      %2547 = vmatpush2.bf16.xpose.msra.mxu0 0
      %2548 = vmatprep.subr.bf16.mxu0 0
      %2549 = vmatpush2.bf16.xpose.msra.mxu0 0
      %2550 = vmatprep.subr.bf16.mxu0 0
      %2551 = vmatpush2.bf16.xpose.msra.mxu0 0
      %2552 = vmatprep.subr.bf16.mxu0 0
      %2553 = vmatpush2.bf16.xpose.msra.mxu0 0
      %2554 = vmatprep.subr.bf16.mxu0 0
      %2555 = vmatpush2.bf16.xpose.msra.mxu0 0
      %2556 = vmatprep.subr.bf16.mxu0 0
      %2557 = vmatpush2.bf16.xpose.msra.mxu0 0
      %2558 = vmatprep.subr.bf16.mxu0 0
      %2559 = vmatpush2.bf16.xpose.msra.mxu0 0
      %2560 = vmatprep.subr.bf16.mxu0 0
      %2561 = vmatpush2.bf16.xpose.msra.mxu0 0
      %2562 = vmatprep.mubr.bf16.mxu0 0
      %2563 = vmatmul.mubr.bf16.gmra.mxu0 %v2525
      %v2564 = vpop.f32.mrf.mxu0
      %v2565 = vadd.f32 0.0, %v2564
      %v2566 = vpop.f32.mrf.mxu0
      %v2567 = vpop.f32.mrf.mxu0
      %v2568 = vpop.f32.mrf.mxu0
      %2569 = vdwg.mxu0
      %2570 = vrot.lane.b32.xlu0 %v1534, 120
      %v2571 = vpop.permute.xlu0 %2570
      %2572 = vrot.lane.b32.xlu0 %v1534, 88
      %v2573 = vpop.permute.xlu0 %2572
      %v2575 = vsel %vm1543, %v2571, 0
      %v2578 = vsel %vm1543, %v2573, 0
      %2580 = vmatprep.subr.bf16.mxu0 0
      %2581 = vmatpush1.bf16.xpose.msra.mxu0 0
      %2582 = vmatprep.subr.bf16.mxu0 0
      %2583 = vmatpush1.bf16.xpose.msra.mxu0 0
      %2584 = vmatprep.subr.bf16.mxu0 0
      %2585 = vmatpush1.bf16.xpose.msra.mxu0 0
      %2586 = vmatprep.subr.bf16.mxu0 0
      %2587 = vmatpush1.bf16.xpose.msra.mxu0 0
      %2588 = vmatprep.subr.bf16.mxu0 0
      %2589 = vmatpush1.bf16.xpose.msra.mxu0 0
      %2590 = vmatprep.subr.bf16.mxu0 0
      %2591 = vmatpush1.bf16.xpose.msra.mxu0 0
      %2592 = vmatprep.subr.bf16.mxu0 0
      %2593 = vmatpush1.bf16.xpose.msra.mxu0 0
      %2594 = vmatprep.subr.bf16.mxu0 0
      %2595 = vmatpush1.bf16.xpose.msra.mxu0 %v2578
      %2596 = vmatprep.subr.bf16.mxu0 0
      %2597 = vmatpush2.bf16.xpose.msra.mxu0 0
      %2598 = vmatprep.subr.bf16.mxu0 0
      %2599 = vmatpush2.bf16.xpose.msra.mxu0 0
      %2600 = vmatprep.subr.bf16.mxu0 0
      %2601 = vmatpush2.bf16.xpose.msra.mxu0 0
      %2602 = vmatprep.subr.bf16.mxu0 0
      %2603 = vmatpush2.bf16.xpose.msra.mxu0 0
      %2604 = vmatprep.subr.bf16.mxu0 0
      %2605 = vmatpush2.bf16.xpose.msra.mxu0 0
      %2606 = vmatprep.subr.bf16.mxu0 0
      %2607 = vmatpush2.bf16.xpose.msra.mxu0 0
      %2608 = vmatprep.subr.bf16.mxu0 0
      %2609 = vmatpush2.bf16.xpose.msra.mxu0 0
      %2610 = vmatprep.subr.bf16.mxu0 0
      %2611 = vmatpush2.bf16.xpose.msra.mxu0 0
      %2612 = vmatprep.mubr.bf16.mxu0 0
      %2613 = vmatmul.mubr.bf16.gmra.mxu0 %v2575
      %v2614 = vpop.f32.mrf.mxu0
      %v2615 = vadd.f32 0.0, %v2614
      %v2616 = vpop.f32.mrf.mxu0
      %v2617 = vpop.f32.mrf.mxu0
      %v2618 = vpop.f32.mrf.mxu0
      %2619 = vdwg.mxu0
      %2620 = vrot.lane.b32.xlu0 %v1535, 120
      %v2621 = vpop.permute.xlu0 %2620
      %2622 = vrot.lane.b32.xlu0 %v1535, 88
      %v2623 = vpop.permute.xlu0 %2622
      %v2625 = vsel %vm1543, %v2621, 0
      %v2628 = vsel %vm1543, %v2623, 0
      %2630 = vmatprep.subr.bf16.mxu0 0
      %2631 = vmatpush1.bf16.xpose.msra.mxu0 0
      %2632 = vmatprep.subr.bf16.mxu0 0
      %2633 = vmatpush1.bf16.xpose.msra.mxu0 0
      %2634 = vmatprep.subr.bf16.mxu0 0
      %2635 = vmatpush1.bf16.xpose.msra.mxu0 0
      %2636 = vmatprep.subr.bf16.mxu0 0
      %2637 = vmatpush1.bf16.xpose.msra.mxu0 0
      %2638 = vmatprep.subr.bf16.mxu0 0
      %2639 = vmatpush1.bf16.xpose.msra.mxu0 0
      %2640 = vmatprep.subr.bf16.mxu0 0
      %2641 = vmatpush1.bf16.xpose.msra.mxu0 0
      %2642 = vmatprep.subr.bf16.mxu0 0
      %2643 = vmatpush1.bf16.xpose.msra.mxu0 0
      %2644 = vmatprep.subr.bf16.mxu0 0
      %2645 = vmatpush1.bf16.xpose.msra.mxu0 %v2628
      %2646 = vmatprep.subr.bf16.mxu0 0
      %2647 = vmatpush2.bf16.xpose.msra.mxu0 0
      %2648 = vmatprep.subr.bf16.mxu0 0
      %2649 = vmatpush2.bf16.xpose.msra.mxu0 0
      %2650 = vmatprep.subr.bf16.mxu0 0
      %2651 = vmatpush2.bf16.xpose.msra.mxu0 0
      %2652 = vmatprep.subr.bf16.mxu0 0
      %2653 = vmatpush2.bf16.xpose.msra.mxu0 0
      %2654 = vmatprep.subr.bf16.mxu0 0
      %2655 = vmatpush2.bf16.xpose.msra.mxu0 0
      %2656 = vmatprep.subr.bf16.mxu0 0
      %2657 = vmatpush2.bf16.xpose.msra.mxu0 0
      %2658 = vmatprep.subr.bf16.mxu0 0
      %2659 = vmatpush2.bf16.xpose.msra.mxu0 0
      %2660 = vmatprep.subr.bf16.mxu0 0
      %2661 = vmatpush2.bf16.xpose.msra.mxu0 0
      %2662 = vmatprep.mubr.bf16.mxu0 0
      %2663 = vmatmul.mubr.bf16.gmra.mxu0 %v2625
      %v2664 = vpop.f32.mrf.mxu0
      %v2665 = vadd.f32 0.0, %v2664
      %v2666 = vpop.f32.mrf.mxu0
      %v2667 = vpop.f32.mrf.mxu0
      %v2668 = vpop.f32.mrf.mxu0
      %2669 = vdwg.mxu0
      %2670 = vrot.lane.b32.xlu0 %v1536, 120
      %v2671 = vpop.permute.xlu0 %2670
      %2672 = vrot.lane.b32.xlu0 %v1536, 88
      %v2673 = vpop.permute.xlu0 %2672
      %v2675 = vsel %vm1543, %v2671, 0
      %v2678 = vsel %vm1543, %v2673, 0
      %2680 = vmatprep.subr.bf16.mxu0 0
      %2681 = vmatpush1.bf16.xpose.msra.mxu0 0
      %2682 = vmatprep.subr.bf16.mxu0 0
      %2683 = vmatpush1.bf16.xpose.msra.mxu0 0
      %2684 = vmatprep.subr.bf16.mxu0 0
      %2685 = vmatpush1.bf16.xpose.msra.mxu0 0
      %2686 = vmatprep.subr.bf16.mxu0 0
      %2687 = vmatpush1.bf16.xpose.msra.mxu0 0
      %2688 = vmatprep.subr.bf16.mxu0 0
      %2689 = vmatpush1.bf16.xpose.msra.mxu0 0
      %2690 = vmatprep.subr.bf16.mxu0 0
      %2691 = vmatpush1.bf16.xpose.msra.mxu0 0
      %2692 = vmatprep.subr.bf16.mxu0 0
      %2693 = vmatpush1.bf16.xpose.msra.mxu0 0
      %2694 = vmatprep.subr.bf16.mxu0 0
      %2695 = vmatpush1.bf16.xpose.msra.mxu0 %v2678
      %2696 = vmatprep.subr.bf16.mxu0 0
      %2697 = vmatpush2.bf16.xpose.msra.mxu0 0
      %2698 = vmatprep.subr.bf16.mxu0 0
      %2699 = vmatpush2.bf16.xpose.msra.mxu0 0
      %2700 = vmatprep.subr.bf16.mxu0 0
      %2701 = vmatpush2.bf16.xpose.msra.mxu0 0
      %2702 = vmatprep.subr.bf16.mxu0 0
      %2703 = vmatpush2.bf16.xpose.msra.mxu0 0
      %2704 = vmatprep.subr.bf16.mxu0 0
      %2705 = vmatpush2.bf16.xpose.msra.mxu0 0
      %2706 = vmatprep.subr.bf16.mxu0 0
      %2707 = vmatpush2.bf16.xpose.msra.mxu0 0
      %2708 = vmatprep.subr.bf16.mxu0 0
      %2709 = vmatpush2.bf16.xpose.msra.mxu0 0
      %2710 = vmatprep.subr.bf16.mxu0 0
      %2711 = vmatpush2.bf16.xpose.msra.mxu0 0
      %2712 = vmatprep.mubr.bf16.mxu0 0
      %2713 = vmatmul.mubr.bf16.gmra.mxu0 %v2675
      %v2714 = vpop.f32.mrf.mxu0
      %v2715 = vadd.f32 0.0, %v2714
      %v2716 = vpop.f32.mrf.mxu0
      %v2717 = vpop.f32.mrf.mxu0
      %v2718 = vpop.f32.mrf.mxu0
      %2719 = vdwg.mxu0
      %2720 = vrot.lane.b32.xlu0 %v1537, 120
      %v2721 = vpop.permute.xlu0 %2720
      %2722 = vrot.lane.b32.xlu0 %v1537, 88
      %v2723 = vpop.permute.xlu0 %2722
      %v2725 = vsel %vm1543, %v2721, 0
      %v2728 = vsel %vm1543, %v2723, 0
      %2730 = vmatprep.subr.bf16.mxu0 0
      %2731 = vmatpush1.bf16.xpose.msra.mxu0 0
      %2732 = vmatprep.subr.bf16.mxu0 0
      %2733 = vmatpush1.bf16.xpose.msra.mxu0 0
      %2734 = vmatprep.subr.bf16.mxu0 0
      %2735 = vmatpush1.bf16.xpose.msra.mxu0 0
      %2736 = vmatprep.subr.bf16.mxu0 0
      %2737 = vmatpush1.bf16.xpose.msra.mxu0 0
      %2738 = vmatprep.subr.bf16.mxu0 0
      %2739 = vmatpush1.bf16.xpose.msra.mxu0 0
      %2740 = vmatprep.subr.bf16.mxu0 0
      %2741 = vmatpush1.bf16.xpose.msra.mxu0 0
      %2742 = vmatprep.subr.bf16.mxu0 0
      %2743 = vmatpush1.bf16.xpose.msra.mxu0 0
      %2744 = vmatprep.subr.bf16.mxu0 0
      %2745 = vmatpush1.bf16.xpose.msra.mxu0 %v2728
      %2746 = vmatprep.subr.bf16.mxu0 0
      %2747 = vmatpush2.bf16.xpose.msra.mxu0 0
      %2748 = vmatprep.subr.bf16.mxu0 0
      %2749 = vmatpush2.bf16.xpose.msra.mxu0 0
      %2750 = vmatprep.subr.bf16.mxu0 0
      %2751 = vmatpush2.bf16.xpose.msra.mxu0 0
      %2752 = vmatprep.subr.bf16.mxu0 0
      %2753 = vmatpush2.bf16.xpose.msra.mxu0 0
      %2754 = vmatprep.subr.bf16.mxu0 0
      %2755 = vmatpush2.bf16.xpose.msra.mxu0 0
      %2756 = vmatprep.subr.bf16.mxu0 0
      %2757 = vmatpush2.bf16.xpose.msra.mxu0 0
      %2758 = vmatprep.subr.bf16.mxu0 0
      %2759 = vmatpush2.bf16.xpose.msra.mxu0 0
      %2760 = vmatprep.subr.bf16.mxu0 0
      %2761 = vmatpush2.bf16.xpose.msra.mxu0 0
      %2762 = vmatprep.mubr.bf16.mxu0 0
      %2763 = vmatmul.mubr.bf16.gmra.mxu0 %v2725
      %v2764 = vpop.f32.mrf.mxu0
      %v2765 = vadd.f32 0.0, %v2764
      %v2766 = vpop.f32.mrf.mxu0
      %v2767 = vpop.f32.mrf.mxu0
      %v2768 = vpop.f32.mrf.mxu0
      %2769 = vdwg.mxu0
      %2770 = vrot.lane.b32.xlu0 %v1538, 120
      %v2771 = vpop.permute.xlu0 %2770
      %2772 = vrot.lane.b32.xlu0 %v1538, 88
      %v2773 = vpop.permute.xlu0 %2772
      %v2775 = vsel %vm1543, %v2771, 0
      %v2778 = vsel %vm1543, %v2773, 0
      %2780 = vmatprep.subr.bf16.mxu0 0
      %2781 = vmatpush1.bf16.xpose.msra.mxu0 0
      %2782 = vmatprep.subr.bf16.mxu0 0
      %2783 = vmatpush1.bf16.xpose.msra.mxu0 0
      %2784 = vmatprep.subr.bf16.mxu0 0
      %2785 = vmatpush1.bf16.xpose.msra.mxu0 0
      %2786 = vmatprep.subr.bf16.mxu0 0
      %2787 = vmatpush1.bf16.xpose.msra.mxu0 0
      %2788 = vmatprep.subr.bf16.mxu0 0
      %2789 = vmatpush1.bf16.xpose.msra.mxu0 0
      %2790 = vmatprep.subr.bf16.mxu0 0
      %2791 = vmatpush1.bf16.xpose.msra.mxu0 0
      %2792 = vmatprep.subr.bf16.mxu0 0
      %2793 = vmatpush1.bf16.xpose.msra.mxu0 0
      %2794 = vmatprep.subr.bf16.mxu0 0
      %2795 = vmatpush1.bf16.xpose.msra.mxu0 %v2778
      %2796 = vmatprep.subr.bf16.mxu0 0
      %2797 = vmatpush2.bf16.xpose.msra.mxu0 0
      %2798 = vmatprep.subr.bf16.mxu0 0
      %2799 = vmatpush2.bf16.xpose.msra.mxu0 0
      %2800 = vmatprep.subr.bf16.mxu0 0
      %2801 = vmatpush2.bf16.xpose.msra.mxu0 0
      %2802 = vmatprep.subr.bf16.mxu0 0
      %2803 = vmatpush2.bf16.xpose.msra.mxu0 0
      %2804 = vmatprep.subr.bf16.mxu0 0
      %2805 = vmatpush2.bf16.xpose.msra.mxu0 0
      %2806 = vmatprep.subr.bf16.mxu0 0
      %2807 = vmatpush2.bf16.xpose.msra.mxu0 0
      %2808 = vmatprep.subr.bf16.mxu0 0
      %2809 = vmatpush2.bf16.xpose.msra.mxu0 0
      %2810 = vmatprep.subr.bf16.mxu0 0
      %2811 = vmatpush2.bf16.xpose.msra.mxu0 0
      %2812 = vmatprep.mubr.bf16.mxu0 0
      %2813 = vmatmul.mubr.bf16.gmra.mxu0 %v2775
      %v2814 = vpop.f32.mrf.mxu0
      %v2815 = vadd.f32 0.0, %v2814
      %v2816 = vpop.f32.mrf.mxu0
      %v2817 = vpop.f32.mrf.mxu0
      %v2818 = vpop.f32.mrf.mxu0
      %2819 = vdwg.mxu0
      %2820 = vrot.lane.b32.xlu0 %v1539, 120
      %v2821 = vpop.permute.xlu0 %2820
      %2822 = vrot.lane.b32.xlu0 %v1539, 88
      %v2823 = vpop.permute.xlu0 %2822
      %v2825 = vsel %vm1543, %v2821, 0
      %v2828 = vsel %vm1543, %v2823, 0
      %2830 = vmatprep.subr.bf16.mxu0 0
      %2831 = vmatpush1.bf16.xpose.msra.mxu0 0
      %2832 = vmatprep.subr.bf16.mxu0 0
      %2833 = vmatpush1.bf16.xpose.msra.mxu0 0
      %2834 = vmatprep.subr.bf16.mxu0 0
      %2835 = vmatpush1.bf16.xpose.msra.mxu0 0
      %2836 = vmatprep.subr.bf16.mxu0 0
      %2837 = vmatpush1.bf16.xpose.msra.mxu0 0
      %2838 = vmatprep.subr.bf16.mxu0 0
      %2839 = vmatpush1.bf16.xpose.msra.mxu0 0
      %2840 = vmatprep.subr.bf16.mxu0 0
      %2841 = vmatpush1.bf16.xpose.msra.mxu0 0
      %2842 = vmatprep.subr.bf16.mxu0 0
      %2843 = vmatpush1.bf16.xpose.msra.mxu0 0
      %2844 = vmatprep.subr.bf16.mxu0 0
      %2845 = vmatpush1.bf16.xpose.msra.mxu0 %v2828
      %2846 = vmatprep.subr.bf16.mxu0 0
      %2847 = vmatpush2.bf16.xpose.msra.mxu0 0
      %2848 = vmatprep.subr.bf16.mxu0 0
      %2849 = vmatpush2.bf16.xpose.msra.mxu0 0
      %2850 = vmatprep.subr.bf16.mxu0 0
      %2851 = vmatpush2.bf16.xpose.msra.mxu0 0
      %2852 = vmatprep.subr.bf16.mxu0 0
      %2853 = vmatpush2.bf16.xpose.msra.mxu0 0
      %2854 = vmatprep.subr.bf16.mxu0 0
      %2855 = vmatpush2.bf16.xpose.msra.mxu0 0
      %2856 = vmatprep.subr.bf16.mxu0 0
      %2857 = vmatpush2.bf16.xpose.msra.mxu0 0
      %2858 = vmatprep.subr.bf16.mxu0 0
      %2859 = vmatpush2.bf16.xpose.msra.mxu0 0
      %2860 = vmatprep.subr.bf16.mxu0 0
      %2861 = vmatpush2.bf16.xpose.msra.mxu0 0
      %2862 = vmatprep.mubr.bf16.mxu0 0
      %2863 = vmatmul.mubr.bf16.gmra.mxu0 %v2825
      %v2864 = vpop.f32.mrf.mxu0
      %v2865 = vadd.f32 0.0, %v2864
      %v2866 = vpop.f32.mrf.mxu0
      %v2867 = vpop.f32.mrf.mxu0
      %v2868 = vpop.f32.mrf.mxu0
      %2869 = vdwg.mxu0
      %v2870 = vsel %vm1973, -1e+18, %v2515
      %v2871 = vsel %vm1974, -1e+18, %v2565
      %v2872 = vsel %vm1975, -1e+18, %v2615
      %v2873 = vsel %vm1976, -1e+18, %v2665
      %v2874 = vsel %vm1977, -1e+18, %v2715
      %v2875 = vsel %vm1978, -1e+18, %v2765
      %v2876 = vsel %vm1979, -1e+18, %v2815
      %v2877 = vsel %vm1980, -1e+18, %v2865
      %v2878 = vsel %vm1543, %v2870, -inf
      %2879 = vmax.xlane.f32.xlu0 %v2878
      %v2880 = vpop.xlane.xlu0 %2879
      %v2881 = vsel %vm1543, %v2871, -inf
      %2882 = vmax.xlane.f32.xlu0 %v2881
      %v2883 = vpop.xlane.xlu0 %2882
      %v2884 = vsel %vm1543, %v2872, -inf
      %2885 = vmax.xlane.f32.xlu0 %v2884
      %v2886 = vpop.xlane.xlu0 %2885
      %v2887 = vsel %vm1543, %v2873, -inf
      %2888 = vmax.xlane.f32.xlu0 %v2887
      %v2889 = vpop.xlane.xlu0 %2888
      %v2890 = vsel %vm1543, %v2874, -inf
      %2891 = vmax.xlane.f32.xlu0 %v2890
      %v2892 = vpop.xlane.xlu0 %2891
      %v2893 = vsel %vm1543, %v2875, -inf
      %2894 = vmax.xlane.f32.xlu0 %v2893
      %v2895 = vpop.xlane.xlu0 %2894
      %v2896 = vsel %vm1543, %v2876, -inf
      %2897 = vmax.xlane.f32.xlu0 %v2896
      %v2898 = vpop.xlane.xlu0 %2897
      %v2899 = vsel %vm1543, %v2877, -inf
      %2900 = vmax.xlane.f32.xlu0 %v2899
      %v2901 = vpop.xlane.xlu0 %2900
      %v2902 = vsub.f32 %v2870, %v2880
      %v2903 = vsub.f32 %v2871, %v2883
      %v2904 = vsub.f32 %v2872, %v2886
      %v2905 = vsub.f32 %v2873, %v2889
      %v2906 = vsub.f32 %v2874, %v2892
      %v2907 = vsub.f32 %v2875, %v2895
      %v2908 = vsub.f32 %v2876, %v2898
      %v2909 = vsub.f32 %v2877, %v2901
      %v2910 = vmul.f32 %v2902, 1.442695
      %v2911 = vpow.pop %v2910
      %v2912 = vmul.f32 %v2903, 1.442695
      %v2913 = vpow.pop %v2912
      %v2914 = vmul.f32 %v2904, 1.442695
      %v2915 = vpow.pop %v2914
      %v2916 = vmul.f32 %v2905, 1.442695
      %v2917 = vpow.pop %v2916
      %v2918 = vmul.f32 %v2906, 1.442695
      %v2919 = vpow.pop %v2918
      %v2920 = vmul.f32 %v2907, 1.442695
      %v2921 = vpow.pop %v2920
      %v2922 = vmul.f32 %v2908, 1.442695
      %v2923 = vpow.pop %v2922
      %v2924 = vmul.f32 %v2909, 1.442695
      %v2925 = vpow.pop %v2924
      %v2926 = vsel %vm1543, %v2911, 0.0
      %2927 = vadd.xlane.f32.xlu0 %v2926
      %v2928 = vpop.xlane.xlu0 %2927
      %v2929 = vsel %vm1543, %v2913, 0.0
      %2930 = vadd.xlane.f32.xlu0 %v2929
      %v2931 = vpop.xlane.xlu0 %2930
      %v2932 = vsel %vm1543, %v2915, 0.0
      %2933 = vadd.xlane.f32.xlu0 %v2932
      %v2934 = vpop.xlane.xlu0 %2933
      %v2935 = vsel %vm1543, %v2917, 0.0
      %2936 = vadd.xlane.f32.xlu0 %v2935
      %v2937 = vpop.xlane.xlu0 %2936
      %v2938 = vsel %vm1543, %v2919, 0.0
      %2939 = vadd.xlane.f32.xlu0 %v2938
      %v2940 = vpop.xlane.xlu0 %2939
      %v2941 = vsel %vm1543, %v2921, 0.0
      %2942 = vadd.xlane.f32.xlu0 %v2941
      %v2943 = vpop.xlane.xlu0 %2942
      %v2944 = vsel %vm1543, %v2923, 0.0
      %2945 = vadd.xlane.f32.xlu0 %v2944
      %v2946 = vpop.xlane.xlu0 %2945
      %v2947 = vsel %vm1543, %v2925, 0.0
      %2948 = vadd.xlane.f32.xlu0 %v2947
      %v2949 = vpop.xlane.xlu0 %2948
      %v2950 = vrcp.pop %v2928
      %v2951 = vrcp.pop %v2931
      %v2952 = vrcp.pop %v2934
      %v2953 = vrcp.pop %v2937
      %v2954 = vrcp.pop %v2940
      %v2955 = vrcp.pop %v2943
      %v2956 = vrcp.pop %v2946
      %v2957 = vrcp.pop %v2949
      %v2958 = vmul.f32 %v2911, %v2950
      %v2959 = vmul.f32 %v2913, %v2951
      %v2960 = vmul.f32 %v2915, %v2952
      %v2961 = vmul.f32 %v2917, %v2953
      %v2962 = vmul.f32 %v2919, %v2954
      %v2963 = vmul.f32 %v2921, %v2955
      %v2964 = vmul.f32 %v2923, %v2956
      %v2965 = vmul.f32 %v2925, %v2957
      %v2966 = vpack.c.bf16 %v2958, %v2958
      %v2967 = vpack.c.bf16 %v2959, %v2959
      %v2968 = vpack.c.bf16 %v2960, %v2960
      %v2969 = vpack.c.bf16 %v2961, %v2961
      %v2970 = vpack.c.bf16 %v2962, %v2962
      %v2971 = vpack.c.bf16 %v2963, %v2963
      %v2972 = vpack.c.bf16 %v2964, %v2964
      %v2973 = vpack.c.bf16 %v2965, %v2965
      %2974 = vrot.lane.b32.xlu0 %v1532, 56
      %v2975 = vpop.permute.xlu0 %2974
      %v2977 = vsel %vm1543, %v2966, 0
      %v2980 = vsel %vm2090, %v2975, 0
      %2982 = vmatprep.subr.bf16.mxu0 0
      %2983 = vmatpush1.bf16.msra.mxu0 0
      %2984 = vmatprep.subr.bf16.mxu0 0
      %2985 = vmatpush1.bf16.msra.mxu0 0
      %2986 = vmatprep.subr.bf16.mxu0 0
      %2987 = vmatpush1.bf16.msra.mxu0 0
      %2988 = vmatprep.subr.bf16.mxu0 0
      %2989 = vmatpush1.bf16.msra.mxu0 0
      %2990 = vmatprep.subr.bf16.mxu0 0
      %2991 = vmatpush1.bf16.msra.mxu0 0
      %2992 = vmatprep.subr.bf16.mxu0 0
      %2993 = vmatpush1.bf16.msra.mxu0 0
      %2994 = vmatprep.subr.bf16.mxu0 0
      %2995 = vmatpush1.bf16.msra.mxu0 0
      %2996 = vmatprep.subr.bf16.mxu0 0
      %2997 = vmatpush1.bf16.msra.mxu0 %v2980
      %2998 = vmatprep.subr.bf16.mxu0 0
      %2999 = vmatpush2.bf16.msra.mxu0 0
      %3000 = vmatprep.subr.bf16.mxu0 0
      %3001 = vmatpush2.bf16.msra.mxu0 0
      %3002 = vmatprep.subr.bf16.mxu0 0
      %3003 = vmatpush2.bf16.msra.mxu0 0
      %3004 = vmatprep.subr.bf16.mxu0 0
      %3005 = vmatpush2.bf16.msra.mxu0 0
      %3006 = vmatprep.subr.bf16.mxu0 0
      %3007 = vmatpush2.bf16.msra.mxu0 0
      %3008 = vmatprep.subr.bf16.mxu0 0
      %3009 = vmatpush2.bf16.msra.mxu0 0
      %3010 = vmatprep.subr.bf16.mxu0 0
      %3011 = vmatpush2.bf16.msra.mxu0 0
      %3012 = vmatprep.subr.bf16.mxu0 0
      %3013 = vmatpush2.bf16.msra.mxu0 0
      %3014 = vmatprep.mubr.bf16.mxu0 0
      %3015 = vmatmul.mubr.bf16.gmra.mxu0 %v2977
      %v3016 = vpop.f32.mrf.mxu0
      %v3017 = vadd.f32 0.0, %v3016
      %v3018 = vpop.f32.mrf.mxu0
      %v3019 = vpop.f32.mrf.mxu0
      %v3020 = vpop.f32.mrf.mxu0
      %3021 = vdwg.mxu0
      %3022 = vrot.lane.b32.xlu0 %v1533, 56
      %v3023 = vpop.permute.xlu0 %3022
      %v3025 = vsel %vm1543, %v2967, 0
      %v3028 = vsel %vm2090, %v3023, 0
      %3030 = vmatprep.subr.bf16.mxu0 0
      %3031 = vmatpush1.bf16.msra.mxu0 0
      %3032 = vmatprep.subr.bf16.mxu0 0
      %3033 = vmatpush1.bf16.msra.mxu0 0
      %3034 = vmatprep.subr.bf16.mxu0 0
      %3035 = vmatpush1.bf16.msra.mxu0 0
      %3036 = vmatprep.subr.bf16.mxu0 0
      %3037 = vmatpush1.bf16.msra.mxu0 0
      %3038 = vmatprep.subr.bf16.mxu0 0
      %3039 = vmatpush1.bf16.msra.mxu0 0
      %3040 = vmatprep.subr.bf16.mxu0 0
      %3041 = vmatpush1.bf16.msra.mxu0 0
      %3042 = vmatprep.subr.bf16.mxu0 0
      %3043 = vmatpush1.bf16.msra.mxu0 0
      %3044 = vmatprep.subr.bf16.mxu0 0
      %3045 = vmatpush1.bf16.msra.mxu0 %v3028
      %3046 = vmatprep.subr.bf16.mxu0 0
      %3047 = vmatpush2.bf16.msra.mxu0 0
      %3048 = vmatprep.subr.bf16.mxu0 0
      %3049 = vmatpush2.bf16.msra.mxu0 0
      %3050 = vmatprep.subr.bf16.mxu0 0
      %3051 = vmatpush2.bf16.msra.mxu0 0
      %3052 = vmatprep.subr.bf16.mxu0 0
      %3053 = vmatpush2.bf16.msra.mxu0 0
      %3054 = vmatprep.subr.bf16.mxu0 0
      %3055 = vmatpush2.bf16.msra.mxu0 0
      %3056 = vmatprep.subr.bf16.mxu0 0
      %3057 = vmatpush2.bf16.msra.mxu0 0
      %3058 = vmatprep.subr.bf16.mxu0 0
      %3059 = vmatpush2.bf16.msra.mxu0 0
      %3060 = vmatprep.subr.bf16.mxu0 0
      %3061 = vmatpush2.bf16.msra.mxu0 0
      %3062 = vmatprep.mubr.bf16.mxu0 0
      %3063 = vmatmul.mubr.bf16.gmra.mxu0 %v3025
      %v3064 = vpop.f32.mrf.mxu0
      %v3065 = vadd.f32 0.0, %v3064
      %v3066 = vpop.f32.mrf.mxu0
      %v3067 = vpop.f32.mrf.mxu0
      %v3068 = vpop.f32.mrf.mxu0
      %3069 = vdwg.mxu0
      %3070 = vrot.lane.b32.xlu0 %v1534, 56
      %v3071 = vpop.permute.xlu0 %3070
      %v3073 = vsel %vm1543, %v2968, 0
      %v3076 = vsel %vm2090, %v3071, 0
      %3078 = vmatprep.subr.bf16.mxu0 0
      %3079 = vmatpush1.bf16.msra.mxu0 0
      %3080 = vmatprep.subr.bf16.mxu0 0
      %3081 = vmatpush1.bf16.msra.mxu0 0
      %3082 = vmatprep.subr.bf16.mxu0 0
      %3083 = vmatpush1.bf16.msra.mxu0 0
      %3084 = vmatprep.subr.bf16.mxu0 0
      %3085 = vmatpush1.bf16.msra.mxu0 0
      %3086 = vmatprep.subr.bf16.mxu0 0
      %3087 = vmatpush1.bf16.msra.mxu0 0
      %3088 = vmatprep.subr.bf16.mxu0 0
      %3089 = vmatpush1.bf16.msra.mxu0 0
      %3090 = vmatprep.subr.bf16.mxu0 0
      %3091 = vmatpush1.bf16.msra.mxu0 0
      %3092 = vmatprep.subr.bf16.mxu0 0
      %3093 = vmatpush1.bf16.msra.mxu0 %v3076
      %3094 = vmatprep.subr.bf16.mxu0 0
      %3095 = vmatpush2.bf16.msra.mxu0 0
      %3096 = vmatprep.subr.bf16.mxu0 0
      %3097 = vmatpush2.bf16.msra.mxu0 0
      %3098 = vmatprep.subr.bf16.mxu0 0
      %3099 = vmatpush2.bf16.msra.mxu0 0
      %3100 = vmatprep.subr.bf16.mxu0 0
      %3101 = vmatpush2.bf16.msra.mxu0 0
      %3102 = vmatprep.subr.bf16.mxu0 0
      %3103 = vmatpush2.bf16.msra.mxu0 0
      %3104 = vmatprep.subr.bf16.mxu0 0
      %3105 = vmatpush2.bf16.msra.mxu0 0
      %3106 = vmatprep.subr.bf16.mxu0 0
      %3107 = vmatpush2.bf16.msra.mxu0 0
      %3108 = vmatprep.subr.bf16.mxu0 0
      %3109 = vmatpush2.bf16.msra.mxu0 0
      %3110 = vmatprep.mubr.bf16.mxu0 0
      %3111 = vmatmul.mubr.bf16.gmra.mxu0 %v3073
      %v3112 = vpop.f32.mrf.mxu0
      %v3113 = vadd.f32 0.0, %v3112
      %v3114 = vpop.f32.mrf.mxu0
      %v3115 = vpop.f32.mrf.mxu0
      %v3116 = vpop.f32.mrf.mxu0
      %3117 = vdwg.mxu0
      %3118 = vrot.lane.b32.xlu0 %v1535, 56
      %v3119 = vpop.permute.xlu0 %3118
      %v3121 = vsel %vm1543, %v2969, 0
      %v3124 = vsel %vm2090, %v3119, 0
      %3126 = vmatprep.subr.bf16.mxu0 0
      %3127 = vmatpush1.bf16.msra.mxu0 0
      %3128 = vmatprep.subr.bf16.mxu0 0
      %3129 = vmatpush1.bf16.msra.mxu0 0
      %3130 = vmatprep.subr.bf16.mxu0 0
      %3131 = vmatpush1.bf16.msra.mxu0 0
      %3132 = vmatprep.subr.bf16.mxu0 0
      %3133 = vmatpush1.bf16.msra.mxu0 0
      %3134 = vmatprep.subr.bf16.mxu0 0
      %3135 = vmatpush1.bf16.msra.mxu0 0
      %3136 = vmatprep.subr.bf16.mxu0 0
      %3137 = vmatpush1.bf16.msra.mxu0 0
      %3138 = vmatprep.subr.bf16.mxu0 0
      %3139 = vmatpush1.bf16.msra.mxu0 0
      %3140 = vmatprep.subr.bf16.mxu0 0
      %3141 = vmatpush1.bf16.msra.mxu0 %v3124
      %3142 = vmatprep.subr.bf16.mxu0 0
      %3143 = vmatpush2.bf16.msra.mxu0 0
      %3144 = vmatprep.subr.bf16.mxu0 0
      %3145 = vmatpush2.bf16.msra.mxu0 0
      %3146 = vmatprep.subr.bf16.mxu0 0
      %3147 = vmatpush2.bf16.msra.mxu0 0
      %3148 = vmatprep.subr.bf16.mxu0 0
      %3149 = vmatpush2.bf16.msra.mxu0 0
      %3150 = vmatprep.subr.bf16.mxu0 0
      %3151 = vmatpush2.bf16.msra.mxu0 0
      %3152 = vmatprep.subr.bf16.mxu0 0
      %3153 = vmatpush2.bf16.msra.mxu0 0
      %3154 = vmatprep.subr.bf16.mxu0 0
      %3155 = vmatpush2.bf16.msra.mxu0 0
      %3156 = vmatprep.subr.bf16.mxu0 0
      %3157 = vmatpush2.bf16.msra.mxu0 0
      %3158 = vmatprep.mubr.bf16.mxu0 0
      %3159 = vmatmul.mubr.bf16.gmra.mxu0 %v3121
      %v3160 = vpop.f32.mrf.mxu0
      %v3161 = vadd.f32 0.0, %v3160
      %v3162 = vpop.f32.mrf.mxu0
      %v3163 = vpop.f32.mrf.mxu0
      %v3164 = vpop.f32.mrf.mxu0
      %3165 = vdwg.mxu0
      %3166 = vrot.lane.b32.xlu0 %v1536, 56
      %v3167 = vpop.permute.xlu0 %3166
      %v3169 = vsel %vm1543, %v2970, 0
      %v3172 = vsel %vm2090, %v3167, 0
      %3174 = vmatprep.subr.bf16.mxu0 0
      %3175 = vmatpush1.bf16.msra.mxu0 0
      %3176 = vmatprep.subr.bf16.mxu0 0
      %3177 = vmatpush1.bf16.msra.mxu0 0
      %3178 = vmatprep.subr.bf16.mxu0 0
      %3179 = vmatpush1.bf16.msra.mxu0 0
      %3180 = vmatprep.subr.bf16.mxu0 0
      %3181 = vmatpush1.bf16.msra.mxu0 0
      %3182 = vmatprep.subr.bf16.mxu0 0
      %3183 = vmatpush1.bf16.msra.mxu0 0
      %3184 = vmatprep.subr.bf16.mxu0 0
      %3185 = vmatpush1.bf16.msra.mxu0 0
      %3186 = vmatprep.subr.bf16.mxu0 0
      %3187 = vmatpush1.bf16.msra.mxu0 0
      %3188 = vmatprep.subr.bf16.mxu0 0
      %3189 = vmatpush1.bf16.msra.mxu0 %v3172
      %3190 = vmatprep.subr.bf16.mxu0 0
      %3191 = vmatpush2.bf16.msra.mxu0 0
      %3192 = vmatprep.subr.bf16.mxu0 0
      %3193 = vmatpush2.bf16.msra.mxu0 0
      %3194 = vmatprep.subr.bf16.mxu0 0
      %3195 = vmatpush2.bf16.msra.mxu0 0
      %3196 = vmatprep.subr.bf16.mxu0 0
      %3197 = vmatpush2.bf16.msra.mxu0 0
      %3198 = vmatprep.subr.bf16.mxu0 0
      %3199 = vmatpush2.bf16.msra.mxu0 0
      %3200 = vmatprep.subr.bf16.mxu0 0
      %3201 = vmatpush2.bf16.msra.mxu0 0
      %3202 = vmatprep.subr.bf16.mxu0 0
      %3203 = vmatpush2.bf16.msra.mxu0 0
      %3204 = vmatprep.subr.bf16.mxu0 0
      %3205 = vmatpush2.bf16.msra.mxu0 0
      %3206 = vmatprep.mubr.bf16.mxu0 0
      %3207 = vmatmul.mubr.bf16.gmra.mxu0 %v3169
      %v3208 = vpop.f32.mrf.mxu0
      %v3209 = vadd.f32 0.0, %v3208
      %v3210 = vpop.f32.mrf.mxu0
      %v3211 = vpop.f32.mrf.mxu0
      %v3212 = vpop.f32.mrf.mxu0
      %3213 = vdwg.mxu0
      %3214 = vrot.lane.b32.xlu0 %v1537, 56
      %v3215 = vpop.permute.xlu0 %3214
      %v3217 = vsel %vm1543, %v2971, 0
      %v3220 = vsel %vm2090, %v3215, 0
      %3222 = vmatprep.subr.bf16.mxu0 0
      %3223 = vmatpush1.bf16.msra.mxu0 0
      %3224 = vmatprep.subr.bf16.mxu0 0
      %3225 = vmatpush1.bf16.msra.mxu0 0
      %3226 = vmatprep.subr.bf16.mxu0 0
      %3227 = vmatpush1.bf16.msra.mxu0 0
      %3228 = vmatprep.subr.bf16.mxu0 0
      %3229 = vmatpush1.bf16.msra.mxu0 0
      %3230 = vmatprep.subr.bf16.mxu0 0
      %3231 = vmatpush1.bf16.msra.mxu0 0
      %3232 = vmatprep.subr.bf16.mxu0 0
      %3233 = vmatpush1.bf16.msra.mxu0 0
      %3234 = vmatprep.subr.bf16.mxu0 0
      %3235 = vmatpush1.bf16.msra.mxu0 0
      %3236 = vmatprep.subr.bf16.mxu0 0
      %3237 = vmatpush1.bf16.msra.mxu0 %v3220
      %3238 = vmatprep.subr.bf16.mxu0 0
      %3239 = vmatpush2.bf16.msra.mxu0 0
      %3240 = vmatprep.subr.bf16.mxu0 0
      %3241 = vmatpush2.bf16.msra.mxu0 0
      %3242 = vmatprep.subr.bf16.mxu0 0
      %3243 = vmatpush2.bf16.msra.mxu0 0
      %3244 = vmatprep.subr.bf16.mxu0 0
      %3245 = vmatpush2.bf16.msra.mxu0 0
      %3246 = vmatprep.subr.bf16.mxu0 0
      %3247 = vmatpush2.bf16.msra.mxu0 0
      %3248 = vmatprep.subr.bf16.mxu0 0
      %3249 = vmatpush2.bf16.msra.mxu0 0
      %3250 = vmatprep.subr.bf16.mxu0 0
      %3251 = vmatpush2.bf16.msra.mxu0 0
      %3252 = vmatprep.subr.bf16.mxu0 0
      %3253 = vmatpush2.bf16.msra.mxu0 0
      %3254 = vmatprep.mubr.bf16.mxu0 0
      %3255 = vmatmul.mubr.bf16.gmra.mxu0 %v3217
      %v3256 = vpop.f32.mrf.mxu0
      %v3257 = vadd.f32 0.0, %v3256
      %v3258 = vpop.f32.mrf.mxu0
      %v3259 = vpop.f32.mrf.mxu0
      %v3260 = vpop.f32.mrf.mxu0
      %3261 = vdwg.mxu0
      %3262 = vrot.lane.b32.xlu0 %v1538, 56
      %v3263 = vpop.permute.xlu0 %3262
      %v3265 = vsel %vm1543, %v2972, 0
      %v3268 = vsel %vm2090, %v3263, 0
      %3270 = vmatprep.subr.bf16.mxu0 0
      %3271 = vmatpush1.bf16.msra.mxu0 0
      %3272 = vmatprep.subr.bf16.mxu0 0
      %3273 = vmatpush1.bf16.msra.mxu0 0
      %3274 = vmatprep.subr.bf16.mxu0 0
      %3275 = vmatpush1.bf16.msra.mxu0 0
      %3276 = vmatprep.subr.bf16.mxu0 0
      %3277 = vmatpush1.bf16.msra.mxu0 0
      %3278 = vmatprep.subr.bf16.mxu0 0
      %3279 = vmatpush1.bf16.msra.mxu0 0
      %3280 = vmatprep.subr.bf16.mxu0 0
      %3281 = vmatpush1.bf16.msra.mxu0 0
      %3282 = vmatprep.subr.bf16.mxu0 0
      %3283 = vmatpush1.bf16.msra.mxu0 0
      %3284 = vmatprep.subr.bf16.mxu0 0
      %3285 = vmatpush1.bf16.msra.mxu0 %v3268
      %3286 = vmatprep.subr.bf16.mxu0 0
      %3287 = vmatpush2.bf16.msra.mxu0 0
      %3288 = vmatprep.subr.bf16.mxu0 0
      %3289 = vmatpush2.bf16.msra.mxu0 0
      %3290 = vmatprep.subr.bf16.mxu0 0
      %3291 = vmatpush2.bf16.msra.mxu0 0
      %3292 = vmatprep.subr.bf16.mxu0 0
      %3293 = vmatpush2.bf16.msra.mxu0 0
      %3294 = vmatprep.subr.bf16.mxu0 0
      %3295 = vmatpush2.bf16.msra.mxu0 0
      %3296 = vmatprep.subr.bf16.mxu0 0
      %3297 = vmatpush2.bf16.msra.mxu0 0
      %3298 = vmatprep.subr.bf16.mxu0 0
      %3299 = vmatpush2.bf16.msra.mxu0 0
      %3300 = vmatprep.subr.bf16.mxu0 0
      %3301 = vmatpush2.bf16.msra.mxu0 0
      %3302 = vmatprep.mubr.bf16.mxu0 0
      %3303 = vmatmul.mubr.bf16.gmra.mxu0 %v3265
      %v3304 = vpop.f32.mrf.mxu0
      %v3305 = vadd.f32 0.0, %v3304
      %v3306 = vpop.f32.mrf.mxu0
      %v3307 = vpop.f32.mrf.mxu0
      %v3308 = vpop.f32.mrf.mxu0
      %3309 = vdwg.mxu0
      %3310 = vrot.lane.b32.xlu0 %v1539, 56
      %v3311 = vpop.permute.xlu0 %3310
      %v3313 = vsel %vm1543, %v2973, 0
      %v3316 = vsel %vm2090, %v3311, 0
      %3318 = vmatprep.subr.bf16.mxu0 0
      %3319 = vmatpush1.bf16.msra.mxu0 0
      %3320 = vmatprep.subr.bf16.mxu0 0
      %3321 = vmatpush1.bf16.msra.mxu0 0
      %3322 = vmatprep.subr.bf16.mxu0 0
      %3323 = vmatpush1.bf16.msra.mxu0 0
      %3324 = vmatprep.subr.bf16.mxu0 0
      %3325 = vmatpush1.bf16.msra.mxu0 0
      %3326 = vmatprep.subr.bf16.mxu0 0
      %3327 = vmatpush1.bf16.msra.mxu0 0
      %3328 = vmatprep.subr.bf16.mxu0 0
      %3329 = vmatpush1.bf16.msra.mxu0 0
      %3330 = vmatprep.subr.bf16.mxu0 0
      %3331 = vmatpush1.bf16.msra.mxu0 0
      %3332 = vmatprep.subr.bf16.mxu0 0
      %3333 = vmatpush1.bf16.msra.mxu0 %v3316
      %3334 = vmatprep.subr.bf16.mxu0 0
      %3335 = vmatpush2.bf16.msra.mxu0 0
      %3336 = vmatprep.subr.bf16.mxu0 0
      %3337 = vmatpush2.bf16.msra.mxu0 0
      %3338 = vmatprep.subr.bf16.mxu0 0
      %3339 = vmatpush2.bf16.msra.mxu0 0
      %3340 = vmatprep.subr.bf16.mxu0 0
      %3341 = vmatpush2.bf16.msra.mxu0 0
      %3342 = vmatprep.subr.bf16.mxu0 0
      %3343 = vmatpush2.bf16.msra.mxu0 0
      %3344 = vmatprep.subr.bf16.mxu0 0
      %3345 = vmatpush2.bf16.msra.mxu0 0
      %3346 = vmatprep.subr.bf16.mxu0 0
      %3347 = vmatpush2.bf16.msra.mxu0 0
      %3348 = vmatprep.subr.bf16.mxu0 0
      %3349 = vmatpush2.bf16.msra.mxu0 0
      %3350 = vmatprep.mubr.bf16.mxu0 0
      %3351 = vmatmul.mubr.bf16.gmra.mxu0 %v3313
      %v3352 = vpop.f32.mrf.mxu0
      %v3353 = vadd.f32 0.0, %v3352
      %v3354 = vpop.f32.mrf.mxu0
      %v3355 = vpop.f32.mrf.mxu0
      %v3356 = vpop.f32.mrf.mxu0
      %3357 = vdwg.mxu0
      %3358 = vrot.lane.b32.xlu0 %v1532, 112
      %v3359 = vpop.permute.xlu0 %3358
      %3360 = vrot.lane.b32.xlu0 %v1532, 80
      %v3361 = vpop.permute.xlu0 %3360
      %v3363 = vsel %vm1543, %v3359, 0
      %v3366 = vsel %vm1543, %v3361, 0
      %3368 = vmatprep.subr.bf16.mxu0 0
      %3369 = vmatpush1.bf16.xpose.msra.mxu0 0
      %3370 = vmatprep.subr.bf16.mxu0 0
      %3371 = vmatpush1.bf16.xpose.msra.mxu0 0
      %3372 = vmatprep.subr.bf16.mxu0 0
      %3373 = vmatpush1.bf16.xpose.msra.mxu0 0
      %3374 = vmatprep.subr.bf16.mxu0 0
      %3375 = vmatpush1.bf16.xpose.msra.mxu0 0
      %3376 = vmatprep.subr.bf16.mxu0 0
      %3377 = vmatpush1.bf16.xpose.msra.mxu0 0
      %3378 = vmatprep.subr.bf16.mxu0 0
      %3379 = vmatpush1.bf16.xpose.msra.mxu0 0
      %3380 = vmatprep.subr.bf16.mxu0 0
      %3381 = vmatpush1.bf16.xpose.msra.mxu0 0
      %3382 = vmatprep.subr.bf16.mxu0 0
      %3383 = vmatpush1.bf16.xpose.msra.mxu0 %v3366
      %3384 = vmatprep.subr.bf16.mxu0 0
      %3385 = vmatpush2.bf16.xpose.msra.mxu0 0
      %3386 = vmatprep.subr.bf16.mxu0 0
      %3387 = vmatpush2.bf16.xpose.msra.mxu0 0
      %3388 = vmatprep.subr.bf16.mxu0 0
      %3389 = vmatpush2.bf16.xpose.msra.mxu0 0
      %3390 = vmatprep.subr.bf16.mxu0 0
      %3391 = vmatpush2.bf16.xpose.msra.mxu0 0
      %3392 = vmatprep.subr.bf16.mxu0 0
      %3393 = vmatpush2.bf16.xpose.msra.mxu0 0
      %3394 = vmatprep.subr.bf16.mxu0 0
      %3395 = vmatpush2.bf16.xpose.msra.mxu0 0
      %3396 = vmatprep.subr.bf16.mxu0 0
      %3397 = vmatpush2.bf16.xpose.msra.mxu0 0
      %3398 = vmatprep.subr.bf16.mxu0 0
      %3399 = vmatpush2.bf16.xpose.msra.mxu0 0
      %3400 = vmatprep.mubr.bf16.mxu0 0
      %3401 = vmatmul.mubr.bf16.gmra.mxu0 %v3363
      %v3402 = vpop.f32.mrf.mxu0
      %v3403 = vadd.f32 0.0, %v3402
      %v3404 = vpop.f32.mrf.mxu0
      %v3405 = vpop.f32.mrf.mxu0
      %v3406 = vpop.f32.mrf.mxu0
      %3407 = vdwg.mxu0
      %3408 = vrot.lane.b32.xlu0 %v1533, 112
      %v3409 = vpop.permute.xlu0 %3408
      %3410 = vrot.lane.b32.xlu0 %v1533, 80
      %v3411 = vpop.permute.xlu0 %3410
      %v3413 = vsel %vm1543, %v3409, 0
      %v3416 = vsel %vm1543, %v3411, 0
      %3418 = vmatprep.subr.bf16.mxu0 0
      %3419 = vmatpush1.bf16.xpose.msra.mxu0 0
      %3420 = vmatprep.subr.bf16.mxu0 0
      %3421 = vmatpush1.bf16.xpose.msra.mxu0 0
      %3422 = vmatprep.subr.bf16.mxu0 0
      %3423 = vmatpush1.bf16.xpose.msra.mxu0 0
      %3424 = vmatprep.subr.bf16.mxu0 0
      %3425 = vmatpush1.bf16.xpose.msra.mxu0 0
      %3426 = vmatprep.subr.bf16.mxu0 0
      %3427 = vmatpush1.bf16.xpose.msra.mxu0 0
      %3428 = vmatprep.subr.bf16.mxu0 0
      %3429 = vmatpush1.bf16.xpose.msra.mxu0 0
      %3430 = vmatprep.subr.bf16.mxu0 0
      %3431 = vmatpush1.bf16.xpose.msra.mxu0 0
      %3432 = vmatprep.subr.bf16.mxu0 0
      %3433 = vmatpush1.bf16.xpose.msra.mxu0 %v3416
      %3434 = vmatprep.subr.bf16.mxu0 0
      %3435 = vmatpush2.bf16.xpose.msra.mxu0 0
      %3436 = vmatprep.subr.bf16.mxu0 0
      %3437 = vmatpush2.bf16.xpose.msra.mxu0 0
      %3438 = vmatprep.subr.bf16.mxu0 0
      %3439 = vmatpush2.bf16.xpose.msra.mxu0 0
      %3440 = vmatprep.subr.bf16.mxu0 0
      %3441 = vmatpush2.bf16.xpose.msra.mxu0 0
      %3442 = vmatprep.subr.bf16.mxu0 0
      %3443 = vmatpush2.bf16.xpose.msra.mxu0 0
      %3444 = vmatprep.subr.bf16.mxu0 0
      %3445 = vmatpush2.bf16.xpose.msra.mxu0 0
      %3446 = vmatprep.subr.bf16.mxu0 0
      %3447 = vmatpush2.bf16.xpose.msra.mxu0 0
      %3448 = vmatprep.subr.bf16.mxu0 0
      %3449 = vmatpush2.bf16.xpose.msra.mxu0 0
      %3450 = vmatprep.mubr.bf16.mxu0 0
      %3451 = vmatmul.mubr.bf16.gmra.mxu0 %v3413
      %v3452 = vpop.f32.mrf.mxu0
      %v3453 = vadd.f32 0.0, %v3452
      %v3454 = vpop.f32.mrf.mxu0
      %v3455 = vpop.f32.mrf.mxu0
      %v3456 = vpop.f32.mrf.mxu0
      %3457 = vdwg.mxu0
      %3458 = vrot.lane.b32.xlu0 %v1534, 112
      %v3459 = vpop.permute.xlu0 %3458
      %3460 = vrot.lane.b32.xlu0 %v1534, 80
      %v3461 = vpop.permute.xlu0 %3460
      %v3463 = vsel %vm1543, %v3459, 0
      %v3466 = vsel %vm1543, %v3461, 0
      %3468 = vmatprep.subr.bf16.mxu0 0
      %3469 = vmatpush1.bf16.xpose.msra.mxu0 0
      %3470 = vmatprep.subr.bf16.mxu0 0
      %3471 = vmatpush1.bf16.xpose.msra.mxu0 0
      %3472 = vmatprep.subr.bf16.mxu0 0
      %3473 = vmatpush1.bf16.xpose.msra.mxu0 0
      %3474 = vmatprep.subr.bf16.mxu0 0
      %3475 = vmatpush1.bf16.xpose.msra.mxu0 0
      %3476 = vmatprep.subr.bf16.mxu0 0
      %3477 = vmatpush1.bf16.xpose.msra.mxu0 0
      %3478 = vmatprep.subr.bf16.mxu0 0
      %3479 = vmatpush1.bf16.xpose.msra.mxu0 0
      %3480 = vmatprep.subr.bf16.mxu0 0
      %3481 = vmatpush1.bf16.xpose.msra.mxu0 0
      %3482 = vmatprep.subr.bf16.mxu0 0
      %3483 = vmatpush1.bf16.xpose.msra.mxu0 %v3466
      %3484 = vmatprep.subr.bf16.mxu0 0
      %3485 = vmatpush2.bf16.xpose.msra.mxu0 0
      %3486 = vmatprep.subr.bf16.mxu0 0
      %3487 = vmatpush2.bf16.xpose.msra.mxu0 0
      %3488 = vmatprep.subr.bf16.mxu0 0
      %3489 = vmatpush2.bf16.xpose.msra.mxu0 0
      %3490 = vmatprep.subr.bf16.mxu0 0
      %3491 = vmatpush2.bf16.xpose.msra.mxu0 0
      %3492 = vmatprep.subr.bf16.mxu0 0
      %3493 = vmatpush2.bf16.xpose.msra.mxu0 0
      %3494 = vmatprep.subr.bf16.mxu0 0
      %3495 = vmatpush2.bf16.xpose.msra.mxu0 0
      %3496 = vmatprep.subr.bf16.mxu0 0
      %3497 = vmatpush2.bf16.xpose.msra.mxu0 0
      %3498 = vmatprep.subr.bf16.mxu0 0
      %3499 = vmatpush2.bf16.xpose.msra.mxu0 0
      %3500 = vmatprep.mubr.bf16.mxu0 0
      %3501 = vmatmul.mubr.bf16.gmra.mxu0 %v3463
      %v3502 = vpop.f32.mrf.mxu0
      %v3503 = vadd.f32 0.0, %v3502
      %v3504 = vpop.f32.mrf.mxu0
      %v3505 = vpop.f32.mrf.mxu0
      %v3506 = vpop.f32.mrf.mxu0
      %3507 = vdwg.mxu0
      %3508 = vrot.lane.b32.xlu0 %v1535, 112
      %v3509 = vpop.permute.xlu0 %3508
      %3510 = vrot.lane.b32.xlu0 %v1535, 80
      %v3511 = vpop.permute.xlu0 %3510
      %v3513 = vsel %vm1543, %v3509, 0
      %v3516 = vsel %vm1543, %v3511, 0
      %3518 = vmatprep.subr.bf16.mxu0 0
      %3519 = vmatpush1.bf16.xpose.msra.mxu0 0
      %3520 = vmatprep.subr.bf16.mxu0 0
      %3521 = vmatpush1.bf16.xpose.msra.mxu0 0
      %3522 = vmatprep.subr.bf16.mxu0 0
      %3523 = vmatpush1.bf16.xpose.msra.mxu0 0
      %3524 = vmatprep.subr.bf16.mxu0 0
      %3525 = vmatpush1.bf16.xpose.msra.mxu0 0
      %3526 = vmatprep.subr.bf16.mxu0 0
      %3527 = vmatpush1.bf16.xpose.msra.mxu0 0
      %3528 = vmatprep.subr.bf16.mxu0 0
      %3529 = vmatpush1.bf16.xpose.msra.mxu0 0
      %3530 = vmatprep.subr.bf16.mxu0 0
      %3531 = vmatpush1.bf16.xpose.msra.mxu0 0
      %3532 = vmatprep.subr.bf16.mxu0 0
      %3533 = vmatpush1.bf16.xpose.msra.mxu0 %v3516
      %3534 = vmatprep.subr.bf16.mxu0 0
      %3535 = vmatpush2.bf16.xpose.msra.mxu0 0
      %3536 = vmatprep.subr.bf16.mxu0 0
      %3537 = vmatpush2.bf16.xpose.msra.mxu0 0
      %3538 = vmatprep.subr.bf16.mxu0 0
      %3539 = vmatpush2.bf16.xpose.msra.mxu0 0
      %3540 = vmatprep.subr.bf16.mxu0 0
      %3541 = vmatpush2.bf16.xpose.msra.mxu0 0
      %3542 = vmatprep.subr.bf16.mxu0 0
      %3543 = vmatpush2.bf16.xpose.msra.mxu0 0
      %3544 = vmatprep.subr.bf16.mxu0 0
      %3545 = vmatpush2.bf16.xpose.msra.mxu0 0
      %3546 = vmatprep.subr.bf16.mxu0 0
      %3547 = vmatpush2.bf16.xpose.msra.mxu0 0
      %3548 = vmatprep.subr.bf16.mxu0 0
      %3549 = vmatpush2.bf16.xpose.msra.mxu0 0
      %3550 = vmatprep.mubr.bf16.mxu0 0
      %3551 = vmatmul.mubr.bf16.gmra.mxu0 %v3513
      %v3552 = vpop.f32.mrf.mxu0
      %v3553 = vadd.f32 0.0, %v3552
      %v3554 = vpop.f32.mrf.mxu0
      %v3555 = vpop.f32.mrf.mxu0
      %v3556 = vpop.f32.mrf.mxu0
      %3557 = vdwg.mxu0
      %3558 = vrot.lane.b32.xlu0 %v1536, 112
      %v3559 = vpop.permute.xlu0 %3558
      %3560 = vrot.lane.b32.xlu0 %v1536, 80
      %v3561 = vpop.permute.xlu0 %3560
      %v3563 = vsel %vm1543, %v3559, 0
      %v3566 = vsel %vm1543, %v3561, 0
      %3568 = vmatprep.subr.bf16.mxu0 0
      %3569 = vmatpush1.bf16.xpose.msra.mxu0 0
      %3570 = vmatprep.subr.bf16.mxu0 0
      %3571 = vmatpush1.bf16.xpose.msra.mxu0 0
      %3572 = vmatprep.subr.bf16.mxu0 0
      %3573 = vmatpush1.bf16.xpose.msra.mxu0 0
      %3574 = vmatprep.subr.bf16.mxu0 0
      %3575 = vmatpush1.bf16.xpose.msra.mxu0 0
      %3576 = vmatprep.subr.bf16.mxu0 0
      %3577 = vmatpush1.bf16.xpose.msra.mxu0 0
      %3578 = vmatprep.subr.bf16.mxu0 0
      %3579 = vmatpush1.bf16.xpose.msra.mxu0 0
      %3580 = vmatprep.subr.bf16.mxu0 0
      %3581 = vmatpush1.bf16.xpose.msra.mxu0 0
      %3582 = vmatprep.subr.bf16.mxu0 0
      %3583 = vmatpush1.bf16.xpose.msra.mxu0 %v3566
      %3584 = vmatprep.subr.bf16.mxu0 0
      %3585 = vmatpush2.bf16.xpose.msra.mxu0 0
      %3586 = vmatprep.subr.bf16.mxu0 0
      %3587 = vmatpush2.bf16.xpose.msra.mxu0 0
      %3588 = vmatprep.subr.bf16.mxu0 0
      %3589 = vmatpush2.bf16.xpose.msra.mxu0 0
      %3590 = vmatprep.subr.bf16.mxu0 0
      %3591 = vmatpush2.bf16.xpose.msra.mxu0 0
      %3592 = vmatprep.subr.bf16.mxu0 0
      %3593 = vmatpush2.bf16.xpose.msra.mxu0 0
      %3594 = vmatprep.subr.bf16.mxu0 0
      %3595 = vmatpush2.bf16.xpose.msra.mxu0 0
      %3596 = vmatprep.subr.bf16.mxu0 0
      %3597 = vmatpush2.bf16.xpose.msra.mxu0 0
      %3598 = vmatprep.subr.bf16.mxu0 0
      %3599 = vmatpush2.bf16.xpose.msra.mxu0 0
      %3600 = vmatprep.mubr.bf16.mxu0 0
      %3601 = vmatmul.mubr.bf16.gmra.mxu0 %v3563
      %v3602 = vpop.f32.mrf.mxu0
      %v3603 = vadd.f32 0.0, %v3602
      %v3604 = vpop.f32.mrf.mxu0
      %v3605 = vpop.f32.mrf.mxu0
      %v3606 = vpop.f32.mrf.mxu0
      %3607 = vdwg.mxu0
      %3608 = vrot.lane.b32.xlu0 %v1537, 112
      %v3609 = vpop.permute.xlu0 %3608
      %3610 = vrot.lane.b32.xlu0 %v1537, 80
      %v3611 = vpop.permute.xlu0 %3610
      %v3613 = vsel %vm1543, %v3609, 0
      %v3616 = vsel %vm1543, %v3611, 0
      %3618 = vmatprep.subr.bf16.mxu0 0
      %3619 = vmatpush1.bf16.xpose.msra.mxu0 0
      %3620 = vmatprep.subr.bf16.mxu0 0
      %3621 = vmatpush1.bf16.xpose.msra.mxu0 0
      %3622 = vmatprep.subr.bf16.mxu0 0
      %3623 = vmatpush1.bf16.xpose.msra.mxu0 0
      %3624 = vmatprep.subr.bf16.mxu0 0
      %3625 = vmatpush1.bf16.xpose.msra.mxu0 0
      %3626 = vmatprep.subr.bf16.mxu0 0
      %3627 = vmatpush1.bf16.xpose.msra.mxu0 0
      %3628 = vmatprep.subr.bf16.mxu0 0
      %3629 = vmatpush1.bf16.xpose.msra.mxu0 0
      %3630 = vmatprep.subr.bf16.mxu0 0
      %3631 = vmatpush1.bf16.xpose.msra.mxu0 0
      %3632 = vmatprep.subr.bf16.mxu0 0
      %3633 = vmatpush1.bf16.xpose.msra.mxu0 %v3616
      %3634 = vmatprep.subr.bf16.mxu0 0
      %3635 = vmatpush2.bf16.xpose.msra.mxu0 0
      %3636 = vmatprep.subr.bf16.mxu0 0
      %3637 = vmatpush2.bf16.xpose.msra.mxu0 0
      %3638 = vmatprep.subr.bf16.mxu0 0
      %3639 = vmatpush2.bf16.xpose.msra.mxu0 0
      %3640 = vmatprep.subr.bf16.mxu0 0
      %3641 = vmatpush2.bf16.xpose.msra.mxu0 0
      %3642 = vmatprep.subr.bf16.mxu0 0
      %3643 = vmatpush2.bf16.xpose.msra.mxu0 0
      %3644 = vmatprep.subr.bf16.mxu0 0
      %3645 = vmatpush2.bf16.xpose.msra.mxu0 0
      %3646 = vmatprep.subr.bf16.mxu0 0
      %3647 = vmatpush2.bf16.xpose.msra.mxu0 0
      %3648 = vmatprep.subr.bf16.mxu0 0
      %3649 = vmatpush2.bf16.xpose.msra.mxu0 0
      %3650 = vmatprep.mubr.bf16.mxu0 0
      %3651 = vmatmul.mubr.bf16.gmra.mxu0 %v3613
      %v3652 = vpop.f32.mrf.mxu0
      %v3653 = vadd.f32 0.0, %v3652
      %v3654 = vpop.f32.mrf.mxu0
      %v3655 = vpop.f32.mrf.mxu0
      %v3656 = vpop.f32.mrf.mxu0
      %3657 = vdwg.mxu0
      %3658 = vrot.lane.b32.xlu0 %v1538, 112
      %v3659 = vpop.permute.xlu0 %3658
      %3660 = vrot.lane.b32.xlu0 %v1538, 80
      %v3661 = vpop.permute.xlu0 %3660
      %v3663 = vsel %vm1543, %v3659, 0
      %v3666 = vsel %vm1543, %v3661, 0
      %3668 = vmatprep.subr.bf16.mxu0 0
      %3669 = vmatpush1.bf16.xpose.msra.mxu0 0
      %3670 = vmatprep.subr.bf16.mxu0 0
      %3671 = vmatpush1.bf16.xpose.msra.mxu0 0
      %3672 = vmatprep.subr.bf16.mxu0 0
      %3673 = vmatpush1.bf16.xpose.msra.mxu0 0
      %3674 = vmatprep.subr.bf16.mxu0 0
      %3675 = vmatpush1.bf16.xpose.msra.mxu0 0
      %3676 = vmatprep.subr.bf16.mxu0 0
      %3677 = vmatpush1.bf16.xpose.msra.mxu0 0
      %3678 = vmatprep.subr.bf16.mxu0 0
      %3679 = vmatpush1.bf16.xpose.msra.mxu0 0
      %3680 = vmatprep.subr.bf16.mxu0 0
      %3681 = vmatpush1.bf16.xpose.msra.mxu0 0
      %3682 = vmatprep.subr.bf16.mxu0 0
      %3683 = vmatpush1.bf16.xpose.msra.mxu0 %v3666
      %3684 = vmatprep.subr.bf16.mxu0 0
      %3685 = vmatpush2.bf16.xpose.msra.mxu0 0
      %3686 = vmatprep.subr.bf16.mxu0 0
      %3687 = vmatpush2.bf16.xpose.msra.mxu0 0
      %3688 = vmatprep.subr.bf16.mxu0 0
      %3689 = vmatpush2.bf16.xpose.msra.mxu0 0
      %3690 = vmatprep.subr.bf16.mxu0 0
      %3691 = vmatpush2.bf16.xpose.msra.mxu0 0
      %3692 = vmatprep.subr.bf16.mxu0 0
      %3693 = vmatpush2.bf16.xpose.msra.mxu0 0
      %3694 = vmatprep.subr.bf16.mxu0 0
      %3695 = vmatpush2.bf16.xpose.msra.mxu0 0
      %3696 = vmatprep.subr.bf16.mxu0 0
      %3697 = vmatpush2.bf16.xpose.msra.mxu0 0
      %3698 = vmatprep.subr.bf16.mxu0 0
      %3699 = vmatpush2.bf16.xpose.msra.mxu0 0
      %3700 = vmatprep.mubr.bf16.mxu0 0
      %3701 = vmatmul.mubr.bf16.gmra.mxu0 %v3663
      %v3702 = vpop.f32.mrf.mxu0
      %v3703 = vadd.f32 0.0, %v3702
      %v3704 = vpop.f32.mrf.mxu0
      %v3705 = vpop.f32.mrf.mxu0
      %v3706 = vpop.f32.mrf.mxu0
      %3707 = vdwg.mxu0
      %3708 = vrot.lane.b32.xlu0 %v1539, 112
      %v3709 = vpop.permute.xlu0 %3708
      %3710 = vrot.lane.b32.xlu0 %v1539, 80
      %v3711 = vpop.permute.xlu0 %3710
      %v3713 = vsel %vm1543, %v3709, 0
      %v3716 = vsel %vm1543, %v3711, 0
      %3718 = vmatprep.subr.bf16.mxu0 0
      %3719 = vmatpush1.bf16.xpose.msra.mxu0 0
      %3720 = vmatprep.subr.bf16.mxu0 0
      %3721 = vmatpush1.bf16.xpose.msra.mxu0 0
      %3722 = vmatprep.subr.bf16.mxu0 0
      %3723 = vmatpush1.bf16.xpose.msra.mxu0 0
      %3724 = vmatprep.subr.bf16.mxu0 0
      %3725 = vmatpush1.bf16.xpose.msra.mxu0 0
      %3726 = vmatprep.subr.bf16.mxu0 0
      %3727 = vmatpush1.bf16.xpose.msra.mxu0 0
      %3728 = vmatprep.subr.bf16.mxu0 0
      %3729 = vmatpush1.bf16.xpose.msra.mxu0 0
      %3730 = vmatprep.subr.bf16.mxu0 0
      %3731 = vmatpush1.bf16.xpose.msra.mxu0 0
      %3732 = vmatprep.subr.bf16.mxu0 0
      %3733 = vmatpush1.bf16.xpose.msra.mxu0 %v3716
      %3734 = vmatprep.subr.bf16.mxu0 0
      %3735 = vmatpush2.bf16.xpose.msra.mxu0 0
      %3736 = vmatprep.subr.bf16.mxu0 0
      %3737 = vmatpush2.bf16.xpose.msra.mxu0 0
      %3738 = vmatprep.subr.bf16.mxu0 0
      %3739 = vmatpush2.bf16.xpose.msra.mxu0 0
      %3740 = vmatprep.subr.bf16.mxu0 0
      %3741 = vmatpush2.bf16.xpose.msra.mxu0 0
      %3742 = vmatprep.subr.bf16.mxu0 0
      %3743 = vmatpush2.bf16.xpose.msra.mxu0 0
      %3744 = vmatprep.subr.bf16.mxu0 0
      %3745 = vmatpush2.bf16.xpose.msra.mxu0 0
      %3746 = vmatprep.subr.bf16.mxu0 0
      %3747 = vmatpush2.bf16.xpose.msra.mxu0 0
      %3748 = vmatprep.subr.bf16.mxu0 0
      %3749 = vmatpush2.bf16.xpose.msra.mxu0 0
      %3750 = vmatprep.mubr.bf16.mxu0 0
      %3751 = vmatmul.mubr.bf16.gmra.mxu0 %v3713
      %v3752 = vpop.f32.mrf.mxu0
      %v3753 = vadd.f32 0.0, %v3752
      %v3754 = vpop.f32.mrf.mxu0
      %v3755 = vpop.f32.mrf.mxu0
      %v3756 = vpop.f32.mrf.mxu0
      %3757 = vdwg.mxu0
      %v3758 = vsel %vm1973, -1e+18, %v3403
      %v3759 = vsel %vm1974, -1e+18, %v3453
      %v3760 = vsel %vm1975, -1e+18, %v3503
      %v3761 = vsel %vm1976, -1e+18, %v3553
      %v3762 = vsel %vm1977, -1e+18, %v3603
      %v3763 = vsel %vm1978, -1e+18, %v3653
      %v3764 = vsel %vm1979, -1e+18, %v3703
      %v3765 = vsel %vm1980, -1e+18, %v3753
      %v3766 = vsel %vm1543, %v3758, -inf
      %3767 = vmax.xlane.f32.xlu0 %v3766
      %v3768 = vpop.xlane.xlu0 %3767
      %v3769 = vsel %vm1543, %v3759, -inf
      %3770 = vmax.xlane.f32.xlu0 %v3769
      %v3771 = vpop.xlane.xlu0 %3770
      %v3772 = vsel %vm1543, %v3760, -inf
      %3773 = vmax.xlane.f32.xlu0 %v3772
      %v3774 = vpop.xlane.xlu0 %3773
      %v3775 = vsel %vm1543, %v3761, -inf
      %3776 = vmax.xlane.f32.xlu0 %v3775
      %v3777 = vpop.xlane.xlu0 %3776
      %v3778 = vsel %vm1543, %v3762, -inf
      %3779 = vmax.xlane.f32.xlu0 %v3778
      %v3780 = vpop.xlane.xlu0 %3779
      %v3781 = vsel %vm1543, %v3763, -inf
      %3782 = vmax.xlane.f32.xlu0 %v3781
      %v3783 = vpop.xlane.xlu0 %3782
      %v3784 = vsel %vm1543, %v3764, -inf
      %3785 = vmax.xlane.f32.xlu0 %v3784
      %v3786 = vpop.xlane.xlu0 %3785
      %v3787 = vsel %vm1543, %v3765, -inf
      %3788 = vmax.xlane.f32.xlu0 %v3787
      %v3789 = vpop.xlane.xlu0 %3788
      %v3790 = vsub.f32 %v3758, %v3768
      %v3791 = vsub.f32 %v3759, %v3771
      %v3792 = vsub.f32 %v3760, %v3774
      %v3793 = vsub.f32 %v3761, %v3777
      %v3794 = vsub.f32 %v3762, %v3780
      %v3795 = vsub.f32 %v3763, %v3783
      %v3796 = vsub.f32 %v3764, %v3786
      %v3797 = vsub.f32 %v3765, %v3789
      %v3798 = vmul.f32 %v3790, 1.442695
      %v3799 = vpow.pop %v3798
      %v3800 = vmul.f32 %v3791, 1.442695
      %v3801 = vpow.pop %v3800
      %v3802 = vmul.f32 %v3792, 1.442695
      %v3803 = vpow.pop %v3802
      %v3804 = vmul.f32 %v3793, 1.442695
      %v3805 = vpow.pop %v3804
      %v3806 = vmul.f32 %v3794, 1.442695
      %v3807 = vpow.pop %v3806
      %v3808 = vmul.f32 %v3795, 1.442695
      %v3809 = vpow.pop %v3808
      %v3810 = vmul.f32 %v3796, 1.442695
      %v3811 = vpow.pop %v3810
      %v3812 = vmul.f32 %v3797, 1.442695
      %v3813 = vpow.pop %v3812
      %v3814 = vsel %vm1543, %v3799, 0.0
      %3815 = vadd.xlane.f32.xlu0 %v3814
      %v3816 = vpop.xlane.xlu0 %3815
      %v3817 = vsel %vm1543, %v3801, 0.0
      %3818 = vadd.xlane.f32.xlu0 %v3817
      %v3819 = vpop.xlane.xlu0 %3818
      %v3820 = vsel %vm1543, %v3803, 0.0
      %3821 = vadd.xlane.f32.xlu0 %v3820
      %v3822 = vpop.xlane.xlu0 %3821
      %v3823 = vsel %vm1543, %v3805, 0.0
      %3824 = vadd.xlane.f32.xlu0 %v3823
      %v3825 = vpop.xlane.xlu0 %3824
      %v3826 = vsel %vm1543, %v3807, 0.0
      %3827 = vadd.xlane.f32.xlu0 %v3826
      %v3828 = vpop.xlane.xlu0 %3827
      %v3829 = vsel %vm1543, %v3809, 0.0
      %3830 = vadd.xlane.f32.xlu0 %v3829
      %v3831 = vpop.xlane.xlu0 %3830
      %v3832 = vsel %vm1543, %v3811, 0.0
      %3833 = vadd.xlane.f32.xlu0 %v3832
      %v3834 = vpop.xlane.xlu0 %3833
      %v3835 = vsel %vm1543, %v3813, 0.0
      %3836 = vadd.xlane.f32.xlu0 %v3835
      %v3837 = vpop.xlane.xlu0 %3836
      %v3838 = vrcp.pop %v3816
      %v3839 = vrcp.pop %v3819
      %v3840 = vrcp.pop %v3822
      %v3841 = vrcp.pop %v3825
      %v3842 = vrcp.pop %v3828
      %v3843 = vrcp.pop %v3831
      %v3844 = vrcp.pop %v3834
      %v3845 = vrcp.pop %v3837
      %v3846 = vmul.f32 %v3799, %v3838
      %v3847 = vmul.f32 %v3801, %v3839
      %v3848 = vmul.f32 %v3803, %v3840
      %v3849 = vmul.f32 %v3805, %v3841
      %v3850 = vmul.f32 %v3807, %v3842
      %v3851 = vmul.f32 %v3809, %v3843
      %v3852 = vmul.f32 %v3811, %v3844
      %v3853 = vmul.f32 %v3813, %v3845
      %v3854 = vpack.c.bf16 %v3846, %v3846
      %v3855 = vpack.c.bf16 %v3847, %v3847
      %v3856 = vpack.c.bf16 %v3848, %v3848
      %v3857 = vpack.c.bf16 %v3849, %v3849
      %v3858 = vpack.c.bf16 %v3850, %v3850
      %v3859 = vpack.c.bf16 %v3851, %v3851
      %v3860 = vpack.c.bf16 %v3852, %v3852
      %v3861 = vpack.c.bf16 %v3853, %v3853
      %3862 = vrot.lane.b32.xlu0 %v1532, 48
      %v3863 = vpop.permute.xlu0 %3862
      %v3865 = vsel %vm1543, %v3854, 0
      %v3868 = vsel %vm2090, %v3863, 0
      %3870 = vmatprep.subr.bf16.mxu0 0
      %3871 = vmatpush1.bf16.msra.mxu0 0
      %3872 = vmatprep.subr.bf16.mxu0 0
      %3873 = vmatpush1.bf16.msra.mxu0 0
      %3874 = vmatprep.subr.bf16.mxu0 0
      %3875 = vmatpush1.bf16.msra.mxu0 0
      %3876 = vmatprep.subr.bf16.mxu0 0
      %3877 = vmatpush1.bf16.msra.mxu0 0
      %3878 = vmatprep.subr.bf16.mxu0 0
      %3879 = vmatpush1.bf16.msra.mxu0 0
      %3880 = vmatprep.subr.bf16.mxu0 0
      %3881 = vmatpush1.bf16.msra.mxu0 0
      %3882 = vmatprep.subr.bf16.mxu0 0
      %3883 = vmatpush1.bf16.msra.mxu0 0
      %3884 = vmatprep.subr.bf16.mxu0 0
      %3885 = vmatpush1.bf16.msra.mxu0 %v3868
      %3886 = vmatprep.subr.bf16.mxu0 0
      %3887 = vmatpush2.bf16.msra.mxu0 0
      %3888 = vmatprep.subr.bf16.mxu0 0
      %3889 = vmatpush2.bf16.msra.mxu0 0
      %3890 = vmatprep.subr.bf16.mxu0 0
      %3891 = vmatpush2.bf16.msra.mxu0 0
      %3892 = vmatprep.subr.bf16.mxu0 0
      %3893 = vmatpush2.bf16.msra.mxu0 0
      %3894 = vmatprep.subr.bf16.mxu0 0
      %3895 = vmatpush2.bf16.msra.mxu0 0
      %3896 = vmatprep.subr.bf16.mxu0 0
      %3897 = vmatpush2.bf16.msra.mxu0 0
      %3898 = vmatprep.subr.bf16.mxu0 0
      %3899 = vmatpush2.bf16.msra.mxu0 0
      %3900 = vmatprep.subr.bf16.mxu0 0
      %3901 = vmatpush2.bf16.msra.mxu0 0
      %3902 = vmatprep.mubr.bf16.mxu0 0
      %3903 = vmatmul.mubr.bf16.gmra.mxu0 %v3865
      %v3904 = vpop.f32.mrf.mxu0
      %v3905 = vadd.f32 0.0, %v3904
      %v3906 = vpop.f32.mrf.mxu0
      %v3907 = vpop.f32.mrf.mxu0
      %v3908 = vpop.f32.mrf.mxu0
      %3909 = vdwg.mxu0
      %3910 = vrot.lane.b32.xlu0 %v1533, 48
      %v3911 = vpop.permute.xlu0 %3910
      %v3913 = vsel %vm1543, %v3855, 0
      %v3916 = vsel %vm2090, %v3911, 0
      %3918 = vmatprep.subr.bf16.mxu0 0
      %3919 = vmatpush1.bf16.msra.mxu0 0
      %3920 = vmatprep.subr.bf16.mxu0 0
      %3921 = vmatpush1.bf16.msra.mxu0 0
      %3922 = vmatprep.subr.bf16.mxu0 0
      %3923 = vmatpush1.bf16.msra.mxu0 0
      %3924 = vmatprep.subr.bf16.mxu0 0
      %3925 = vmatpush1.bf16.msra.mxu0 0
      %3926 = vmatprep.subr.bf16.mxu0 0
      %3927 = vmatpush1.bf16.msra.mxu0 0
      %3928 = vmatprep.subr.bf16.mxu0 0
      %3929 = vmatpush1.bf16.msra.mxu0 0
      %3930 = vmatprep.subr.bf16.mxu0 0
      %3931 = vmatpush1.bf16.msra.mxu0 0
      %3932 = vmatprep.subr.bf16.mxu0 0
      %3933 = vmatpush1.bf16.msra.mxu0 %v3916
      %3934 = vmatprep.subr.bf16.mxu0 0
      %3935 = vmatpush2.bf16.msra.mxu0 0
      %3936 = vmatprep.subr.bf16.mxu0 0
      %3937 = vmatpush2.bf16.msra.mxu0 0
      %3938 = vmatprep.subr.bf16.mxu0 0
      %3939 = vmatpush2.bf16.msra.mxu0 0
      %3940 = vmatprep.subr.bf16.mxu0 0
      %3941 = vmatpush2.bf16.msra.mxu0 0
      %3942 = vmatprep.subr.bf16.mxu0 0
      %3943 = vmatpush2.bf16.msra.mxu0 0
      %3944 = vmatprep.subr.bf16.mxu0 0
      %3945 = vmatpush2.bf16.msra.mxu0 0
      %3946 = vmatprep.subr.bf16.mxu0 0
      %3947 = vmatpush2.bf16.msra.mxu0 0
      %3948 = vmatprep.subr.bf16.mxu0 0
      %3949 = vmatpush2.bf16.msra.mxu0 0
      %3950 = vmatprep.mubr.bf16.mxu0 0
      %3951 = vmatmul.mubr.bf16.gmra.mxu0 %v3913
      %v3952 = vpop.f32.mrf.mxu0
      %v3953 = vadd.f32 0.0, %v3952
      %v3954 = vpop.f32.mrf.mxu0
      %v3955 = vpop.f32.mrf.mxu0
      %v3956 = vpop.f32.mrf.mxu0
      %3957 = vdwg.mxu0
      %3958 = vrot.lane.b32.xlu0 %v1534, 48
      %v3959 = vpop.permute.xlu0 %3958
      %v3961 = vsel %vm1543, %v3856, 0
      %v3964 = vsel %vm2090, %v3959, 0
      %3966 = vmatprep.subr.bf16.mxu0 0
      %3967 = vmatpush1.bf16.msra.mxu0 0
      %3968 = vmatprep.subr.bf16.mxu0 0
      %3969 = vmatpush1.bf16.msra.mxu0 0
      %3970 = vmatprep.subr.bf16.mxu0 0
      %3971 = vmatpush1.bf16.msra.mxu0 0
      %3972 = vmatprep.subr.bf16.mxu0 0
      %3973 = vmatpush1.bf16.msra.mxu0 0
      %3974 = vmatprep.subr.bf16.mxu0 0
      %3975 = vmatpush1.bf16.msra.mxu0 0
      %3976 = vmatprep.subr.bf16.mxu0 0
      %3977 = vmatpush1.bf16.msra.mxu0 0
      %3978 = vmatprep.subr.bf16.mxu0 0
      %3979 = vmatpush1.bf16.msra.mxu0 0
      %3980 = vmatprep.subr.bf16.mxu0 0
      %3981 = vmatpush1.bf16.msra.mxu0 %v3964
      %3982 = vmatprep.subr.bf16.mxu0 0
      %3983 = vmatpush2.bf16.msra.mxu0 0
      %3984 = vmatprep.subr.bf16.mxu0 0
      %3985 = vmatpush2.bf16.msra.mxu0 0
      %3986 = vmatprep.subr.bf16.mxu0 0
      %3987 = vmatpush2.bf16.msra.mxu0 0
      %3988 = vmatprep.subr.bf16.mxu0 0
      %3989 = vmatpush2.bf16.msra.mxu0 0
      %3990 = vmatprep.subr.bf16.mxu0 0
      %3991 = vmatpush2.bf16.msra.mxu0 0
      %3992 = vmatprep.subr.bf16.mxu0 0
      %3993 = vmatpush2.bf16.msra.mxu0 0
      %3994 = vmatprep.subr.bf16.mxu0 0
      %3995 = vmatpush2.bf16.msra.mxu0 0
      %3996 = vmatprep.subr.bf16.mxu0 0
      %3997 = vmatpush2.bf16.msra.mxu0 0
      %3998 = vmatprep.mubr.bf16.mxu0 0
      %3999 = vmatmul.mubr.bf16.gmra.mxu0 %v3961
      %v4000 = vpop.f32.mrf.mxu0
      %v4001 = vadd.f32 0.0, %v4000
      %v4002 = vpop.f32.mrf.mxu0
      %v4003 = vpop.f32.mrf.mxu0
      %v4004 = vpop.f32.mrf.mxu0
      %4005 = vdwg.mxu0
      %4006 = vrot.lane.b32.xlu0 %v1535, 48
      %v4007 = vpop.permute.xlu0 %4006
      %v4009 = vsel %vm1543, %v3857, 0
      %v4012 = vsel %vm2090, %v4007, 0
      %4014 = vmatprep.subr.bf16.mxu0 0
      %4015 = vmatpush1.bf16.msra.mxu0 0
      %4016 = vmatprep.subr.bf16.mxu0 0
      %4017 = vmatpush1.bf16.msra.mxu0 0
      %4018 = vmatprep.subr.bf16.mxu0 0
      %4019 = vmatpush1.bf16.msra.mxu0 0
      %4020 = vmatprep.subr.bf16.mxu0 0
      %4021 = vmatpush1.bf16.msra.mxu0 0
      %4022 = vmatprep.subr.bf16.mxu0 0
      %4023 = vmatpush1.bf16.msra.mxu0 0
      %4024 = vmatprep.subr.bf16.mxu0 0
      %4025 = vmatpush1.bf16.msra.mxu0 0
      %4026 = vmatprep.subr.bf16.mxu0 0
      %4027 = vmatpush1.bf16.msra.mxu0 0
      %4028 = vmatprep.subr.bf16.mxu0 0
      %4029 = vmatpush1.bf16.msra.mxu0 %v4012
      %4030 = vmatprep.subr.bf16.mxu0 0
      %4031 = vmatpush2.bf16.msra.mxu0 0
      %4032 = vmatprep.subr.bf16.mxu0 0
      %4033 = vmatpush2.bf16.msra.mxu0 0
      %4034 = vmatprep.subr.bf16.mxu0 0
      %4035 = vmatpush2.bf16.msra.mxu0 0
      %4036 = vmatprep.subr.bf16.mxu0 0
      %4037 = vmatpush2.bf16.msra.mxu0 0
      %4038 = vmatprep.subr.bf16.mxu0 0
      %4039 = vmatpush2.bf16.msra.mxu0 0
      %4040 = vmatprep.subr.bf16.mxu0 0
      %4041 = vmatpush2.bf16.msra.mxu0 0
      %4042 = vmatprep.subr.bf16.mxu0 0
      %4043 = vmatpush2.bf16.msra.mxu0 0
      %4044 = vmatprep.subr.bf16.mxu0 0
      %4045 = vmatpush2.bf16.msra.mxu0 0
      %4046 = vmatprep.mubr.bf16.mxu0 0
      %4047 = vmatmul.mubr.bf16.gmra.mxu0 %v4009
      %v4048 = vpop.f32.mrf.mxu0
      %v4049 = vadd.f32 0.0, %v4048
      %v4050 = vpop.f32.mrf.mxu0
      %v4051 = vpop.f32.mrf.mxu0
      %v4052 = vpop.f32.mrf.mxu0
      %4053 = vdwg.mxu0
      %4054 = vrot.lane.b32.xlu0 %v1536, 48
      %v4055 = vpop.permute.xlu0 %4054
      %v4057 = vsel %vm1543, %v3858, 0
      %v4060 = vsel %vm2090, %v4055, 0
      %4062 = vmatprep.subr.bf16.mxu0 0
      %4063 = vmatpush1.bf16.msra.mxu0 0
      %4064 = vmatprep.subr.bf16.mxu0 0
      %4065 = vmatpush1.bf16.msra.mxu0 0
      %4066 = vmatprep.subr.bf16.mxu0 0
      %4067 = vmatpush1.bf16.msra.mxu0 0
      %4068 = vmatprep.subr.bf16.mxu0 0
      %4069 = vmatpush1.bf16.msra.mxu0 0
      %4070 = vmatprep.subr.bf16.mxu0 0
      %4071 = vmatpush1.bf16.msra.mxu0 0
      %4072 = vmatprep.subr.bf16.mxu0 0
      %4073 = vmatpush1.bf16.msra.mxu0 0
      %4074 = vmatprep.subr.bf16.mxu0 0
      %4075 = vmatpush1.bf16.msra.mxu0 0
      %4076 = vmatprep.subr.bf16.mxu0 0
      %4077 = vmatpush1.bf16.msra.mxu0 %v4060
      %4078 = vmatprep.subr.bf16.mxu0 0
      %4079 = vmatpush2.bf16.msra.mxu0 0
      %4080 = vmatprep.subr.bf16.mxu0 0
      %4081 = vmatpush2.bf16.msra.mxu0 0
      %4082 = vmatprep.subr.bf16.mxu0 0
      %4083 = vmatpush2.bf16.msra.mxu0 0
      %4084 = vmatprep.subr.bf16.mxu0 0
      %4085 = vmatpush2.bf16.msra.mxu0 0
      %4086 = vmatprep.subr.bf16.mxu0 0
      %4087 = vmatpush2.bf16.msra.mxu0 0
      %4088 = vmatprep.subr.bf16.mxu0 0
      %4089 = vmatpush2.bf16.msra.mxu0 0
      %4090 = vmatprep.subr.bf16.mxu0 0
      %4091 = vmatpush2.bf16.msra.mxu0 0
      %4092 = vmatprep.subr.bf16.mxu0 0
      %4093 = vmatpush2.bf16.msra.mxu0 0
      %4094 = vmatprep.mubr.bf16.mxu0 0
      %4095 = vmatmul.mubr.bf16.gmra.mxu0 %v4057
      %v4096 = vpop.f32.mrf.mxu0
      %v4097 = vadd.f32 0.0, %v4096
      %v4098 = vpop.f32.mrf.mxu0
      %v4099 = vpop.f32.mrf.mxu0
      %v4100 = vpop.f32.mrf.mxu0
      %4101 = vdwg.mxu0
      %4102 = vrot.lane.b32.xlu0 %v1537, 48
      %v4103 = vpop.permute.xlu0 %4102
      %v4105 = vsel %vm1543, %v3859, 0
      %v4108 = vsel %vm2090, %v4103, 0
      %4110 = vmatprep.subr.bf16.mxu0 0
      %4111 = vmatpush1.bf16.msra.mxu0 0
      %4112 = vmatprep.subr.bf16.mxu0 0
      %4113 = vmatpush1.bf16.msra.mxu0 0
      %4114 = vmatprep.subr.bf16.mxu0 0
      %4115 = vmatpush1.bf16.msra.mxu0 0
      %4116 = vmatprep.subr.bf16.mxu0 0
      %4117 = vmatpush1.bf16.msra.mxu0 0
      %4118 = vmatprep.subr.bf16.mxu0 0
      %4119 = vmatpush1.bf16.msra.mxu0 0
      %4120 = vmatprep.subr.bf16.mxu0 0
      %4121 = vmatpush1.bf16.msra.mxu0 0
      %4122 = vmatprep.subr.bf16.mxu0 0
      %4123 = vmatpush1.bf16.msra.mxu0 0
      %4124 = vmatprep.subr.bf16.mxu0 0
      %4125 = vmatpush1.bf16.msra.mxu0 %v4108
      %4126 = vmatprep.subr.bf16.mxu0 0
      %4127 = vmatpush2.bf16.msra.mxu0 0
      %4128 = vmatprep.subr.bf16.mxu0 0
      %4129 = vmatpush2.bf16.msra.mxu0 0
      %4130 = vmatprep.subr.bf16.mxu0 0
      %4131 = vmatpush2.bf16.msra.mxu0 0
      %4132 = vmatprep.subr.bf16.mxu0 0
      %4133 = vmatpush2.bf16.msra.mxu0 0
      %4134 = vmatprep.subr.bf16.mxu0 0
      %4135 = vmatpush2.bf16.msra.mxu0 0
      %4136 = vmatprep.subr.bf16.mxu0 0
      %4137 = vmatpush2.bf16.msra.mxu0 0
      %4138 = vmatprep.subr.bf16.mxu0 0
      %4139 = vmatpush2.bf16.msra.mxu0 0
      %4140 = vmatprep.subr.bf16.mxu0 0
      %4141 = vmatpush2.bf16.msra.mxu0 0
      %4142 = vmatprep.mubr.bf16.mxu0 0
      %4143 = vmatmul.mubr.bf16.gmra.mxu0 %v4105
      %v4144 = vpop.f32.mrf.mxu0
      %v4145 = vadd.f32 0.0, %v4144
      %v4146 = vpop.f32.mrf.mxu0
      %v4147 = vpop.f32.mrf.mxu0
      %v4148 = vpop.f32.mrf.mxu0
      %4149 = vdwg.mxu0
      %4150 = vrot.lane.b32.xlu0 %v1538, 48
      %v4151 = vpop.permute.xlu0 %4150
      %v4153 = vsel %vm1543, %v3860, 0
      %v4156 = vsel %vm2090, %v4151, 0
      %4158 = vmatprep.subr.bf16.mxu0 0
      %4159 = vmatpush1.bf16.msra.mxu0 0
      %4160 = vmatprep.subr.bf16.mxu0 0
      %4161 = vmatpush1.bf16.msra.mxu0 0
      %4162 = vmatprep.subr.bf16.mxu0 0
      %4163 = vmatpush1.bf16.msra.mxu0 0
      %4164 = vmatprep.subr.bf16.mxu0 0
      %4165 = vmatpush1.bf16.msra.mxu0 0
      %4166 = vmatprep.subr.bf16.mxu0 0
      %4167 = vmatpush1.bf16.msra.mxu0 0
      %4168 = vmatprep.subr.bf16.mxu0 0
      %4169 = vmatpush1.bf16.msra.mxu0 0
      %4170 = vmatprep.subr.bf16.mxu0 0
      %4171 = vmatpush1.bf16.msra.mxu0 0
      %4172 = vmatprep.subr.bf16.mxu0 0
      %4173 = vmatpush1.bf16.msra.mxu0 %v4156
      %4174 = vmatprep.subr.bf16.mxu0 0
      %4175 = vmatpush2.bf16.msra.mxu0 0
      %4176 = vmatprep.subr.bf16.mxu0 0
      %4177 = vmatpush2.bf16.msra.mxu0 0
      %4178 = vmatprep.subr.bf16.mxu0 0
      %4179 = vmatpush2.bf16.msra.mxu0 0
      %4180 = vmatprep.subr.bf16.mxu0 0
      %4181 = vmatpush2.bf16.msra.mxu0 0
      %4182 = vmatprep.subr.bf16.mxu0 0
      %4183 = vmatpush2.bf16.msra.mxu0 0
      %4184 = vmatprep.subr.bf16.mxu0 0
      %4185 = vmatpush2.bf16.msra.mxu0 0
      %4186 = vmatprep.subr.bf16.mxu0 0
      %4187 = vmatpush2.bf16.msra.mxu0 0
      %4188 = vmatprep.subr.bf16.mxu0 0
      %4189 = vmatpush2.bf16.msra.mxu0 0
      %4190 = vmatprep.mubr.bf16.mxu0 0
      %4191 = vmatmul.mubr.bf16.gmra.mxu0 %v4153
      %v4192 = vpop.f32.mrf.mxu0
      %v4193 = vadd.f32 0.0, %v4192
      %v4194 = vpop.f32.mrf.mxu0
      %v4195 = vpop.f32.mrf.mxu0
      %v4196 = vpop.f32.mrf.mxu0
      %4197 = vdwg.mxu0
      %4198 = vrot.lane.b32.xlu0 %v1539, 48
      %v4199 = vpop.permute.xlu0 %4198
      %v4201 = vsel %vm1543, %v3861, 0
      %v4204 = vsel %vm2090, %v4199, 0
      %4206 = vmatprep.subr.bf16.mxu0 0
      %4207 = vmatpush1.bf16.msra.mxu0 0
      %4208 = vmatprep.subr.bf16.mxu0 0
      %4209 = vmatpush1.bf16.msra.mxu0 0
      %4210 = vmatprep.subr.bf16.mxu0 0
      %4211 = vmatpush1.bf16.msra.mxu0 0
      %4212 = vmatprep.subr.bf16.mxu0 0
      %4213 = vmatpush1.bf16.msra.mxu0 0
      %4214 = vmatprep.subr.bf16.mxu0 0
      %4215 = vmatpush1.bf16.msra.mxu0 0
      %4216 = vmatprep.subr.bf16.mxu0 0
      %4217 = vmatpush1.bf16.msra.mxu0 0
      %4218 = vmatprep.subr.bf16.mxu0 0
      %4219 = vmatpush1.bf16.msra.mxu0 0
      %4220 = vmatprep.subr.bf16.mxu0 0
      %4221 = vmatpush1.bf16.msra.mxu0 %v4204
      %4222 = vmatprep.subr.bf16.mxu0 0
      %4223 = vmatpush2.bf16.msra.mxu0 0
      %4224 = vmatprep.subr.bf16.mxu0 0
      %4225 = vmatpush2.bf16.msra.mxu0 0
      %4226 = vmatprep.subr.bf16.mxu0 0
      %4227 = vmatpush2.bf16.msra.mxu0 0
      %4228 = vmatprep.subr.bf16.mxu0 0
      %4229 = vmatpush2.bf16.msra.mxu0 0
      %4230 = vmatprep.subr.bf16.mxu0 0
      %4231 = vmatpush2.bf16.msra.mxu0 0
      %4232 = vmatprep.subr.bf16.mxu0 0
      %4233 = vmatpush2.bf16.msra.mxu0 0
      %4234 = vmatprep.subr.bf16.mxu0 0
      %4235 = vmatpush2.bf16.msra.mxu0 0
      %4236 = vmatprep.subr.bf16.mxu0 0
      %4237 = vmatpush2.bf16.msra.mxu0 0
      %4238 = vmatprep.mubr.bf16.mxu0 0
      %4239 = vmatmul.mubr.bf16.gmra.mxu0 %v4201
      %v4240 = vpop.f32.mrf.mxu0
      %v4241 = vadd.f32 0.0, %v4240
      %v4242 = vpop.f32.mrf.mxu0
      %v4243 = vpop.f32.mrf.mxu0
      %v4244 = vpop.f32.mrf.mxu0
      %4245 = vdwg.mxu0
      %4246 = vrot.lane.b32.xlu0 %v1532, 104
      %v4247 = vpop.permute.xlu0 %4246
      %4248 = vrot.lane.b32.xlu0 %v1532, 72
      %v4249 = vpop.permute.xlu0 %4248
      %v4251 = vsel %vm1543, %v4247, 0
      %v4254 = vsel %vm1543, %v4249, 0
      %4256 = vmatprep.subr.bf16.mxu0 0
      %4257 = vmatpush1.bf16.xpose.msra.mxu0 0
      %4258 = vmatprep.subr.bf16.mxu0 0
      %4259 = vmatpush1.bf16.xpose.msra.mxu0 0
      %4260 = vmatprep.subr.bf16.mxu0 0
      %4261 = vmatpush1.bf16.xpose.msra.mxu0 0
      %4262 = vmatprep.subr.bf16.mxu0 0
      %4263 = vmatpush1.bf16.xpose.msra.mxu0 0
      %4264 = vmatprep.subr.bf16.mxu0 0
      %4265 = vmatpush1.bf16.xpose.msra.mxu0 0
      %4266 = vmatprep.subr.bf16.mxu0 0
      %4267 = vmatpush1.bf16.xpose.msra.mxu0 0
      %4268 = vmatprep.subr.bf16.mxu0 0
      %4269 = vmatpush1.bf16.xpose.msra.mxu0 0
      %4270 = vmatprep.subr.bf16.mxu0 0
      %4271 = vmatpush1.bf16.xpose.msra.mxu0 %v4254
      %4272 = vmatprep.subr.bf16.mxu0 0
      %4273 = vmatpush2.bf16.xpose.msra.mxu0 0
      %4274 = vmatprep.subr.bf16.mxu0 0
      %4275 = vmatpush2.bf16.xpose.msra.mxu0 0
      %4276 = vmatprep.subr.bf16.mxu0 0
      %4277 = vmatpush2.bf16.xpose.msra.mxu0 0
      %4278 = vmatprep.subr.bf16.mxu0 0
      %4279 = vmatpush2.bf16.xpose.msra.mxu0 0
      %4280 = vmatprep.subr.bf16.mxu0 0
      %4281 = vmatpush2.bf16.xpose.msra.mxu0 0
      %4282 = vmatprep.subr.bf16.mxu0 0
      %4283 = vmatpush2.bf16.xpose.msra.mxu0 0
      %4284 = vmatprep.subr.bf16.mxu0 0
      %4285 = vmatpush2.bf16.xpose.msra.mxu0 0
      %4286 = vmatprep.subr.bf16.mxu0 0
      %4287 = vmatpush2.bf16.xpose.msra.mxu0 0
      %4288 = vmatprep.mubr.bf16.mxu0 0
      %4289 = vmatmul.mubr.bf16.gmra.mxu0 %v4251
      %v4290 = vpop.f32.mrf.mxu0
      %v4291 = vadd.f32 0.0, %v4290
      %v4292 = vpop.f32.mrf.mxu0
      %v4293 = vpop.f32.mrf.mxu0
      %v4294 = vpop.f32.mrf.mxu0
      %4295 = vdwg.mxu0
      %4296 = vrot.lane.b32.xlu0 %v1533, 104
      %v4297 = vpop.permute.xlu0 %4296
      %4298 = vrot.lane.b32.xlu0 %v1533, 72
      %v4299 = vpop.permute.xlu0 %4298
      %v4301 = vsel %vm1543, %v4297, 0
      %v4304 = vsel %vm1543, %v4299, 0
      %4306 = vmatprep.subr.bf16.mxu0 0
      %4307 = vmatpush1.bf16.xpose.msra.mxu0 0
      %4308 = vmatprep.subr.bf16.mxu0 0
      %4309 = vmatpush1.bf16.xpose.msra.mxu0 0
      %4310 = vmatprep.subr.bf16.mxu0 0
      %4311 = vmatpush1.bf16.xpose.msra.mxu0 0
      %4312 = vmatprep.subr.bf16.mxu0 0
      %4313 = vmatpush1.bf16.xpose.msra.mxu0 0
      %4314 = vmatprep.subr.bf16.mxu0 0
      %4315 = vmatpush1.bf16.xpose.msra.mxu0 0
      %4316 = vmatprep.subr.bf16.mxu0 0
      %4317 = vmatpush1.bf16.xpose.msra.mxu0 0
      %4318 = vmatprep.subr.bf16.mxu0 0
      %4319 = vmatpush1.bf16.xpose.msra.mxu0 0
      %4320 = vmatprep.subr.bf16.mxu0 0
      %4321 = vmatpush1.bf16.xpose.msra.mxu0 %v4304
      %4322 = vmatprep.subr.bf16.mxu0 0
      %4323 = vmatpush2.bf16.xpose.msra.mxu0 0
      %4324 = vmatprep.subr.bf16.mxu0 0
      %4325 = vmatpush2.bf16.xpose.msra.mxu0 0
      %4326 = vmatprep.subr.bf16.mxu0 0
      %4327 = vmatpush2.bf16.xpose.msra.mxu0 0
      %4328 = vmatprep.subr.bf16.mxu0 0
      %4329 = vmatpush2.bf16.xpose.msra.mxu0 0
      %4330 = vmatprep.subr.bf16.mxu0 0
      %4331 = vmatpush2.bf16.xpose.msra.mxu0 0
      %4332 = vmatprep.subr.bf16.mxu0 0
      %4333 = vmatpush2.bf16.xpose.msra.mxu0 0
      %4334 = vmatprep.subr.bf16.mxu0 0
      %4335 = vmatpush2.bf16.xpose.msra.mxu0 0
      %4336 = vmatprep.subr.bf16.mxu0 0
      %4337 = vmatpush2.bf16.xpose.msra.mxu0 0
      %4338 = vmatprep.mubr.bf16.mxu0 0
      %4339 = vmatmul.mubr.bf16.gmra.mxu0 %v4301
      %v4340 = vpop.f32.mrf.mxu0
      %v4341 = vadd.f32 0.0, %v4340
      %v4342 = vpop.f32.mrf.mxu0
      %v4343 = vpop.f32.mrf.mxu0
      %v4344 = vpop.f32.mrf.mxu0
      %4345 = vdwg.mxu0
      %4346 = vrot.lane.b32.xlu0 %v1534, 104
      %v4347 = vpop.permute.xlu0 %4346
      %4348 = vrot.lane.b32.xlu0 %v1534, 72
      %v4349 = vpop.permute.xlu0 %4348
      %v4351 = vsel %vm1543, %v4347, 0
      %v4354 = vsel %vm1543, %v4349, 0
      %4356 = vmatprep.subr.bf16.mxu0 0
      %4357 = vmatpush1.bf16.xpose.msra.mxu0 0
      %4358 = vmatprep.subr.bf16.mxu0 0
      %4359 = vmatpush1.bf16.xpose.msra.mxu0 0
      %4360 = vmatprep.subr.bf16.mxu0 0
      %4361 = vmatpush1.bf16.xpose.msra.mxu0 0
      %4362 = vmatprep.subr.bf16.mxu0 0
      %4363 = vmatpush1.bf16.xpose.msra.mxu0 0
      %4364 = vmatprep.subr.bf16.mxu0 0
      %4365 = vmatpush1.bf16.xpose.msra.mxu0 0
      %4366 = vmatprep.subr.bf16.mxu0 0
      %4367 = vmatpush1.bf16.xpose.msra.mxu0 0
      %4368 = vmatprep.subr.bf16.mxu0 0
      %4369 = vmatpush1.bf16.xpose.msra.mxu0 0
      %4370 = vmatprep.subr.bf16.mxu0 0
      %4371 = vmatpush1.bf16.xpose.msra.mxu0 %v4354
      %4372 = vmatprep.subr.bf16.mxu0 0
      %4373 = vmatpush2.bf16.xpose.msra.mxu0 0
      %4374 = vmatprep.subr.bf16.mxu0 0
      %4375 = vmatpush2.bf16.xpose.msra.mxu0 0
      %4376 = vmatprep.subr.bf16.mxu0 0
      %4377 = vmatpush2.bf16.xpose.msra.mxu0 0
      %4378 = vmatprep.subr.bf16.mxu0 0
      %4379 = vmatpush2.bf16.xpose.msra.mxu0 0
      %4380 = vmatprep.subr.bf16.mxu0 0
      %4381 = vmatpush2.bf16.xpose.msra.mxu0 0
      %4382 = vmatprep.subr.bf16.mxu0 0
      %4383 = vmatpush2.bf16.xpose.msra.mxu0 0
      %4384 = vmatprep.subr.bf16.mxu0 0
      %4385 = vmatpush2.bf16.xpose.msra.mxu0 0
      %4386 = vmatprep.subr.bf16.mxu0 0
      %4387 = vmatpush2.bf16.xpose.msra.mxu0 0
      %4388 = vmatprep.mubr.bf16.mxu0 0
      %4389 = vmatmul.mubr.bf16.gmra.mxu0 %v4351
      %v4390 = vpop.f32.mrf.mxu0
      %v4391 = vadd.f32 0.0, %v4390
      %v4392 = vpop.f32.mrf.mxu0
      %v4393 = vpop.f32.mrf.mxu0
      %v4394 = vpop.f32.mrf.mxu0
      %4395 = vdwg.mxu0
      %4396 = vrot.lane.b32.xlu0 %v1535, 104
      %v4397 = vpop.permute.xlu0 %4396
      %4398 = vrot.lane.b32.xlu0 %v1535, 72
      %v4399 = vpop.permute.xlu0 %4398
      %v4401 = vsel %vm1543, %v4397, 0
      %v4404 = vsel %vm1543, %v4399, 0
      %4406 = vmatprep.subr.bf16.mxu0 0
      %4407 = vmatpush1.bf16.xpose.msra.mxu0 0
      %4408 = vmatprep.subr.bf16.mxu0 0
      %4409 = vmatpush1.bf16.xpose.msra.mxu0 0
      %4410 = vmatprep.subr.bf16.mxu0 0
      %4411 = vmatpush1.bf16.xpose.msra.mxu0 0
      %4412 = vmatprep.subr.bf16.mxu0 0
      %4413 = vmatpush1.bf16.xpose.msra.mxu0 0
      %4414 = vmatprep.subr.bf16.mxu0 0
      %4415 = vmatpush1.bf16.xpose.msra.mxu0 0
      %4416 = vmatprep.subr.bf16.mxu0 0
      %4417 = vmatpush1.bf16.xpose.msra.mxu0 0
      %4418 = vmatprep.subr.bf16.mxu0 0
      %4419 = vmatpush1.bf16.xpose.msra.mxu0 0
      %4420 = vmatprep.subr.bf16.mxu0 0
      %4421 = vmatpush1.bf16.xpose.msra.mxu0 %v4404
      %4422 = vmatprep.subr.bf16.mxu0 0
      %4423 = vmatpush2.bf16.xpose.msra.mxu0 0
      %4424 = vmatprep.subr.bf16.mxu0 0
      %4425 = vmatpush2.bf16.xpose.msra.mxu0 0
      %4426 = vmatprep.subr.bf16.mxu0 0
      %4427 = vmatpush2.bf16.xpose.msra.mxu0 0
      %4428 = vmatprep.subr.bf16.mxu0 0
      %4429 = vmatpush2.bf16.xpose.msra.mxu0 0
      %4430 = vmatprep.subr.bf16.mxu0 0
      %4431 = vmatpush2.bf16.xpose.msra.mxu0 0
      %4432 = vmatprep.subr.bf16.mxu0 0
      %4433 = vmatpush2.bf16.xpose.msra.mxu0 0
      %4434 = vmatprep.subr.bf16.mxu0 0
      %4435 = vmatpush2.bf16.xpose.msra.mxu0 0
      %4436 = vmatprep.subr.bf16.mxu0 0
      %4437 = vmatpush2.bf16.xpose.msra.mxu0 0
      %4438 = vmatprep.mubr.bf16.mxu0 0
      %4439 = vmatmul.mubr.bf16.gmra.mxu0 %v4401
      %v4440 = vpop.f32.mrf.mxu0
      %v4441 = vadd.f32 0.0, %v4440
      %v4442 = vpop.f32.mrf.mxu0
      %v4443 = vpop.f32.mrf.mxu0
      %v4444 = vpop.f32.mrf.mxu0
      %4445 = vdwg.mxu0
      %4446 = vrot.lane.b32.xlu0 %v1536, 104
      %v4447 = vpop.permute.xlu0 %4446
      %4448 = vrot.lane.b32.xlu0 %v1536, 72
      %v4449 = vpop.permute.xlu0 %4448
      %v4451 = vsel %vm1543, %v4447, 0
      %v4454 = vsel %vm1543, %v4449, 0
      %4456 = vmatprep.subr.bf16.mxu0 0
      %4457 = vmatpush1.bf16.xpose.msra.mxu0 0
      %4458 = vmatprep.subr.bf16.mxu0 0
      %4459 = vmatpush1.bf16.xpose.msra.mxu0 0
      %4460 = vmatprep.subr.bf16.mxu0 0
      %4461 = vmatpush1.bf16.xpose.msra.mxu0 0
      %4462 = vmatprep.subr.bf16.mxu0 0
      %4463 = vmatpush1.bf16.xpose.msra.mxu0 0
      %4464 = vmatprep.subr.bf16.mxu0 0
      %4465 = vmatpush1.bf16.xpose.msra.mxu0 0
      %4466 = vmatprep.subr.bf16.mxu0 0
      %4467 = vmatpush1.bf16.xpose.msra.mxu0 0
      %4468 = vmatprep.subr.bf16.mxu0 0
      %4469 = vmatpush1.bf16.xpose.msra.mxu0 0
      %4470 = vmatprep.subr.bf16.mxu0 0
      %4471 = vmatpush1.bf16.xpose.msra.mxu0 %v4454
      %4472 = vmatprep.subr.bf16.mxu0 0
      %4473 = vmatpush2.bf16.xpose.msra.mxu0 0
      %4474 = vmatprep.subr.bf16.mxu0 0
      %4475 = vmatpush2.bf16.xpose.msra.mxu0 0
      %4476 = vmatprep.subr.bf16.mxu0 0
      %4477 = vmatpush2.bf16.xpose.msra.mxu0 0
      %4478 = vmatprep.subr.bf16.mxu0 0
      %4479 = vmatpush2.bf16.xpose.msra.mxu0 0
      %4480 = vmatprep.subr.bf16.mxu0 0
      %4481 = vmatpush2.bf16.xpose.msra.mxu0 0
      %4482 = vmatprep.subr.bf16.mxu0 0
      %4483 = vmatpush2.bf16.xpose.msra.mxu0 0
      %4484 = vmatprep.subr.bf16.mxu0 0
      %4485 = vmatpush2.bf16.xpose.msra.mxu0 0
      %4486 = vmatprep.subr.bf16.mxu0 0
      %4487 = vmatpush2.bf16.xpose.msra.mxu0 0
      %4488 = vmatprep.mubr.bf16.mxu0 0
      %4489 = vmatmul.mubr.bf16.gmra.mxu0 %v4451
      %v4490 = vpop.f32.mrf.mxu0
      %v4491 = vadd.f32 0.0, %v4490
      %v4492 = vpop.f32.mrf.mxu0
      %v4493 = vpop.f32.mrf.mxu0
      %v4494 = vpop.f32.mrf.mxu0
      %4495 = vdwg.mxu0
      %4496 = vrot.lane.b32.xlu0 %v1537, 104
      %v4497 = vpop.permute.xlu0 %4496
      %4498 = vrot.lane.b32.xlu0 %v1537, 72
      %v4499 = vpop.permute.xlu0 %4498
      %v4501 = vsel %vm1543, %v4497, 0
      %v4504 = vsel %vm1543, %v4499, 0
      %4506 = vmatprep.subr.bf16.mxu0 0
      %4507 = vmatpush1.bf16.xpose.msra.mxu0 0
      %4508 = vmatprep.subr.bf16.mxu0 0
      %4509 = vmatpush1.bf16.xpose.msra.mxu0 0
      %4510 = vmatprep.subr.bf16.mxu0 0
      %4511 = vmatpush1.bf16.xpose.msra.mxu0 0
      %4512 = vmatprep.subr.bf16.mxu0 0
      %4513 = vmatpush1.bf16.xpose.msra.mxu0 0
      %4514 = vmatprep.subr.bf16.mxu0 0
      %4515 = vmatpush1.bf16.xpose.msra.mxu0 0
      %4516 = vmatprep.subr.bf16.mxu0 0
      %4517 = vmatpush1.bf16.xpose.msra.mxu0 0
      %4518 = vmatprep.subr.bf16.mxu0 0
      %4519 = vmatpush1.bf16.xpose.msra.mxu0 0
      %4520 = vmatprep.subr.bf16.mxu0 0
      %4521 = vmatpush1.bf16.xpose.msra.mxu0 %v4504
      %4522 = vmatprep.subr.bf16.mxu0 0
      %4523 = vmatpush2.bf16.xpose.msra.mxu0 0
      %4524 = vmatprep.subr.bf16.mxu0 0
      %4525 = vmatpush2.bf16.xpose.msra.mxu0 0
      %4526 = vmatprep.subr.bf16.mxu0 0
      %4527 = vmatpush2.bf16.xpose.msra.mxu0 0
      %4528 = vmatprep.subr.bf16.mxu0 0
      %4529 = vmatpush2.bf16.xpose.msra.mxu0 0
      %4530 = vmatprep.subr.bf16.mxu0 0
      %4531 = vmatpush2.bf16.xpose.msra.mxu0 0
      %4532 = vmatprep.subr.bf16.mxu0 0
      %4533 = vmatpush2.bf16.xpose.msra.mxu0 0
      %4534 = vmatprep.subr.bf16.mxu0 0
      %4535 = vmatpush2.bf16.xpose.msra.mxu0 0
      %4536 = vmatprep.subr.bf16.mxu0 0
      %4537 = vmatpush2.bf16.xpose.msra.mxu0 0
      %4538 = vmatprep.mubr.bf16.mxu0 0
      %4539 = vmatmul.mubr.bf16.gmra.mxu0 %v4501
      %v4540 = vpop.f32.mrf.mxu0
      %v4541 = vadd.f32 0.0, %v4540
      %v4542 = vpop.f32.mrf.mxu0
      %v4543 = vpop.f32.mrf.mxu0
      %v4544 = vpop.f32.mrf.mxu0
      %4545 = vdwg.mxu0
      %4546 = vrot.lane.b32.xlu0 %v1538, 104
      %v4547 = vpop.permute.xlu0 %4546
      %4548 = vrot.lane.b32.xlu0 %v1538, 72
      %v4549 = vpop.permute.xlu0 %4548
      %v4551 = vsel %vm1543, %v4547, 0
      %v4554 = vsel %vm1543, %v4549, 0
      %4556 = vmatprep.subr.bf16.mxu0 0
      %4557 = vmatpush1.bf16.xpose.msra.mxu0 0
      %4558 = vmatprep.subr.bf16.mxu0 0
      %4559 = vmatpush1.bf16.xpose.msra.mxu0 0
      %4560 = vmatprep.subr.bf16.mxu0 0
      %4561 = vmatpush1.bf16.xpose.msra.mxu0 0
      %4562 = vmatprep.subr.bf16.mxu0 0
      %4563 = vmatpush1.bf16.xpose.msra.mxu0 0
      %4564 = vmatprep.subr.bf16.mxu0 0
      %4565 = vmatpush1.bf16.xpose.msra.mxu0 0
      %4566 = vmatprep.subr.bf16.mxu0 0
      %4567 = vmatpush1.bf16.xpose.msra.mxu0 0
      %4568 = vmatprep.subr.bf16.mxu0 0
      %4569 = vmatpush1.bf16.xpose.msra.mxu0 0
      %4570 = vmatprep.subr.bf16.mxu0 0
      %4571 = vmatpush1.bf16.xpose.msra.mxu0 %v4554
      %4572 = vmatprep.subr.bf16.mxu0 0
      %4573 = vmatpush2.bf16.xpose.msra.mxu0 0
      %4574 = vmatprep.subr.bf16.mxu0 0
      %4575 = vmatpush2.bf16.xpose.msra.mxu0 0
      %4576 = vmatprep.subr.bf16.mxu0 0
      %4577 = vmatpush2.bf16.xpose.msra.mxu0 0
      %4578 = vmatprep.subr.bf16.mxu0 0
      %4579 = vmatpush2.bf16.xpose.msra.mxu0 0
      %4580 = vmatprep.subr.bf16.mxu0 0
      %4581 = vmatpush2.bf16.xpose.msra.mxu0 0
      %4582 = vmatprep.subr.bf16.mxu0 0
      %4583 = vmatpush2.bf16.xpose.msra.mxu0 0
      %4584 = vmatprep.subr.bf16.mxu0 0
      %4585 = vmatpush2.bf16.xpose.msra.mxu0 0
      %4586 = vmatprep.subr.bf16.mxu0 0
      %4587 = vmatpush2.bf16.xpose.msra.mxu0 0
      %4588 = vmatprep.mubr.bf16.mxu0 0
      %4589 = vmatmul.mubr.bf16.gmra.mxu0 %v4551
      %v4590 = vpop.f32.mrf.mxu0
      %v4591 = vadd.f32 0.0, %v4590
      %v4592 = vpop.f32.mrf.mxu0
      %v4593 = vpop.f32.mrf.mxu0
      %v4594 = vpop.f32.mrf.mxu0
      %4595 = vdwg.mxu0
      %4596 = vrot.lane.b32.xlu0 %v1539, 104
      %v4597 = vpop.permute.xlu0 %4596
      %4598 = vrot.lane.b32.xlu0 %v1539, 72
      %v4599 = vpop.permute.xlu0 %4598
      %v4601 = vsel %vm1543, %v4597, 0
      %v4604 = vsel %vm1543, %v4599, 0
      %4606 = vmatprep.subr.bf16.mxu0 0
      %4607 = vmatpush1.bf16.xpose.msra.mxu0 0
      %4608 = vmatprep.subr.bf16.mxu0 0
      %4609 = vmatpush1.bf16.xpose.msra.mxu0 0
      %4610 = vmatprep.subr.bf16.mxu0 0
      %4611 = vmatpush1.bf16.xpose.msra.mxu0 0
      %4612 = vmatprep.subr.bf16.mxu0 0
      %4613 = vmatpush1.bf16.xpose.msra.mxu0 0
      %4614 = vmatprep.subr.bf16.mxu0 0
      %4615 = vmatpush1.bf16.xpose.msra.mxu0 0
      %4616 = vmatprep.subr.bf16.mxu0 0
      %4617 = vmatpush1.bf16.xpose.msra.mxu0 0
      %4618 = vmatprep.subr.bf16.mxu0 0
      %4619 = vmatpush1.bf16.xpose.msra.mxu0 0
      %4620 = vmatprep.subr.bf16.mxu0 0
      %4621 = vmatpush1.bf16.xpose.msra.mxu0 %v4604
      %4622 = vmatprep.subr.bf16.mxu0 0
      %4623 = vmatpush2.bf16.xpose.msra.mxu0 0
      %4624 = vmatprep.subr.bf16.mxu0 0
      %4625 = vmatpush2.bf16.xpose.msra.mxu0 0
      %4626 = vmatprep.subr.bf16.mxu0 0
      %4627 = vmatpush2.bf16.xpose.msra.mxu0 0
      %4628 = vmatprep.subr.bf16.mxu0 0
      %4629 = vmatpush2.bf16.xpose.msra.mxu0 0
      %4630 = vmatprep.subr.bf16.mxu0 0
      %4631 = vmatpush2.bf16.xpose.msra.mxu0 0
      %4632 = vmatprep.subr.bf16.mxu0 0
      %4633 = vmatpush2.bf16.xpose.msra.mxu0 0
      %4634 = vmatprep.subr.bf16.mxu0 0
      %4635 = vmatpush2.bf16.xpose.msra.mxu0 0
      %4636 = vmatprep.subr.bf16.mxu0 0
      %4637 = vmatpush2.bf16.xpose.msra.mxu0 0
      %4638 = vmatprep.mubr.bf16.mxu0 0
      %4639 = vmatmul.mubr.bf16.gmra.mxu0 %v4601
      %v4640 = vpop.f32.mrf.mxu0
      %v4641 = vadd.f32 0.0, %v4640
      %v4642 = vpop.f32.mrf.mxu0
      %v4643 = vpop.f32.mrf.mxu0
      %v4644 = vpop.f32.mrf.mxu0
      %4645 = vdwg.mxu0
      %v4646 = vsel %vm1973, -1e+18, %v4291
      %v4647 = vsel %vm1974, -1e+18, %v4341
      %v4648 = vsel %vm1975, -1e+18, %v4391
      %v4649 = vsel %vm1976, -1e+18, %v4441
      %v4650 = vsel %vm1977, -1e+18, %v4491
      %v4651 = vsel %vm1978, -1e+18, %v4541
      %v4652 = vsel %vm1979, -1e+18, %v4591
      %v4653 = vsel %vm1980, -1e+18, %v4641
      %v4654 = vsel %vm1543, %v4646, -inf
      %4655 = vmax.xlane.f32.xlu0 %v4654
      %v4656 = vpop.xlane.xlu0 %4655
      %v4657 = vsel %vm1543, %v4647, -inf
      %4658 = vmax.xlane.f32.xlu0 %v4657
      %v4659 = vpop.xlane.xlu0 %4658
      %v4660 = vsel %vm1543, %v4648, -inf
      %4661 = vmax.xlane.f32.xlu0 %v4660
      %v4662 = vpop.xlane.xlu0 %4661
      %v4663 = vsel %vm1543, %v4649, -inf
      %4664 = vmax.xlane.f32.xlu0 %v4663
      %v4665 = vpop.xlane.xlu0 %4664
      %v4666 = vsel %vm1543, %v4650, -inf
      %4667 = vmax.xlane.f32.xlu0 %v4666
      %v4668 = vpop.xlane.xlu0 %4667
      %v4669 = vsel %vm1543, %v4651, -inf
      %4670 = vmax.xlane.f32.xlu0 %v4669
      %v4671 = vpop.xlane.xlu0 %4670
      %v4672 = vsel %vm1543, %v4652, -inf
      %4673 = vmax.xlane.f32.xlu0 %v4672
      %v4674 = vpop.xlane.xlu0 %4673
      %v4675 = vsel %vm1543, %v4653, -inf
      %4676 = vmax.xlane.f32.xlu0 %v4675
      %v4677 = vpop.xlane.xlu0 %4676
      %v4678 = vsub.f32 %v4646, %v4656
      %v4679 = vsub.f32 %v4647, %v4659
      %v4680 = vsub.f32 %v4648, %v4662
      %v4681 = vsub.f32 %v4649, %v4665
      %v4682 = vsub.f32 %v4650, %v4668
      %v4683 = vsub.f32 %v4651, %v4671
      %v4684 = vsub.f32 %v4652, %v4674
      %v4685 = vsub.f32 %v4653, %v4677
      %v4686 = vmul.f32 %v4678, 1.442695
      %v4687 = vpow.pop %v4686
      %v4688 = vmul.f32 %v4679, 1.442695
      %v4689 = vpow.pop %v4688
      %v4690 = vmul.f32 %v4680, 1.442695
      %v4691 = vpow.pop %v4690
      %v4692 = vmul.f32 %v4681, 1.442695
      %v4693 = vpow.pop %v4692
      %v4694 = vmul.f32 %v4682, 1.442695
      %v4695 = vpow.pop %v4694
      %v4696 = vmul.f32 %v4683, 1.442695
      %v4697 = vpow.pop %v4696
      %v4698 = vmul.f32 %v4684, 1.442695
      %v4699 = vpow.pop %v4698
      %v4700 = vmul.f32 %v4685, 1.442695
      %v4701 = vpow.pop %v4700
      %v4702 = vsel %vm1543, %v4687, 0.0
      %4703 = vadd.xlane.f32.xlu0 %v4702
      %v4704 = vpop.xlane.xlu0 %4703
      %v4705 = vsel %vm1543, %v4689, 0.0
      %4706 = vadd.xlane.f32.xlu0 %v4705
      %v4707 = vpop.xlane.xlu0 %4706
      %v4708 = vsel %vm1543, %v4691, 0.0
      %4709 = vadd.xlane.f32.xlu0 %v4708
      %v4710 = vpop.xlane.xlu0 %4709
      %v4711 = vsel %vm1543, %v4693, 0.0
      %4712 = vadd.xlane.f32.xlu0 %v4711
      %v4713 = vpop.xlane.xlu0 %4712
      %v4714 = vsel %vm1543, %v4695, 0.0
      %4715 = vadd.xlane.f32.xlu0 %v4714
      %v4716 = vpop.xlane.xlu0 %4715
      %v4717 = vsel %vm1543, %v4697, 0.0
      %4718 = vadd.xlane.f32.xlu0 %v4717
      %v4719 = vpop.xlane.xlu0 %4718
      %v4720 = vsel %vm1543, %v4699, 0.0
      %4721 = vadd.xlane.f32.xlu0 %v4720
      %v4722 = vpop.xlane.xlu0 %4721
      %v4723 = vsel %vm1543, %v4701, 0.0
      %4724 = vadd.xlane.f32.xlu0 %v4723
      %v4725 = vpop.xlane.xlu0 %4724
      %v4726 = vrcp.pop %v4704
      %v4727 = vrcp.pop %v4707
      %v4728 = vrcp.pop %v4710
      %v4729 = vrcp.pop %v4713
      %v4730 = vrcp.pop %v4716
      %v4731 = vrcp.pop %v4719
      %v4732 = vrcp.pop %v4722
      %v4733 = vrcp.pop %v4725
      %v4734 = vmul.f32 %v4687, %v4726
      %v4735 = vmul.f32 %v4689, %v4727
      %v4736 = vmul.f32 %v4691, %v4728
      %v4737 = vmul.f32 %v4693, %v4729
      %v4738 = vmul.f32 %v4695, %v4730
      %v4739 = vmul.f32 %v4697, %v4731
      %v4740 = vmul.f32 %v4699, %v4732
      %v4741 = vmul.f32 %v4701, %v4733
      %v4742 = vpack.c.bf16 %v4734, %v4734
      %v4743 = vpack.c.bf16 %v4735, %v4735
      %v4744 = vpack.c.bf16 %v4736, %v4736
      %v4745 = vpack.c.bf16 %v4737, %v4737
      %v4746 = vpack.c.bf16 %v4738, %v4738
      %v4747 = vpack.c.bf16 %v4739, %v4739
      %v4748 = vpack.c.bf16 %v4740, %v4740
      %v4749 = vpack.c.bf16 %v4741, %v4741
      %4750 = vrot.lane.b32.xlu0 %v1532, 40
      %v4751 = vpop.permute.xlu0 %4750
      %v4753 = vsel %vm1543, %v4742, 0
      %v4756 = vsel %vm2090, %v4751, 0
      %4758 = vmatprep.subr.bf16.mxu0 0
      %4759 = vmatpush1.bf16.msra.mxu0 0
      %4760 = vmatprep.subr.bf16.mxu0 0
      %4761 = vmatpush1.bf16.msra.mxu0 0
      %4762 = vmatprep.subr.bf16.mxu0 0
      %4763 = vmatpush1.bf16.msra.mxu0 0
      %4764 = vmatprep.subr.bf16.mxu0 0
      %4765 = vmatpush1.bf16.msra.mxu0 0
      %4766 = vmatprep.subr.bf16.mxu0 0
      %4767 = vmatpush1.bf16.msra.mxu0 0
      %4768 = vmatprep.subr.bf16.mxu0 0
      %4769 = vmatpush1.bf16.msra.mxu0 0
      %4770 = vmatprep.subr.bf16.mxu0 0
      %4771 = vmatpush1.bf16.msra.mxu0 0
      %4772 = vmatprep.subr.bf16.mxu0 0
      %4773 = vmatpush1.bf16.msra.mxu0 %v4756
      %4774 = vmatprep.subr.bf16.mxu0 0
      %4775 = vmatpush2.bf16.msra.mxu0 0
      %4776 = vmatprep.subr.bf16.mxu0 0
      %4777 = vmatpush2.bf16.msra.mxu0 0
      %4778 = vmatprep.subr.bf16.mxu0 0
      %4779 = vmatpush2.bf16.msra.mxu0 0
      %4780 = vmatprep.subr.bf16.mxu0 0
      %4781 = vmatpush2.bf16.msra.mxu0 0
      %4782 = vmatprep.subr.bf16.mxu0 0
      %4783 = vmatpush2.bf16.msra.mxu0 0
      %4784 = vmatprep.subr.bf16.mxu0 0
      %4785 = vmatpush2.bf16.msra.mxu0 0
      %4786 = vmatprep.subr.bf16.mxu0 0
      %4787 = vmatpush2.bf16.msra.mxu0 0
      %4788 = vmatprep.subr.bf16.mxu0 0
      %4789 = vmatpush2.bf16.msra.mxu0 0
      %4790 = vmatprep.mubr.bf16.mxu0 0
      %4791 = vmatmul.mubr.bf16.gmra.mxu0 %v4753
      %v4792 = vpop.f32.mrf.mxu0
      %v4793 = vadd.f32 0.0, %v4792
      %v4794 = vpop.f32.mrf.mxu0
      %v4795 = vpop.f32.mrf.mxu0
      %v4796 = vpop.f32.mrf.mxu0
      %4797 = vdwg.mxu0
      %4798 = vrot.lane.b32.xlu0 %v1533, 40
      %v4799 = vpop.permute.xlu0 %4798
      %v4801 = vsel %vm1543, %v4743, 0
      %v4804 = vsel %vm2090, %v4799, 0
      %4806 = vmatprep.subr.bf16.mxu0 0
      %4807 = vmatpush1.bf16.msra.mxu0 0
      %4808 = vmatprep.subr.bf16.mxu0 0
      %4809 = vmatpush1.bf16.msra.mxu0 0
      %4810 = vmatprep.subr.bf16.mxu0 0
      %4811 = vmatpush1.bf16.msra.mxu0 0
      %4812 = vmatprep.subr.bf16.mxu0 0
      %4813 = vmatpush1.bf16.msra.mxu0 0
      %4814 = vmatprep.subr.bf16.mxu0 0
      %4815 = vmatpush1.bf16.msra.mxu0 0
      %4816 = vmatprep.subr.bf16.mxu0 0
      %4817 = vmatpush1.bf16.msra.mxu0 0
      %4818 = vmatprep.subr.bf16.mxu0 0
      %4819 = vmatpush1.bf16.msra.mxu0 0
      %4820 = vmatprep.subr.bf16.mxu0 0
      %4821 = vmatpush1.bf16.msra.mxu0 %v4804
      %4822 = vmatprep.subr.bf16.mxu0 0
      %4823 = vmatpush2.bf16.msra.mxu0 0
      %4824 = vmatprep.subr.bf16.mxu0 0
      %4825 = vmatpush2.bf16.msra.mxu0 0
      %4826 = vmatprep.subr.bf16.mxu0 0
      %4827 = vmatpush2.bf16.msra.mxu0 0
      %4828 = vmatprep.subr.bf16.mxu0 0
      %4829 = vmatpush2.bf16.msra.mxu0 0
      %4830 = vmatprep.subr.bf16.mxu0 0
      %4831 = vmatpush2.bf16.msra.mxu0 0
      %4832 = vmatprep.subr.bf16.mxu0 0
      %4833 = vmatpush2.bf16.msra.mxu0 0
      %4834 = vmatprep.subr.bf16.mxu0 0
      %4835 = vmatpush2.bf16.msra.mxu0 0
      %4836 = vmatprep.subr.bf16.mxu0 0
      %4837 = vmatpush2.bf16.msra.mxu0 0
      %4838 = vmatprep.mubr.bf16.mxu0 0
      %4839 = vmatmul.mubr.bf16.gmra.mxu0 %v4801
      %v4840 = vpop.f32.mrf.mxu0
      %v4841 = vadd.f32 0.0, %v4840
      %v4842 = vpop.f32.mrf.mxu0
      %v4843 = vpop.f32.mrf.mxu0
      %v4844 = vpop.f32.mrf.mxu0
      %4845 = vdwg.mxu0
      %4846 = vrot.lane.b32.xlu0 %v1534, 40
      %v4847 = vpop.permute.xlu0 %4846
      %v4849 = vsel %vm1543, %v4744, 0
      %v4852 = vsel %vm2090, %v4847, 0
      %4854 = vmatprep.subr.bf16.mxu0 0
      %4855 = vmatpush1.bf16.msra.mxu0 0
      %4856 = vmatprep.subr.bf16.mxu0 0
      %4857 = vmatpush1.bf16.msra.mxu0 0
      %4858 = vmatprep.subr.bf16.mxu0 0
      %4859 = vmatpush1.bf16.msra.mxu0 0
      %4860 = vmatprep.subr.bf16.mxu0 0
      %4861 = vmatpush1.bf16.msra.mxu0 0
      %4862 = vmatprep.subr.bf16.mxu0 0
      %4863 = vmatpush1.bf16.msra.mxu0 0
      %4864 = vmatprep.subr.bf16.mxu0 0
      %4865 = vmatpush1.bf16.msra.mxu0 0
      %4866 = vmatprep.subr.bf16.mxu0 0
      %4867 = vmatpush1.bf16.msra.mxu0 0
      %4868 = vmatprep.subr.bf16.mxu0 0
      %4869 = vmatpush1.bf16.msra.mxu0 %v4852
      %4870 = vmatprep.subr.bf16.mxu0 0
      %4871 = vmatpush2.bf16.msra.mxu0 0
      %4872 = vmatprep.subr.bf16.mxu0 0
      %4873 = vmatpush2.bf16.msra.mxu0 0
      %4874 = vmatprep.subr.bf16.mxu0 0
      %4875 = vmatpush2.bf16.msra.mxu0 0
      %4876 = vmatprep.subr.bf16.mxu0 0
      %4877 = vmatpush2.bf16.msra.mxu0 0
      %4878 = vmatprep.subr.bf16.mxu0 0
      %4879 = vmatpush2.bf16.msra.mxu0 0
      %4880 = vmatprep.subr.bf16.mxu0 0
      %4881 = vmatpush2.bf16.msra.mxu0 0
      %4882 = vmatprep.subr.bf16.mxu0 0
      %4883 = vmatpush2.bf16.msra.mxu0 0
      %4884 = vmatprep.subr.bf16.mxu0 0
      %4885 = vmatpush2.bf16.msra.mxu0 0
      %4886 = vmatprep.mubr.bf16.mxu0 0
      %4887 = vmatmul.mubr.bf16.gmra.mxu0 %v4849
      %v4888 = vpop.f32.mrf.mxu0
      %v4889 = vadd.f32 0.0, %v4888
      %v4890 = vpop.f32.mrf.mxu0
      %v4891 = vpop.f32.mrf.mxu0
      %v4892 = vpop.f32.mrf.mxu0
      %4893 = vdwg.mxu0
      %4894 = vrot.lane.b32.xlu0 %v1535, 40
      %v4895 = vpop.permute.xlu0 %4894
      %v4897 = vsel %vm1543, %v4745, 0
      %v4900 = vsel %vm2090, %v4895, 0
      %4902 = vmatprep.subr.bf16.mxu0 0
      %4903 = vmatpush1.bf16.msra.mxu0 0
      %4904 = vmatprep.subr.bf16.mxu0 0
      %4905 = vmatpush1.bf16.msra.mxu0 0
      %4906 = vmatprep.subr.bf16.mxu0 0
      %4907 = vmatpush1.bf16.msra.mxu0 0
      %4908 = vmatprep.subr.bf16.mxu0 0
      %4909 = vmatpush1.bf16.msra.mxu0 0
      %4910 = vmatprep.subr.bf16.mxu0 0
      %4911 = vmatpush1.bf16.msra.mxu0 0
      %4912 = vmatprep.subr.bf16.mxu0 0
      %4913 = vmatpush1.bf16.msra.mxu0 0
      %4914 = vmatprep.subr.bf16.mxu0 0
      %4915 = vmatpush1.bf16.msra.mxu0 0
      %4916 = vmatprep.subr.bf16.mxu0 0
      %4917 = vmatpush1.bf16.msra.mxu0 %v4900
      %4918 = vmatprep.subr.bf16.mxu0 0
      %4919 = vmatpush2.bf16.msra.mxu0 0
      %4920 = vmatprep.subr.bf16.mxu0 0
      %4921 = vmatpush2.bf16.msra.mxu0 0
      %4922 = vmatprep.subr.bf16.mxu0 0
      %4923 = vmatpush2.bf16.msra.mxu0 0
      %4924 = vmatprep.subr.bf16.mxu0 0
      %4925 = vmatpush2.bf16.msra.mxu0 0
      %4926 = vmatprep.subr.bf16.mxu0 0
      %4927 = vmatpush2.bf16.msra.mxu0 0
      %4928 = vmatprep.subr.bf16.mxu0 0
      %4929 = vmatpush2.bf16.msra.mxu0 0
      %4930 = vmatprep.subr.bf16.mxu0 0
      %4931 = vmatpush2.bf16.msra.mxu0 0
      %4932 = vmatprep.subr.bf16.mxu0 0
      %4933 = vmatpush2.bf16.msra.mxu0 0
      %4934 = vmatprep.mubr.bf16.mxu0 0
      %4935 = vmatmul.mubr.bf16.gmra.mxu0 %v4897
      %v4936 = vpop.f32.mrf.mxu0
      %v4937 = vadd.f32 0.0, %v4936
      %v4938 = vpop.f32.mrf.mxu0
      %v4939 = vpop.f32.mrf.mxu0
      %v4940 = vpop.f32.mrf.mxu0
      %4941 = vdwg.mxu0
      %4942 = vrot.lane.b32.xlu0 %v1536, 40
      %v4943 = vpop.permute.xlu0 %4942
      %v4945 = vsel %vm1543, %v4746, 0
      %v4948 = vsel %vm2090, %v4943, 0
      %4950 = vmatprep.subr.bf16.mxu0 0
      %4951 = vmatpush1.bf16.msra.mxu0 0
      %4952 = vmatprep.subr.bf16.mxu0 0
      %4953 = vmatpush1.bf16.msra.mxu0 0
      %4954 = vmatprep.subr.bf16.mxu0 0
      %4955 = vmatpush1.bf16.msra.mxu0 0
      %4956 = vmatprep.subr.bf16.mxu0 0
      %4957 = vmatpush1.bf16.msra.mxu0 0
      %4958 = vmatprep.subr.bf16.mxu0 0
      %4959 = vmatpush1.bf16.msra.mxu0 0
      %4960 = vmatprep.subr.bf16.mxu0 0
      %4961 = vmatpush1.bf16.msra.mxu0 0
      %4962 = vmatprep.subr.bf16.mxu0 0
      %4963 = vmatpush1.bf16.msra.mxu0 0
      %4964 = vmatprep.subr.bf16.mxu0 0
      %4965 = vmatpush1.bf16.msra.mxu0 %v4948
      %4966 = vmatprep.subr.bf16.mxu0 0
      %4967 = vmatpush2.bf16.msra.mxu0 0
      %4968 = vmatprep.subr.bf16.mxu0 0
      %4969 = vmatpush2.bf16.msra.mxu0 0
      %4970 = vmatprep.subr.bf16.mxu0 0
      %4971 = vmatpush2.bf16.msra.mxu0 0
      %4972 = vmatprep.subr.bf16.mxu0 0
      %4973 = vmatpush2.bf16.msra.mxu0 0
      %4974 = vmatprep.subr.bf16.mxu0 0
      %4975 = vmatpush2.bf16.msra.mxu0 0
      %4976 = vmatprep.subr.bf16.mxu0 0
      %4977 = vmatpush2.bf16.msra.mxu0 0
      %4978 = vmatprep.subr.bf16.mxu0 0
      %4979 = vmatpush2.bf16.msra.mxu0 0
      %4980 = vmatprep.subr.bf16.mxu0 0
      %4981 = vmatpush2.bf16.msra.mxu0 0
      %4982 = vmatprep.mubr.bf16.mxu0 0
      %4983 = vmatmul.mubr.bf16.gmra.mxu0 %v4945
      %v4984 = vpop.f32.mrf.mxu0
      %v4985 = vadd.f32 0.0, %v4984
      %v4986 = vpop.f32.mrf.mxu0
      %v4987 = vpop.f32.mrf.mxu0
      %v4988 = vpop.f32.mrf.mxu0
      %4989 = vdwg.mxu0
      %4990 = vrot.lane.b32.xlu0 %v1537, 40
      %v4991 = vpop.permute.xlu0 %4990
      %v4993 = vsel %vm1543, %v4747, 0
      %v4996 = vsel %vm2090, %v4991, 0
      %4998 = vmatprep.subr.bf16.mxu0 0
      %4999 = vmatpush1.bf16.msra.mxu0 0
      %5000 = vmatprep.subr.bf16.mxu0 0
      %5001 = vmatpush1.bf16.msra.mxu0 0
      %5002 = vmatprep.subr.bf16.mxu0 0
      %5003 = vmatpush1.bf16.msra.mxu0 0
      %5004 = vmatprep.subr.bf16.mxu0 0
      %5005 = vmatpush1.bf16.msra.mxu0 0
      %5006 = vmatprep.subr.bf16.mxu0 0
      %5007 = vmatpush1.bf16.msra.mxu0 0
      %5008 = vmatprep.subr.bf16.mxu0 0
      %5009 = vmatpush1.bf16.msra.mxu0 0
      %5010 = vmatprep.subr.bf16.mxu0 0
      %5011 = vmatpush1.bf16.msra.mxu0 0
      %5012 = vmatprep.subr.bf16.mxu0 0
      %5013 = vmatpush1.bf16.msra.mxu0 %v4996
      %5014 = vmatprep.subr.bf16.mxu0 0
      %5015 = vmatpush2.bf16.msra.mxu0 0
      %5016 = vmatprep.subr.bf16.mxu0 0
      %5017 = vmatpush2.bf16.msra.mxu0 0
      %5018 = vmatprep.subr.bf16.mxu0 0
      %5019 = vmatpush2.bf16.msra.mxu0 0
      %5020 = vmatprep.subr.bf16.mxu0 0
      %5021 = vmatpush2.bf16.msra.mxu0 0
      %5022 = vmatprep.subr.bf16.mxu0 0
      %5023 = vmatpush2.bf16.msra.mxu0 0
      %5024 = vmatprep.subr.bf16.mxu0 0
      %5025 = vmatpush2.bf16.msra.mxu0 0
      %5026 = vmatprep.subr.bf16.mxu0 0
      %5027 = vmatpush2.bf16.msra.mxu0 0
      %5028 = vmatprep.subr.bf16.mxu0 0
      %5029 = vmatpush2.bf16.msra.mxu0 0
      %5030 = vmatprep.mubr.bf16.mxu0 0
      %5031 = vmatmul.mubr.bf16.gmra.mxu0 %v4993
      %v5032 = vpop.f32.mrf.mxu0
      %v5033 = vadd.f32 0.0, %v5032
      %v5034 = vpop.f32.mrf.mxu0
      %v5035 = vpop.f32.mrf.mxu0
      %v5036 = vpop.f32.mrf.mxu0
      %5037 = vdwg.mxu0
      %5038 = vrot.lane.b32.xlu0 %v1538, 40
      %v5039 = vpop.permute.xlu0 %5038
      %v5041 = vsel %vm1543, %v4748, 0
      %v5044 = vsel %vm2090, %v5039, 0
      %5046 = vmatprep.subr.bf16.mxu0 0
      %5047 = vmatpush1.bf16.msra.mxu0 0
      %5048 = vmatprep.subr.bf16.mxu0 0
      %5049 = vmatpush1.bf16.msra.mxu0 0
      %5050 = vmatprep.subr.bf16.mxu0 0
      %5051 = vmatpush1.bf16.msra.mxu0 0
      %5052 = vmatprep.subr.bf16.mxu0 0
      %5053 = vmatpush1.bf16.msra.mxu0 0
      %5054 = vmatprep.subr.bf16.mxu0 0
      %5055 = vmatpush1.bf16.msra.mxu0 0
      %5056 = vmatprep.subr.bf16.mxu0 0
      %5057 = vmatpush1.bf16.msra.mxu0 0
      %5058 = vmatprep.subr.bf16.mxu0 0
      %5059 = vmatpush1.bf16.msra.mxu0 0
      %5060 = vmatprep.subr.bf16.mxu0 0
      %5061 = vmatpush1.bf16.msra.mxu0 %v5044
      %5062 = vmatprep.subr.bf16.mxu0 0
      %5063 = vmatpush2.bf16.msra.mxu0 0
      %5064 = vmatprep.subr.bf16.mxu0 0
      %5065 = vmatpush2.bf16.msra.mxu0 0
      %5066 = vmatprep.subr.bf16.mxu0 0
      %5067 = vmatpush2.bf16.msra.mxu0 0
      %5068 = vmatprep.subr.bf16.mxu0 0
      %5069 = vmatpush2.bf16.msra.mxu0 0
      %5070 = vmatprep.subr.bf16.mxu0 0
      %5071 = vmatpush2.bf16.msra.mxu0 0
      %5072 = vmatprep.subr.bf16.mxu0 0
      %5073 = vmatpush2.bf16.msra.mxu0 0
      %5074 = vmatprep.subr.bf16.mxu0 0
      %5075 = vmatpush2.bf16.msra.mxu0 0
      %5076 = vmatprep.subr.bf16.mxu0 0
      %5077 = vmatpush2.bf16.msra.mxu0 0
      %5078 = vmatprep.mubr.bf16.mxu0 0
      %5079 = vmatmul.mubr.bf16.gmra.mxu0 %v5041
      %v5080 = vpop.f32.mrf.mxu0
      %v5081 = vadd.f32 0.0, %v5080
      %v5082 = vpop.f32.mrf.mxu0
      %v5083 = vpop.f32.mrf.mxu0
      %v5084 = vpop.f32.mrf.mxu0
      %5085 = vdwg.mxu0
      %5086 = vrot.lane.b32.xlu0 %v1539, 40
      %v5087 = vpop.permute.xlu0 %5086
      %v5089 = vsel %vm1543, %v4749, 0
      %v5092 = vsel %vm2090, %v5087, 0
      %5094 = vmatprep.subr.bf16.mxu0 0
      %5095 = vmatpush1.bf16.msra.mxu0 0
      %5096 = vmatprep.subr.bf16.mxu0 0
      %5097 = vmatpush1.bf16.msra.mxu0 0
      %5098 = vmatprep.subr.bf16.mxu0 0
      %5099 = vmatpush1.bf16.msra.mxu0 0
      %5100 = vmatprep.subr.bf16.mxu0 0
      %5101 = vmatpush1.bf16.msra.mxu0 0
      %5102 = vmatprep.subr.bf16.mxu0 0
      %5103 = vmatpush1.bf16.msra.mxu0 0
      %5104 = vmatprep.subr.bf16.mxu0 0
      %5105 = vmatpush1.bf16.msra.mxu0 0
      %5106 = vmatprep.subr.bf16.mxu0 0
      %5107 = vmatpush1.bf16.msra.mxu0 0
      %5108 = vmatprep.subr.bf16.mxu0 0
      %5109 = vmatpush1.bf16.msra.mxu0 %v5092
      %5110 = vmatprep.subr.bf16.mxu0 0
      %5111 = vmatpush2.bf16.msra.mxu0 0
      %5112 = vmatprep.subr.bf16.mxu0 0
      %5113 = vmatpush2.bf16.msra.mxu0 0
      %5114 = vmatprep.subr.bf16.mxu0 0
      %5115 = vmatpush2.bf16.msra.mxu0 0
      %5116 = vmatprep.subr.bf16.mxu0 0
      %5117 = vmatpush2.bf16.msra.mxu0 0
      %5118 = vmatprep.subr.bf16.mxu0 0
      %5119 = vmatpush2.bf16.msra.mxu0 0
      %5120 = vmatprep.subr.bf16.mxu0 0
      %5121 = vmatpush2.bf16.msra.mxu0 0
      %5122 = vmatprep.subr.bf16.mxu0 0
      %5123 = vmatpush2.bf16.msra.mxu0 0
      %5124 = vmatprep.subr.bf16.mxu0 0
      %5125 = vmatpush2.bf16.msra.mxu0 0
      %5126 = vmatprep.mubr.bf16.mxu0 0
      %5127 = vmatmul.mubr.bf16.gmra.mxu0 %v5089
      %v5128 = vpop.f32.mrf.mxu0
      %v5129 = vadd.f32 0.0, %v5128
      %v5130 = vpop.f32.mrf.mxu0
      %v5131 = vpop.f32.mrf.mxu0
      %v5132 = vpop.f32.mrf.mxu0
      %5133 = vdwg.mxu0
      %5142 = vrot.lane.b32.xlu0 %v3017, 8
      %v5143 = vpop.permute.xlu0 %5142
      %5144 = vrot.lane.b32.xlu0 %v3065, 8
      %v5145 = vpop.permute.xlu0 %5144
      %5146 = vrot.lane.b32.xlu0 %v3113, 8
      %v5147 = vpop.permute.xlu0 %5146
      %5148 = vrot.lane.b32.xlu0 %v3161, 8
      %v5149 = vpop.permute.xlu0 %5148
      %5150 = vrot.lane.b32.xlu0 %v3209, 8
      %v5151 = vpop.permute.xlu0 %5150
      %5152 = vrot.lane.b32.xlu0 %v3257, 8
      %v5153 = vpop.permute.xlu0 %5152
      %5154 = vrot.lane.b32.xlu0 %v3305, 8
      %v5155 = vpop.permute.xlu0 %5154
      %5156 = vrot.lane.b32.xlu0 %v3353, 8
      %v5157 = vpop.permute.xlu0 %5156
      %5174 = vrot.lane.b32.xlu0 %v3905, 16
      %v5175 = vpop.permute.xlu0 %5174
      %5176 = vrot.lane.b32.xlu0 %v3953, 16
      %v5177 = vpop.permute.xlu0 %5176
      %5178 = vrot.lane.b32.xlu0 %v4001, 16
      %v5179 = vpop.permute.xlu0 %5178
      %5180 = vrot.lane.b32.xlu0 %v4049, 16
      %v5181 = vpop.permute.xlu0 %5180
      %5182 = vrot.lane.b32.xlu0 %v4097, 16
      %v5183 = vpop.permute.xlu0 %5182
      %5184 = vrot.lane.b32.xlu0 %v4145, 16
      %v5185 = vpop.permute.xlu0 %5184
      %5186 = vrot.lane.b32.xlu0 %v4193, 16
      %v5187 = vpop.permute.xlu0 %5186
      %5188 = vrot.lane.b32.xlu0 %v4241, 16
      %v5189 = vpop.permute.xlu0 %5188
      %5206 = vrot.lane.b32.xlu0 %v4793, 24
      %v5207 = vpop.permute.xlu0 %5206
      %5208 = vrot.lane.b32.xlu0 %v4841, 24
      %v5209 = vpop.permute.xlu0 %5208
      %5210 = vrot.lane.b32.xlu0 %v4889, 24
      %v5211 = vpop.permute.xlu0 %5210
      %5212 = vrot.lane.b32.xlu0 %v4937, 24
      %v5213 = vpop.permute.xlu0 %5212
      %5214 = vrot.lane.b32.xlu0 %v4985, 24
      %v5215 = vpop.permute.xlu0 %5214
      %5216 = vrot.lane.b32.xlu0 %v5033, 24
      %v5217 = vpop.permute.xlu0 %5216
      %5218 = vrot.lane.b32.xlu0 %v5081, 24
      %v5219 = vpop.permute.xlu0 %5218
      %5220 = vrot.lane.b32.xlu0 %v5129, 24
      %v5221 = vpop.permute.xlu0 %5220
      %v5230 = vsel %vm1543, %v2129, %v5143
      %v5231 = vsel %vm1543, %v2177, %v5145
      %v5232 = vsel %vm1543, %v2225, %v5147
      %v5233 = vsel %vm1543, %v2273, %v5149
      %v5234 = vsel %vm1543, %v2321, %v5151
      %v5235 = vsel %vm1543, %v2369, %v5153
      %v5236 = vsel %vm1543, %v2417, %v5155
      %v5237 = vsel %vm1543, %v2465, %v5157
      %vm5238 = vcmask 130048
      %v5239 = vsel %vm5238, %v5230, %v5175
      %v5240 = vsel %vm5238, %v5231, %v5177
      %v5241 = vsel %vm5238, %v5232, %v5179
      %v5242 = vsel %vm5238, %v5233, %v5181
      %v5243 = vsel %vm5238, %v5234, %v5183
      %v5244 = vsel %vm5238, %v5235, %v5185
      %v5245 = vsel %vm5238, %v5236, %v5187
      %v5246 = vsel %vm5238, %v5237, %v5189
      %vm5247 = vcmask 195584
      %v5248 = vsel %vm5247, %v5239, %v5207
      %v5249 = vsel %vm5247, %v5240, %v5209
      %v5250 = vsel %vm5247, %v5241, %v5211
      %v5251 = vsel %vm5247, %v5242, %v5213
      %v5252 = vsel %vm5247, %v5243, %v5215
      %v5253 = vsel %vm5247, %v5244, %v5217
      %v5254 = vsel %vm5247, %v5245, %v5219
      %v5255 = vsel %vm5247, %v5246, %v5221
      %v5256 = vpack.c.bf16 %v5249, %v5248
      %v5257 = vpack.c.bf16 %v5251, %v5250
      %v5258 = vpack.c.bf16 %v5253, %v5252
      %v5259 = vpack.c.bf16 %v5255, %v5254
      %v5260 = vld [vmem:[%s1210] sm:$0xf]
      %v5261 = vld [vmem:[%s1210 + $0x4] sm:$0xf]
      %v5262 = vld [vmem:[%s1210 + $0x8] sm:$0xf]
      %v5263 = vld [vmem:[%s1210 + $0xc] sm:$0xf]
      %v5264 = vld [vmem:[%s1213] sm:$0x1]
      %v5266 = vlaneseq
      %v5267 = vshrl.u32 %v5266, 7
      %v5268 = vsub.s32 0, %v5267
      %v5269 = vrot.slane %v5264, %v5268
      %v5275 = vunpack.c.l.b16 %v5260
      %v5276 = vunpack.c.l.b16 %v5261
      %v5277 = vunpack.c.l.b16 %v5262
      %v5278 = vunpack.c.l.b16 %v5263
      %v5279 = vpack.c.b16 %v5276, %v5275
      %v5280 = vpack.c.b16 %v5278, %v5277
      %v5284 = vsel %vm1294, %v5256, 0
      %v5287 = vsel %vm1294, %v5257, 0
      %v5290 = vsel %vm1294, %v5258, 0
      %v5293 = vsel %vm1294, %v5259, 0
      %5295 = vmatprep.subr.bf16.mxu0 0
      %5296 = vmatpush1.bf16.msra.mxu0 0
      %5297 = vmatprep.subr.bf16.mxu0 0
      %5298 = vmatpush1.bf16.msra.mxu0 0
      %5299 = vmatprep.subr.bf16.mxu0 0
      %5300 = vmatpush1.bf16.msra.mxu0 0
      %5301 = vmatprep.subr.bf16.mxu0 0
      %5302 = vmatpush1.bf16.msra.mxu0 0
      %5303 = vmatprep.subr.bf16.mxu0 0
      %5304 = vmatpush1.bf16.msra.mxu0 0
      %5305 = vmatprep.subr.bf16.mxu0 0
      %5306 = vmatpush1.bf16.msra.mxu0 0
      %5307 = vmatprep.subr.bf16.mxu0 0
      %5308 = vmatpush1.bf16.msra.mxu0 %v5280
      %5309 = vmatprep.subr.bf16.mxu0 0
      %5310 = vmatpush1.bf16.msra.mxu0 %v5279
      %5311 = vmatprep.subr.bf16.mxu0 0
      %5312 = vmatpush2.bf16.msra.mxu0 0
      %5313 = vmatprep.subr.bf16.mxu0 0
      %5314 = vmatpush2.bf16.msra.mxu0 0
      %5315 = vmatprep.subr.bf16.mxu0 0
      %5316 = vmatpush2.bf16.msra.mxu0 0
      %5317 = vmatprep.subr.bf16.mxu0 0
      %5318 = vmatpush2.bf16.msra.mxu0 0
      %5319 = vmatprep.subr.bf16.mxu0 0
      %5320 = vmatpush2.bf16.msra.mxu0 0
      %5321 = vmatprep.subr.bf16.mxu0 0
      %5322 = vmatpush2.bf16.msra.mxu0 0
      %5323 = vmatprep.subr.bf16.mxu0 0
      %5324 = vmatpush2.bf16.msra.mxu0 0
      %5325 = vmatprep.subr.bf16.mxu0 0
      %5326 = vmatpush2.bf16.msra.mxu0 0
      %5327 = vmatprep.mubr.bf16.mxu0 0
      %5328 = vmatmul.mubr.bf16.gmra.mxu0 %v5284
      %v5329 = vpop.f32.mrf.mxu0
      %v5330 = vadd.f32 %v5269, %v5329
      %v5331 = vpop.f32.mrf.mxu0
      %v5332 = vpop.f32.mrf.mxu0
      %v5333 = vadd.f32 %v5269, %v5332
      %v5334 = vpop.f32.mrf.mxu0
      %5335 = vmatprep.mubr.bf16.mxu0 0
      %5336 = vmatmul.mubr.bf16.gmra.mxu0 %v5287
      %v5337 = vpop.f32.mrf.mxu0
      %v5338 = vadd.f32 %v5269, %v5337
      %v5339 = vpop.f32.mrf.mxu0
      %v5340 = vpop.f32.mrf.mxu0
      %v5341 = vadd.f32 %v5269, %v5340
      %v5342 = vpop.f32.mrf.mxu0
      %5343 = vmatprep.mubr.bf16.mxu0 0
      %5344 = vmatmul.mubr.bf16.gmra.mxu0 %v5290
      %v5345 = vpop.f32.mrf.mxu0
      %v5346 = vadd.f32 %v5269, %v5345
      %v5347 = vpop.f32.mrf.mxu0
      %v5348 = vpop.f32.mrf.mxu0
      %v5349 = vadd.f32 %v5269, %v5348
      %v5350 = vpop.f32.mrf.mxu0
      %5351 = vmatprep.mubr.bf16.mxu0 0
      %5352 = vmatmul.mubr.bf16.gmra.mxu0 %v5293
      %v5353 = vpop.f32.mrf.mxu0
      %v5354 = vadd.f32 %v5269, %v5353
      %v5355 = vpop.f32.mrf.mxu0
      %v5356 = vpop.f32.mrf.mxu0
      %v5357 = vadd.f32 %v5269, %v5356
      %v5358 = vpop.f32.mrf.mxu0
      %5359 = vdwg.mxu0
      %v5360 = vadd.f32 %v5330, %v1284
      %v5361 = vadd.f32 %v5333, %v1285
      %v5362 = vadd.f32 %v5338, %v1286
      %v5363 = vadd.f32 %v5341, %v1287
      %v5364 = vadd.f32 %v5346, %v1288
      %v5365 = vadd.f32 %v5349, %v1289
      %v5366 = vadd.f32 %v5354, %v1290
      %v5367 = vadd.f32 %v5357, %v1291
      %v5368 = vld [vmem:[%s1216] sm:$0x1]
      %v5369 = vld [vmem:[%s1219] sm:$0x1]
      %v5370 = vsel %vm1294, %v5360, 0.0
      %5371 = vadd.xlane.f32.xlu0 %v5370
      %v5372 = vpop.xlane.xlu0 %5371
      %v5373 = vsel %vm1294, %v5361, 0.0
      %5374 = vadd.xlane.f32.xlu0 %v5373
      %v5375 = vpop.xlane.xlu0 %5374
      %v5376 = vsel %vm1294, %v5362, 0.0
      %5377 = vadd.xlane.f32.xlu0 %v5376
      %v5378 = vpop.xlane.xlu0 %5377
      %v5379 = vsel %vm1294, %v5363, 0.0
      %5380 = vadd.xlane.f32.xlu0 %v5379
      %v5381 = vpop.xlane.xlu0 %5380
      %v5382 = vsel %vm1294, %v5364, 0.0
      %5383 = vadd.xlane.f32.xlu0 %v5382
      %v5384 = vpop.xlane.xlu0 %5383
      %v5385 = vsel %vm1294, %v5365, 0.0
      %5386 = vadd.xlane.f32.xlu0 %v5385
      %v5387 = vpop.xlane.xlu0 %5386
      %v5388 = vsel %vm1294, %v5366, 0.0
      %5389 = vadd.xlane.f32.xlu0 %v5388
      %v5390 = vpop.xlane.xlu0 %5389
      %v5391 = vsel %vm1294, %v5367, 0.0
      %5392 = vadd.xlane.f32.xlu0 %v5391
      %v5393 = vpop.xlane.xlu0 %5392
      %v5394 = vmul.f32 %v5372, %v1319
      %v5395 = vmul.f32 %v5375, %v1319
      %v5396 = vmul.f32 %v5378, %v1319
      %v5397 = vmul.f32 %v5381, %v1319
      %v5398 = vmul.f32 %v5384, %v1319
      %v5399 = vmul.f32 %v5387, %v1319
      %v5400 = vmul.f32 %v5390, %v1319
      %v5401 = vmul.f32 %v5393, %v1319
      %v5402 = vsub.f32 %v5360, %v5394
      %v5403 = vsub.f32 %v5361, %v5395
      %v5404 = vsub.f32 %v5362, %v5396
      %v5405 = vsub.f32 %v5363, %v5397
      %v5406 = vsub.f32 %v5364, %v5398
      %v5407 = vsub.f32 %v5365, %v5399
      %v5408 = vsub.f32 %v5366, %v5400
      %v5409 = vsub.f32 %v5367, %v5401
      %v5410 = vmul.f32 %v5402, %v5402
      %v5411 = vmul.f32 %v5403, %v5403
      %v5412 = vmul.f32 %v5404, %v5404
      %v5413 = vmul.f32 %v5405, %v5405
      %v5414 = vmul.f32 %v5406, %v5406
      %v5415 = vmul.f32 %v5407, %v5407
      %v5416 = vmul.f32 %v5408, %v5408
      %v5417 = vmul.f32 %v5409, %v5409
      %v5418 = vsel %vm1294, %v5410, 0.0
      %5419 = vadd.xlane.f32.xlu0 %v5418
      %v5420 = vpop.xlane.xlu0 %5419
      %v5421 = vsel %vm1294, %v5411, 0.0
      %5422 = vadd.xlane.f32.xlu0 %v5421
      %v5423 = vpop.xlane.xlu0 %5422
      %v5424 = vsel %vm1294, %v5412, 0.0
      %5425 = vadd.xlane.f32.xlu0 %v5424
      %v5426 = vpop.xlane.xlu0 %5425
      %v5427 = vsel %vm1294, %v5413, 0.0
      %5428 = vadd.xlane.f32.xlu0 %v5427
      %v5429 = vpop.xlane.xlu0 %5428
      %v5430 = vsel %vm1294, %v5414, 0.0
      %5431 = vadd.xlane.f32.xlu0 %v5430
      %v5432 = vpop.xlane.xlu0 %5431
      %v5433 = vsel %vm1294, %v5415, 0.0
      %5434 = vadd.xlane.f32.xlu0 %v5433
      %v5435 = vpop.xlane.xlu0 %5434
      %v5436 = vsel %vm1294, %v5416, 0.0
      %5437 = vadd.xlane.f32.xlu0 %v5436
      %v5438 = vpop.xlane.xlu0 %5437
      %v5439 = vsel %vm1294, %v5417, 0.0
      %5440 = vadd.xlane.f32.xlu0 %v5439
      %v5441 = vpop.xlane.xlu0 %5440
      %v5442 = vmul.f32 %v5420, %v1319
      %v5443 = vmul.f32 %v5423, %v1319
      %v5444 = vmul.f32 %v5426, %v1319
      %v5445 = vmul.f32 %v5429, %v1319
      %v5446 = vmul.f32 %v5432, %v1319
      %v5447 = vmul.f32 %v5435, %v1319
      %v5448 = vmul.f32 %v5438, %v1319
      %v5449 = vmul.f32 %v5441, %v1319
      %v5450 = vadd.f32 %v5442, 1e-06
      %v5451 = vadd.f32 %v5443, 1e-06
      %v5452 = vadd.f32 %v5444, 1e-06
      %v5453 = vadd.f32 %v5445, 1e-06
      %v5454 = vadd.f32 %v5446, 1e-06
      %v5455 = vadd.f32 %v5447, 1e-06
      %v5456 = vadd.f32 %v5448, 1e-06
      %v5457 = vadd.f32 %v5449, 1e-06
      %v5458 = vrsqrt.pop %v5450
      %v5459 = vrsqrt.pop %v5451
      %v5460 = vrsqrt.pop %v5452
      %v5461 = vrsqrt.pop %v5453
      %v5462 = vrsqrt.pop %v5454
      %v5463 = vrsqrt.pop %v5455
      %v5464 = vrsqrt.pop %v5456
      %v5465 = vrsqrt.pop %v5457
      %v5466 = vmul.f32 %v5402, %v5458
      %v5467 = vmul.f32 %v5403, %v5459
      %v5468 = vmul.f32 %v5404, %v5460
      %v5469 = vmul.f32 %v5405, %v5461
      %v5470 = vmul.f32 %v5406, %v5462
      %v5471 = vmul.f32 %v5407, %v5463
      %v5472 = vmul.f32 %v5408, %v5464
      %v5473 = vmul.f32 %v5409, %v5465
      %v5475 = vlaneseq
      %v5476 = vshrl.u32 %v5475, 7
      %v5477 = vsub.s32 0, %v5476
      %v5478 = vrot.slane %v5368, %v5477
      %v5480 = vmul.f32 %v5466, %v5478
      %v5481 = vmul.f32 %v5467, %v5478
      %v5482 = vmul.f32 %v5468, %v5478
      %v5483 = vmul.f32 %v5469, %v5478
      %v5484 = vmul.f32 %v5470, %v5478
      %v5485 = vmul.f32 %v5471, %v5478
      %v5486 = vmul.f32 %v5472, %v5478
      %v5487 = vmul.f32 %v5473, %v5478
      %v5489 = vlaneseq
      %v5490 = vshrl.u32 %v5489, 7
      %v5491 = vsub.s32 0, %v5490
      %v5492 = vrot.slane %v5369, %v5491
      %v5494 = vadd.f32 %v5480, %v5492
      %v5495 = vadd.f32 %v5481, %v5492
      %v5496 = vadd.f32 %v5482, %v5492
      %v5497 = vadd.f32 %v5483, %v5492
      %v5498 = vadd.f32 %v5484, %v5492
      %v5499 = vadd.f32 %v5485, %v5492
      %v5500 = vadd.f32 %v5486, %v5492
      %v5501 = vadd.f32 %v5487, %v5492
      %v5502 = vpack.c.bf16 %v5495, %v5494
      %v5503 = vpack.c.bf16 %v5497, %v5496
      %v5504 = vpack.c.bf16 %v5499, %v5498
      %v5505 = vpack.c.bf16 %v5501, %v5500
      %v5506 = vld [vmem:[%s1224] sm:$0xf]
      %v5507 = vld [vmem:[%s1224 + $0x4] sm:$0xf]
      %v5508 = vld [vmem:[%s1224 + $0x8] sm:$0xf]
      %v5509 = vld [vmem:[%s1224 + $0xc] sm:$0xf]
      %v5510 = vld [vmem:[%s1227] sm:$0x1]
      %v5512 = vlaneseq
      %v5513 = vshrl.u32 %v5512, 7
      %v5514 = vsub.s32 0, %v5513
      %v5515 = vrot.slane %v5510, %v5514
      %v5521 = vunpack.c.l.b16 %v5506
      %v5522 = vunpack.c.l.b16 %v5507
      %v5523 = vunpack.c.l.b16 %v5508
      %v5524 = vunpack.c.l.b16 %v5509
      %v5525 = vpack.c.b16 %v5522, %v5521
      %v5526 = vpack.c.b16 %v5524, %v5523
      %v5530 = vsel %vm1294, %v5502, 0
      %v5533 = vsel %vm1294, %v5503, 0
      %v5536 = vsel %vm1294, %v5504, 0
      %v5539 = vsel %vm1294, %v5505, 0
      %5541 = vmatprep.subr.bf16.mxu0 0
      %5542 = vmatpush1.bf16.msra.mxu0 0
      %5543 = vmatprep.subr.bf16.mxu0 0
      %5544 = vmatpush1.bf16.msra.mxu0 0
      %5545 = vmatprep.subr.bf16.mxu0 0
      %5546 = vmatpush1.bf16.msra.mxu0 0
      %5547 = vmatprep.subr.bf16.mxu0 0
      %5548 = vmatpush1.bf16.msra.mxu0 0
      %5549 = vmatprep.subr.bf16.mxu0 0
      %5550 = vmatpush1.bf16.msra.mxu0 0
      %5551 = vmatprep.subr.bf16.mxu0 0
      %5552 = vmatpush1.bf16.msra.mxu0 0
      %5553 = vmatprep.subr.bf16.mxu0 0
      %5554 = vmatpush1.bf16.msra.mxu0 %v5526
      %5555 = vmatprep.subr.bf16.mxu0 0
      %5556 = vmatpush1.bf16.msra.mxu0 %v5525
      %5557 = vmatprep.subr.bf16.mxu0 0
      %5558 = vmatpush2.bf16.msra.mxu0 0
      %5559 = vmatprep.subr.bf16.mxu0 0
      %5560 = vmatpush2.bf16.msra.mxu0 0
      %5561 = vmatprep.subr.bf16.mxu0 0
      %5562 = vmatpush2.bf16.msra.mxu0 0
      %5563 = vmatprep.subr.bf16.mxu0 0
      %5564 = vmatpush2.bf16.msra.mxu0 0
      %5565 = vmatprep.subr.bf16.mxu0 0
      %5566 = vmatpush2.bf16.msra.mxu0 0
      %5567 = vmatprep.subr.bf16.mxu0 0
      %5568 = vmatpush2.bf16.msra.mxu0 0
      %5569 = vmatprep.subr.bf16.mxu0 0
      %5570 = vmatpush2.bf16.msra.mxu0 0
      %5571 = vmatprep.subr.bf16.mxu0 0
      %5572 = vmatpush2.bf16.msra.mxu0 0
      %5573 = vmatprep.mubr.bf16.mxu0 0
      %5574 = vmatmul.mubr.bf16.gmra.mxu0 %v5530
      %v5575 = vpop.f32.mrf.mxu0
      %v5576 = vadd.f32 %v5515, %v5575
      %v5577 = vpop.f32.mrf.mxu0
      %v5578 = vpop.f32.mrf.mxu0
      %v5579 = vadd.f32 %v5515, %v5578
      %v5580 = vpop.f32.mrf.mxu0
      %5581 = vmatprep.mubr.bf16.mxu0 0
      %5582 = vmatmul.mubr.bf16.gmra.mxu0 %v5533
      %v5583 = vpop.f32.mrf.mxu0
      %v5584 = vadd.f32 %v5515, %v5583
      %v5585 = vpop.f32.mrf.mxu0
      %v5586 = vpop.f32.mrf.mxu0
      %v5587 = vadd.f32 %v5515, %v5586
      %v5588 = vpop.f32.mrf.mxu0
      %5589 = vmatprep.mubr.bf16.mxu0 0
      %5590 = vmatmul.mubr.bf16.gmra.mxu0 %v5536
      %v5591 = vpop.f32.mrf.mxu0
      %v5592 = vadd.f32 %v5515, %v5591
      %v5593 = vpop.f32.mrf.mxu0
      %v5594 = vpop.f32.mrf.mxu0
      %v5595 = vadd.f32 %v5515, %v5594
      %v5596 = vpop.f32.mrf.mxu0
      %5597 = vmatprep.mubr.bf16.mxu0 0
      %5598 = vmatmul.mubr.bf16.gmra.mxu0 %v5539
      %v5599 = vpop.f32.mrf.mxu0
      %v5600 = vadd.f32 %v5515, %v5599
      %v5601 = vpop.f32.mrf.mxu0
      %v5602 = vpop.f32.mrf.mxu0
      %v5603 = vadd.f32 %v5515, %v5602
      %v5604 = vpop.f32.mrf.mxu0
      %5605 = vdwg.mxu0
      %v5606 = vmax.f32 %v5576, 0.0
      %v5607 = vmax.f32 %v5579, 0.0
      %v5608 = vmax.f32 %v5584, 0.0
      %v5609 = vmax.f32 %v5587, 0.0
      %v5610 = vmax.f32 %v5592, 0.0
      %v5611 = vmax.f32 %v5595, 0.0
      %v5612 = vmax.f32 %v5600, 0.0
      %v5613 = vmax.f32 %v5603, 0.0
      %v5614 = vpack.c.bf16 %v5607, %v5606
      %v5615 = vpack.c.bf16 %v5609, %v5608
      %v5616 = vpack.c.bf16 %v5611, %v5610
      %v5617 = vpack.c.bf16 %v5613, %v5612
      %v5618 = vld [vmem:[%s1232] sm:$0xf]
      %v5619 = vld [vmem:[%s1232 + $0x4] sm:$0xf]
      %v5620 = vld [vmem:[%s1232 + $0x8] sm:$0xf]
      %v5621 = vld [vmem:[%s1232 + $0xc] sm:$0xf]
      %v5622 = vld [vmem:[%s1232 + $0x10] sm:$0xf]
      %v5623 = vld [vmem:[%s1232 + $0x14] sm:$0xf]
      %v5624 = vld [vmem:[%s1232 + $0x18] sm:$0xf]
      %v5625 = vld [vmem:[%s1232 + $0x1c] sm:$0xf]
      %v5626 = vld [vmem:[%s1235] sm:$0x1]
      %v5628 = vlaneseq
      %v5629 = vshrl.u32 %v5628, 7
      %v5630 = vsub.s32 0, %v5629
      %v5631 = vrot.slane %v5626, %v5630
      %v5641 = vunpack.c.l.b16 %v5618
      %v5642 = vunpack.c.l.b16 %v5619
      %v5643 = vunpack.c.l.b16 %v5620
      %v5644 = vunpack.c.l.b16 %v5621
      %v5645 = vunpack.c.l.b16 %v5622
      %v5646 = vunpack.c.l.b16 %v5623
      %v5647 = vunpack.c.l.b16 %v5624
      %v5648 = vunpack.c.l.b16 %v5625
      %v5649 = vpack.c.b16 %v5642, %v5641
      %v5650 = vpack.c.b16 %v5644, %v5643
      %v5651 = vpack.c.b16 %v5646, %v5645
      %v5652 = vpack.c.b16 %v5648, %v5647
      %vm5657 = vcmask 523264
      %v5659 = vsel %vm5657, %v5614, 0
      %v5662 = vsel %vm5657, %v5615, 0
      %v5665 = vsel %vm5657, %v5616, 0
      %v5668 = vsel %vm5657, %v5617, 0
      %5670 = vmatprep.subr.bf16.mxu0 0
      %5671 = vmatpush1.bf16.msra.mxu0 0
      %5672 = vmatprep.subr.bf16.mxu0 0
      %5673 = vmatpush1.bf16.msra.mxu0 0
      %5674 = vmatprep.subr.bf16.mxu0 0
      %5675 = vmatpush1.bf16.msra.mxu0 0
      %5676 = vmatprep.subr.bf16.mxu0 0
      %5677 = vmatpush1.bf16.msra.mxu0 0
      %5678 = vmatprep.subr.bf16.mxu0 0
      %5679 = vmatpush1.bf16.msra.mxu0 %v5652
      %5680 = vmatprep.subr.bf16.mxu0 0
      %5681 = vmatpush1.bf16.msra.mxu0 %v5651
      %5682 = vmatprep.subr.bf16.mxu0 0
      %5683 = vmatpush1.bf16.msra.mxu0 %v5650
      %5684 = vmatprep.subr.bf16.mxu0 0
      %5685 = vmatpush1.bf16.msra.mxu0 %v5649
      %5686 = vmatprep.subr.bf16.mxu0 0
      %5687 = vmatpush2.bf16.msra.mxu0 0
      %5688 = vmatprep.subr.bf16.mxu0 0
      %5689 = vmatpush2.bf16.msra.mxu0 0
      %5690 = vmatprep.subr.bf16.mxu0 0
      %5691 = vmatpush2.bf16.msra.mxu0 0
      %5692 = vmatprep.subr.bf16.mxu0 0
      %5693 = vmatpush2.bf16.msra.mxu0 0
      %5694 = vmatprep.subr.bf16.mxu0 0
      %5695 = vmatpush2.bf16.msra.mxu0 0
      %5696 = vmatprep.subr.bf16.mxu0 0
      %5697 = vmatpush2.bf16.msra.mxu0 0
      %5698 = vmatprep.subr.bf16.mxu0 0
      %5699 = vmatpush2.bf16.msra.mxu0 0
      %5700 = vmatprep.subr.bf16.mxu0 0
      %5701 = vmatpush2.bf16.msra.mxu0 0
      %5702 = vmatprep.mubr.bf16.mxu0 0
      %5703 = vmatmul.mubr.bf16.gmra.mxu0 %v5659
      %v5704 = vpop.f32.mrf.mxu0
      %v5705 = vadd.f32 %v5631, %v5704
      %v5706 = vpop.f32.mrf.mxu0
      %v5707 = vpop.f32.mrf.mxu0
      %v5708 = vadd.f32 %v5631, %v5707
      %v5709 = vpop.f32.mrf.mxu0
      %5710 = vmatprep.mubr.bf16.mxu0 0
      %5711 = vmatmul.mubr.bf16.gmra.mxu0 %v5662
      %v5712 = vpop.f32.mrf.mxu0
      %v5713 = vadd.f32 %v5631, %v5712
      %v5714 = vpop.f32.mrf.mxu0
      %v5715 = vpop.f32.mrf.mxu0
      %v5716 = vadd.f32 %v5631, %v5715
      %v5717 = vpop.f32.mrf.mxu0
      %5718 = vmatprep.mubr.bf16.mxu0 0
      %5719 = vmatmul.mubr.bf16.gmra.mxu0 %v5665
      %v5720 = vpop.f32.mrf.mxu0
      %v5721 = vadd.f32 %v5631, %v5720
      %v5722 = vpop.f32.mrf.mxu0
      %v5723 = vpop.f32.mrf.mxu0
      %v5724 = vadd.f32 %v5631, %v5723
      %v5725 = vpop.f32.mrf.mxu0
      %5726 = vmatprep.mubr.bf16.mxu0 0
      %5727 = vmatmul.mubr.bf16.gmra.mxu0 %v5668
      %v5728 = vpop.f32.mrf.mxu0
      %v5729 = vadd.f32 %v5631, %v5728
      %v5730 = vpop.f32.mrf.mxu0
      %v5731 = vpop.f32.mrf.mxu0
      %v5732 = vadd.f32 %v5631, %v5731
      %v5733 = vpop.f32.mrf.mxu0
      %5734 = vdwg.mxu0
      %v5735 = vadd.f32 %v5705, %v5360
      %v5736 = vadd.f32 %v5708, %v5361
      %v5737 = vadd.f32 %v5713, %v5362
      %v5738 = vadd.f32 %v5716, %v5363
      %v5739 = vadd.f32 %v5721, %v5364
      %v5740 = vadd.f32 %v5724, %v5365
      %v5741 = vadd.f32 %v5729, %v5366
      %v5742 = vadd.f32 %v5732, %v5367
      %5743 = vst.msk [vmem:[#allocation2] sm:$0xff] %vm1294, %v5735
      %5744 = vst.msk [vmem:[#allocation2 + $0x8] sm:$0xff] %vm1294, %v5736
      %5745 = vst.msk [vmem:[#allocation2 + $0x10] sm:$0xff] %vm1294, %v5737
      %5746 = vst.msk [vmem:[#allocation2 + $0x18] sm:$0xff] %vm1294, %v5738
      %5747 = vst.msk [vmem:[#allocation2 + $0x20] sm:$0xff] %vm1294, %v5739
      %5748 = vst.msk [vmem:[#allocation2 + $0x28] sm:$0xff] %vm1294, %v5740
      %5749 = vst.msk [vmem:[#allocation2 + $0x30] sm:$0xff] %vm1294, %v5741
      %5750 = vst.msk [vmem:[#allocation2 + $0x38] sm:$0xff] %vm1294, %v5742
      %p5751 = scmp.eq.s32.totalorder %s82, 1
      // Predicated region
      $region149: #{new_transformer_encoder_forward.1} parent=143 // pred_check
        %p5752 = pneg %p5751
      $region150: #{new_transformer_encoder_forward.1} parent=143 // pred_check_branch
        %5754 = sbr.rel (%p5752) target = $region152
      $region151: #{new_transformer_encoder_forward.1} parent=143 // pred_region
        %v5755 = vld [vmem:[%s1190] sm:$0xff]
        %v5756 = vld [vmem:[%s1190 + $0x8] sm:$0xff]
        %v5757 = vld [vmem:[%s1190 + $0x10] sm:$0xff]
        %v5758 = vld [vmem:[%s1190 + $0x18] sm:$0xff]
        %v5759 = vld [vmem:[%s1190 + $0x20] sm:$0xff]
        %v5760 = vld [vmem:[%s1190 + $0x28] sm:$0xff]
        %v5761 = vld [vmem:[%s1190 + $0x30] sm:$0xff]
        %v5762 = vld [vmem:[%s1190 + $0x38] sm:$0xff]
        %v5763 = vld [vmem:[%s31] sm:$0x1]
        %v5764 = vld [vmem:[%s33] sm:$0x1]
        %v5765 = vsel %vm1294, %v5735, 0.0
        %5766 = vadd.xlane.f32.xlu0 %v5765
        %v5767 = vpop.xlane.xlu0 %5766
        %v5768 = vsel %vm1294, %v5736, 0.0
        %5769 = vadd.xlane.f32.xlu0 %v5768
        %v5770 = vpop.xlane.xlu0 %5769
        %v5771 = vsel %vm1294, %v5737, 0.0
        %5772 = vadd.xlane.f32.xlu0 %v5771
        %v5773 = vpop.xlane.xlu0 %5772
        %v5774 = vsel %vm1294, %v5738, 0.0
        %5775 = vadd.xlane.f32.xlu0 %v5774
        %v5776 = vpop.xlane.xlu0 %5775
        %v5777 = vsel %vm1294, %v5739, 0.0
        %5778 = vadd.xlane.f32.xlu0 %v5777
        %v5779 = vpop.xlane.xlu0 %5778
        %v5780 = vsel %vm1294, %v5740, 0.0
        %5781 = vadd.xlane.f32.xlu0 %v5780
        %v5782 = vpop.xlane.xlu0 %5781
        %v5783 = vsel %vm1294, %v5741, 0.0
        %5784 = vadd.xlane.f32.xlu0 %v5783
        %v5785 = vpop.xlane.xlu0 %5784
        %v5786 = vsel %vm1294, %v5742, 0.0
        %5787 = vadd.xlane.f32.xlu0 %v5786
        %v5788 = vpop.xlane.xlu0 %5787
        %v5789 = vmul.f32 %v5767, %v1319
        %v5790 = vmul.f32 %v5770, %v1319
        %v5791 = vmul.f32 %v5773, %v1319
        %v5792 = vmul.f32 %v5776, %v1319
        %v5793 = vmul.f32 %v5779, %v1319
        %v5794 = vmul.f32 %v5782, %v1319
        %v5795 = vmul.f32 %v5785, %v1319
        %v5796 = vmul.f32 %v5788, %v1319
        %v5797 = vsub.f32 %v5735, %v5789
        %v5798 = vsub.f32 %v5736, %v5790
        %v5799 = vsub.f32 %v5737, %v5791
        %v5800 = vsub.f32 %v5738, %v5792
        %v5801 = vsub.f32 %v5739, %v5793
        %v5802 = vsub.f32 %v5740, %v5794
        %v5803 = vsub.f32 %v5741, %v5795
        %v5804 = vsub.f32 %v5742, %v5796
        %v5805 = vmul.f32 %v5797, %v5797
        %v5806 = vmul.f32 %v5798, %v5798
        %v5807 = vmul.f32 %v5799, %v5799
        %v5808 = vmul.f32 %v5800, %v5800
        %v5809 = vmul.f32 %v5801, %v5801
        %v5810 = vmul.f32 %v5802, %v5802
        %v5811 = vmul.f32 %v5803, %v5803
        %v5812 = vmul.f32 %v5804, %v5804
        %v5813 = vsel %vm1294, %v5805, 0.0
        %5814 = vadd.xlane.f32.xlu0 %v5813
        %v5815 = vpop.xlane.xlu0 %5814
        %v5816 = vsel %vm1294, %v5806, 0.0
        %5817 = vadd.xlane.f32.xlu0 %v5816
        %v5818 = vpop.xlane.xlu0 %5817
        %v5819 = vsel %vm1294, %v5807, 0.0
        %5820 = vadd.xlane.f32.xlu0 %v5819
        %v5821 = vpop.xlane.xlu0 %5820
        %v5822 = vsel %vm1294, %v5808, 0.0
        %5823 = vadd.xlane.f32.xlu0 %v5822
        %v5824 = vpop.xlane.xlu0 %5823
        %v5825 = vsel %vm1294, %v5809, 0.0
        %5826 = vadd.xlane.f32.xlu0 %v5825
        %v5827 = vpop.xlane.xlu0 %5826
        %v5828 = vsel %vm1294, %v5810, 0.0
        %5829 = vadd.xlane.f32.xlu0 %v5828
        %v5830 = vpop.xlane.xlu0 %5829
        %v5831 = vsel %vm1294, %v5811, 0.0
        %5832 = vadd.xlane.f32.xlu0 %v5831
        %v5833 = vpop.xlane.xlu0 %5832
        %v5834 = vsel %vm1294, %v5812, 0.0
        %5835 = vadd.xlane.f32.xlu0 %v5834
        %v5836 = vpop.xlane.xlu0 %5835
        %v5837 = vmul.f32 %v5815, %v1319
        %v5838 = vmul.f32 %v5818, %v1319
        %v5839 = vmul.f32 %v5821, %v1319
        %v5840 = vmul.f32 %v5824, %v1319
        %v5841 = vmul.f32 %v5827, %v1319
        %v5842 = vmul.f32 %v5830, %v1319
        %v5843 = vmul.f32 %v5833, %v1319
        %v5844 = vmul.f32 %v5836, %v1319
        %v5845 = vadd.f32 %v5837, 1e-06
        %v5846 = vadd.f32 %v5838, 1e-06
        %v5847 = vadd.f32 %v5839, 1e-06
        %v5848 = vadd.f32 %v5840, 1e-06
        %v5849 = vadd.f32 %v5841, 1e-06
        %v5850 = vadd.f32 %v5842, 1e-06
        %v5851 = vadd.f32 %v5843, 1e-06
        %v5852 = vadd.f32 %v5844, 1e-06
        %v5853 = vrsqrt.pop %v5845
        %v5854 = vrsqrt.pop %v5846
        %v5855 = vrsqrt.pop %v5847
        %v5856 = vrsqrt.pop %v5848
        %v5857 = vrsqrt.pop %v5849
        %v5858 = vrsqrt.pop %v5850
        %v5859 = vrsqrt.pop %v5851
        %v5860 = vrsqrt.pop %v5852
        %v5861 = vmul.f32 %v5797, %v5853
        %v5862 = vmul.f32 %v5798, %v5854
        %v5863 = vmul.f32 %v5799, %v5855
        %v5864 = vmul.f32 %v5800, %v5856
        %v5865 = vmul.f32 %v5801, %v5857
        %v5866 = vmul.f32 %v5802, %v5858
        %v5867 = vmul.f32 %v5803, %v5859
        %v5868 = vmul.f32 %v5804, %v5860
        %v5870 = vlaneseq
        %v5871 = vshrl.u32 %v5870, 7
        %v5872 = vsub.s32 0, %v5871
        %v5873 = vrot.slane %v5763, %v5872
        %v5875 = vmul.f32 %v5861, %v5873
        %v5876 = vmul.f32 %v5862, %v5873
        %v5877 = vmul.f32 %v5863, %v5873
        %v5878 = vmul.f32 %v5864, %v5873
        %v5879 = vmul.f32 %v5865, %v5873
        %v5880 = vmul.f32 %v5866, %v5873
        %v5881 = vmul.f32 %v5867, %v5873
        %v5882 = vmul.f32 %v5868, %v5873
        %v5884 = vlaneseq
        %v5885 = vshrl.u32 %v5884, 7
        %v5886 = vsub.s32 0, %v5885
        %v5887 = vrot.slane %v5764, %v5886
        %v5889 = vadd.f32 %v5875, %v5887
        %v5890 = vadd.f32 %v5876, %v5887
        %v5891 = vadd.f32 %v5877, %v5887
        %v5892 = vadd.f32 %v5878, %v5887
        %v5893 = vadd.f32 %v5879, %v5887
        %v5894 = vadd.f32 %v5880, %v5887
        %v5895 = vadd.f32 %v5881, %v5887
        %v5896 = vadd.f32 %v5882, %v5887
        %v5897 = vpack.c.bf16 %v5890, %v5889
        %v5898 = vpack.c.bf16 %v5892, %v5891
        %v5899 = vpack.c.bf16 %v5894, %v5893
        %v5900 = vpack.c.bf16 %v5896, %v5895
        %v5901 = vld [vmem:[%s35] sm:$0xf]
        %v5902 = vld [vmem:[%s35 + $0x4] sm:$0xf]
        %v5903 = vld [vmem:[%s35 + $0x8] sm:$0xf]
        %v5904 = vld [vmem:[%s35 + $0xc] sm:$0xf]
        %v5905 = vld [vmem:[%s37] sm:$0x1]
        %v5907 = vlaneseq
        %v5908 = vshrl.u32 %v5907, 7
        %v5909 = vsub.s32 0, %v5908
        %v5910 = vrot.slane %v5905, %v5909
        %v5916 = vunpack.c.l.b16 %v5901
        %v5917 = vunpack.c.l.b16 %v5902
        %v5918 = vunpack.c.l.b16 %v5903
        %v5919 = vunpack.c.l.b16 %v5904
        %v5920 = vpack.c.b16 %v5917, %v5916
        %v5921 = vpack.c.b16 %v5919, %v5918
        %v5925 = vsel %vm1294, %v5897, 0
        %v5928 = vsel %vm1294, %v5898, 0
        %v5931 = vsel %vm1294, %v5899, 0
        %v5934 = vsel %vm1294, %v5900, 0
        %5936 = vmatprep.subr.bf16.mxu0 0
        %5937 = vmatpush1.bf16.msra.mxu0 0
        %5938 = vmatprep.subr.bf16.mxu0 0
        %5939 = vmatpush1.bf16.msra.mxu0 0
        %5940 = vmatprep.subr.bf16.mxu0 0
        %5941 = vmatpush1.bf16.msra.mxu0 0
        %5942 = vmatprep.subr.bf16.mxu0 0
        %5943 = vmatpush1.bf16.msra.mxu0 0
        %5944 = vmatprep.subr.bf16.mxu0 0
        %5945 = vmatpush1.bf16.msra.mxu0 0
        %5946 = vmatprep.subr.bf16.mxu0 0
        %5947 = vmatpush1.bf16.msra.mxu0 0
        %5948 = vmatprep.subr.bf16.mxu0 0
        %5949 = vmatpush1.bf16.msra.mxu0 %v5921
        %5950 = vmatprep.subr.bf16.mxu0 0
        %5951 = vmatpush1.bf16.msra.mxu0 %v5920
        %5952 = vmatprep.subr.bf16.mxu0 0
        %5953 = vmatpush2.bf16.msra.mxu0 0
        %5954 = vmatprep.subr.bf16.mxu0 0
        %5955 = vmatpush2.bf16.msra.mxu0 0
        %5956 = vmatprep.subr.bf16.mxu0 0
        %5957 = vmatpush2.bf16.msra.mxu0 0
        %5958 = vmatprep.subr.bf16.mxu0 0
        %5959 = vmatpush2.bf16.msra.mxu0 0
        %5960 = vmatprep.subr.bf16.mxu0 0
        %5961 = vmatpush2.bf16.msra.mxu0 0
        %5962 = vmatprep.subr.bf16.mxu0 0
        %5963 = vmatpush2.bf16.msra.mxu0 0
        %5964 = vmatprep.subr.bf16.mxu0 0
        %5965 = vmatpush2.bf16.msra.mxu0 0
        %5966 = vmatprep.subr.bf16.mxu0 0
        %5967 = vmatpush2.bf16.msra.mxu0 0
        %5968 = vmatprep.mubr.bf16.mxu0 0
        %5969 = vmatmul.mubr.bf16.gmra.mxu0 %v5925
        %v5970 = vpop.f32.mrf.mxu0
        %v5971 = vadd.f32 %v5910, %v5970
        %v5972 = vpop.f32.mrf.mxu0
        %v5973 = vpop.f32.mrf.mxu0
        %v5974 = vadd.f32 %v5910, %v5973
        %v5975 = vpop.f32.mrf.mxu0
        %5976 = vmatprep.mubr.bf16.mxu0 0
        %5977 = vmatmul.mubr.bf16.gmra.mxu0 %v5928
        %v5978 = vpop.f32.mrf.mxu0
        %v5979 = vadd.f32 %v5910, %v5978
        %v5980 = vpop.f32.mrf.mxu0
        %v5981 = vpop.f32.mrf.mxu0
        %v5982 = vadd.f32 %v5910, %v5981
        %v5983 = vpop.f32.mrf.mxu0
        %5984 = vmatprep.mubr.bf16.mxu0 0
        %5985 = vmatmul.mubr.bf16.gmra.mxu0 %v5931
        %v5986 = vpop.f32.mrf.mxu0
        %v5987 = vadd.f32 %v5910, %v5986
        %v5988 = vpop.f32.mrf.mxu0
        %v5989 = vpop.f32.mrf.mxu0
        %v5990 = vadd.f32 %v5910, %v5989
        %v5991 = vpop.f32.mrf.mxu0
        %5992 = vmatprep.mubr.bf16.mxu0 0
        %5993 = vmatmul.mubr.bf16.gmra.mxu0 %v5934
        %v5994 = vpop.f32.mrf.mxu0
        %v5995 = vadd.f32 %v5910, %v5994
        %v5996 = vpop.f32.mrf.mxu0
        %v5997 = vpop.f32.mrf.mxu0
        %v5998 = vadd.f32 %v5910, %v5997
        %v5999 = vpop.f32.mrf.mxu0
        %6000 = vdwg.mxu0
        %v6001 = vld [vmem:[%s39] sm:$0xf]
        %v6002 = vld [vmem:[%s39 + $0x4] sm:$0xf]
        %v6003 = vld [vmem:[%s39 + $0x8] sm:$0xf]
        %v6004 = vld [vmem:[%s39 + $0xc] sm:$0xf]
        %v6005 = vld [vmem:[%s41] sm:$0x1]
        %v6007 = vlaneseq
        %v6008 = vshrl.u32 %v6007, 7
        %v6009 = vsub.s32 0, %v6008
        %v6010 = vrot.slane %v6005, %v6009
        %v6016 = vunpack.c.l.b16 %v6001
        %v6017 = vunpack.c.l.b16 %v6002
        %v6018 = vunpack.c.l.b16 %v6003
        %v6019 = vunpack.c.l.b16 %v6004
        %v6020 = vpack.c.b16 %v6017, %v6016
        %v6021 = vpack.c.b16 %v6019, %v6018
        %6024 = vmatprep.subr.bf16.mxu0 0
        %6025 = vmatpush1.bf16.msra.mxu0 0
        %6026 = vmatprep.subr.bf16.mxu0 0
        %6027 = vmatpush1.bf16.msra.mxu0 0
        %6028 = vmatprep.subr.bf16.mxu0 0
        %6029 = vmatpush1.bf16.msra.mxu0 0
        %6030 = vmatprep.subr.bf16.mxu0 0
        %6031 = vmatpush1.bf16.msra.mxu0 0
        %6032 = vmatprep.subr.bf16.mxu0 0
        %6033 = vmatpush1.bf16.msra.mxu0 0
        %6034 = vmatprep.subr.bf16.mxu0 0
        %6035 = vmatpush1.bf16.msra.mxu0 0
        %6036 = vmatprep.subr.bf16.mxu0 0
        %6037 = vmatpush1.bf16.msra.mxu0 %v6021
        %6038 = vmatprep.subr.bf16.mxu0 0
        %6039 = vmatpush1.bf16.msra.mxu0 %v6020
        %6040 = vmatprep.subr.bf16.mxu0 0
        %6041 = vmatpush2.bf16.msra.mxu0 0
        %6042 = vmatprep.subr.bf16.mxu0 0
        %6043 = vmatpush2.bf16.msra.mxu0 0
        %6044 = vmatprep.subr.bf16.mxu0 0
        %6045 = vmatpush2.bf16.msra.mxu0 0
        %6046 = vmatprep.subr.bf16.mxu0 0
        %6047 = vmatpush2.bf16.msra.mxu0 0
        %6048 = vmatprep.subr.bf16.mxu0 0
        %6049 = vmatpush2.bf16.msra.mxu0 0
        %6050 = vmatprep.subr.bf16.mxu0 0
        %6051 = vmatpush2.bf16.msra.mxu0 0
        %6052 = vmatprep.subr.bf16.mxu0 0
        %6053 = vmatpush2.bf16.msra.mxu0 0
        %6054 = vmatprep.subr.bf16.mxu0 0
        %6055 = vmatpush2.bf16.msra.mxu0 0
        %6056 = vmatprep.mubr.bf16.mxu0 0
        %6057 = vmatmul.mubr.bf16.gmra.mxu0 %v5925
        %v6058 = vpop.f32.mrf.mxu0
        %v6059 = vadd.f32 %v6010, %v6058
        %v6060 = vpop.f32.mrf.mxu0
        %v6061 = vpop.f32.mrf.mxu0
        %v6062 = vadd.f32 %v6010, %v6061
        %v6063 = vpop.f32.mrf.mxu0
        %6064 = vmatprep.mubr.bf16.mxu0 0
        %6065 = vmatmul.mubr.bf16.gmra.mxu0 %v5928
        %v6066 = vpop.f32.mrf.mxu0
        %v6067 = vadd.f32 %v6010, %v6066
        %v6068 = vpop.f32.mrf.mxu0
        %v6069 = vpop.f32.mrf.mxu0
        %v6070 = vadd.f32 %v6010, %v6069
        %v6071 = vpop.f32.mrf.mxu0
        %6072 = vmatprep.mubr.bf16.mxu0 0
        %6073 = vmatmul.mubr.bf16.gmra.mxu0 %v5931
        %v6074 = vpop.f32.mrf.mxu0
        %v6075 = vadd.f32 %v6010, %v6074
        %v6076 = vpop.f32.mrf.mxu0
        %v6077 = vpop.f32.mrf.mxu0
        %v6078 = vadd.f32 %v6010, %v6077
        %v6079 = vpop.f32.mrf.mxu0
        %6080 = vmatprep.mubr.bf16.mxu0 0
        %6081 = vmatmul.mubr.bf16.gmra.mxu0 %v5934
        %v6082 = vpop.f32.mrf.mxu0
        %v6083 = vadd.f32 %v6010, %v6082
        %v6084 = vpop.f32.mrf.mxu0
        %v6085 = vpop.f32.mrf.mxu0
        %v6086 = vadd.f32 %v6010, %v6085
        %v6087 = vpop.f32.mrf.mxu0
        %6088 = vdwg.mxu0
        %vm6089 = vcmp.gt.f32.partialorder %v5755, 0.5
        %vm6090 = vcmp.gt.f32.partialorder %v5756, 0.5
        %vm6091 = vcmp.gt.f32.partialorder %v5757, 0.5
        %vm6092 = vcmp.gt.f32.partialorder %v5758, 0.5
        %vm6093 = vcmp.gt.f32.partialorder %v5759, 0.5
        %vm6094 = vcmp.gt.f32.partialorder %v5760, 0.5
        %vm6095 = vcmp.gt.f32.partialorder %v5761, 0.5
        %vm6096 = vcmp.gt.f32.partialorder %v5762, 0.5
        %v6097 = vsel %vm6089, 1, 0
        %v6098 = vsel %vm6090, 1, 0
        %v6099 = vsel %vm6091, 1, 0
        %v6100 = vsel %vm6092, 1, 0
        %v6101 = vsel %vm6093, 1, 0
        %v6102 = vsel %vm6094, 1, 0
        %v6103 = vsel %vm6095, 1, 0
        %v6104 = vsel %vm6096, 1, 0
        %6105 = vset.pattern.permute.xlu0 0
        %6106 = vperm.xlu0 %6105, %v6097
        %v6107 = vpop.permute.xlu0 %6106
        %6108 = vset.pattern.permute.xlu0 0
        %6109 = vperm.xlu0 %6108, %v6098
        %v6110 = vpop.permute.xlu0 %6109
        %6111 = vset.pattern.permute.xlu0 0
        %6112 = vperm.xlu0 %6111, %v6099
        %v6113 = vpop.permute.xlu0 %6112
        %6114 = vset.pattern.permute.xlu0 0
        %6115 = vperm.xlu0 %6114, %v6100
        %v6116 = vpop.permute.xlu0 %6115
        %6117 = vset.pattern.permute.xlu0 0
        %6118 = vperm.xlu0 %6117, %v6101
        %v6119 = vpop.permute.xlu0 %6118
        %6120 = vset.pattern.permute.xlu0 0
        %6121 = vperm.xlu0 %6120, %v6102
        %v6122 = vpop.permute.xlu0 %6121
        %6123 = vset.pattern.permute.xlu0 0
        %6124 = vperm.xlu0 %6123, %v6103
        %v6125 = vpop.permute.xlu0 %6124
        %6126 = vset.pattern.permute.xlu0 0
        %6127 = vperm.xlu0 %6126, %v6104
        %v6128 = vpop.permute.xlu0 %6127
        %vm6129 = vcmp.eq.s32.totalorder %v6107, 1
        %vm6130 = vcmp.eq.s32.totalorder %v6110, 1
        %vm6131 = vcmp.eq.s32.totalorder %v6113, 1
        %vm6132 = vcmp.eq.s32.totalorder %v6116, 1
        %vm6133 = vcmp.eq.s32.totalorder %v6119, 1
        %vm6134 = vcmp.eq.s32.totalorder %v6122, 1
        %vm6135 = vcmp.eq.s32.totalorder %v6125, 1
        %vm6136 = vcmp.eq.s32.totalorder %v6128, 1
        %v6137 = vsel %vm6129, -1e+18, %v5971
        %v6138 = vsel %vm6130, -1e+18, %v5974
        %v6139 = vsel %vm6131, -1e+18, %v5979
        %v6140 = vsel %vm6132, -1e+18, %v5982
        %v6141 = vsel %vm6133, -1e+18, %v5987
        %v6142 = vsel %vm6134, -1e+18, %v5990
        %v6143 = vsel %vm6135, -1e+18, %v5995
        %v6144 = vsel %vm6136, -1e+18, %v5998
        %vm6145 = vcmask 31744
        %v6146 = vsel %vm6145, %v6137, -inf
        %v6147 = vrot.slane %v6146, 4
        %v6148 = vmax.f32 %v6146, %v6147
        %v6149 = vrot.slane %v6148, 2
        %v6150 = vmax.f32 %v6148, %v6149
        %v6151 = vrot.slane %v6150, 1
        %v6152 = vmax.f32 %v6150, %v6151
        %v6153 = vsel %vm6145, %v6138, -inf
        %v6154 = vrot.slane %v6153, 4
        %v6155 = vmax.f32 %v6153, %v6154
        %v6156 = vrot.slane %v6155, 2
        %v6157 = vmax.f32 %v6155, %v6156
        %v6158 = vrot.slane %v6157, 1
        %v6159 = vmax.f32 %v6157, %v6158
        %v6160 = vsel %vm6145, %v6139, -inf
        %v6161 = vrot.slane %v6160, 4
        %v6162 = vmax.f32 %v6160, %v6161
        %v6163 = vrot.slane %v6162, 2
        %v6164 = vmax.f32 %v6162, %v6163
        %v6165 = vrot.slane %v6164, 1
        %v6166 = vmax.f32 %v6164, %v6165
        %v6167 = vsel %vm6145, %v6140, -inf
        %v6168 = vrot.slane %v6167, 4
        %v6169 = vmax.f32 %v6167, %v6168
        %v6170 = vrot.slane %v6169, 2
        %v6171 = vmax.f32 %v6169, %v6170
        %v6172 = vrot.slane %v6171, 1
        %v6173 = vmax.f32 %v6171, %v6172
        %v6174 = vsel %vm6145, %v6141, -inf
        %v6175 = vrot.slane %v6174, 4
        %v6176 = vmax.f32 %v6174, %v6175
        %v6177 = vrot.slane %v6176, 2
        %v6178 = vmax.f32 %v6176, %v6177
        %v6179 = vrot.slane %v6178, 1
        %v6180 = vmax.f32 %v6178, %v6179
        %v6181 = vsel %vm6145, %v6142, -inf
        %v6182 = vrot.slane %v6181, 4
        %v6183 = vmax.f32 %v6181, %v6182
        %v6184 = vrot.slane %v6183, 2
        %v6185 = vmax.f32 %v6183, %v6184
        %v6186 = vrot.slane %v6185, 1
        %v6187 = vmax.f32 %v6185, %v6186
        %v6188 = vsel %vm6145, %v6143, -inf
        %v6189 = vrot.slane %v6188, 4
        %v6190 = vmax.f32 %v6188, %v6189
        %v6191 = vrot.slane %v6190, 2
        %v6192 = vmax.f32 %v6190, %v6191
        %v6193 = vrot.slane %v6192, 1
        %v6194 = vmax.f32 %v6192, %v6193
        %v6195 = vsel %vm6145, %v6144, -inf
        %v6196 = vrot.slane %v6195, 4
        %v6197 = vmax.f32 %v6195, %v6196
        %v6198 = vrot.slane %v6197, 2
        %v6199 = vmax.f32 %v6197, %v6198
        %v6200 = vrot.slane %v6199, 1
        %v6201 = vmax.f32 %v6199, %v6200
        %v6202 = vsub.f32 %v6137, %v6152
        %v6203 = vsub.f32 %v6138, %v6159
        %v6204 = vsub.f32 %v6139, %v6166
        %v6205 = vsub.f32 %v6140, %v6173
        %v6206 = vsub.f32 %v6141, %v6180
        %v6207 = vsub.f32 %v6142, %v6187
        %v6208 = vsub.f32 %v6143, %v6194
        %v6209 = vsub.f32 %v6144, %v6201
        %v6210 = vmul.f32 %v6202, 1.442695
        %v6211 = vpow.pop %v6210
        %v6212 = vmul.f32 %v6203, 1.442695
        %v6213 = vpow.pop %v6212
        %v6214 = vmul.f32 %v6204, 1.442695
        %v6215 = vpow.pop %v6214
        %v6216 = vmul.f32 %v6205, 1.442695
        %v6217 = vpow.pop %v6216
        %v6218 = vmul.f32 %v6206, 1.442695
        %v6219 = vpow.pop %v6218
        %v6220 = vmul.f32 %v6207, 1.442695
        %v6221 = vpow.pop %v6220
        %v6222 = vmul.f32 %v6208, 1.442695
        %v6223 = vpow.pop %v6222
        %v6224 = vmul.f32 %v6209, 1.442695
        %v6225 = vpow.pop %v6224
        %v6226 = vsel %vm6145, %v6211, 0.0
        %v6227 = vrot.slane %v6226, 4
        %v6228 = vadd.f32 %v6226, %v6227
        %v6229 = vrot.slane %v6228, 2
        %v6230 = vadd.f32 %v6228, %v6229
        %v6231 = vrot.slane %v6230, 1
        %v6232 = vadd.f32 %v6230, %v6231
        %v6233 = vsel %vm6145, %v6213, 0.0
        %v6234 = vrot.slane %v6233, 4
        %v6235 = vadd.f32 %v6233, %v6234
        %v6236 = vrot.slane %v6235, 2
        %v6237 = vadd.f32 %v6235, %v6236
        %v6238 = vrot.slane %v6237, 1
        %v6239 = vadd.f32 %v6237, %v6238
        %v6240 = vsel %vm6145, %v6215, 0.0
        %v6241 = vrot.slane %v6240, 4
        %v6242 = vadd.f32 %v6240, %v6241
        %v6243 = vrot.slane %v6242, 2
        %v6244 = vadd.f32 %v6242, %v6243
        %v6245 = vrot.slane %v6244, 1
        %v6246 = vadd.f32 %v6244, %v6245
        %v6247 = vsel %vm6145, %v6217, 0.0
        %v6248 = vrot.slane %v6247, 4
        %v6249 = vadd.f32 %v6247, %v6248
        %v6250 = vrot.slane %v6249, 2
        %v6251 = vadd.f32 %v6249, %v6250
        %v6252 = vrot.slane %v6251, 1
        %v6253 = vadd.f32 %v6251, %v6252
        %v6254 = vsel %vm6145, %v6219, 0.0
        %v6255 = vrot.slane %v6254, 4
        %v6256 = vadd.f32 %v6254, %v6255
        %v6257 = vrot.slane %v6256, 2
        %v6258 = vadd.f32 %v6256, %v6257
        %v6259 = vrot.slane %v6258, 1
        %v6260 = vadd.f32 %v6258, %v6259
        %v6261 = vsel %vm6145, %v6221, 0.0
        %v6262 = vrot.slane %v6261, 4
        %v6263 = vadd.f32 %v6261, %v6262
        %v6264 = vrot.slane %v6263, 2
        %v6265 = vadd.f32 %v6263, %v6264
        %v6266 = vrot.slane %v6265, 1
        %v6267 = vadd.f32 %v6265, %v6266
        %v6268 = vsel %vm6145, %v6223, 0.0
        %v6269 = vrot.slane %v6268, 4
        %v6270 = vadd.f32 %v6268, %v6269
        %v6271 = vrot.slane %v6270, 2
        %v6272 = vadd.f32 %v6270, %v6271
        %v6273 = vrot.slane %v6272, 1
        %v6274 = vadd.f32 %v6272, %v6273
        %v6275 = vsel %vm6145, %v6225, 0.0
        %v6276 = vrot.slane %v6275, 4
        %v6277 = vadd.f32 %v6275, %v6276
        %v6278 = vrot.slane %v6277, 2
        %v6279 = vadd.f32 %v6277, %v6278
        %v6280 = vrot.slane %v6279, 1
        %v6281 = vadd.f32 %v6279, %v6280
        %v6282 = vrcp.pop %v6232
        %v6283 = vrcp.pop %v6239
        %v6284 = vrcp.pop %v6246
        %v6285 = vrcp.pop %v6253
        %v6286 = vrcp.pop %v6260
        %v6287 = vrcp.pop %v6267
        %v6288 = vrcp.pop %v6274
        %v6289 = vrcp.pop %v6281
        %v6290 = vmul.f32 %v6211, %v6282
        %v6291 = vmul.f32 %v6213, %v6283
        %v6292 = vmul.f32 %v6215, %v6284
        %v6293 = vmul.f32 %v6217, %v6285
        %v6294 = vmul.f32 %v6219, %v6286
        %v6295 = vmul.f32 %v6221, %v6287
        %v6296 = vmul.f32 %v6223, %v6288
        %v6297 = vmul.f32 %v6225, %v6289
        %v6298 = vld [vmem:[%s47] sm:$0xf]
        %v6300 = vsel %vm6145, %v6290, 0
        %v6303 = vsel %vm6145, %v6291, 0
        %v6306 = vsel %vm6145, %v6292, 0
        %v6309 = vsel %vm6145, %v6293, 0
        %v6312 = vsel %vm6145, %v6294, 0
        %v6315 = vsel %vm6145, %v6295, 0
        %v6318 = vsel %vm6145, %v6296, 0
        %v6321 = vsel %vm6145, %v6297, 0
        %v6324 = vsel %vm2090, %v6298, 0
        %6326 = vmatprep.subr.mxu0 0.0
        %6327 = vmatpush1.msra.mxu0 0.0
        %6328 = vmatprep.subr.mxu0 0.0
        %6329 = vmatpush1.msra.mxu0 0.0
        %6330 = vmatprep.subr.mxu0 0.0
        %6331 = vmatpush1.msra.mxu0 0.0
        %6332 = vmatprep.subr.mxu0 0.0
        %6333 = vmatpush1.msra.mxu0 0.0
        %6334 = vmatprep.subr.mxu0 0.0
        %6335 = vmatpush1.msra.mxu0 0.0
        %6336 = vmatprep.subr.mxu0 0.0
        %6337 = vmatpush1.msra.mxu0 0.0
        %6338 = vmatprep.subr.mxu0 0.0
        %6339 = vmatpush1.msra.mxu0 0.0
        %6340 = vmatprep.subr.mxu0 0.0
        %6341 = vmatpush1.msra.mxu0 0.0
        %6342 = vmatprep.subr.mxu0 0.0
        %6343 = vmatpush1.msra.mxu0 0.0
        %6344 = vmatprep.subr.mxu0 0.0
        %6345 = vmatpush1.msra.mxu0 0.0
        %6346 = vmatprep.subr.mxu0 0.0
        %6347 = vmatpush1.msra.mxu0 0.0
        %6348 = vmatprep.subr.mxu0 0.0
        %6349 = vmatpush1.msra.mxu0 0.0
        %6350 = vmatprep.subr.mxu0 0.0
        %6351 = vmatpush1.msra.mxu0 0.0
        %6352 = vmatprep.subr.mxu0 0.0
        %6353 = vmatpush1.msra.mxu0 0.0
        %6354 = vmatprep.subr.mxu0 0.0
        %6355 = vmatpush1.msra.mxu0 0.0
        %6356 = vmatprep.subr.mxu0 0.0
        %6357 = vmatpush1.msra.mxu0 %v6324
        %6358 = vmatprep.subr.mxu0 0.0
        %6359 = vmatpush2.msra.mxu0 0.0
        %6360 = vmatprep.subr.mxu0 0.0
        %6361 = vmatpush2.msra.mxu0 0.0
        %6362 = vmatprep.subr.mxu0 0.0
        %6363 = vmatpush2.msra.mxu0 0.0
        %6364 = vmatprep.subr.mxu0 0.0
        %6365 = vmatpush2.msra.mxu0 0.0
        %6366 = vmatprep.subr.mxu0 0.0
        %6367 = vmatpush2.msra.mxu0 0.0
        %6368 = vmatprep.subr.mxu0 0.0
        %6369 = vmatpush2.msra.mxu0 0.0
        %6370 = vmatprep.subr.mxu0 0.0
        %6371 = vmatpush2.msra.mxu0 0.0
        %6372 = vmatprep.subr.mxu0 0.0
        %6373 = vmatpush2.msra.mxu0 0.0
        %6374 = vmatprep.subr.mxu0 0.0
        %6375 = vmatpush2.msra.mxu0 0.0
        %6376 = vmatprep.subr.mxu0 0.0
        %6377 = vmatpush2.msra.mxu0 0.0
        %6378 = vmatprep.subr.mxu0 0.0
        %6379 = vmatpush2.msra.mxu0 0.0
        %6380 = vmatprep.subr.mxu0 0.0
        %6381 = vmatpush2.msra.mxu0 0.0
        %6382 = vmatprep.subr.mxu0 0.0
        %6383 = vmatpush2.msra.mxu0 0.0
        %6384 = vmatprep.subr.mxu0 0.0
        %6385 = vmatpush2.msra.mxu0 0.0
        %6386 = vmatprep.subr.mxu0 0.0
        %6387 = vmatpush2.msra.mxu0 0.0
        %6388 = vmatprep.subr.mxu0 0.0
        %6389 = vmatpush2.msra.mxu0 0.0
        %6390 = vmatprep.mubr.f32.mxu0 0.0
        %6391 = vmatmul.mubr.f32.gmra.mxu0 %v6300
        %v6392 = vpop.f32.mrf.mxu0
        %v6393 = vadd.f32 0.0, %v6392
        %v6394 = vpop.f32.mrf.mxu0
        %6395 = vmatprep.mubr.f32.mxu0 0.0
        %6396 = vmatmul.mubr.f32.gmra.mxu0 %v6303
        %v6397 = vpop.f32.mrf.mxu0
        %v6398 = vadd.f32 0.0, %v6397
        %v6399 = vpop.f32.mrf.mxu0
        %6400 = vmatprep.mubr.f32.mxu0 0.0
        %6401 = vmatmul.mubr.f32.gmra.mxu0 %v6306
        %v6402 = vpop.f32.mrf.mxu0
        %v6403 = vadd.f32 0.0, %v6402
        %v6404 = vpop.f32.mrf.mxu0
        %6405 = vmatprep.mubr.f32.mxu0 0.0
        %6406 = vmatmul.mubr.f32.gmra.mxu0 %v6309
        %v6407 = vpop.f32.mrf.mxu0
        %v6408 = vadd.f32 0.0, %v6407
        %v6409 = vpop.f32.mrf.mxu0
        %6410 = vmatprep.mubr.f32.mxu0 0.0
        %6411 = vmatmul.mubr.f32.gmra.mxu0 %v6312
        %v6412 = vpop.f32.mrf.mxu0
        %v6413 = vadd.f32 0.0, %v6412
        %v6414 = vpop.f32.mrf.mxu0
        %6415 = vmatprep.mubr.f32.mxu0 0.0
        %6416 = vmatmul.mubr.f32.gmra.mxu0 %v6315
        %v6417 = vpop.f32.mrf.mxu0
        %v6418 = vadd.f32 0.0, %v6417
        %v6419 = vpop.f32.mrf.mxu0
        %6420 = vmatprep.mubr.f32.mxu0 0.0
        %6421 = vmatmul.mubr.f32.gmra.mxu0 %v6318
        %v6422 = vpop.f32.mrf.mxu0
        %v6423 = vadd.f32 0.0, %v6422
        %v6424 = vpop.f32.mrf.mxu0
        %6425 = vmatprep.mubr.f32.mxu0 0.0
        %6426 = vmatmul.mubr.f32.gmra.mxu0 %v6321
        %v6427 = vpop.f32.mrf.mxu0
        %v6428 = vadd.f32 0.0, %v6427
        %v6429 = vpop.f32.mrf.mxu0
        %6430 = vdwg.mxu0
        %v6431 = vmul.f32 %v6393, %v6059
        %v6432 = vmul.f32 %v6398, %v6062
        %v6433 = vmul.f32 %v6403, %v6067
        %v6434 = vmul.f32 %v6408, %v6070
        %v6435 = vmul.f32 %v6413, %v6075
        %v6436 = vmul.f32 %v6418, %v6078
        %v6437 = vmul.f32 %v6423, %v6083
        %v6438 = vmul.f32 %v6428, %v6086
        %v6439 = vsel %vm1294, %v6431, 0.0
        %v6440 = vrot.slane %v6439, 4
        %v6441 = vadd.f32 %v6439, %v6440
        %v6442 = vrot.slane %v6441, 2
        %v6443 = vadd.f32 %v6441, %v6442
        %v6444 = vrot.slane %v6443, 1
        %v6445 = vadd.f32 %v6443, %v6444
        %v6446 = vsel %vm1294, %v6432, 0.0
        %v6447 = vrot.slane %v6446, 4
        %v6448 = vadd.f32 %v6446, %v6447
        %v6449 = vrot.slane %v6448, 2
        %v6450 = vadd.f32 %v6448, %v6449
        %v6451 = vrot.slane %v6450, 1
        %v6452 = vadd.f32 %v6450, %v6451
        %v6453 = vsel %vm1294, %v6433, 0.0
        %v6454 = vrot.slane %v6453, 4
        %v6455 = vadd.f32 %v6453, %v6454
        %v6456 = vrot.slane %v6455, 2
        %v6457 = vadd.f32 %v6455, %v6456
        %v6458 = vrot.slane %v6457, 1
        %v6459 = vadd.f32 %v6457, %v6458
        %v6460 = vsel %vm1294, %v6434, 0.0
        %v6461 = vrot.slane %v6460, 4
        %v6462 = vadd.f32 %v6460, %v6461
        %v6463 = vrot.slane %v6462, 2
        %v6464 = vadd.f32 %v6462, %v6463
        %v6465 = vrot.slane %v6464, 1
        %v6466 = vadd.f32 %v6464, %v6465
        %v6467 = vsel %vm1294, %v6435, 0.0
        %v6468 = vrot.slane %v6467, 4
        %v6469 = vadd.f32 %v6467, %v6468
        %v6470 = vrot.slane %v6469, 2
        %v6471 = vadd.f32 %v6469, %v6470
        %v6472 = vrot.slane %v6471, 1
        %v6473 = vadd.f32 %v6471, %v6472
        %v6474 = vsel %vm1294, %v6436, 0.0
        %v6475 = vrot.slane %v6474, 4
        %v6476 = vadd.f32 %v6474, %v6475
        %v6477 = vrot.slane %v6476, 2
        %v6478 = vadd.f32 %v6476, %v6477
        %v6479 = vrot.slane %v6478, 1
        %v6480 = vadd.f32 %v6478, %v6479
        %v6481 = vsel %vm1294, %v6437, 0.0
        %v6482 = vrot.slane %v6481, 4
        %v6483 = vadd.f32 %v6481, %v6482
        %v6484 = vrot.slane %v6483, 2
        %v6485 = vadd.f32 %v6483, %v6484
        %v6486 = vrot.slane %v6485, 1
        %v6487 = vadd.f32 %v6485, %v6486
        %v6488 = vsel %vm1294, %v6438, 0.0
        %v6489 = vrot.slane %v6488, 4
        %v6490 = vadd.f32 %v6488, %v6489
        %v6491 = vrot.slane %v6490, 2
        %v6492 = vadd.f32 %v6490, %v6491
        %v6493 = vrot.slane %v6492, 1
        %v6494 = vadd.f32 %v6492, %v6493
        %v6495 = vld [vmem:[%s49] sm:$0xff]
        %v6496 = vld [vmem:[%s49 + $0x8] sm:$0xff]
        %v6497 = vld [vmem:[%s49 + $0x10] sm:$0xff]
        %v6498 = vld [vmem:[%s49 + $0x18] sm:$0xff]
        %vm6507 = vcmask 1041409
        %v6508 = vsel %vm6507, %v6452, %v6445
        %vm6509 = vcmask 1042434
        %v6510 = vsel %vm6509, %v6459, %v6508
        %vm6511 = vcmask 1043459
        %v6512 = vsel %vm6511, %v6466, %v6510
        %vm6513 = vcmask 1044484
        %v6514 = vsel %vm6513, %v6473, %v6512
        %vm6515 = vcmask 1045509
        %v6516 = vsel %vm6515, %v6480, %v6514
        %vm6517 = vcmask 1046534
        %v6518 = vsel %vm6517, %v6487, %v6516
        %vm6519 = vcmask 1047559
        %v6520 = vsel %vm6519, %v6494, %v6518
        %v6521 = vsel %vm1294, %v6520, 0
        %6523 = vmatprep.subr.mxu0 0.0
        %6524 = vmatpush1.msra.mxu0 0.0
        %6525 = vmatprep.subr.mxu0 0.0
        %6526 = vmatpush1.msra.mxu0 0.0
        %6527 = vmatprep.subr.mxu0 0.0
        %6528 = vmatpush1.msra.mxu0 0.0
        %6529 = vmatprep.subr.mxu0 0.0
        %6530 = vmatpush1.msra.mxu0 0.0
        %6531 = vmatprep.subr.mxu0 0.0
        %6532 = vmatpush1.msra.mxu0 0.0
        %6533 = vmatprep.subr.mxu0 0.0
        %6534 = vmatpush1.msra.mxu0 0.0
        %6535 = vmatprep.subr.mxu0 0.0
        %6536 = vmatpush1.msra.mxu0 0.0
        %6537 = vmatprep.subr.mxu0 0.0
        %6538 = vmatpush1.msra.mxu0 0.0
        %6539 = vmatprep.subr.mxu0 0.0
        %6540 = vmatpush1.msra.mxu0 0.0
        %6541 = vmatprep.subr.mxu0 0.0
        %6542 = vmatpush1.msra.mxu0 0.0
        %6543 = vmatprep.subr.mxu0 0.0
        %6544 = vmatpush1.msra.mxu0 0.0
        %6545 = vmatprep.subr.mxu0 0.0
        %6546 = vmatpush1.msra.mxu0 0.0
        %6547 = vmatprep.subr.mxu0 0.0
        %6548 = vmatpush1.msra.mxu0 %v6498
        %6549 = vmatprep.subr.mxu0 0.0
        %6550 = vmatpush1.msra.mxu0 %v6497
        %6551 = vmatprep.subr.mxu0 0.0
        %6552 = vmatpush1.msra.mxu0 %v6496
        %6553 = vmatprep.subr.mxu0 0.0
        %6554 = vmatpush1.msra.mxu0 %v6495
        %6555 = vmatprep.subr.mxu0 0.0
        %6556 = vmatpush2.msra.mxu0 0.0
        %6557 = vmatprep.subr.mxu0 0.0
        %6558 = vmatpush2.msra.mxu0 0.0
        %6559 = vmatprep.subr.mxu0 0.0
        %6560 = vmatpush2.msra.mxu0 0.0
        %6561 = vmatprep.subr.mxu0 0.0
        %6562 = vmatpush2.msra.mxu0 0.0
        %6563 = vmatprep.subr.mxu0 0.0
        %6564 = vmatpush2.msra.mxu0 0.0
        %6565 = vmatprep.subr.mxu0 0.0
        %6566 = vmatpush2.msra.mxu0 0.0
        %6567 = vmatprep.subr.mxu0 0.0
        %6568 = vmatpush2.msra.mxu0 0.0
        %6569 = vmatprep.subr.mxu0 0.0
        %6570 = vmatpush2.msra.mxu0 0.0
        %6571 = vmatprep.subr.mxu0 0.0
        %6572 = vmatpush2.msra.mxu0 0.0
        %6573 = vmatprep.subr.mxu0 0.0
        %6574 = vmatpush2.msra.mxu0 0.0
        %6575 = vmatprep.subr.mxu0 0.0
        %6576 = vmatpush2.msra.mxu0 0.0
        %6577 = vmatprep.subr.mxu0 0.0
        %6578 = vmatpush2.msra.mxu0 0.0
        %6579 = vmatprep.subr.mxu0 0.0
        %6580 = vmatpush2.msra.mxu0 0.0
        %6581 = vmatprep.subr.mxu0 0.0
        %6582 = vmatpush2.msra.mxu0 0.0
        %6583 = vmatprep.subr.mxu0 0.0
        %6584 = vmatpush2.msra.mxu0 0.0
        %6585 = vmatprep.subr.mxu0 0.0
        %6586 = vmatpush2.msra.mxu0 0.0
        %6587 = vmatprep.mubr.f32.mxu0 0.0
        %6588 = vmatmul.mubr.f32.gmra.mxu0 %v6521
        %v6589 = vpop.f32.mrf.mxu0
        %v6590 = vadd.f32 0.0, %v6589
        %v6591 = vpop.f32.mrf.mxu0
        %6592 = vdwg.mxu0
        %v6594 = vrot.slane %v6590, 1
        %v6595 = vrot.slane %v6590, 2
        %v6596 = vrot.slane %v6590, 3
        %v6597 = vrot.slane %v6590, 4
        %v6598 = vrot.slane %v6590, 5
        %v6599 = vrot.slane %v6590, 6
        %v6600 = vrot.slane %v6590, 7
        %v6609 = vsub.f32 %v6445, %v6590
        %v6610 = vsub.f32 %v6452, %v6594
        %v6611 = vsub.f32 %v6459, %v6595
        %v6612 = vsub.f32 %v6466, %v6596
        %v6613 = vsub.f32 %v6473, %v6597
        %v6614 = vsub.f32 %v6480, %v6598
        %v6615 = vsub.f32 %v6487, %v6599
        %v6616 = vsub.f32 %v6494, %v6600
        %v6617 = vmul.f32 %v6609, %v6609
        %v6618 = vmul.f32 %v6610, %v6610
        %v6619 = vmul.f32 %v6611, %v6611
        %v6620 = vmul.f32 %v6612, %v6612
        %v6621 = vmul.f32 %v6613, %v6613
        %v6622 = vmul.f32 %v6614, %v6614
        %v6623 = vmul.f32 %v6615, %v6615
        %v6624 = vmul.f32 %v6616, %v6616
        %v6633 = vrot.slane %v6618, 7
        %v6634 = vsel %vm6507, %v6633, %v6617
        %v6635 = vrot.slane %v6619, 6
        %v6636 = vsel %vm6509, %v6635, %v6634
        %v6637 = vrot.slane %v6620, 5
        %v6638 = vsel %vm6511, %v6637, %v6636
        %v6639 = vrot.slane %v6621, 4
        %v6640 = vsel %vm6513, %v6639, %v6638
        %v6641 = vrot.slane %v6622, 3
        %v6642 = vsel %vm6515, %v6641, %v6640
        %v6643 = vrot.slane %v6623, 2
        %v6644 = vsel %vm6517, %v6643, %v6642
        %v6645 = vrot.slane %v6624, 1
        %v6646 = vsel %vm6519, %v6645, %v6644
        %v6647 = vsel %vm1294, %v6646, 0
        %6649 = vmatprep.subr.mxu0 0.0
        %6650 = vmatpush1.msra.mxu0 0.0
        %6651 = vmatprep.subr.mxu0 0.0
        %6652 = vmatpush1.msra.mxu0 0.0
        %6653 = vmatprep.subr.mxu0 0.0
        %6654 = vmatpush1.msra.mxu0 0.0
        %6655 = vmatprep.subr.mxu0 0.0
        %6656 = vmatpush1.msra.mxu0 0.0
        %6657 = vmatprep.subr.mxu0 0.0
        %6658 = vmatpush1.msra.mxu0 0.0
        %6659 = vmatprep.subr.mxu0 0.0
        %6660 = vmatpush1.msra.mxu0 0.0
        %6661 = vmatprep.subr.mxu0 0.0
        %6662 = vmatpush1.msra.mxu0 0.0
        %6663 = vmatprep.subr.mxu0 0.0
        %6664 = vmatpush1.msra.mxu0 0.0
        %6665 = vmatprep.subr.mxu0 0.0
        %6666 = vmatpush1.msra.mxu0 0.0
        %6667 = vmatprep.subr.mxu0 0.0
        %6668 = vmatpush1.msra.mxu0 0.0
        %6669 = vmatprep.subr.mxu0 0.0
        %6670 = vmatpush1.msra.mxu0 0.0
        %6671 = vmatprep.subr.mxu0 0.0
        %6672 = vmatpush1.msra.mxu0 0.0
        %6673 = vmatprep.subr.mxu0 0.0
        %6674 = vmatpush1.msra.mxu0 %v6498
        %6675 = vmatprep.subr.mxu0 0.0
        %6676 = vmatpush1.msra.mxu0 %v6497
        %6677 = vmatprep.subr.mxu0 0.0
        %6678 = vmatpush1.msra.mxu0 %v6496
        %6679 = vmatprep.subr.mxu0 0.0
        %6680 = vmatpush1.msra.mxu0 %v6495
        %6681 = vmatprep.subr.mxu0 0.0
        %6682 = vmatpush2.msra.mxu0 0.0
        %6683 = vmatprep.subr.mxu0 0.0
        %6684 = vmatpush2.msra.mxu0 0.0
        %6685 = vmatprep.subr.mxu0 0.0
        %6686 = vmatpush2.msra.mxu0 0.0
        %6687 = vmatprep.subr.mxu0 0.0
        %6688 = vmatpush2.msra.mxu0 0.0
        %6689 = vmatprep.subr.mxu0 0.0
        %6690 = vmatpush2.msra.mxu0 0.0
        %6691 = vmatprep.subr.mxu0 0.0
        %6692 = vmatpush2.msra.mxu0 0.0
        %6693 = vmatprep.subr.mxu0 0.0
        %6694 = vmatpush2.msra.mxu0 0.0
        %6695 = vmatprep.subr.mxu0 0.0
        %6696 = vmatpush2.msra.mxu0 0.0
        %6697 = vmatprep.subr.mxu0 0.0
        %6698 = vmatpush2.msra.mxu0 0.0
        %6699 = vmatprep.subr.mxu0 0.0
        %6700 = vmatpush2.msra.mxu0 0.0
        %6701 = vmatprep.subr.mxu0 0.0
        %6702 = vmatpush2.msra.mxu0 0.0
        %6703 = vmatprep.subr.mxu0 0.0
        %6704 = vmatpush2.msra.mxu0 0.0
        %6705 = vmatprep.subr.mxu0 0.0
        %6706 = vmatpush2.msra.mxu0 0.0
        %6707 = vmatprep.subr.mxu0 0.0
        %6708 = vmatpush2.msra.mxu0 0.0
        %6709 = vmatprep.subr.mxu0 0.0
        %6710 = vmatpush2.msra.mxu0 0.0
        %6711 = vmatprep.subr.mxu0 0.0
        %6712 = vmatpush2.msra.mxu0 0.0
        %6713 = vmatprep.mubr.f32.mxu0 0.0
        %6714 = vmatmul.mubr.f32.gmra.mxu0 %v6647
        %v6715 = vpop.f32.mrf.mxu0
        %v6716 = vadd.f32 1e-06, %v6715
        %v6717 = vpop.f32.mrf.mxu0
        %6718 = vdwg.mxu0
        %v6719 = vrsqrt.pop %v6716
        %v6721 = vrot.slane %v6719, 1
        %v6722 = vrot.slane %v6719, 2
        %v6723 = vrot.slane %v6719, 3
        %v6724 = vrot.slane %v6719, 4
        %v6725 = vrot.slane %v6719, 5
        %v6726 = vrot.slane %v6719, 6
        %v6727 = vrot.slane %v6719, 7
        %v6736 = vmul.f32 %v6609, %v6719
        %v6737 = vmul.f32 %v6610, %v6721
        %v6738 = vmul.f32 %v6611, %v6722
        %v6739 = vmul.f32 %v6612, %v6723
        %v6740 = vmul.f32 %v6613, %v6724
        %v6741 = vmul.f32 %v6614, %v6725
        %v6742 = vmul.f32 %v6615, %v6726
        %v6743 = vmul.f32 %v6616, %v6727
        %v6744 = vld [vmem:[%s43] sm:$0x1]
        %v6746 = vlaneseq
        %v6747 = vshrl.u32 %v6746, 7
        %v6748 = vsub.s32 0, %v6747
        %v6749 = vrot.slane %v6744, %v6748
        %v6751 = vmul.f32 %v6736, %v6749
        %v6752 = vmul.f32 %v6737, %v6749
        %v6753 = vmul.f32 %v6738, %v6749
        %v6754 = vmul.f32 %v6739, %v6749
        %v6755 = vmul.f32 %v6740, %v6749
        %v6756 = vmul.f32 %v6741, %v6749
        %v6757 = vmul.f32 %v6742, %v6749
        %v6758 = vmul.f32 %v6743, %v6749
        %v6759 = vld [vmem:[%s45] sm:$0x1]
        %v6761 = vlaneseq
        %v6762 = vshrl.u32 %v6761, 7
        %v6763 = vsub.s32 0, %v6762
        %v6764 = vrot.slane %v6759, %v6763
        %v6766 = vadd.f32 %v6751, %v6764
        %v6767 = vadd.f32 %v6752, %v6764
        %v6768 = vadd.f32 %v6753, %v6764
        %v6769 = vadd.f32 %v6754, %v6764
        %v6770 = vadd.f32 %v6755, %v6764
        %v6771 = vadd.f32 %v6756, %v6764
        %v6772 = vadd.f32 %v6757, %v6764
        %v6773 = vadd.f32 %v6758, %v6764
        %v6782 = vrot.slane %v6767, 7
        %v6783 = vsel %vm6507, %v6782, %v6766
        %v6784 = vrot.slane %v6768, 6
        %v6785 = vsel %vm6509, %v6784, %v6783
        %v6786 = vrot.slane %v6769, 5
        %v6787 = vsel %vm6511, %v6786, %v6785
        %v6788 = vrot.slane %v6770, 4
        %v6789 = vsel %vm6513, %v6788, %v6787
        %v6790 = vrot.slane %v6771, 3
        %v6791 = vsel %vm6515, %v6790, %v6789
        %v6792 = vrot.slane %v6772, 2
        %v6793 = vsel %vm6517, %v6792, %v6791
        %v6794 = vrot.slane %v6773, 1
        %v6795 = vsel %vm6519, %v6794, %v6793
        %6797 = vst.msk [vmem:[%s1245] sm:$0xff] %vm1294, %v6795
        %v6798 = vlaneseq
        %v6799 = vshrl.u32 %v6798, 7
        %v6800 = vsub.s32 0, %v6799
        %v6801 = vrot.slane %v6766, %v6800
        %v6802 = vlaneseq
        %v6803 = vshrl.u32 %v6802, 7
        %v6804 = vsub.s32 0, %v6803
        %v6805 = vrot.slane %v6767, %v6804
        %v6806 = vlaneseq
        %v6807 = vshrl.u32 %v6806, 7
        %v6808 = vsub.s32 0, %v6807
        %v6809 = vrot.slane %v6768, %v6808
        %v6810 = vlaneseq
        %v6811 = vshrl.u32 %v6810, 7
        %v6812 = vsub.s32 0, %v6811
        %v6813 = vrot.slane %v6769, %v6812
        %v6814 = vlaneseq
        %v6815 = vshrl.u32 %v6814, 7
        %v6816 = vsub.s32 0, %v6815
        %v6817 = vrot.slane %v6770, %v6816
        %v6818 = vlaneseq
        %v6819 = vshrl.u32 %v6818, 7
        %v6820 = vsub.s32 0, %v6819
        %v6821 = vrot.slane %v6771, %v6820
        %v6822 = vlaneseq
        %v6823 = vshrl.u32 %v6822, 7
        %v6824 = vsub.s32 0, %v6823
        %v6825 = vrot.slane %v6772, %v6824
        %v6826 = vlaneseq
        %v6827 = vshrl.u32 %v6826, 7
        %v6828 = vsub.s32 0, %v6827
        %v6829 = vrot.slane %v6773, %v6828
        %v6830 = vadd.f32 %v5889, %v6801
        %v6831 = vadd.f32 %v5890, %v6805
        %v6832 = vadd.f32 %v5891, %v6809
        %v6833 = vadd.f32 %v5892, %v6813
        %v6834 = vadd.f32 %v5893, %v6817
        %v6835 = vadd.f32 %v5894, %v6821
        %v6836 = vadd.f32 %v5895, %v6825
        %v6837 = vadd.f32 %v5896, %v6829
        %v6838 = vld [vmem:[%s51] sm:$0x1]
        %v6839 = vld [vmem:[%s53] sm:$0x1]
        %v6840 = vsel %vm1294, %v6830, 0.0
        %6841 = vadd.xlane.f32.xlu0 %v6840
        %v6842 = vpop.xlane.xlu0 %6841
        %v6843 = vsel %vm1294, %v6831, 0.0
        %6844 = vadd.xlane.f32.xlu0 %v6843
        %v6845 = vpop.xlane.xlu0 %6844
        %v6846 = vsel %vm1294, %v6832, 0.0
        %6847 = vadd.xlane.f32.xlu0 %v6846
        %v6848 = vpop.xlane.xlu0 %6847
        %v6849 = vsel %vm1294, %v6833, 0.0
        %6850 = vadd.xlane.f32.xlu0 %v6849
        %v6851 = vpop.xlane.xlu0 %6850
        %v6852 = vsel %vm1294, %v6834, 0.0
        %6853 = vadd.xlane.f32.xlu0 %v6852
        %v6854 = vpop.xlane.xlu0 %6853
        %v6855 = vsel %vm1294, %v6835, 0.0
        %6856 = vadd.xlane.f32.xlu0 %v6855
        %v6857 = vpop.xlane.xlu0 %6856
        %v6858 = vsel %vm1294, %v6836, 0.0
        %6859 = vadd.xlane.f32.xlu0 %v6858
        %v6860 = vpop.xlane.xlu0 %6859
        %v6861 = vsel %vm1294, %v6837, 0.0
        %6862 = vadd.xlane.f32.xlu0 %v6861
        %v6863 = vpop.xlane.xlu0 %6862
        %v6864 = vmul.f32 %v6842, %v1319
        %v6865 = vmul.f32 %v6845, %v1319
        %v6866 = vmul.f32 %v6848, %v1319
        %v6867 = vmul.f32 %v6851, %v1319
        %v6868 = vmul.f32 %v6854, %v1319
        %v6869 = vmul.f32 %v6857, %v1319
        %v6870 = vmul.f32 %v6860, %v1319
        %v6871 = vmul.f32 %v6863, %v1319
        %v6872 = vsub.f32 %v6830, %v6864
        %v6873 = vsub.f32 %v6831, %v6865
        %v6874 = vsub.f32 %v6832, %v6866
        %v6875 = vsub.f32 %v6833, %v6867
        %v6876 = vsub.f32 %v6834, %v6868
        %v6877 = vsub.f32 %v6835, %v6869
        %v6878 = vsub.f32 %v6836, %v6870
        %v6879 = vsub.f32 %v6837, %v6871
        %v6880 = vmul.f32 %v6872, %v6872
        %v6881 = vmul.f32 %v6873, %v6873
        %v6882 = vmul.f32 %v6874, %v6874
        %v6883 = vmul.f32 %v6875, %v6875
        %v6884 = vmul.f32 %v6876, %v6876
        %v6885 = vmul.f32 %v6877, %v6877
        %v6886 = vmul.f32 %v6878, %v6878
        %v6887 = vmul.f32 %v6879, %v6879
        %v6888 = vsel %vm1294, %v6880, 0.0
        %6889 = vadd.xlane.f32.xlu0 %v6888
        %v6890 = vpop.xlane.xlu0 %6889
        %v6891 = vsel %vm1294, %v6881, 0.0
        %6892 = vadd.xlane.f32.xlu0 %v6891
        %v6893 = vpop.xlane.xlu0 %6892
        %v6894 = vsel %vm1294, %v6882, 0.0
        %6895 = vadd.xlane.f32.xlu0 %v6894
        %v6896 = vpop.xlane.xlu0 %6895
        %v6897 = vsel %vm1294, %v6883, 0.0
        %6898 = vadd.xlane.f32.xlu0 %v6897
        %v6899 = vpop.xlane.xlu0 %6898
        %v6900 = vsel %vm1294, %v6884, 0.0
        %6901 = vadd.xlane.f32.xlu0 %v6900
        %v6902 = vpop.xlane.xlu0 %6901
        %v6903 = vsel %vm1294, %v6885, 0.0
        %6904 = vadd.xlane.f32.xlu0 %v6903
        %v6905 = vpop.xlane.xlu0 %6904
        %v6906 = vsel %vm1294, %v6886, 0.0
        %6907 = vadd.xlane.f32.xlu0 %v6906
        %v6908 = vpop.xlane.xlu0 %6907
        %v6909 = vsel %vm1294, %v6887, 0.0
        %6910 = vadd.xlane.f32.xlu0 %v6909
        %v6911 = vpop.xlane.xlu0 %6910
        %v6912 = vmul.f32 %v6890, %v1319
        %v6913 = vmul.f32 %v6893, %v1319
        %v6914 = vmul.f32 %v6896, %v1319
        %v6915 = vmul.f32 %v6899, %v1319
        %v6916 = vmul.f32 %v6902, %v1319
        %v6917 = vmul.f32 %v6905, %v1319
        %v6918 = vmul.f32 %v6908, %v1319
        %v6919 = vmul.f32 %v6911, %v1319
        %v6920 = vadd.f32 %v6912, 1e-06
        %v6921 = vadd.f32 %v6913, 1e-06
        %v6922 = vadd.f32 %v6914, 1e-06
        %v6923 = vadd.f32 %v6915, 1e-06
        %v6924 = vadd.f32 %v6916, 1e-06
        %v6925 = vadd.f32 %v6917, 1e-06
        %v6926 = vadd.f32 %v6918, 1e-06
        %v6927 = vadd.f32 %v6919, 1e-06
        %v6928 = vrsqrt.pop %v6920
        %v6929 = vrsqrt.pop %v6921
        %v6930 = vrsqrt.pop %v6922
        %v6931 = vrsqrt.pop %v6923
        %v6932 = vrsqrt.pop %v6924
        %v6933 = vrsqrt.pop %v6925
        %v6934 = vrsqrt.pop %v6926
        %v6935 = vrsqrt.pop %v6927
        %v6936 = vmul.f32 %v6872, %v6928
        %v6937 = vmul.f32 %v6873, %v6929
        %v6938 = vmul.f32 %v6874, %v6930
        %v6939 = vmul.f32 %v6875, %v6931
        %v6940 = vmul.f32 %v6876, %v6932
        %v6941 = vmul.f32 %v6877, %v6933
        %v6942 = vmul.f32 %v6878, %v6934
        %v6943 = vmul.f32 %v6879, %v6935
        %v6945 = vlaneseq
        %v6946 = vshrl.u32 %v6945, 7
        %v6947 = vsub.s32 0, %v6946
        %v6948 = vrot.slane %v6838, %v6947
        %v6950 = vmul.f32 %v6936, %v6948
        %v6951 = vmul.f32 %v6937, %v6948
        %v6952 = vmul.f32 %v6938, %v6948
        %v6953 = vmul.f32 %v6939, %v6948
        %v6954 = vmul.f32 %v6940, %v6948
        %v6955 = vmul.f32 %v6941, %v6948
        %v6956 = vmul.f32 %v6942, %v6948
        %v6957 = vmul.f32 %v6943, %v6948
        %v6959 = vlaneseq
        %v6960 = vshrl.u32 %v6959, 7
        %v6961 = vsub.s32 0, %v6960
        %v6962 = vrot.slane %v6839, %v6961
        %v6964 = vadd.f32 %v6950, %v6962
        %v6965 = vadd.f32 %v6951, %v6962
        %v6966 = vadd.f32 %v6952, %v6962
        %v6967 = vadd.f32 %v6953, %v6962
        %v6968 = vadd.f32 %v6954, %v6962
        %v6969 = vadd.f32 %v6955, %v6962
        %v6970 = vadd.f32 %v6956, %v6962
        %v6971 = vadd.f32 %v6957, %v6962
        %v6972 = vpack.c.bf16 %v6965, %v6964
        %v6973 = vpack.c.bf16 %v6967, %v6966
        %v6974 = vpack.c.bf16 %v6969, %v6968
        %v6975 = vpack.c.bf16 %v6971, %v6970
        %v6976 = vld [vmem:[%s55] sm:$0xf]
        %v6977 = vld [vmem:[%s55 + $0x4] sm:$0xf]
        %v6978 = vld [vmem:[%s55 + $0x8] sm:$0xf]
        %v6979 = vld [vmem:[%s55 + $0xc] sm:$0xf]
        %v6980 = vld [vmem:[%s57] sm:$0x1]
        %v6982 = vlaneseq
        %v6983 = vshrl.u32 %v6982, 7
        %v6984 = vsub.s32 0, %v6983
        %v6985 = vrot.slane %v6980, %v6984
        %v6991 = vunpack.c.l.b16 %v6976
        %v6992 = vunpack.c.l.b16 %v6977
        %v6993 = vunpack.c.l.b16 %v6978
        %v6994 = vunpack.c.l.b16 %v6979
        %v6995 = vpack.c.b16 %v6992, %v6991
        %v6996 = vpack.c.b16 %v6994, %v6993
        %v7000 = vsel %vm1294, %v6972, 0
        %v7003 = vsel %vm1294, %v6973, 0
        %v7006 = vsel %vm1294, %v6974, 0
        %v7009 = vsel %vm1294, %v6975, 0
        %7011 = vmatprep.subr.bf16.mxu0 0
        %7012 = vmatpush1.bf16.msra.mxu0 0
        %7013 = vmatprep.subr.bf16.mxu0 0
        %7014 = vmatpush1.bf16.msra.mxu0 0
        %7015 = vmatprep.subr.bf16.mxu0 0
        %7016 = vmatpush1.bf16.msra.mxu0 0
        %7017 = vmatprep.subr.bf16.mxu0 0
        %7018 = vmatpush1.bf16.msra.mxu0 0
        %7019 = vmatprep.subr.bf16.mxu0 0
        %7020 = vmatpush1.bf16.msra.mxu0 0
        %7021 = vmatprep.subr.bf16.mxu0 0
        %7022 = vmatpush1.bf16.msra.mxu0 0
        %7023 = vmatprep.subr.bf16.mxu0 0
        %7024 = vmatpush1.bf16.msra.mxu0 %v6996
        %7025 = vmatprep.subr.bf16.mxu0 0
        %7026 = vmatpush1.bf16.msra.mxu0 %v6995
        %7027 = vmatprep.subr.bf16.mxu0 0
        %7028 = vmatpush2.bf16.msra.mxu0 0
        %7029 = vmatprep.subr.bf16.mxu0 0
        %7030 = vmatpush2.bf16.msra.mxu0 0
        %7031 = vmatprep.subr.bf16.mxu0 0
        %7032 = vmatpush2.bf16.msra.mxu0 0
        %7033 = vmatprep.subr.bf16.mxu0 0
        %7034 = vmatpush2.bf16.msra.mxu0 0
        %7035 = vmatprep.subr.bf16.mxu0 0
        %7036 = vmatpush2.bf16.msra.mxu0 0
        %7037 = vmatprep.subr.bf16.mxu0 0
        %7038 = vmatpush2.bf16.msra.mxu0 0
        %7039 = vmatprep.subr.bf16.mxu0 0
        %7040 = vmatpush2.bf16.msra.mxu0 0
        %7041 = vmatprep.subr.bf16.mxu0 0
        %7042 = vmatpush2.bf16.msra.mxu0 0
        %7043 = vmatprep.mubr.bf16.mxu0 0
        %7044 = vmatmul.mubr.bf16.gmra.mxu0 %v7000
        %v7045 = vpop.f32.mrf.mxu0
        %v7046 = vadd.f32 %v6985, %v7045
        %v7047 = vpop.f32.mrf.mxu0
        %v7048 = vpop.f32.mrf.mxu0
        %v7049 = vadd.f32 %v6985, %v7048
        %v7050 = vpop.f32.mrf.mxu0
        %7051 = vmatprep.mubr.bf16.mxu0 0
        %7052 = vmatmul.mubr.bf16.gmra.mxu0 %v7003
        %v7053 = vpop.f32.mrf.mxu0
        %v7054 = vadd.f32 %v6985, %v7053
        %v7055 = vpop.f32.mrf.mxu0
        %v7056 = vpop.f32.mrf.mxu0
        %v7057 = vadd.f32 %v6985, %v7056
        %v7058 = vpop.f32.mrf.mxu0
        %7059 = vmatprep.mubr.bf16.mxu0 0
        %7060 = vmatmul.mubr.bf16.gmra.mxu0 %v7006
        %v7061 = vpop.f32.mrf.mxu0
        %v7062 = vadd.f32 %v6985, %v7061
        %v7063 = vpop.f32.mrf.mxu0
        %v7064 = vpop.f32.mrf.mxu0
        %v7065 = vadd.f32 %v6985, %v7064
        %v7066 = vpop.f32.mrf.mxu0
        %7067 = vmatprep.mubr.bf16.mxu0 0
        %7068 = vmatmul.mubr.bf16.gmra.mxu0 %v7009
        %v7069 = vpop.f32.mrf.mxu0
        %v7070 = vadd.f32 %v6985, %v7069
        %v7071 = vpop.f32.mrf.mxu0
        %v7072 = vpop.f32.mrf.mxu0
        %v7073 = vadd.f32 %v6985, %v7072
        %v7074 = vpop.f32.mrf.mxu0
        %7075 = vdwg.mxu0
        %v7076 = vmax.f32 %v7046, 0.0
        %v7077 = vmax.f32 %v7049, 0.0
        %v7078 = vmax.f32 %v7054, 0.0
        %v7079 = vmax.f32 %v7057, 0.0
        %v7080 = vmax.f32 %v7062, 0.0
        %v7081 = vmax.f32 %v7065, 0.0
        %v7082 = vmax.f32 %v7070, 0.0
        %v7083 = vmax.f32 %v7073, 0.0
        %v7084 = vpack.c.bf16 %v7077, %v7076
        %v7085 = vpack.c.bf16 %v7079, %v7078
        %v7086 = vpack.c.bf16 %v7081, %v7080
        %v7087 = vpack.c.bf16 %v7083, %v7082
        %v7088 = vld [vmem:[%s59] sm:$0xf]
        %v7089 = vld [vmem:[%s59 + $0x4] sm:$0xf]
        %v7090 = vld [vmem:[%s59 + $0x8] sm:$0xf]
        %v7091 = vld [vmem:[%s59 + $0xc] sm:$0xf]
        %v7092 = vld [vmem:[%s59 + $0x10] sm:$0xf]
        %v7093 = vld [vmem:[%s59 + $0x14] sm:$0xf]
        %v7094 = vld [vmem:[%s59 + $0x18] sm:$0xf]
        %v7095 = vld [vmem:[%s59 + $0x1c] sm:$0xf]
        %v7096 = vld [vmem:[%s61] sm:$0x1]
        %v7098 = vlaneseq
        %v7099 = vshrl.u32 %v7098, 7
        %v7100 = vsub.s32 0, %v7099
        %v7101 = vrot.slane %v7096, %v7100
        %v7111 = vunpack.c.l.b16 %v7088
        %v7112 = vunpack.c.l.b16 %v7089
        %v7113 = vunpack.c.l.b16 %v7090
        %v7114 = vunpack.c.l.b16 %v7091
        %v7115 = vunpack.c.l.b16 %v7092
        %v7116 = vunpack.c.l.b16 %v7093
        %v7117 = vunpack.c.l.b16 %v7094
        %v7118 = vunpack.c.l.b16 %v7095
        %v7119 = vpack.c.b16 %v7112, %v7111
        %v7120 = vpack.c.b16 %v7114, %v7113
        %v7121 = vpack.c.b16 %v7116, %v7115
        %v7122 = vpack.c.b16 %v7118, %v7117
        %v7128 = vsel %vm5657, %v7084, 0
        %v7131 = vsel %vm5657, %v7085, 0
        %v7134 = vsel %vm5657, %v7086, 0
        %v7137 = vsel %vm5657, %v7087, 0
        %7139 = vmatprep.subr.bf16.mxu0 0
        %7140 = vmatpush1.bf16.msra.mxu0 0
        %7141 = vmatprep.subr.bf16.mxu0 0
        %7142 = vmatpush1.bf16.msra.mxu0 0
        %7143 = vmatprep.subr.bf16.mxu0 0
        %7144 = vmatpush1.bf16.msra.mxu0 0
        %7145 = vmatprep.subr.bf16.mxu0 0
        %7146 = vmatpush1.bf16.msra.mxu0 0
        %7147 = vmatprep.subr.bf16.mxu0 0
        %7148 = vmatpush1.bf16.msra.mxu0 %v7122
        %7149 = vmatprep.subr.bf16.mxu0 0
        %7150 = vmatpush1.bf16.msra.mxu0 %v7121
        %7151 = vmatprep.subr.bf16.mxu0 0
        %7152 = vmatpush1.bf16.msra.mxu0 %v7120
        %7153 = vmatprep.subr.bf16.mxu0 0
        %7154 = vmatpush1.bf16.msra.mxu0 %v7119
        %7155 = vmatprep.subr.bf16.mxu0 0
        %7156 = vmatpush2.bf16.msra.mxu0 0
        %7157 = vmatprep.subr.bf16.mxu0 0
        %7158 = vmatpush2.bf16.msra.mxu0 0
        %7159 = vmatprep.subr.bf16.mxu0 0
        %7160 = vmatpush2.bf16.msra.mxu0 0
        %7161 = vmatprep.subr.bf16.mxu0 0
        %7162 = vmatpush2.bf16.msra.mxu0 0
        %7163 = vmatprep.subr.bf16.mxu0 0
        %7164 = vmatpush2.bf16.msra.mxu0 0
        %7165 = vmatprep.subr.bf16.mxu0 0
        %7166 = vmatpush2.bf16.msra.mxu0 0
        %7167 = vmatprep.subr.bf16.mxu0 0
        %7168 = vmatpush2.bf16.msra.mxu0 0
        %7169 = vmatprep.subr.bf16.mxu0 0
        %7170 = vmatpush2.bf16.msra.mxu0 0
        %7171 = vmatprep.mubr.bf16.mxu0 0
        %7172 = vmatmul.mubr.bf16.gmra.mxu0 %v7128
        %v7173 = vpop.f32.mrf.mxu0
        %v7174 = vadd.f32 %v7101, %v7173
        %v7175 = vpop.f32.mrf.mxu0
        %v7176 = vpop.f32.mrf.mxu0
        %v7177 = vadd.f32 %v7101, %v7176
        %v7178 = vpop.f32.mrf.mxu0
        %7179 = vmatprep.mubr.bf16.mxu0 0
        %7180 = vmatmul.mubr.bf16.gmra.mxu0 %v7131
        %v7181 = vpop.f32.mrf.mxu0
        %v7182 = vadd.f32 %v7101, %v7181
        %v7183 = vpop.f32.mrf.mxu0
        %v7184 = vpop.f32.mrf.mxu0
        %v7185 = vadd.f32 %v7101, %v7184
        %v7186 = vpop.f32.mrf.mxu0
        %7187 = vmatprep.mubr.bf16.mxu0 0
        %7188 = vmatmul.mubr.bf16.gmra.mxu0 %v7134
        %v7189 = vpop.f32.mrf.mxu0
        %v7190 = vadd.f32 %v7101, %v7189
        %v7191 = vpop.f32.mrf.mxu0
        %v7192 = vpop.f32.mrf.mxu0
        %v7193 = vadd.f32 %v7101, %v7192
        %v7194 = vpop.f32.mrf.mxu0
        %7195 = vmatprep.mubr.bf16.mxu0 0
        %7196 = vmatmul.mubr.bf16.gmra.mxu0 %v7137
        %v7197 = vpop.f32.mrf.mxu0
        %v7198 = vadd.f32 %v7101, %v7197
        %v7199 = vpop.f32.mrf.mxu0
        %v7200 = vpop.f32.mrf.mxu0
        %v7201 = vadd.f32 %v7101, %v7200
        %v7202 = vpop.f32.mrf.mxu0
        %7203 = vdwg.mxu0
        %v7204 = vadd.f32 %v7174, %v6830
        %v7205 = vadd.f32 %v7177, %v6831
        %v7206 = vadd.f32 %v7182, %v6832
        %v7207 = vadd.f32 %v7185, %v6833
        %v7208 = vadd.f32 %v7190, %v6834
        %v7209 = vadd.f32 %v7193, %v6835
        %v7210 = vadd.f32 %v7198, %v6836
        %v7211 = vadd.f32 %v7201, %v6837
        %v7212 = vsub.f32 1.0, %v5755
        %v7213 = vsub.f32 1.0, %v5756
        %v7214 = vsub.f32 1.0, %v5757
        %v7215 = vsub.f32 1.0, %v5758
        %v7216 = vsub.f32 1.0, %v5759
        %v7217 = vsub.f32 1.0, %v5760
        %v7218 = vsub.f32 1.0, %v5761
        %v7219 = vsub.f32 1.0, %v5762
        %7221 = vset.pattern.permute.xlu0 0
        %7222 = vperm.xlu0 %7221, %v7212
        %v7223 = vpop.permute.xlu0 %7222
        %7226 = vset.pattern.permute.xlu0 0
        %7227 = vperm.xlu0 %7226, %v7213
        %v7228 = vpop.permute.xlu0 %7227
        %7231 = vset.pattern.permute.xlu0 0
        %7232 = vperm.xlu0 %7231, %v7214
        %v7233 = vpop.permute.xlu0 %7232
        %7236 = vset.pattern.permute.xlu0 0
        %7237 = vperm.xlu0 %7236, %v7215
        %v7238 = vpop.permute.xlu0 %7237
        %7241 = vset.pattern.permute.xlu0 0
        %7242 = vperm.xlu0 %7241, %v7216
        %v7243 = vpop.permute.xlu0 %7242
        %7246 = vset.pattern.permute.xlu0 0
        %7247 = vperm.xlu0 %7246, %v7217
        %v7248 = vpop.permute.xlu0 %7247
        %7251 = vset.pattern.permute.xlu0 0
        %7252 = vperm.xlu0 %7251, %v7218
        %v7253 = vpop.permute.xlu0 %7252
        %7256 = vset.pattern.permute.xlu0 0
        %7257 = vperm.xlu0 %7256, %v7219
        %v7258 = vpop.permute.xlu0 %7257
        %v7260 = vmul.f32 %v7204, %v7223
        %v7261 = vmul.f32 %v7205, %v7228
        %v7262 = vmul.f32 %v7206, %v7233
        %v7263 = vmul.f32 %v7207, %v7238
        %v7264 = vmul.f32 %v7208, %v7243
        %v7265 = vmul.f32 %v7209, %v7248
        %v7266 = vmul.f32 %v7210, %v7253
        %v7267 = vmul.f32 %v7211, %v7258
        %7268 = vst.msk [vmem:[%s1240] sm:$0xff] %vm1294, %v7260
        %7269 = vst.msk [vmem:[%s1240 + $0x8] sm:$0xff] %vm1294, %v7261
        %7270 = vst.msk [vmem:[%s1240 + $0x10] sm:$0xff] %vm1294, %v7262
        %7271 = vst.msk [vmem:[%s1240 + $0x18] sm:$0xff] %vm1294, %v7263
        %7272 = vst.msk [vmem:[%s1240 + $0x20] sm:$0xff] %vm1294, %v7264
        %7273 = vst.msk [vmem:[%s1240 + $0x28] sm:$0xff] %vm1294, %v7265
        %7274 = vst.msk [vmem:[%s1240 + $0x30] sm:$0xff] %vm1294, %v7266
        %7275 = vst.msk [vmem:[%s1240 + $0x38] sm:$0xff] %vm1294, %v7267
      $region152: #{new_transformer_encoder_forward.1} parent=143 // pred_fallthru
        _
      %s7276 = smul.u32 8, %s81
      %p7277 = scmp.lt.s32.totalorder %s7276, 7
      %s7278 = scalar_select %p7277, %s7276, 7
      %s7279 = smul.addr %s7278, 8
      %s7280 = scalar_lea.vmem %s63, %s7279
      %p7281 = scmp.lt.s32.totalorder %s81, 0
      %s7282 = scalar_select %p7281, %s81, 0
      %s7283 = smul.addr %s7282, 8
      %s7284 = scalar_lea.vmem %s65, %s7283
      // Predicated region
      $region153: #{new_transformer_encoder_forward.1} parent=143 // pred_check
        %p7285 = pneg %p833
      $region154: #{new_transformer_encoder_forward.1} parent=143 // pred_check_branch
        %7287 = sbr.rel (%p7285) target = $region156
      $region155: #{new_transformer_encoder_forward.1} parent=143 // pred_region
        %s7288 = smul.u32 8, %s81
      $region156: #{new_transformer_encoder_forward.1} parent=143 // pred_fallthru
        _
      // Predicated region
      $region157: #{new_transformer_encoder_forward.1} parent=143 // pred_check
        %p7289 = pneg %p859
      $region158: #{new_transformer_encoder_forward.1} parent=143 // pred_check_branch
        %7291 = sbr.rel (%p7289) target = $region160
      $region159: #{new_transformer_encoder_forward.1} parent=143 // pred_region
        _
      $region160: #{new_transformer_encoder_forward.1} parent=143 // pred_fallthru
        _
      // Predicated region
      $region161: #{new_transformer_encoder_forward.1} parent=143 // pred_check
        %p7292 = pneg %p833
      $region162: #{new_transformer_encoder_forward.1} parent=143 // pred_check_branch
        %7294 = sbr.rel (%p7292) target = $region164
      $region163: #{new_transformer_encoder_forward.1} parent=143 // pred_region
        %s7295 = smul.u32 8, %s81
        %p7296 = scmp.lt.s32.totalorder %s7295, 7
        %s7297 = scalar_select %p7296, %s7295, 7
        %s7298 = smul.addr %s7297, 8
        %s7299 = scalar_lea.vmem %s63, %s7298
      $region164: #{new_transformer_encoder_forward.1} parent=143 // pred_fallthru
        _
      // Predicated region
      $region165: #{new_transformer_encoder_forward.1} parent=143 // pred_check
        %p7300 = pneg %p859
      $region166: #{new_transformer_encoder_forward.1} parent=143 // pred_check_branch
        %7302 = sbr.rel (%p7300) target = $region168
      $region167: #{new_transformer_encoder_forward.1} parent=143 // pred_region
        %p7303 = scmp.lt.s32.totalorder %s81, 0
        %s7304 = scalar_select %p7303, %s81, 0
        %s7305 = smul.addr %s7304, 8
        %s7306 = scalar_lea.vmem %s65, %s7305
      $region168: #{new_transformer_encoder_forward.1} parent=143 // pred_fallthru
        _
    $region144: #{new_transformer_encoder_forward.1} parent=5 // pred_fallthru
      _
    %p7307 = scmp.le.s32.totalorder 2, %s72
    // Predicated region
    $region169: #{new_transformer_encoder_forward.1} parent=5 // pred_check
      %p7308 = pneg %p7307
    $region170: #{new_transformer_encoder_forward.1} parent=5 // pred_check_branch
      %7310 = sbr.rel (%p7308) target = $region172
    $region171: #{new_transformer_encoder_forward.1} parent=5 // pred_region
      %s7311 = ssub.s32 %s72, 2
    $region172: #{new_transformer_encoder_forward.1} parent=5 // pred_fallthru
      _
  $region6: #{new_transformer_encoder_forward.1} parent=0 // loop_footer
    %s76 = sadd.s32 1, %s72
  $region7: #{new_transformer_encoder_forward.1} parent=0 // loop_footer_branch
    %71 = sbr.rel target = $region3
  $region8: #{new_transformer_encoder_forward.1} parent=0 // loop_exit
    _

</llo_original>
